<compile_context>
chip_gen: v7x
topology: tpu7x:2x2x1
jax: 0.10.0
libtpu: 0.0.40
codegen_flags: <defaults>
</compile_context>

<pallas_src>
import functools

import jax
import jax.numpy as jnp
from jax.experimental import pallas as pl
from jax.experimental.pallas import tpu as pltpu

EPS = 1e-5                      # nn.BatchNorm2d default eps
VMEM_LIMIT = 32 * 1024 * 1024   # explicit scoped-VMEM budget


# --------------------------- in-kernel helpers -------------------------------
def _sigmoid(t):
    # exp runs on the EUP; exact form keeps the error well below the MXU tolerance
    # even when the result feeds another K=1152 matmul.
    return 1.0 / (1.0 + jnp.exp(-t))


def _silu(t):
    return t * _sigmoid(t)


# ------------------------------- kernels -------------------------------------
def channel_stats_kernel(x_ref, o_ref):
    """Pass 0: per-channel sum / sum-of-squares over row tiles (single-pass stats)."""
    @pl.when(pl.program_id(0) == 0)
    def _():
        o_ref[...] = jnp.zeros_like(o_ref)

    x = x_ref[...].astype(jnp.float32)                      # (row_tile, C) lane-dense
    s = jnp.sum(x, axis=0, keepdims=True)
    sq = jnp.sum(x * x, axis=0, keepdims=True)
    o_ref[...] += jnp.concatenate([s, sq], axis=0)          # (2, C) resident accumulator


def affine_conv3x3_kernel(x_ref, scale_ref, shift_ref, w_ref,
                          y_ref, st_ref, pad_ref,
                          *, h, w, c_in, c_out, apply_silu):
    """Folded-BN affine (+ optional SiLU) -> 3x3 conv (im2col, one matmul) ->
    per-image partial BN stats of the conv output.  One image per grid step."""
    a = x_ref[...].astype(jnp.float32).reshape(h * w, c_in)
    a = a * scale_ref[...] + shift_ref[...]                 # folded BN affine
    if apply_silu:
        a = _silu(a)

    # Zero only the 1-px halo (4 small edge stores); write the interior exactly once.
    # Done every step so the result is correct under "parallel" (megacore) sharding
    # of the batch grid axis (each core has its own scratch copy).
    pad_ref[0:1, :, :] = jnp.zeros((1, w + 2, c_in), jnp.float32)
    pad_ref[h + 1:h + 2, :, :] = jnp.zeros((1, w + 2, c_in), jnp.float32)
    pad_ref[:, 0:1, :] = jnp.zeros((h + 2, 1, c_in), jnp.float32)
    pad_ref[:, w + 1:w + 2, :] = jnp.zeros((h + 2, 1, c_in), jnp.float32)
    pad_ref[1:h + 1, 1:w + 1, :] = a.reshape(h, w, c_in)

    padded = pad_ref[...]                                   # (h+2, w+2, c_in)

    # im2col: 9 shifted windows concatenated along channels (lane axis, 128-aligned)
    # -> a single MXU matmul with K = 9*c_in.
    cols = [padded[kh:kh + h, kw:kw + w, :].reshape(h * w, c_in)
            for kh in range(3) for kw in range(3)]
    patches = jnp.concatenate(cols, axis=1)                 # (h*w, 9*c_in)
    y = jnp.dot(patches, w_ref[...], preferred_element_type=jnp.float32)

    y_ref[...] = y.reshape(1, h, w, c_out).astype(y_ref.dtype)

    # Single-pass partial stats for this image; reduced over N (tiny) in the wrapper,
    # which keeps the batch grid axis fully "parallel" for megacore.
    s = jnp.sum(y, axis=0, keepdims=True)
    sq = jnp.sum(y * y, axis=0, keepdims=True)
    st_ref[...] = jnp.concatenate([s, sq], axis=0).reshape(1, 2, c_out)


def bn_se_residual_kernel(y_ref, x_ref, scale_ref, shift_ref,
                          wf1_ref, bf1_ref, wf2_ref, bf2_ref, o_ref,
                          *, h, w, c):
    """Folded BN2 affine -> SE (global avg-pool + 2-layer MLP gate) ->
    identity residual add -> SiLU.  One image per grid step."""
    z = y_ref[...].astype(jnp.float32).reshape(h * w, c)
    z = z * scale_ref[...] + shift_ref[...]                 # bn2 affine

    # SE gate (block == whole image, so the avg-pool is a local reduction)
    pooled = jnp.sum(z, axis=0, keepdims=True) * (1.0 / (h * w))          # (1, c)
    g = _silu(jnp.dot(pooled, wf1_ref[...],
                      preferred_element_type=jnp.float32) + bf1_ref[...])  # (1, c//16)
    g = _sigmoid(jnp.dot(g, wf2_ref[...],
                         preferred_element_type=jnp.float32) + bf2_ref[...])  # (1, c)

    # Residual x is re-read here from its own BlockSpec (short live range).
    x = x_ref[...].astype(jnp.float32).reshape(h * w, c)
    out = _silu(z * g + x)
    o_ref[...] = out.reshape(1, h, w, c).astype(o_ref.dtype)


# ------------------------------- wrappers -------------------------------------
def _fold_bn(s, sq, count, gamma, beta):
    """Fold training-mode BN (biased batch stats) into a per-channel affine."""
    mean = s / count
    var = jnp.maximum(sq / count - mean * mean, 0.0)
    scale = gamma * jax.lax.rsqrt(var + EPS)
    shift = beta - mean * scale
    return scale, shift


def _channel_stats(x2d, c, *, row_tile):
    rows = x2d.shape[0]
    assert rows % row_tile == 0, (rows, row_tile)
    return pl.pallas_call(
        channel_stats_kernel,
        grid=(rows // row_tile,),
        in_specs=[pl.BlockSpec((row_tile, c), lambda i: (i, 0))],
        out_specs=pl.BlockSpec((2, c), lambda i: (0, 0)),       # resident accumulator
        out_shape=jax.ShapeDtypeStruct((2, c), jnp.float32),
        compiler_params=pltpu.CompilerParams(
            dimension_semantics=("arbitrary",),
            vmem_limit_bytes=VMEM_LIMIT),
    )(x2d)


def _affine_conv3x3(x, scale, shift, wcol, *, apply_silu):
    n, h, w, c_in = x.shape
    c_out = wcol.shape[1]
    kernel = functools.partial(affine_conv3x3_kernel, h=h, w=w,
                               c_in=c_in, c_out=c_out, apply_silu=apply_silu)
    return pl.pallas_call(
        kernel,
        grid=(n,),
        in_specs=[
            pl.BlockSpec((1, h, w, c_in), lambda i: (i, 0, 0, 0)),
            pl.BlockSpec((1, c_in), lambda i: (0, 0)),
            pl.BlockSpec((1, c_in), lambda i: (0, 0)),
            pl.BlockSpec((9 * c_in, c_out), lambda i: (0, 0)),   # weights resident
        ],
        out_specs=(
            pl.BlockSpec((1, h, w, c_out), lambda i: (i, 0, 0, 0)),
            pl.BlockSpec((1, 2, c_out), lambda i: (i, 0, 0)),
        ),
        out_shape=(
            jax.ShapeDtypeStruct((n, h, w, c_out), jnp.float32),
            jax.ShapeDtypeStruct((n, 2, c_out), jnp.float32),
        ),
        scratch_shapes=[pltpu.VMEM((h + 2, w + 2, c_in), jnp.float32)],
        compiler_params=pltpu.CompilerParams(
            dimension_semantics=("parallel",),                   # megacore over batch
            vmem_limit_bytes=VMEM_LIMIT),
    )(x, scale, shift, wcol)


def _bn_se_residual(y, x, scale, shift, wf1, bf1, wf2, bf2):
    n, h, w, c = y.shape
    c_red = wf1.shape[1]
    kernel = functools.partial(bn_se_residual_kernel, h=h, w=w, c=c)
    return pl.pallas_call(
        kernel,
        grid=(n,),
        in_specs=[
            pl.BlockSpec((1, h, w, c), lambda i: (i, 0, 0, 0)),
            pl.BlockSpec((1, h, w, c), lambda i: (i, 0, 0, 0)),
            pl.BlockSpec((1, c), lambda i: (0, 0)),
            pl.BlockSpec((1, c), lambda i: (0, 0)),
            pl.BlockSpec((c, c_red), lambda i: (0, 0)),
            pl.BlockSpec((1, c_red), lambda i: (0, 0)),
            pl.BlockSpec((c_red, c), lambda i: (0, 0)),
            pl.BlockSpec((1, c), lambda i: (0, 0)),
        ],
        out_specs=pl.BlockSpec((1, h, w, c), lambda i: (i, 0, 0, 0)),
        out_shape=jax.ShapeDtypeStruct((n, h, w, c), x.dtype),
        compiler_params=pltpu.CompilerParams(
            dimension_semantics=("parallel",),
            vmem_limit_bytes=VMEM_LIMIT),
    )(y, x, scale, shift, wf1, bf1, wf2, bf2)


def irblock_forward(x_nhwc, params, *, row_tile=128):
    """IRBlock(in==out, stride=1, downsample=None, use_se=True), training-mode BN."""
    n, h, w, c = x_nhwc.shape
    count = float(n * h * w)

    # HWIO 3x3 weights reshaped once to im2col layout (9*Cin, Cout).
    w1col = params["w1"].reshape(9 * c, c)
    w2col = params["w2"].reshape(9 * c, c)

    # ---- pass 0: global per-channel stats of x (bn0) --------------------------------
    st_x = _channel_stats(x_nhwc.reshape(n * h * w, c), c, row_tile=row_tile)
    scale0, shift0 = _fold_bn(st_x[0:1], st_x[1:2], count, params["g0"], params["b0"])

    # ---- pass 1: bn0 affine + conv1(3x3) + per-image stats of y1 (for bn1) ----------
    y1, p1 = _affine_conv3x3(x_nhwc, scale0, shift0, w1col, apply_silu=False)
    s1 = jnp.sum(p1, axis=0)                                  # tiny (2, C) reduce over N
    scale1, shift1 = _fold_bn(s1[0:1], s1[1:2], count, params["g1"], params["b1"])

    # ---- pass 2: bn1 affine + SiLU + conv2(3x3) + per-image stats of y2 (for bn2) ---
    y2, p2 = _affine_conv3x3(y1, scale1, shift1, w2col, apply_silu=True)
    s2 = jnp.sum(p2, axis=0)
    scale2, shift2 = _fold_bn(s2[0:1], s2[1:2], count, params["g2"], params["b2"])

    # ---- pass 3: bn2 affine + SE + identity residual + SiLU -------------------------
    return _bn_se_residual(y2, x_nhwc, scale2, shift2,
                           params["wf1"], params["bf1"], params["wf2"], params["bf2"])


# ---------------------------- pure-JAX reference ----------------------------
def _bn_train_ref(y, gamma, beta):
    mean = jnp.mean(y, axis=(0, 1, 2), keepdims=True)
    var = jnp.mean(jnp.square(y - mean), axis=(0, 1, 2), keepdims=True)
    return ((y - mean) / jnp.sqrt(var + EPS)) * gamma.reshape(1, 1, 1, -1) \
        + beta.reshape(1, 1, 1, -1)


def irblock_ref(x, p):
    dn = ("NHWC", "HWIO", "NHWC")
    hp = jax.lax.Precision.HIGHEST
    out = _bn_train_ref(x, p["g0"], p["b0"])
    out = jax.lax.conv_general_dilated(out, p["w1"], (1, 1), [(1, 1), (1, 1)],
                                       dimension_numbers=dn, precision=hp)
    out = jax.nn.silu(_bn_train_ref(out, p["g1"], p["b1"]))
    out = jax.lax.conv_general_dilated(out, p["w2"], (1, 1), [(1, 1), (1, 1)],
                                       dimension_numbers=dn, precision=hp)
    out = _bn_train_ref(out, p["g2"], p["b2"])
    # SE block
    pooled = jnp.mean(out, axis=(1, 2))                        # (N, C)
    g = jax.nn.silu(pooled @ p["wf1"] + p["bf1"])              # (N, C//16)
    g = jax.nn.sigmoid(g @ p["wf2"] + p["bf2"])                # (N, C)
    out = out * g[:, None, None, :]
    return jax.nn.silu(out + x)                                # identity residual


# --------------------------------- driver -----------------------------------
if __name__ == "__main__":
    # layer2-style IRBlock: in = out = 128 channels (lane-dense), 16x16 spatial, batch 2.
    N, C, H, W = 2, 128, 16, 16
    C_RED = C // 16    # SEBlock reduction=16

    key = jax.random.PRNGKey(0)
    ks = jax.random.split(key, 13)

    x_nchw = jax.random.normal(ks[0], (N, C, H, W), jnp.float32)
    x_nhwc = jnp.transpose(x_nchw, (0, 2, 3, 1))               # NCHW -> NHWC

    params = {
        # bn0 / bn1 / bn2 affine params, stored as (1, C)
        "g0": 1.0 + 0.1 * jax.random.normal(ks[1], (1, C)),
        "b0": 0.1 * jax.random.normal(ks[2], (1, C)),
        # conv1.weight (C, C, 3, 3) in torch, stored here as HWIO (3, 3, C, C)
        "w1": 0.05 * jax.random.normal(ks[3], (3, 3, C, C)),
        "g1": 1.0 + 0.1 * jax.random.normal(ks[4], (1, C)),
        "b1": 0.1 * jax.random.normal(ks[5], (1, C)),
        # conv2.weight, HWIO
        "w2": 0.05 * jax.random.normal(ks[6], (3, 3, C, C)),
        "g2": 1.0 + 0.1 * jax.random.normal(ks[7], (1, C)),
        "b2": 0.1 * jax.random.normal(ks[8], (1, C)),
        # SE fc weights stored pre-transposed: (in, out); biases as (1, out)
        "wf1": (1.0 / jnp.sqrt(C)) * jax.random.normal(ks[9], (C, C_RED)),
        "bf1": 0.1 * jax.random.normal(ks[10], (1, C_RED)),
        "wf2": (1.0 / jnp.sqrt(C_RED)) * jax.random.normal(ks[11], (C_RED, C)),
        "bf2": 0.1 * jax.random.normal(ks[12], (1, C)),
    }

    out = jax.block_until_ready(jax.jit(irblock_forward)(x_nhwc, params))
    ref = jax.block_until_ready(jax.jit(irblock_ref)(x_nhwc, params))

    assert out.shape == (N, H, W, C), out.shape
    max_err = float(jnp.max(jnp.abs(out - ref)))
    # Tolerance covers MXU-vs-XLA accumulation-order differences in the fp32 matmuls.
    assert jnp.allclose(out, ref, atol=5e-3, rtol=5e-3), max_err
    print("KERNEL_OK")
</pallas_src>

<mosaic_0001>
module attributes {stable_mosaic.version = 11 : i64} {
  func.func @affine_conv3x3_kernel(%arg0: i32, %arg1: memref<1x16x16x128xf32, #tpu.memory_space<vmem>>, %arg2: memref<1x128xf32, #tpu.memory_space<vmem>>, %arg3: memref<1x128xf32, #tpu.memory_space<vmem>>, %arg4: memref<1152x128xf32, #tpu.memory_space<vmem>>, %arg5: memref<1x16x16x128xf32, #tpu.memory_space<vmem>>, %arg6: memref<1x2x128xf32, #tpu.memory_space<vmem>>, %arg7: memref<18x18x128xf32, #tpu.memory_space<vmem>>) attributes {dimension_semantics = [#tpu.dimension_semantics<parallel>], iteration_bounds = array<i64: 2>, scalar_prefetch = 0 : i64, scratch_operands = 1 : i64, tpu.core_type = #tpu.core_type<tc>, window_params = [{transform_indices = @transform_0, window_bounds = array<i64: 1, 16, 16, 128>}, {pipeline_mode = #tpu.pipeline_mode<synchronous>, transform_indices = @transform_1, window_bounds = array<i64: 1, 128>}, {pipeline_mode = #tpu.pipeline_mode<synchronous>, transform_indices = @transform_2, window_bounds = array<i64: 1, 128>}, {pipeline_mode = #tpu.pipeline_mode<synchronous>, transform_indices = @transform_3, window_bounds = array<i64: 1152, 128>}, {transform_indices = @transform_4, window_bounds = array<i64: 1, 16, 16, 128>}, {transform_indices = @transform_5, window_bounds = array<i64: 1, 2, 128>}]} {
    %c0 = arith.constant 0 : index
    %c0_0 = arith.constant 0 : index
    %c0_1 = arith.constant 0 : index
    %c0_2 = arith.constant 0 : index
    %0 = vector.load %arg1[%c0, %c0_0, %c0_1, %c0_2] : memref<1x16x16x128xf32, #tpu.memory_space<vmem>>, vector<1x16x16x128xf32>
    %1 = vector.shape_cast %0 : vector<1x16x16x128xf32> to vector<256x128xf32>
    %c0_3 = arith.constant 0 : index
    %c0_4 = arith.constant 0 : index
    %2 = vector.load %arg2[%c0_3, %c0_4] : memref<1x128xf32, #tpu.memory_space<vmem>>, vector<1x128xf32>
    %3 = vector.broadcast %2 : vector<1x128xf32> to vector<256x128xf32>
    %4 = arith.mulf %1, %3 : vector<256x128xf32>
    %c0_5 = arith.constant 0 : index
    %c0_6 = arith.constant 0 : index
    %5 = vector.load %arg3[%c0_5, %c0_6] : memref<1x128xf32, #tpu.memory_space<vmem>>, vector<1x128xf32>
    %6 = vector.broadcast %5 : vector<1x128xf32> to vector<256x128xf32>
    %7 = arith.addf %4, %6 : vector<256x128xf32>
    %cst = arith.constant 0.000000e+00 : f32
    %8 = vector.broadcast %cst : f32 to vector<1x18x128xf32>
    %c0_7 = arith.constant 0 : index
    %c0_8 = arith.constant 0 : index
    %c0_9 = arith.constant 0 : index
    %9 = vector.load %arg7[%c0_7, %c0_8, %c0_9] : memref<18x18x128xf32, #tpu.memory_space<vmem>>, vector<1x18x128xf32>
    tpu.vector_store %arg7[%c0_7, %c0_8, %c0_9], %8 {strides = array<i32>} : memref<18x18x128xf32, #tpu.memory_space<vmem>>, vector<1x18x128xf32>,
    %cst_10 = arith.constant 0.000000e+00 : f32
    %10 = vector.broadcast %cst_10 : f32 to vector<1x18x128xf32>
    %c17 = arith.constant 17 : index
    %c0_11 = arith.constant 0 : index
    %c0_12 = arith.constant 0 : index
    %11 = vector.load %arg7[%c17, %c0_11, %c0_12] : memref<18x18x128xf32, #tpu.memory_space<vmem>>, vector<1x18x128xf32>
    tpu.vector_store %arg7[%c17, %c0_11, %c0_12], %10 {strides = array<i32>} : memref<18x18x128xf32, #tpu.memory_space<vmem>>, vector<1x18x128xf32>,
    %cst_13 = arith.constant 0.000000e+00 : f32
    %12 = vector.broadcast %cst_13 : f32 to vector<18x1x128xf32>
    %c0_14 = arith.constant 0 : index
    %c0_15 = arith.constant 0 : index
    %c0_16 = arith.constant 0 : index
    %13 = vector.load %arg7[%c0_14, %c0_15, %c0_16] : memref<18x18x128xf32, #tpu.memory_space<vmem>>, vector<18x1x128xf32>
    tpu.vector_store %arg7[%c0_14, %c0_15, %c0_16], %12 {strides = array<i32>} : memref<18x18x128xf32, #tpu.memory_space<vmem>>, vector<18x1x128xf32>,
    %cst_17 = arith.constant 0.000000e+00 : f32
    %14 = vector.broadcast %cst_17 : f32 to vector<18x1x128xf32>
    %c0_18 = arith.constant 0 : index
    %c17_19 = arith.constant 17 : index
    %c0_20 = arith.constant 0 : index
    %15 = vector.load %arg7[%c0_18, %c17_19, %c0_20] : memref<18x18x128xf32, #tpu.memory_space<vmem>>, vector<18x1x128xf32>
    tpu.vector_store %arg7[%c0_18, %c17_19, %c0_20], %14 {strides = array<i32>} : memref<18x18x128xf32, #tpu.memory_space<vmem>>, vector<18x1x128xf32>,
    %16 = vector.shape_cast %7 : vector<256x128xf32> to vector<16x16x128xf32>
    %c1 = arith.constant 1 : index
    %c1_21 = arith.constant 1 : index
    %c0_22 = arith.constant 0 : index
    %17 = vector.load %arg7[%c1, %c1_21, %c0_22] : memref<18x18x128xf32, #tpu.memory_space<vmem>>, vector<16x16x128xf32>
    tpu.vector_store %arg7[%c1, %c1_21, %c0_22], %16 {strides = array<i32>} : memref<18x18x128xf32, #tpu.memory_space<vmem>>, vector<16x16x128xf32>,
    %c0_23 = arith.constant 0 : index
    %c0_24 = arith.constant 0 : index
    %c0_25 = arith.constant 0 : index
    %18 = vector.load %arg7[%c0_23, %c0_24, %c0_25] : memref<18x18x128xf32, #tpu.memory_space<vmem>>, vector<18x18x128xf32>
    %19 = vector.extract_strided_slice %18 {offsets = [0, 0, 0], sizes = [16, 16, 128], strides = [1, 1, 1]} : vector<18x18x128xf32> to vector<16x16x128xf32>
    %20 = vector.shape_cast %19 : vector<16x16x128xf32> to vector<256x128xf32>
    %21 = vector.extract_strided_slice %18 {offsets = [0, 1, 0], sizes = [16, 16, 128], strides = [1, 1, 1]} : vector<18x18x128xf32> to vector<16x16x128xf32>
    %22 = vector.shape_cast %21 : vector<16x16x128xf32> to vector<256x128xf32>
    %23 = vector.extract_strided_slice %18 {offsets = [0, 2, 0], sizes = [16, 16, 128], strides = [1, 1, 1]} : vector<18x18x128xf32> to vector<16x16x128xf32>
    %24 = vector.shape_cast %23 : vector<16x16x128xf32> to vector<256x128xf32>
    %25 = vector.extract_strided_slice %18 {offsets = [1, 0, 0], sizes = [16, 16, 128], strides = [1, 1, 1]} : vector<18x18x128xf32> to vector<16x16x128xf32>
    %26 = vector.shape_cast %25 : vector<16x16x128xf32> to vector<256x128xf32>
    %27 = vector.extract_strided_slice %18 {offsets = [1, 1, 0], sizes = [16, 16, 128], strides = [1, 1, 1]} : vector<18x18x128xf32> to vector<16x16x128xf32>
    %28 = vector.shape_cast %27 : vector<16x16x128xf32> to vector<256x128xf32>
    %29 = vector.extract_strided_slice %18 {offsets = [1, 2, 0], sizes = [16, 16, 128], strides = [1, 1, 1]} : vector<18x18x128xf32> to vector<16x16x128xf32>
    %30 = vector.shape_cast %29 : vector<16x16x128xf32> to vector<256x128xf32>
    %31 = vector.extract_strided_slice %18 {offsets = [2, 0, 0], sizes = [16, 16, 128], strides = [1, 1, 1]} : vector<18x18x128xf32> to vector<16x16x128xf32>
    %32 = vector.shape_cast %31 : vector<16x16x128xf32> to vector<256x128xf32>
    %33 = vector.extract_strided_slice %18 {offsets = [2, 1, 0], sizes = [16, 16, 128], strides = [1, 1, 1]} : vector<18x18x128xf32> to vector<16x16x128xf32>
    %34 = vector.shape_cast %33 : vector<16x16x128xf32> to vector<256x128xf32>
    %35 = vector.extract_strided_slice %18 {offsets = [2, 2, 0], sizes = [16, 16, 128], strides = [1, 1, 1]} : vector<18x18x128xf32> to vector<16x16x128xf32>
    %36 = vector.shape_cast %35 : vector<16x16x128xf32> to vector<256x128xf32>
    %37 = tpu.concatenate %20, %22, %24, %26, %28, %30, %32, %34, %36 in 1 : vector<256x128xf32>, vector<256x128xf32>, vector<256x128xf32>, vector<256x128xf32>, vector<256x128xf32>, vector<256x128xf32>, vector<256x128xf32>, vector<256x128xf32>, vector<256x128xf32> -> vector<256x1152xf32>
    %c0_26 = arith.constant 0 : index
    %c0_27 = arith.constant 0 : index
    %38 = vector.load %arg4[%c0_26, %c0_27] : memref<1152x128xf32, #tpu.memory_space<vmem>>, vector<1152x128xf32>
    %cst_28 = arith.constant dense<0.000000e+00> : vector<256x128xf32>
    %39 = tpu.matmul %37, %38, %cst_28 {dimension_numbers = #tpu.dot_dimension_numbers<[1], [0], [0], [1], [0, 0, 1, 1], [], []>} : vector<256x1152xf32>, vector<1152x128xf32>, vector<256x128xf32> -> vector<256x128xf32>
    %40 = vector.shape_cast %39 : vector<256x128xf32> to vector<1x16x16x128xf32>
    %c0_29 = arith.constant 0 : index
    %c0_30 = arith.constant 0 : index
    %c0_31 = arith.constant 0 : index
    %c0_32 = arith.constant 0 : index
    %41 = vector.load %arg5[%c0_29, %c0_30, %c0_31, %c0_32] : memref<1x16x16x128xf32, #tpu.memory_space<vmem>>, vector<1x16x16x128xf32>
    tpu.vector_store %arg5[%c0_29, %c0_30, %c0_31, %c0_32], %40 {strides = array<i32>} : memref<1x16x16x128xf32, #tpu.memory_space<vmem>>, vector<1x16x16x128xf32>,
    %cst_33 = arith.constant dense<0.000000e+00> : vector<128xf32>
    %42 = vector.multi_reduction <add>, %39, %cst_33 [0] : vector<256x128xf32> to vector<128xf32>
    %43 = vector.shape_cast %42 : vector<128xf32> to vector<1x128xf32>
    %44 = arith.mulf %39, %39 : vector<256x128xf32>
    %cst_34 = arith.constant dense<0.000000e+00> : vector<128xf32>
    %45 = vector.multi_reduction <add>, %44, %cst_34 [0] : vector<256x128xf32> to vector<128xf32>
    %46 = vector.shape_cast %45 : vector<128xf32> to vector<1x128xf32>
    %47 = tpu.concatenate %43, %46 in 0 : vector<1x128xf32>, vector<1x128xf32> -> vector<2x128xf32>
    %48 = vector.shape_cast %47 : vector<2x128xf32> to vector<1x2x128xf32>
    %c0_35 = arith.constant 0 : index
    %c0_36 = arith.constant 0 : index
    %c0_37 = arith.constant 0 : index
    %49 = vector.load %arg6[%c0_35, %c0_36, %c0_37] : memref<1x2x128xf32, #tpu.memory_space<vmem>>, vector<1x2x128xf32>
    tpu.vector_store %arg6[%c0_35, %c0_36, %c0_37], %48 {strides = array<i32>} : memref<1x2x128xf32, #tpu.memory_space<vmem>>, vector<1x2x128xf32>,
    return
  }
  func.func @transform_0(%arg0: i32) -> (i32, i32, i32, i32) {
    %c0_i32 = arith.constant 0 : i32
    %c0_i32_0 = arith.constant 0 : i32
    %c0_i32_1 = arith.constant 0 : i32
    %c0_i32_2 = arith.constant 0 : i32
    return %arg0, %c0_i32, %c0_i32_0, %c0_i32_1 : i32, i32, i32, i32
  }
  func.func @transform_1(%arg0: i32) -> (i32, i32) {
    %c0_i32 = arith.constant 0 : i32
    %c0_i32_0 = arith.constant 0 : i32
    %c0_i32_1 = arith.constant 0 : i32
    return %c0_i32, %c0_i32_0 : i32, i32
  }
  func.func @transform_2(%arg0: i32) -> (i32, i32) {
    %c0_i32 = arith.constant 0 : i32
    %c0_i32_0 = arith.constant 0 : i32
    %c0_i32_1 = arith.constant 0 : i32
    return %c0_i32, %c0_i32_0 : i32, i32
  }
  func.func @transform_3(%arg0: i32) -> (i32, i32) {
    %c0_i32 = arith.constant 0 : i32
    %c0_i32_0 = arith.constant 0 : i32
    %c0_i32_1 = arith.constant 0 : i32
    return %c0_i32, %c0_i32_0 : i32, i32
  }
  func.func @transform_4(%arg0: i32) -> (i32, i32, i32, i32) {
    %c0_i32 = arith.constant 0 : i32
    %c0_i32_0 = arith.constant 0 : i32
    %c0_i32_1 = arith.constant 0 : i32
    %c0_i32_2 = arith.constant 0 : i32
    return %arg0, %c0_i32, %c0_i32_0, %c0_i32_1 : i32, i32, i32, i32
  }
  func.func @transform_5(%arg0: i32) -> (i32, i32, i32) {
    %c0_i32 = arith.constant 0 : i32
    %c0_i32_0 = arith.constant 0 : i32
    %c0_i32_1 = arith.constant 0 : i32
    return %arg0, %c0_i32, %c0_i32_0 : i32, i32, i32
  }
}

module attributes {stable_mosaic.version = 11 : i64} {
  func.func @channel_stats_kernel(%arg0: i32, %arg1: memref<128x128xf32, #tpu.memory_space<vmem>>, %arg2: memref<2x128xf32, #tpu.memory_space<vmem>>) attributes {dimension_semantics = [#tpu.dimension_semantics<arbitrary>], iteration_bounds = array<i64: 4>, scalar_prefetch = 0 : i64, scratch_operands = 0 : i64, tpu.core_type = #tpu.core_type<tc>, window_params = [{transform_indices = @transform_0, window_bounds = array<i64: 128, 128>}, {pipeline_mode = #tpu.pipeline_mode<synchronous>, transform_indices = @transform_1, window_bounds = array<i64: 2, 128>}]} {
    %c0_i32 = arith.constant 0 : i32
    %0 = arith.cmpi eq, %arg0, %c0_i32 : i32
    %1 = arith.extui %0 : i1 to i32
    %c0_i32_0 = arith.constant 0 : i32
    %2 = arith.cmpi ne, %1, %c0_i32_0 : i32
    scf.if %2 {
      %cst_7 = arith.constant 0.000000e+00 : f32
      %13 = vector.broadcast %cst_7 : f32 to vector<2x128xf32>
      %c0_8 = arith.constant 0 : index
      %c0_9 = arith.constant 0 : index
      %14 = vector.load %arg2[%c0_8, %c0_9] : memref<2x128xf32, #tpu.memory_space<vmem>>, vector<2x128xf32>
      tpu.vector_store %arg2[%c0_8, %c0_9], %13 {strides = array<i32>} : memref<2x128xf32, #tpu.memory_space<vmem>>, vector<2x128xf32>,
    } else {
    }
    %c0 = arith.constant 0 : index
    %c0_1 = arith.constant 0 : index
    %3 = vector.load %arg1[%c0, %c0_1] : memref<128x128xf32, #tpu.memory_space<vmem>>, vector<128x128xf32>
    %cst = arith.constant dense<0.000000e+00> : vector<128xf32>
    %4 = vector.multi_reduction <add>, %3, %cst [0] : vector<128x128xf32> to vector<128xf32>
    %5 = vector.shape_cast %4 : vector<128xf32> to vector<1x128xf32>
    %6 = arith.mulf %3, %3 : vector<128x128xf32>
    %cst_2 = arith.constant dense<0.000000e+00> : vector<128xf32>
    %7 = vector.multi_reduction <add>, %6, %cst_2 [0] : vector<128x128xf32> to vector<128xf32>
    %8 = vector.shape_cast %7 : vector<128xf32> to vector<1x128xf32>
    %c0_3 = arith.constant 0 : index
    %c0_4 = arith.constant 0 : index
    %9 = vector.load %arg2[%c0_3, %c0_4] : memref<2x128xf32, #tpu.memory_space<vmem>>, vector<2x128xf32>
    %10 = tpu.concatenate %5, %8 in 0 : vector<1x128xf32>, vector<1x128xf32> -> vector<2x128xf32>
    %11 = arith.addf %9, %10 : vector<2x128xf32>
    %c0_5 = arith.constant 0 : index
    %c0_6 = arith.constant 0 : index
    %12 = vector.load %arg2[%c0_5, %c0_6] : memref<2x128xf32, #tpu.memory_space<vmem>>, vector<2x128xf32>
    tpu.vector_store %arg2[%c0_5, %c0_6], %11 {strides = array<i32>} : memref<2x128xf32, #tpu.memory_space<vmem>>, vector<2x128xf32>,
    return
  }
  func.func @transform_0(%arg0: i32) -> (i32, i32) {
    %c0_i32 = arith.constant 0 : i32
    %c0_i32_0 = arith.constant 0 : i32
    return %arg0, %c0_i32 : i32, i32
  }
  func.func @transform_1(%arg0: i32) -> (i32, i32) {
    %c0_i32 = arith.constant 0 : i32
    %c0_i32_0 = arith.constant 0 : i32
    %c0_i32_1 = arith.constant 0 : i32
    return %c0_i32, %c0_i32_0 : i32, i32
  }
}

module attributes {stable_mosaic.version = 11 : i64} {
  func.func @affine_conv3x3_kernel(%arg0: i32, %arg1: memref<1x16x16x128xf32, #tpu.memory_space<vmem>>, %arg2: memref<1x128xf32, #tpu.memory_space<vmem>>, %arg3: memref<1x128xf32, #tpu.memory_space<vmem>>, %arg4: memref<1152x128xf32, #tpu.memory_space<vmem>>, %arg5: memref<1x16x16x128xf32, #tpu.memory_space<vmem>>, %arg6: memref<1x2x128xf32, #tpu.memory_space<vmem>>, %arg7: memref<18x18x128xf32, #tpu.memory_space<vmem>>) attributes {dimension_semantics = [#tpu.dimension_semantics<parallel>], iteration_bounds = array<i64: 2>, scalar_prefetch = 0 : i64, scratch_operands = 1 : i64, tpu.core_type = #tpu.core_type<tc>, window_params = [{transform_indices = @transform_0, window_bounds = array<i64: 1, 16, 16, 128>}, {pipeline_mode = #tpu.pipeline_mode<synchronous>, transform_indices = @transform_1, window_bounds = array<i64: 1, 128>}, {pipeline_mode = #tpu.pipeline_mode<synchronous>, transform_indices = @transform_2, window_bounds = array<i64: 1, 128>}, {pipeline_mode = #tpu.pipeline_mode<synchronous>, transform_indices = @transform_3, window_bounds = array<i64: 1152, 128>}, {transform_indices = @transform_4, window_bounds = array<i64: 1, 16, 16, 128>}, {transform_indices = @transform_5, window_bounds = array<i64: 1, 2, 128>}]} {
    %c0 = arith.constant 0 : index
    %c0_0 = arith.constant 0 : index
    %c0_1 = arith.constant 0 : index
    %c0_2 = arith.constant 0 : index
    %0 = vector.load %arg1[%c0, %c0_0, %c0_1, %c0_2] : memref<1x16x16x128xf32, #tpu.memory_space<vmem>>, vector<1x16x16x128xf32>
    %1 = vector.shape_cast %0 : vector<1x16x16x128xf32> to vector<256x128xf32>
    %c0_3 = arith.constant 0 : index
    %c0_4 = arith.constant 0 : index
    %2 = vector.load %arg2[%c0_3, %c0_4] : memref<1x128xf32, #tpu.memory_space<vmem>>, vector<1x128xf32>
    %3 = vector.broadcast %2 : vector<1x128xf32> to vector<256x128xf32>
    %4 = arith.mulf %1, %3 : vector<256x128xf32>
    %c0_5 = arith.constant 0 : index
    %c0_6 = arith.constant 0 : index
    %5 = vector.load %arg3[%c0_5, %c0_6] : memref<1x128xf32, #tpu.memory_space<vmem>>, vector<1x128xf32>
    %6 = vector.broadcast %5 : vector<1x128xf32> to vector<256x128xf32>
    %7 = arith.addf %4, %6 : vector<256x128xf32>
    %cst = arith.constant 0.000000e+00 : f32
    %8 = vector.broadcast %cst : f32 to vector<256x128xf32>
    %9 = arith.subf %8, %7 : vector<256x128xf32>
    %10 = math.exp %9 : vector<256x128xf32>
    %cst_7 = arith.constant 1.000000e+00 : f32
    %11 = vector.broadcast %cst_7 : f32 to vector<256x128xf32>
    %12 = arith.addf %11, %10 : vector<256x128xf32>
    %cst_8 = arith.constant 1.000000e+00 : f32
    %13 = vector.broadcast %cst_8 : f32 to vector<256x128xf32>
    %14 = arith.divf %13, %12 : vector<256x128xf32>
    %15 = arith.mulf %7, %14 : vector<256x128xf32>
    %cst_9 = arith.constant 0.000000e+00 : f32
    %16 = vector.broadcast %cst_9 : f32 to vector<1x18x128xf32>
    %c0_10 = arith.constant 0 : index
    %c0_11 = arith.constant 0 : index
    %c0_12 = arith.constant 0 : index
    %17 = vector.load %arg7[%c0_10, %c0_11, %c0_12] : memref<18x18x128xf32, #tpu.memory_space<vmem>>, vector<1x18x128xf32>
    tpu.vector_store %arg7[%c0_10, %c0_11, %c0_12], %16 {strides = array<i32>} : memref<18x18x128xf32, #tpu.memory_space<vmem>>, vector<1x18x128xf32>,
    %cst_13 = arith.constant 0.000000e+00 : f32
    %18 = vector.broadcast %cst_13 : f32 to vector<1x18x128xf32>
    %c17 = arith.constant 17 : index
    %c0_14 = arith.constant 0 : index
    %c0_15 = arith.constant 0 : index
    %19 = vector.load %arg7[%c17, %c0_14, %c0_15] : memref<18x18x128xf32, #tpu.memory_space<vmem>>, vector<1x18x128xf32>
    tpu.vector_store %arg7[%c17, %c0_14, %c0_15], %18 {strides = array<i32>} : memref<18x18x128xf32, #tpu.memory_space<vmem>>, vector<1x18x128xf32>,
    %cst_16 = arith.constant 0.000000e+00 : f32
    %20 = vector.broadcast %cst_16 : f32 to vector<18x1x128xf32>
    %c0_17 = arith.constant 0 : index
    %c0_18 = arith.constant 0 : index
    %c0_19 = arith.constant 0 : index
    %21 = vector.load %arg7[%c0_17, %c0_18, %c0_19] : memref<18x18x128xf32, #tpu.memory_space<vmem>>, vector<18x1x128xf32>
    tpu.vector_store %arg7[%c0_17, %c0_18, %c0_19], %20 {strides = array<i32>} : memref<18x18x128xf32, #tpu.memory_space<vmem>>, vector<18x1x128xf32>,
    %cst_20 = arith.constant 0.000000e+00 : f32
    %22 = vector.broadcast %cst_20 : f32 to vector<18x1x128xf32>
    %c0_21 = arith.constant 0 : index
    %c17_22 = arith.constant 17 : index
    %c0_23 = arith.constant 0 : index
    %23 = vector.load %arg7[%c0_21, %c17_22, %c0_23] : memref<18x18x128xf32, #tpu.memory_space<vmem>>, vector<18x1x128xf32>
    tpu.vector_store %arg7[%c0_21, %c17_22, %c0_23], %22 {strides = array<i32>} : memref<18x18x128xf32, #tpu.memory_space<vmem>>, vector<18x1x128xf32>,
    %24 = vector.shape_cast %15 : vector<256x128xf32> to vector<16x16x128xf32>
    %c1 = arith.constant 1 : index
    %c1_24 = arith.constant 1 : index
    %c0_25 = arith.constant 0 : index
    %25 = vector.load %arg7[%c1, %c1_24, %c0_25] : memref<18x18x128xf32, #tpu.memory_space<vmem>>, vector<16x16x128xf32>
    tpu.vector_store %arg7[%c1, %c1_24, %c0_25], %24 {strides = array<i32>} : memref<18x18x128xf32, #tpu.memory_space<vmem>>, vector<16x16x128xf32>,
    %c0_26 = arith.constant 0 : index
    %c0_27 = arith.constant 0 : index
    %c0_28 = arith.constant 0 : index
    %26 = vector.load %arg7[%c0_26, %c0_27, %c0_28] : memref<18x18x128xf32, #tpu.memory_space<vmem>>, vector<18x18x128xf32>
    %27 = vector.extract_strided_slice %26 {offsets = [0, 0, 0], sizes = [16, 16, 128], strides = [1, 1, 1]} : vector<18x18x128xf32> to vector<16x16x128xf32>
    %28 = vector.shape_cast %27 : vector<16x16x128xf32> to vector<256x128xf32>
    %29 = vector.extract_strided_slice %26 {offsets = [0, 1, 0], sizes = [16, 16, 128], strides = [1, 1, 1]} : vector<18x18x128xf32> to vector<16x16x128xf32>
    %30 = vector.shape_cast %29 : vector<16x16x128xf32> to vector<256x128xf32>
    %31 = vector.extract_strided_slice %26 {offsets = [0, 2, 0], sizes = [16, 16, 128], strides = [1, 1, 1]} : vector<18x18x128xf32> to vector<16x16x128xf32>
    %32 = vector.shape_cast %31 : vector<16x16x128xf32> to vector<256x128xf32>
    %33 = vector.extract_strided_slice %26 {offsets = [1, 0, 0], sizes = [16, 16, 128], strides = [1, 1, 1]} : vector<18x18x128xf32> to vector<16x16x128xf32>
    %34 = vector.shape_cast %33 : vector<16x16x128xf32> to vector<256x128xf32>
    %35 = vector.extract_strided_slice %26 {offsets = [1, 1, 0], sizes = [16, 16, 128], strides = [1, 1, 1]} : vector<18x18x128xf32> to vector<16x16x128xf32>
    %36 = vector.shape_cast %35 : vector<16x16x128xf32> to vector<256x128xf32>
    %37 = vector.extract_strided_slice %26 {offsets = [1, 2, 0], sizes = [16, 16, 128], strides = [1, 1, 1]} : vector<18x18x128xf32> to vector<16x16x128xf32>
    %38 = vector.shape_cast %37 : vector<16x16x128xf32> to vector<256x128xf32>
    %39 = vector.extract_strided_slice %26 {offsets = [2, 0, 0], sizes = [16, 16, 128], strides = [1, 1, 1]} : vector<18x18x128xf32> to vector<16x16x128xf32>
    %40 = vector.shape_cast %39 : vector<16x16x128xf32> to vector<256x128xf32>
    %41 = vector.extract_strided_slice %26 {offsets = [2, 1, 0], sizes = [16, 16, 128], strides = [1, 1, 1]} : vector<18x18x128xf32> to vector<16x16x128xf32>
    %42 = vector.shape_cast %41 : vector<16x16x128xf32> to vector<256x128xf32>
    %43 = vector.extract_strided_slice %26 {offsets = [2, 2, 0], sizes = [16, 16, 128], strides = [1, 1, 1]} : vector<18x18x128xf32> to vector<16x16x128xf32>
    %44 = vector.shape_cast %43 : vector<16x16x128xf32> to vector<256x128xf32>
    %45 = tpu.concatenate %28, %30, %32, %34, %36, %38, %40, %42, %44 in 1 : vector<256x128xf32>, vector<256x128xf32>, vector<256x128xf32>, vector<256x128xf32>, vector<256x128xf32>, vector<256x128xf32>, vector<256x128xf32>, vector<256x128xf32>, vector<256x128xf32> -> vector<256x1152xf32>
    %c0_29 = arith.constant 0 : index
    %c0_30 = arith.constant 0 : index
    %46 = vector.load %arg4[%c0_29, %c0_30] : memref<1152x128xf32, #tpu.memory_space<vmem>>, vector<1152x128xf32>
    %cst_31 = arith.constant dense<0.000000e+00> : vector<256x128xf32>
    %47 = tpu.matmul %45, %46, %cst_31 {dimension_numbers = #tpu.dot_dimension_numbers<[1], [0], [0], [1], [0, 0, 1, 1], [], []>} : vector<256x1152xf32>, vector<1152x128xf32>, vector<256x128xf32> -> vector<256x128xf32>
    %48 = vector.shape_cast %47 : vector<256x128xf32> to vector<1x16x16x128xf32>
    %c0_32 = arith.constant 0 : index
    %c0_33 = arith.constant 0 : index
    %c0_34 = arith.constant 0 : index
    %c0_35 = arith.constant 0 : index
    %49 = vector.load %arg5[%c0_32, %c0_33, %c0_34, %c0_35] : memref<1x16x16x128xf32, #tpu.memory_space<vmem>>, vector<1x16x16x128xf32>
    tpu.vector_store %arg5[%c0_32, %c0_33, %c0_34, %c0_35], %48 {strides = array<i32>} : memref<1x16x16x128xf32, #tpu.memory_space<vmem>>, vector<1x16x16x128xf32>,
    %cst_36 = arith.constant dense<0.000000e+00> : vector<128xf32>
    %50 = vector.multi_reduction <add>, %47, %cst_36 [0] : vector<256x128xf32> to vector<128xf32>
    %51 = vector.shape_cast %50 : vector<128xf32> to vector<1x128xf32>
    %52 = arith.mulf %47, %47 : vector<256x128xf32>
    %cst_37 = arith.constant dense<0.000000e+00> : vector<128xf32>
    %53 = vector.multi_reduction <add>, %52, %cst_37 [0] : vector<256x128xf32> to vector<128xf32>
    %54 = vector.shape_cast %53 : vector<128xf32> to vector<1x128xf32>
    %55 = tpu.concatenate %51, %54 in 0 : vector<1x128xf32>, vector<1x128xf32> -> vector<2x128xf32>
    %56 = vector.shape_cast %55 : vector<2x128xf32> to vector<1x2x128xf32>
    %c0_38 = arith.constant 0 : index
    %c0_39 = arith.constant 0 : index
    %c0_40 = arith.constant 0 : index
    %57 = vector.load %arg6[%c0_38, %c0_39, %c0_40] : memref<1x2x128xf32, #tpu.memory_space<vmem>>, vector<1x2x128xf32>
    tpu.vector_store %arg6[%c0_38, %c0_39, %c0_40], %56 {strides = array<i32>} : memref<1x2x128xf32, #tpu.memory_space<vmem>>, vector<1x2x128xf32>,
    return
  }
  func.func @transform_0(%arg0: i32) -> (i32, i32, i32, i32) {
    %c0_i32 = arith.constant 0 : i32
    %c0_i32_0 = arith.constant 0 : i32
    %c0_i32_1 = arith.constant 0 : i32
    %c0_i32_2 = arith.constant 0 : i32
    return %arg0, %c0_i32, %c0_i32_0, %c0_i32_1 : i32, i32, i32, i32
  }
  func.func @transform_1(%arg0: i32) -> (i32, i32) {
    %c0_i32 = arith.constant 0 : i32
    %c0_i32_0 = arith.constant 0 : i32
    %c0_i32_1 = arith.constant 0 : i32
    return %c0_i32, %c0_i32_0 : i32, i32
  }
  func.func @transform_2(%arg0: i32) -> (i32, i32) {
    %c0_i32 = arith.constant 0 : i32
    %c0_i32_0 = arith.constant 0 : i32
    %c0_i32_1 = arith.constant 0 : i32
    return %c0_i32, %c0_i32_0 : i32, i32
  }
  func.func @transform_3(%arg0: i32) -> (i32, i32) {
    %c0_i32 = arith.constant 0 : i32
    %c0_i32_0 = arith.constant 0 : i32
    %c0_i32_1 = arith.constant 0 : i32
    return %c0_i32, %c0_i32_0 : i32, i32
  }
  func.func @transform_4(%arg0: i32) -> (i32, i32, i32, i32) {
    %c0_i32 = arith.constant 0 : i32
    %c0_i32_0 = arith.constant 0 : i32
    %c0_i32_1 = arith.constant 0 : i32
    %c0_i32_2 = arith.constant 0 : i32
    return %arg0, %c0_i32, %c0_i32_0, %c0_i32_1 : i32, i32, i32, i32
  }
  func.func @transform_5(%arg0: i32) -> (i32, i32, i32) {
    %c0_i32 = arith.constant 0 : i32
    %c0_i32_0 = arith.constant 0 : i32
    %c0_i32_1 = arith.constant 0 : i32
    return %arg0, %c0_i32, %c0_i32_0 : i32, i32, i32
  }
}

module attributes {stable_mosaic.version = 11 : i64} {
  func.func @bn_se_residual_kernel(%arg0: i32, %arg1: memref<1x16x16x128xf32, #tpu.memory_space<vmem>>, %arg2: memref<1x16x16x128xf32, #tpu.memory_space<vmem>>, %arg3: memref<1x128xf32, #tpu.memory_space<vmem>>, %arg4: memref<1x128xf32, #tpu.memory_space<vmem>>, %arg5: memref<128x8xf32, #tpu.memory_space<vmem>>, %arg6: memref<1x8xf32, #tpu.memory_space<vmem>>, %arg7: memref<8x128xf32, #tpu.memory_space<vmem>>, %arg8: memref<1x128xf32, #tpu.memory_space<vmem>>, %arg9: memref<1x16x16x128xf32, #tpu.memory_space<vmem>>) attributes {dimension_semantics = [#tpu.dimension_semantics<parallel>], iteration_bounds = array<i64: 2>, scalar_prefetch = 0 : i64, scratch_operands = 0 : i64, tpu.core_type = #tpu.core_type<tc>, window_params = [{transform_indices = @transform_0, window_bounds = array<i64: 1, 16, 16, 128>}, {transform_indices = @transform_1, window_bounds = array<i64: 1, 16, 16, 128>}, {pipeline_mode = #tpu.pipeline_mode<synchronous>, transform_indices = @transform_2, window_bounds = array<i64: 1, 128>}, {pipeline_mode = #tpu.pipeline_mode<synchronous>, transform_indices = @transform_3, window_bounds = array<i64: 1, 128>}, {pipeline_mode = #tpu.pipeline_mode<synchronous>, transform_indices = @transform_4, window_bounds = array<i64: 128, 8>}, {pipeline_mode = #tpu.pipeline_mode<synchronous>, transform_indices = @transform_5, window_bounds = array<i64: 1, 8>}, {pipeline_mode = #tpu.pipeline_mode<synchronous>, transform_indices = @transform_6, window_bounds = array<i64: 8, 128>}, {pipeline_mode = #tpu.pipeline_mode<synchronous>, transform_indices = @transform_7, window_bounds = array<i64: 1, 128>}, {transform_indices = @transform_8, window_bounds = array<i64: 1, 16, 16, 128>}]} {
    %c0 = arith.constant 0 : index
    %c0_0 = arith.constant 0 : index
    %c0_1 = arith.constant 0 : index
    %c0_2 = arith.constant 0 : index
    %0 = vector.load %arg1[%c0, %c0_0, %c0_1, %c0_2] : memref<1x16x16x128xf32, #tpu.memory_space<vmem>>, vector<1x16x16x128xf32>
    %1 = vector.shape_cast %0 : vector<1x16x16x128xf32> to vector<256x128xf32>
    %c0_3 = arith.constant 0 : index
    %c0_4 = arith.constant 0 : index
    %2 = vector.load %arg3[%c0_3, %c0_4] : memref<1x128xf32, #tpu.memory_space<vmem>>, vector<1x128xf32>
    %3 = vector.broadcast %2 : vector<1x128xf32> to vector<256x128xf32>
    %4 = arith.mulf %1, %3 : vector<256x128xf32>
    %c0_5 = arith.constant 0 : index
    %c0_6 = arith.constant 0 : index
    %5 = vector.load %arg4[%c0_5, %c0_6] : memref<1x128xf32, #tpu.memory_space<vmem>>, vector<1x128xf32>
    %6 = vector.broadcast %5 : vector<1x128xf32> to vector<256x128xf32>
    %7 = arith.addf %4, %6 : vector<256x128xf32>
    %cst = arith.constant dense<0.000000e+00> : vector<128xf32>
    %8 = vector.multi_reduction <add>, %7, %cst [0] : vector<256x128xf32> to vector<128xf32>
    %9 = vector.shape_cast %8 : vector<128xf32> to vector<1x128xf32>
    %cst_7 = arith.constant 3.906250e-03 : f32
    %10 = vector.broadcast %cst_7 : f32 to vector<1x128xf32>
    %11 = arith.mulf %9, %10 : vector<1x128xf32>
    %c0_8 = arith.constant 0 : index
    %c0_9 = arith.constant 0 : index
    %12 = vector.load %arg5[%c0_8, %c0_9] : memref<128x8xf32, #tpu.memory_space<vmem>>, vector<128x8xf32>
    %cst_10 = arith.constant dense<0.000000e+00> : vector<1x8xf32>
    %13 = tpu.matmul %11, %12, %cst_10 {dimension_numbers = #tpu.dot_dimension_numbers<[1], [0], [0], [1], [0, 0, 1, 1], [], []>} : vector<1x128xf32>, vector<128x8xf32>, vector<1x8xf32> -> vector<1x8xf32>
    %c0_11 = arith.constant 0 : index
    %c0_12 = arith.constant 0 : index
    %14 = vector.load %arg6[%c0_11, %c0_12] : memref<1x8xf32, #tpu.memory_space<vmem>>, vector<1x8xf32>
    %15 = arith.addf %13, %14 : vector<1x8xf32>
    %cst_13 = arith.constant 0.000000e+00 : f32
    %16 = vector.broadcast %cst_13 : f32 to vector<1x8xf32>
    %17 = arith.subf %16, %15 : vector<1x8xf32>
    %18 = math.exp %17 : vector<1x8xf32>
    %cst_14 = arith.constant 1.000000e+00 : f32
    %19 = vector.broadcast %cst_14 : f32 to vector<1x8xf32>
    %20 = arith.addf %19, %18 : vector<1x8xf32>
    %cst_15 = arith.constant 1.000000e+00 : f32
    %21 = vector.broadcast %cst_15 : f32 to vector<1x8xf32>
    %22 = arith.divf %21, %20 : vector<1x8xf32>
    %23 = arith.mulf %15, %22 : vector<1x8xf32>
    %c0_16 = arith.constant 0 : index
    %c0_17 = arith.constant 0 : index
    %24 = vector.load %arg7[%c0_16, %c0_17] : memref<8x128xf32, #tpu.memory_space<vmem>>, vector<8x128xf32>
    %cst_18 = arith.constant dense<0.000000e+00> : vector<1x128xf32>
    %25 = tpu.matmul %23, %24, %cst_18 {dimension_numbers = #tpu.dot_dimension_numbers<[1], [0], [0], [1], [0, 0, 1, 1], [], []>} : vector<1x8xf32>, vector<8x128xf32>, vector<1x128xf32> -> vector<1x128xf32>
    %c0_19 = arith.constant 0 : index
    %c0_20 = arith.constant 0 : index
    %26 = vector.load %arg8[%c0_19, %c0_20] : memref<1x128xf32, #tpu.memory_space<vmem>>, vector<1x128xf32>
    %27 = arith.addf %25, %26 : vector<1x128xf32>
    %cst_21 = arith.constant 0.000000e+00 : f32
    %28 = vector.broadcast %cst_21 : f32 to vector<1x128xf32>
    %29 = arith.subf %28, %27 : vector<1x128xf32>
    %30 = math.exp %29 : vector<1x128xf32>
    %cst_22 = arith.constant 1.000000e+00 : f32
    %31 = vector.broadcast %cst_22 : f32 to vector<1x128xf32>
    %32 = arith.addf %31, %30 : vector<1x128xf32>
    %cst_23 = arith.constant 1.000000e+00 : f32
    %33 = vector.broadcast %cst_23 : f32 to vector<1x128xf32>
    %34 = arith.divf %33, %32 : vector<1x128xf32>
    %c0_24 = arith.constant 0 : index
    %c0_25 = arith.constant 0 : index
    %c0_26 = arith.constant 0 : index
    %c0_27 = arith.constant 0 : index
    %35 = vector.load %arg2[%c0_24, %c0_25, %c0_26, %c0_27] : memref<1x16x16x128xf32, #tpu.memory_space<vmem>>, vector<1x16x16x128xf32>
    %36 = vector.shape_cast %35 : vector<1x16x16x128xf32> to vector<256x128xf32>
    %37 = vector.broadcast %34 : vector<1x128xf32> to vector<256x128xf32>
    %38 = arith.mulf %7, %37 : vector<256x128xf32>
    %39 = arith.addf %38, %36 : vector<256x128xf32>
    %cst_28 = arith.constant 0.000000e+00 : f32
    %40 = vector.broadcast %cst_28 : f32 to vector<256x128xf32>
    %41 = arith.subf %40, %39 : vector<256x128xf32>
    %42 = math.exp %41 : vector<256x128xf32>
    %cst_29 = arith.constant 1.000000e+00 : f32
    %43 = vector.broadcast %cst_29 : f32 to vector<256x128xf32>
    %44 = arith.addf %43, %42 : vector<256x128xf32>
    %cst_30 = arith.constant 1.000000e+00 : f32
    %45 = vector.broadcast %cst_30 : f32 to vector<256x128xf32>
    %46 = arith.divf %45, %44 : vector<256x128xf32>
    %47 = arith.mulf %39, %46 : vector<256x128xf32>
    %48 = vector.shape_cast %47 : vector<256x128xf32> to vector<1x16x16x128xf32>
    %c0_31 = arith.constant 0 : index
    %c0_32 = arith.constant 0 : index
    %c0_33 = arith.constant 0 : index
    %c0_34 = arith.constant 0 : index
    %49 = vector.load %arg9[%c0_31, %c0_32, %c0_33, %c0_34] : memref<1x16x16x128xf32, #tpu.memory_space<vmem>>, vector<1x16x16x128xf32>
    tpu.vector_store %arg9[%c0_31, %c0_32, %c0_33, %c0_34], %48 {strides = array<i32>} : memref<1x16x16x128xf32, #tpu.memory_space<vmem>>, vector<1x16x16x128xf32>,
    return
  }
  func.func @transform_0(%arg0: i32) -> (i32, i32, i32, i32) {
    %c0_i32 = arith.constant 0 : i32
    %c0_i32_0 = arith.constant 0 : i32
    %c0_i32_1 = arith.constant 0 : i32
    %c0_i32_2 = arith.constant 0 : i32
    return %arg0, %c0_i32, %c0_i32_0, %c0_i32_1 : i32, i32, i32, i32
  }
  func.func @transform_1(%arg0: i32) -> (i32, i32, i32, i32) {
    %c0_i32 = arith.constant 0 : i32
    %c0_i32_0 = arith.constant 0 : i32
    %c0_i32_1 = arith.constant 0 : i32
    %c0_i32_2 = arith.constant 0 : i32
    return %arg0, %c0_i32, %c0_i32_0, %c0_i32_1 : i32, i32, i32, i32
  }
  func.func @transform_2(%arg0: i32) -> (i32, i32) {
    %c0_i32 = arith.constant 0 : i32
    %c0_i32_0 = arith.constant 0 : i32
    %c0_i32_1 = arith.constant 0 : i32
    return %c0_i32, %c0_i32_0 : i32, i32
  }
  func.func @transform_3(%arg0: i32) -> (i32, i32) {
    %c0_i32 = arith.constant 0 : i32
    %c0_i32_0 = arith.constant 0 : i32
    %c0_i32_1 = arith.constant 0 : i32
    return %c0_i32, %c0_i32_0 : i32, i32
  }
  func.func @transform_4(%arg0: i32) -> (i32, i32) {
    %c0_i32 = arith.constant 0 : i32
    %c0_i32_0 = arith.constant 0 : i32
    %c0_i32_1 = arith.constant 0 : i32
    return %c0_i32, %c0_i32_0 : i32, i32
  }
  func.func @transform_5(%arg0: i32) -> (i32, i32) {
    %c0_i32 = arith.constant 0 : i32
    %c0_i32_0 = arith.constant 0 : i32
    %c0_i32_1 = arith.constant 0 : i32
    return %c0_i32, %c0_i32_0 : i32, i32
  }
  func.func @transform_6(%arg0: i32) -> (i32, i32) {
    %c0_i32 = arith.constant 0 : i32
    %c0_i32_0 = arith.constant 0 : i32
    %c0_i32_1 = arith.constant 0 : i32
    return %c0_i32, %c0_i32_0 : i32, i32
  }
  func.func @transform_7(%arg0: i32) -> (i32, i32) {
    %c0_i32 = arith.constant 0 : i32
    %c0_i32_0 = arith.constant 0 : i32
    %c0_i32_1 = arith.constant 0 : i32
    return %c0_i32, %c0_i32_0 : i32, i32
  }
  func.func @transform_8(%arg0: i32) -> (i32, i32, i32, i32) {
    %c0_i32 = arith.constant 0 : i32
    %c0_i32_0 = arith.constant 0 : i32
    %c0_i32_1 = arith.constant 0 : i32
    %c0_i32_2 = arith.constant 0 : i32
    return %arg0, %c0_i32, %c0_i32_0, %c0_i32_1 : i32, i32, i32, i32
  }
}

</mosaic_0001>

<llo_original>
// kernel: irblock_forward.4
$region0: #{irblock_forward.4}
  #allocation0 [shape = 'u32[]', space=smem, size = 0x4, offset = 0x4, fixed_abs, tag = 'smem constant byte address 0x4 - core index']
  #allocation1 [shape = 'u32[144,128]{1,0:T(1,128)}', space=vmem, size = 0x12000, scoped, tag = 'internal scratch']
  %s0 = inlined_call_operand.hbm [shape: f32[512,128], index: 0, kind: input, shape index: {}]
  %s1 = inlined_call_operand.vmem [shape: f32[2,128], index: 1, kind: output, shape index: {}]
  %s2 = sld [smem:[#allocation0]]
  $region45: #{irblock_forward.4} parent=0
    _
  %s4 = ssub.s32 1, %s2
  %s5 = scalar_select 0, %s4, %s2
  $region1: #{irblock_forward.4} parent=0
    #allocation2 [shape = 'u8[131072]{0}', space=vmem, size = 0x20000, scoped, tag = 'input window, operand 0']
    #allocation3 [shape = 's32[2]{0}', space=sflag, size = 0x8, scoped, tag = 'scoped memory for irblock_forward.4']
    %6 = vsyncpa [#allocation3], 0
    %s7 = scalar_lea.sflag [#allocation3], 1
    %8 = vsyncpa %s7, 0
    loop: start=0, step=1, limit=6
    $region2: #{irblock_forward.4} parent=1 // loop_pre_header
      _
    $region3: #{irblock_forward.4} parent=1 // loop_header
      %s10 = sphi 0, %s14
      %p11 = scmp.ge.s32.totalorder %s10, 6
      %s20 = sphi 0, %s22
      %s23 = sphi 0, %s20
      %s24 = sphi 0, %s23
      %s40 = sphi 0, %s24
      %s44 = sphi 0, %s44
      %s46 = sphi 0, %s44
      %s47 = sphi 0, %s46
      %s61 = sphi 0, %s47
    $region4: #{irblock_forward.4} parent=1 // loop_header_branch
      %13 = sbr.rel (%p11) target = $region8
    $region5: #{irblock_forward.4} parent=1 // loop_body
      %s15 = ssub.s32 %s10, 1
      %s16 = ssub.s32 %s10, 2
      %s17 = sadd.s32 %s10, 1
      %s18 = ssub.s32 %s10, %s17
      %p19 = scmp.eq.s32.totalorder %s18, 0
      %s21 = sadd.s32 %s20, 1
      %s22 = scalar_select %p19, %s20, %s21
      %p25 = pneg %p19
      %p26 = scmp.eq.s32.totalorder %s10, 3
      %p27 = por %p25, %p26
      %p28 = scmp.ne.s32.totalorder %s20, %s23
      %p29 = scmp.eq.s32.totalorder %s10, 0
      %p30 = por %p28, %p29
      %p31 = scmp.ne.s32.totalorder %s20, %s23
      %p32 = scmp.eq.s32.totalorder %s15, 3
      %p33 = por %p31, %p32
      %p34 = scmp.ne.s32.totalorder %s23, %s24
      %p35 = scmp.eq.s32.totalorder %s15, 0
      %p36 = por %p34, %p35
      %p37 = scmp.ne.s32.totalorder %s23, %s24
      %p38 = scmp.eq.s32.totalorder %s16, 3
      %p39 = por %p37, %p38
      %p41 = scmp.ne.s32.totalorder %s24, %s40
      %p42 = scmp.eq.s32.totalorder %s16, 0
      %p43 = por %p41, %p42
      %s45 = sadd.s32 %s44, 1
      %p48 = scmp.eq.s32.totalorder %s10, 3
      %p49 = scmp.ne.s32.totalorder %s44, %s46
      %p50 = scmp.eq.s32.totalorder %s10, 0
      %p51 = por %p49, %p50
      %p52 = scmp.ne.s32.totalorder %s44, %s46
      %p53 = scmp.eq.s32.totalorder %s15, 3
      %p54 = por %p52, %p53
      %p55 = scmp.ne.s32.totalorder %s46, %s47
      %p56 = scmp.eq.s32.totalorder %s15, 0
      %p57 = por %p55, %p56
      %p58 = scmp.ne.s32.totalorder %s46, %s47
      %p59 = scmp.eq.s32.totalorder %s16, 3
      %p60 = por %p58, %p59
      %p62 = scmp.ne.s32.totalorder %s47, %s61
      %p63 = scmp.eq.s32.totalorder %s16, 0
      %p64 = por %p62, %p63
      %p65 = scmp.le.s32.totalorder 1, %s10
      %p66 = scmp.lt.s32.totalorder %s10, 5
      %p67 = pnand %p65, %p66
      %p68 = pneg %p67
      // Predicated region
      $region9: #{irblock_forward.4} parent=5 // pred_check
        _
      $region10: #{irblock_forward.4} parent=5 // pred_check_branch
        %70 = sbr.rel (%p67) target = $region12
      $region11: #{irblock_forward.4} parent=5 // pred_region
        %s71 = ssub.s32 %s10, 1
      $region12: #{irblock_forward.4} parent=5 // pred_fallthru
        _
      %p72 = scmp.lt.s32.totalorder %s10, 4
      // Predicated region
      $region13: #{irblock_forward.4} parent=5 // pred_check
        %p73 = pneg %p72
      $region14: #{irblock_forward.4} parent=5 // pred_check_branch
        %75 = sbr.rel (%p73) target = $region16
      $region15: #{irblock_forward.4} parent=5 // pred_region
        // Predicated region
        $region17: #{irblock_forward.4} parent=15 // pred_check
          %p76 = pneg %p30
        $region18: #{irblock_forward.4} parent=15 // pred_check_branch
          %78 = sbr.rel (%p76) target = $region20
        $region19: #{irblock_forward.4} parent=15 // pred_region
          %s79 = sand.u32 %s20, 1
          %s80 = scalar_lea.sflag [#allocation3], %s79
          %s81 = sand.u32 %s20, 1
          %s82 = smul.addr %s81, 128
          %s83 = scalar_lea.vmem [#allocation2], %s82
          %s84 = smul.u32 16, %s10
          %s86 = ssub.s32 2048, 2048
          %87 = vsyncadd %s80, %s86
          %s88 = smul.addr %s84, 128
          %s89 = scalar_lea.hbm %s0, %s88
          %s90 = sshll.u32 %s83, 4
          %s91 = int_to_ptr.vmem [resolvable:$true] %s90
          %96 = dma.hbm_to_vmem [thread:$0]  %s89, 2048, %s91, %s80, 128, 128, 8
        $region20: #{irblock_forward.4} parent=15 // pred_fallthru
          _
      $region16: #{irblock_forward.4} parent=5 // pred_fallthru
        _
      %p97 = scmp.le.s32.totalorder 1, %s10
      %p98 = scmp.lt.s32.totalorder %s10, 5
      %p99 = pnand %p97, %p98
      %p100 = pneg %p99
      // Predicated region
      $region21: #{irblock_forward.4} parent=5 // pred_check
        _
      $region22: #{irblock_forward.4} parent=5 // pred_check_branch
        %102 = sbr.rel (%p99) target = $region24
      $region23: #{irblock_forward.4} parent=5 // pred_region
        %s103 = ssub.s32 %s10, 1
        %s104 = sand.u32 %s23, 1
        %s105 = scalar_lea.sflag [#allocation3], %s104
        %s106 = sand.u32 %s23, 1
        %s107 = smul.addr %s106, 128
        %s108 = scalar_lea.vmem [#allocation2], %s107
        // Predicated region
        $region25: #{irblock_forward.4} parent=23 // pred_check
          %p109 = pneg %p36
        $region26: #{irblock_forward.4} parent=23 // pred_check_branch
          %111 = sbr.rel (%p109) target = $region28
        $region27: #{irblock_forward.4} parent=23 // pred_region
          %112 = dma.done %s105, 2048
        $region28: #{irblock_forward.4} parent=23 // pred_fallthru
          _
        %s113 = sand.u32 %s23, 1
        %s114 = scalar_lea.sflag [#allocation3], %s113
        %s115 = sand.u32 %s23, 1
        %s116 = smul.addr %s115, 128
        %s117 = scalar_lea.vmem [#allocation2], %s116
        %p118 = pneg %p36
        %p119 = pneg %p33
        %p120 = pneg %p57
        %p121 = pneg %p54
        %s122 = smul.u32 16, %s15
        %p123 = scmp.eq.s32.totalorder %s15, 0
        // Predicated region
        $region29: #{irblock_forward.4} parent=23 // pred_check
          %p124 = pneg %p123
        $region30: #{irblock_forward.4} parent=23 // pred_check_branch
          %126 = sbr.rel (%p124) target = $region32
        $region31: #{irblock_forward.4} parent=23 // pred_region
          %127 = vst [vmem:[%s1] sm:$0x3] 0.0
        $region32: #{irblock_forward.4} parent=23 // pred_fallthru
          _
        %v128 = vld [vmem:[%s108] sm:$0xff]
        %v129 = vld [vmem:[%s108 + $0x8] sm:$0xff]
        %v130 = vld [vmem:[%s108 + $0x10] sm:$0xff]
        %v131 = vld [vmem:[%s108 + $0x18] sm:$0xff]
        %v132 = vld [vmem:[%s108 + $0x20] sm:$0xff]
        %v133 = vld [vmem:[%s108 + $0x28] sm:$0xff]
        %v134 = vld [vmem:[%s108 + $0x30] sm:$0xff]
        %v135 = vld [vmem:[%s108 + $0x38] sm:$0xff]
        %v136 = vld [vmem:[%s108 + $0x40] sm:$0xff]
        %v137 = vld [vmem:[%s108 + $0x48] sm:$0xff]
        %v138 = vld [vmem:[%s108 + $0x50] sm:$0xff]
        %v139 = vld [vmem:[%s108 + $0x58] sm:$0xff]
        %v140 = vld [vmem:[%s108 + $0x60] sm:$0xff]
        %v141 = vld [vmem:[%s108 + $0x68] sm:$0xff]
        %v142 = vld [vmem:[%s108 + $0x70] sm:$0xff]
        %v143 = vld [vmem:[%s108 + $0x78] sm:$0xff]
        %v144 = vadd.f32 %v128, %v129
        %v145 = vadd.f32 %v144, %v130
        %v146 = vadd.f32 %v145, %v131
        %v147 = vadd.f32 %v146, %v132
        %v148 = vadd.f32 %v147, %v133
        %v149 = vadd.f32 %v148, %v134
        %v150 = vadd.f32 %v149, %v135
        %v151 = vadd.f32 %v150, %v136
        %v152 = vadd.f32 %v151, %v137
        %v153 = vadd.f32 %v152, %v138
        %v154 = vadd.f32 %v153, %v139
        %v155 = vadd.f32 %v154, %v140
        %v156 = vadd.f32 %v155, %v141
        %v157 = vadd.f32 %v156, %v142
        %v158 = vadd.f32 %v157, %v143
        %v159 = vrot.slane %v158, 4
        %v160 = vadd.f32 %v158, %v159
        %v161 = vrot.slane %v160, 2
        %v162 = vadd.f32 %v160, %v161
        %v163 = vrot.slane %v162, 1
        %v164 = vadd.f32 %v162, %v163
        %v165 = vmul.f32 %v128, %v128
        %v166 = vmul.f32 %v129, %v129
        %v167 = vmul.f32 %v130, %v130
        %v168 = vmul.f32 %v131, %v131
        %v169 = vmul.f32 %v132, %v132
        %v170 = vmul.f32 %v133, %v133
        %v171 = vmul.f32 %v134, %v134
        %v172 = vmul.f32 %v135, %v135
        %v173 = vmul.f32 %v136, %v136
        %v174 = vmul.f32 %v137, %v137
        %v175 = vmul.f32 %v138, %v138
        %v176 = vmul.f32 %v139, %v139
        %v177 = vmul.f32 %v140, %v140
        %v178 = vmul.f32 %v141, %v141
        %v179 = vmul.f32 %v142, %v142
        %v180 = vmul.f32 %v143, %v143
        %v181 = vadd.f32 %v165, %v166
        %v182 = vadd.f32 %v181, %v167
        %v183 = vadd.f32 %v182, %v168
        %v184 = vadd.f32 %v183, %v169
        %v185 = vadd.f32 %v184, %v170
        %v186 = vadd.f32 %v185, %v171
        %v187 = vadd.f32 %v186, %v172
        %v188 = vadd.f32 %v187, %v173
        %v189 = vadd.f32 %v188, %v174
        %v190 = vadd.f32 %v189, %v175
        %v191 = vadd.f32 %v190, %v176
        %v192 = vadd.f32 %v191, %v177
        %v193 = vadd.f32 %v192, %v178
        %v194 = vadd.f32 %v193, %v179
        %v195 = vadd.f32 %v194, %v180
        %v196 = vrot.slane %v195, 4
        %v197 = vadd.f32 %v195, %v196
        %v198 = vrot.slane %v197, 2
        %v199 = vadd.f32 %v197, %v198
        %v200 = vrot.slane %v199, 1
        %v201 = vadd.f32 %v199, %v200
        %v202 = vld [vmem:[%s1] sm:$0x3]
        %vm203 = vcmask 1040384
        %v204 = vsel %vm203, %v164, %v201
        %v205 = vadd.f32 %v202, %v204
        %206 = vst [vmem:[%s1] sm:$0x3] %v205
        // Predicated region
        $region33: #{irblock_forward.4} parent=23 // pred_check
          %p207 = pneg %p54
        $region34: #{irblock_forward.4} parent=23 // pred_check_branch
          %209 = sbr.rel (%p207) target = $region36
        $region35: #{irblock_forward.4} parent=23 // pred_region
          _
        $region36: #{irblock_forward.4} parent=23 // pred_fallthru
          _
        // Predicated region
        $region37: #{irblock_forward.4} parent=23 // pred_check
          %p210 = pneg %p54
        $region38: #{irblock_forward.4} parent=23 // pred_check_branch
          %212 = sbr.rel (%p210) target = $region40
        $region39: #{irblock_forward.4} parent=23 // pred_region
          _
        $region40: #{irblock_forward.4} parent=23 // pred_fallthru
          _
      $region24: #{irblock_forward.4} parent=5 // pred_fallthru
        _
      %p213 = scmp.le.s32.totalorder 2, %s10
      // Predicated region
      $region41: #{irblock_forward.4} parent=5 // pred_check
        %p214 = pneg %p213
      $region42: #{irblock_forward.4} parent=5 // pred_check_branch
        %216 = sbr.rel (%p214) target = $region44
      $region43: #{irblock_forward.4} parent=5 // pred_region
        %s217 = ssub.s32 %s10, 2
      $region44: #{irblock_forward.4} parent=5 // pred_fallthru
        _
    $region6: #{irblock_forward.4} parent=1 // loop_footer
      %s14 = sadd.s32 1, %s10
    $region7: #{irblock_forward.4} parent=1 // loop_footer_branch
      %9 = sbr.rel target = $region3
    $region8: #{irblock_forward.4} parent=1 // loop_exit
      _
    %218 = vsyncpa [#allocation3], 1
    %s219 = scalar_lea.sflag [#allocation3], 1
    %220 = vsyncpa %s219, 1

// kernel: irblock_forward.7
$region0: #{irblock_forward.7}
  #allocation0 [shape = 'u32[]', space=smem, size = 0x4, offset = 0x4, fixed_abs, tag = 'smem constant byte address 0x4 - core index']
  #allocation1 [shape = 'u32[144,128]{1,0:T(1,128)}', space=vmem, size = 0x12000, scoped, tag = 'internal scratch']
  %s0 = inlined_call_operand.vmem [shape: f32[2,16,16,128], index: 0, kind: input, shape index: {}]
  %s1 = inlined_call_operand.vmem [shape: f32[2,16,16,128], index: 1, kind: input, shape index: {}]
  %s2 = inlined_call_operand.vmem [shape: f32[1,128], index: 2, kind: input, shape index: {}]
  %s3 = inlined_call_operand.vmem [shape: f32[1,128], index: 3, kind: input, shape index: {}]
  %s4 = inlined_call_operand.vmem [shape: f32[128,8], index: 4, kind: input, shape index: {}]
  %s5 = inlined_call_operand.vmem [shape: f32[1,8], index: 5, kind: input, shape index: {}]
  %s6 = inlined_call_operand.vmem [shape: f32[8,128], index: 6, kind: input, shape index: {}]
  %s7 = inlined_call_operand.vmem [shape: f32[1,128], index: 7, kind: input, shape index: {}]
  %s8 = inlined_call_operand.hbm [shape: f32[2,16,16,128], index: 8, kind: output, shape index: {}]
  %s9 = sld [smem:[#allocation0]]
  $region65: #{irblock_forward.7} parent=0
    _
  %s11 = ssub.s32 1, %s9
  %s12 = scalar_select 0, %s11, %s9
  $region1: #{irblock_forward.7} parent=0
    #allocation2 [shape = 'u8[262144]{0}', space=vmem, size = 0x40000, scoped, tag = 'output window, operand 0']
    #allocation3 [shape = 's32[2]{0}', space=sflag, size = 0x8, scoped, tag = 'scoped memory for irblock_forward.7']
    %13 = vsyncpa [#allocation3], 0
    %s14 = scalar_lea.sflag [#allocation3], 1
    %15 = vsyncpa %s14, 0
    loop: start=0, step=1, limit=4
    $region2: #{irblock_forward.7} parent=1 // loop_pre_header
      _
    $region3: #{irblock_forward.7} parent=1 // loop_header
      %s17 = sphi 0, %s21
      %p18 = scmp.ge.s32.totalorder %s17, 4
      %s27 = sphi 0, %s29
      %s30 = sphi 0, %s27
      %s31 = sphi 0, %s30
      %s47 = sphi 0, %s31
      %s53 = sphi 0, %s55
      %s56 = sphi 0, %s53
      %s57 = sphi 0, %s56
      %s73 = sphi 0, %s57
      %s77 = sphi 0, %s77
      %s79 = sphi 0, %s77
      %s80 = sphi 0, %s79
      %s94 = sphi 0, %s80
      %s98 = sphi 0, %s98
      %s100 = sphi 0, %s98
      %s101 = sphi 0, %s100
      %s115 = sphi 0, %s101
      %s119 = sphi 0, %s119
      %s121 = sphi 0, %s119
      %s122 = sphi 0, %s121
      %s136 = sphi 0, %s122
      %s140 = sphi 0, %s140
      %s142 = sphi 0, %s140
      %s143 = sphi 0, %s142
      %s157 = sphi 0, %s143
      %s161 = sphi 0, %s161
      %s163 = sphi 0, %s161
      %s164 = sphi 0, %s163
      %s178 = sphi 0, %s164
      %s182 = sphi 0, %s182
      %s184 = sphi 0, %s182
      %s185 = sphi 0, %s184
      %s199 = sphi 0, %s185
      %s205 = sphi 0, %s207
      %s208 = sphi 0, %s205
      %s209 = sphi 0, %s208
      %s225 = sphi 0, %s209
    $region4: #{irblock_forward.7} parent=1 // loop_header_branch
      %20 = sbr.rel (%p18) target = $region8
    $region5: #{irblock_forward.7} parent=1 // loop_body
      %s22 = ssub.s32 %s17, 1
      %s23 = ssub.s32 %s17, 2
      %s24 = sadd.s32 %s17, 1
      %s25 = ssub.s32 %s17, %s24
      %p26 = scmp.eq.s32.totalorder %s25, 0
      %s28 = sadd.s32 %s27, 1
      %s29 = scalar_select %p26, %s27, %s28
      %p32 = pneg %p26
      %p33 = scmp.eq.s32.totalorder %s17, 1
      %p34 = por %p32, %p33
      %p35 = scmp.ne.s32.totalorder %s27, %s30
      %p36 = scmp.eq.s32.totalorder %s17, 0
      %p37 = por %p35, %p36
      %p38 = scmp.ne.s32.totalorder %s27, %s30
      %p39 = scmp.eq.s32.totalorder %s22, 1
      %p40 = por %p38, %p39
      %p41 = scmp.ne.s32.totalorder %s30, %s31
      %p42 = scmp.eq.s32.totalorder %s22, 0
      %p43 = por %p41, %p42
      %p44 = scmp.ne.s32.totalorder %s30, %s31
      %p45 = scmp.eq.s32.totalorder %s23, 1
      %p46 = por %p44, %p45
      %p48 = scmp.ne.s32.totalorder %s31, %s47
      %p49 = scmp.eq.s32.totalorder %s23, 0
      %p50 = por %p48, %p49
      %s51 = ssub.s32 %s17, %s24
      %p52 = scmp.eq.s32.totalorder %s51, 0
      %s54 = sadd.s32 %s53, 1
      %s55 = scalar_select %p52, %s53, %s54
      %p58 = pneg %p52
      %p59 = scmp.eq.s32.totalorder %s17, 1
      %p60 = por %p58, %p59
      %p61 = scmp.ne.s32.totalorder %s53, %s56
      %p62 = scmp.eq.s32.totalorder %s17, 0
      %p63 = por %p61, %p62
      %p64 = scmp.ne.s32.totalorder %s53, %s56
      %p65 = scmp.eq.s32.totalorder %s22, 1
      %p66 = por %p64, %p65
      %p67 = scmp.ne.s32.totalorder %s56, %s57
      %p68 = scmp.eq.s32.totalorder %s22, 0
      %p69 = por %p67, %p68
      %p70 = scmp.ne.s32.totalorder %s56, %s57
      %p71 = scmp.eq.s32.totalorder %s23, 1
      %p72 = por %p70, %p71
      %p74 = scmp.ne.s32.totalorder %s57, %s73
      %p75 = scmp.eq.s32.totalorder %s23, 0
      %p76 = por %p74, %p75
      %s78 = sadd.s32 %s77, 1
      %p81 = scmp.eq.s32.totalorder %s17, 1
      %p82 = scmp.ne.s32.totalorder %s77, %s79
      %p83 = scmp.eq.s32.totalorder %s17, 0
      %p84 = por %p82, %p83
      %p85 = scmp.ne.s32.totalorder %s77, %s79
      %p86 = scmp.eq.s32.totalorder %s22, 1
      %p87 = por %p85, %p86
      %p88 = scmp.ne.s32.totalorder %s79, %s80
      %p89 = scmp.eq.s32.totalorder %s22, 0
      %p90 = por %p88, %p89
      %p91 = scmp.ne.s32.totalorder %s79, %s80
      %p92 = scmp.eq.s32.totalorder %s23, 1
      %p93 = por %p91, %p92
      %p95 = scmp.ne.s32.totalorder %s80, %s94
      %p96 = scmp.eq.s32.totalorder %s23, 0
      %p97 = por %p95, %p96
      %s99 = sadd.s32 %s98, 1
      %p102 = scmp.eq.s32.totalorder %s17, 1
      %p103 = scmp.ne.s32.totalorder %s98, %s100
      %p104 = scmp.eq.s32.totalorder %s17, 0
      %p105 = por %p103, %p104
      %p106 = scmp.ne.s32.totalorder %s98, %s100
      %p107 = scmp.eq.s32.totalorder %s22, 1
      %p108 = por %p106, %p107
      %p109 = scmp.ne.s32.totalorder %s100, %s101
      %p110 = scmp.eq.s32.totalorder %s22, 0
      %p111 = por %p109, %p110
      %p112 = scmp.ne.s32.totalorder %s100, %s101
      %p113 = scmp.eq.s32.totalorder %s23, 1
      %p114 = por %p112, %p113
      %p116 = scmp.ne.s32.totalorder %s101, %s115
      %p117 = scmp.eq.s32.totalorder %s23, 0
      %p118 = por %p116, %p117
      %s120 = sadd.s32 %s119, 1
      %p123 = scmp.eq.s32.totalorder %s17, 1
      %p124 = scmp.ne.s32.totalorder %s119, %s121
      %p125 = scmp.eq.s32.totalorder %s17, 0
      %p126 = por %p124, %p125
      %p127 = scmp.ne.s32.totalorder %s119, %s121
      %p128 = scmp.eq.s32.totalorder %s22, 1
      %p129 = por %p127, %p128
      %p130 = scmp.ne.s32.totalorder %s121, %s122
      %p131 = scmp.eq.s32.totalorder %s22, 0
      %p132 = por %p130, %p131
      %p133 = scmp.ne.s32.totalorder %s121, %s122
      %p134 = scmp.eq.s32.totalorder %s23, 1
      %p135 = por %p133, %p134
      %p137 = scmp.ne.s32.totalorder %s122, %s136
      %p138 = scmp.eq.s32.totalorder %s23, 0
      %p139 = por %p137, %p138
      %s141 = sadd.s32 %s140, 1
      %p144 = scmp.eq.s32.totalorder %s17, 1
      %p145 = scmp.ne.s32.totalorder %s140, %s142
      %p146 = scmp.eq.s32.totalorder %s17, 0
      %p147 = por %p145, %p146
      %p148 = scmp.ne.s32.totalorder %s140, %s142
      %p149 = scmp.eq.s32.totalorder %s22, 1
      %p150 = por %p148, %p149
      %p151 = scmp.ne.s32.totalorder %s142, %s143
      %p152 = scmp.eq.s32.totalorder %s22, 0
      %p153 = por %p151, %p152
      %p154 = scmp.ne.s32.totalorder %s142, %s143
      %p155 = scmp.eq.s32.totalorder %s23, 1
      %p156 = por %p154, %p155
      %p158 = scmp.ne.s32.totalorder %s143, %s157
      %p159 = scmp.eq.s32.totalorder %s23, 0
      %p160 = por %p158, %p159
      %s162 = sadd.s32 %s161, 1
      %p165 = scmp.eq.s32.totalorder %s17, 1
      %p166 = scmp.ne.s32.totalorder %s161, %s163
      %p167 = scmp.eq.s32.totalorder %s17, 0
      %p168 = por %p166, %p167
      %p169 = scmp.ne.s32.totalorder %s161, %s163
      %p170 = scmp.eq.s32.totalorder %s22, 1
      %p171 = por %p169, %p170
      %p172 = scmp.ne.s32.totalorder %s163, %s164
      %p173 = scmp.eq.s32.totalorder %s22, 0
      %p174 = por %p172, %p173
      %p175 = scmp.ne.s32.totalorder %s163, %s164
      %p176 = scmp.eq.s32.totalorder %s23, 1
      %p177 = por %p175, %p176
      %p179 = scmp.ne.s32.totalorder %s164, %s178
      %p180 = scmp.eq.s32.totalorder %s23, 0
      %p181 = por %p179, %p180
      %s183 = sadd.s32 %s182, 1
      %p186 = scmp.eq.s32.totalorder %s17, 1
      %p187 = scmp.ne.s32.totalorder %s182, %s184
      %p188 = scmp.eq.s32.totalorder %s17, 0
      %p189 = por %p187, %p188
      %p190 = scmp.ne.s32.totalorder %s182, %s184
      %p191 = scmp.eq.s32.totalorder %s22, 1
      %p192 = por %p190, %p191
      %p193 = scmp.ne.s32.totalorder %s184, %s185
      %p194 = scmp.eq.s32.totalorder %s22, 0
      %p195 = por %p193, %p194
      %p196 = scmp.ne.s32.totalorder %s184, %s185
      %p197 = scmp.eq.s32.totalorder %s23, 1
      %p198 = por %p196, %p197
      %p200 = scmp.ne.s32.totalorder %s185, %s199
      %p201 = scmp.eq.s32.totalorder %s23, 0
      %p202 = por %p200, %p201
      %s203 = ssub.s32 %s17, %s24
      %p204 = scmp.eq.s32.totalorder %s203, 0
      %s206 = sadd.s32 %s205, 1
      %s207 = scalar_select %p204, %s205, %s206
      %p210 = pneg %p204
      %p211 = scmp.eq.s32.totalorder %s17, 1
      %p212 = por %p210, %p211
      %p213 = scmp.ne.s32.totalorder %s205, %s208
      %p214 = scmp.eq.s32.totalorder %s17, 0
      %p215 = por %p213, %p214
      %p216 = scmp.ne.s32.totalorder %s205, %s208
      %p217 = scmp.eq.s32.totalorder %s22, 1
      %p218 = por %p216, %p217
      %p219 = scmp.ne.s32.totalorder %s208, %s209
      %p220 = scmp.eq.s32.totalorder %s22, 0
      %p221 = por %p219, %p220
      %p222 = scmp.ne.s32.totalorder %s208, %s209
      %p223 = scmp.eq.s32.totalorder %s23, 1
      %p224 = por %p222, %p223
      %p226 = scmp.ne.s32.totalorder %s209, %s225
      %p227 = scmp.eq.s32.totalorder %s23, 0
      %p228 = por %p226, %p227
      %p229 = scmp.le.s32.totalorder 1, %s17
      %p230 = scmp.lt.s32.totalorder %s17, 3
      %p231 = pnand %p229, %p230
      %p232 = pneg %p231
      // Predicated region
      $region9: #{irblock_forward.7} parent=5 // pred_check
        _
      $region10: #{irblock_forward.7} parent=5 // pred_check_branch
        %234 = sbr.rel (%p231) target = $region12
      $region11: #{irblock_forward.7} parent=5 // pred_region
        %s235 = ssub.s32 %s17, 1
        // Predicated region
        $region13: #{irblock_forward.7} parent=11 // pred_check
          %p236 = pneg %p90
        $region14: #{irblock_forward.7} parent=11 // pred_check_branch
          %238 = sbr.rel (%p236) target = $region16
        $region15: #{irblock_forward.7} parent=11 // pred_region
          _
        $region16: #{irblock_forward.7} parent=11 // pred_fallthru
          _
        // Predicated region
        $region17: #{irblock_forward.7} parent=11 // pred_check
          %p239 = pneg %p111
        $region18: #{irblock_forward.7} parent=11 // pred_check_branch
          %241 = sbr.rel (%p239) target = $region20
        $region19: #{irblock_forward.7} parent=11 // pred_region
          _
        $region20: #{irblock_forward.7} parent=11 // pred_fallthru
          _
        // Predicated region
        $region21: #{irblock_forward.7} parent=11 // pred_check
          %p242 = pneg %p132
        $region22: #{irblock_forward.7} parent=11 // pred_check_branch
          %244 = sbr.rel (%p242) target = $region24
        $region23: #{irblock_forward.7} parent=11 // pred_region
          _
        $region24: #{irblock_forward.7} parent=11 // pred_fallthru
          _
        // Predicated region
        $region25: #{irblock_forward.7} parent=11 // pred_check
          %p245 = pneg %p153
        $region26: #{irblock_forward.7} parent=11 // pred_check_branch
          %247 = sbr.rel (%p245) target = $region28
        $region27: #{irblock_forward.7} parent=11 // pred_region
          _
        $region28: #{irblock_forward.7} parent=11 // pred_fallthru
          _
        // Predicated region
        $region29: #{irblock_forward.7} parent=11 // pred_check
          %p248 = pneg %p174
        $region30: #{irblock_forward.7} parent=11 // pred_check_branch
          %250 = sbr.rel (%p248) target = $region32
        $region31: #{irblock_forward.7} parent=11 // pred_region
          _
        $region32: #{irblock_forward.7} parent=11 // pred_fallthru
          _
        // Predicated region
        $region33: #{irblock_forward.7} parent=11 // pred_check
          %p251 = pneg %p195
        $region34: #{irblock_forward.7} parent=11 // pred_check_branch
          %253 = sbr.rel (%p251) target = $region36
        $region35: #{irblock_forward.7} parent=11 // pred_region
          _
        $region36: #{irblock_forward.7} parent=11 // pred_fallthru
          _
      $region12: #{irblock_forward.7} parent=5 // pred_fallthru
        _
      %p254 = scmp.lt.s32.totalorder %s17, 2
      // Predicated region
      $region37: #{irblock_forward.7} parent=5 // pred_check
        %p255 = pneg %p254
      $region38: #{irblock_forward.7} parent=5 // pred_check_branch
        %257 = sbr.rel (%p255) target = $region40
      $region39: #{irblock_forward.7} parent=5 // pred_region
        // Predicated region
        $region41: #{irblock_forward.7} parent=39 // pred_check
          %p258 = pneg %p37
        $region42: #{irblock_forward.7} parent=39 // pred_check_branch
          %260 = sbr.rel (%p258) target = $region44
        $region43: #{irblock_forward.7} parent=39 // pred_region
          %p261 = scmp.lt.s32.totalorder %s17, 1
          %s262 = scalar_select %p261, %s17, 1
          %s263 = smul.addr %s262, 32
          %s264 = smul.addr %s263, 8
          %s265 = scalar_lea.vmem %s0, %s264
        $region44: #{irblock_forward.7} parent=39 // pred_fallthru
          _
        // Predicated region
        $region45: #{irblock_forward.7} parent=39 // pred_check
          %p266 = pneg %p63
        $region46: #{irblock_forward.7} parent=39 // pred_check_branch
          %268 = sbr.rel (%p266) target = $region48
        $region47: #{irblock_forward.7} parent=39 // pred_region
          %p269 = scmp.lt.s32.totalorder %s17, 1
          %s270 = scalar_select %p269, %s17, 1
          %s271 = smul.addr %s270, 32
          %s272 = smul.addr %s271, 8
          %s273 = scalar_lea.vmem %s1, %s272
        $region48: #{irblock_forward.7} parent=39 // pred_fallthru
          _
      $region40: #{irblock_forward.7} parent=5 // pred_fallthru
        _
      %p274 = scmp.le.s32.totalorder 1, %s17
      %p275 = scmp.lt.s32.totalorder %s17, 3
      %p276 = pnand %p274, %p275
      %p277 = pneg %p276
      // Predicated region
      $region49: #{irblock_forward.7} parent=5 // pred_check
        _
      $region50: #{irblock_forward.7} parent=5 // pred_check_branch
        %279 = sbr.rel (%p276) target = $region52
      $region51: #{irblock_forward.7} parent=5 // pred_region
        %s280 = ssub.s32 %s17, 1
        %p281 = scmp.lt.s32.totalorder %s22, 1
        %s282 = scalar_select %p281, %s22, 1
        %s283 = smul.addr %s282, 32
        %s284 = smul.addr %s283, 8
        %s285 = scalar_lea.vmem %s0, %s284
        %p286 = pneg %p43
        %p287 = pneg %p40
        %p288 = scmp.lt.s32.totalorder %s22, 1
        %s289 = scalar_select %p288, %s22, 1
        %s290 = smul.addr %s289, 32
        %s291 = smul.addr %s290, 8
        %s292 = scalar_lea.vmem %s1, %s291
        %p293 = pneg %p69
        %p294 = pneg %p66
        %p295 = pneg %p90
        %p296 = pneg %p87
        %p297 = pneg %p111
        %p298 = pneg %p108
        %p299 = pneg %p132
        %p300 = pneg %p129
        %p301 = pneg %p153
        %p302 = pneg %p150
        %p303 = pneg %p174
        %p304 = pneg %p171
        %p305 = pneg %p195
        %p306 = pneg %p192
        %p307 = pneg %p221
        %p308 = pneg %p218
        %s309 = sand.u32 %s208, 1
        %s310 = scalar_lea.sflag [#allocation3], %s309
        %s311 = sand.u32 %s208, 1
        %s312 = smul.addr %s311, 256
        %s313 = scalar_lea.vmem [#allocation2], %s312
        %p314 = scmp.lt.s32.totalorder %s22, 1
        %s315 = scalar_select %p314, %s22, 1
        %s316 = smul.addr %s315, 32
        %s317 = smul.addr %s316, 8
        %s318 = scalar_lea.vmem %s0, %s317
        %p319 = scmp.lt.s32.totalorder %s22, 1
        %s320 = scalar_select %p319, %s22, 1
        %s321 = smul.addr %s320, 32
        %s322 = smul.addr %s321, 8
        %s323 = scalar_lea.vmem %s1, %s322
        %v324 = vld [vmem:[%s318] sm:$0xff]
        %v325 = vld [vmem:[%s318 + $0x8] sm:$0xff]
        %v326 = vld [vmem:[%s318 + $0x10] sm:$0xff]
        %v327 = vld [vmem:[%s318 + $0x18] sm:$0xff]
        %v328 = vld [vmem:[%s318 + $0x20] sm:$0xff]
        %v329 = vld [vmem:[%s318 + $0x28] sm:$0xff]
        %v330 = vld [vmem:[%s318 + $0x30] sm:$0xff]
        %v331 = vld [vmem:[%s318 + $0x38] sm:$0xff]
        %v332 = vld [vmem:[%s318 + $0x40] sm:$0xff]
        %v333 = vld [vmem:[%s318 + $0x48] sm:$0xff]
        %v334 = vld [vmem:[%s318 + $0x50] sm:$0xff]
        %v335 = vld [vmem:[%s318 + $0x58] sm:$0xff]
        %v336 = vld [vmem:[%s318 + $0x60] sm:$0xff]
        %v337 = vld [vmem:[%s318 + $0x68] sm:$0xff]
        %v338 = vld [vmem:[%s318 + $0x70] sm:$0xff]
        %v339 = vld [vmem:[%s318 + $0x78] sm:$0xff]
        %v340 = vld [vmem:[%s318 + $0x80] sm:$0xff]
        %v341 = vld [vmem:[%s318 + $0x88] sm:$0xff]
        %v342 = vld [vmem:[%s318 + $0x90] sm:$0xff]
        %v343 = vld [vmem:[%s318 + $0x98] sm:$0xff]
        %v344 = vld [vmem:[%s318 + $0xa0] sm:$0xff]
        %v345 = vld [vmem:[%s318 + $0xa8] sm:$0xff]
        %v346 = vld [vmem:[%s318 + $0xb0] sm:$0xff]
        %v347 = vld [vmem:[%s318 + $0xb8] sm:$0xff]
        %v348 = vld [vmem:[%s318 + $0xc0] sm:$0xff]
        %v349 = vld [vmem:[%s318 + $0xc8] sm:$0xff]
        %v350 = vld [vmem:[%s318 + $0xd0] sm:$0xff]
        %v351 = vld [vmem:[%s318 + $0xd8] sm:$0xff]
        %v352 = vld [vmem:[%s318 + $0xe0] sm:$0xff]
        %v353 = vld [vmem:[%s318 + $0xe8] sm:$0xff]
        %v354 = vld [vmem:[%s318 + $0xf0] sm:$0xff]
        %v355 = vld [vmem:[%s318 + $0xf8] sm:$0xff]
        %v356 = vld [vmem:[%s2] sm:$0x1]
        %v358 = vlaneseq
        %v359 = vshrl.u32 %v358, 7
        %v360 = vsub.s32 0, %v359
        %v361 = vrot.slane %v356, %v360
        %v363 = vmul.f32 %v324, %v361
        %v364 = vmul.f32 %v325, %v361
        %v365 = vmul.f32 %v326, %v361
        %v366 = vmul.f32 %v327, %v361
        %v367 = vmul.f32 %v328, %v361
        %v368 = vmul.f32 %v329, %v361
        %v369 = vmul.f32 %v330, %v361
        %v370 = vmul.f32 %v331, %v361
        %v371 = vmul.f32 %v332, %v361
        %v372 = vmul.f32 %v333, %v361
        %v373 = vmul.f32 %v334, %v361
        %v374 = vmul.f32 %v335, %v361
        %v375 = vmul.f32 %v336, %v361
        %v376 = vmul.f32 %v337, %v361
        %v377 = vmul.f32 %v338, %v361
        %v378 = vmul.f32 %v339, %v361
        %v379 = vmul.f32 %v340, %v361
        %v380 = vmul.f32 %v341, %v361
        %v381 = vmul.f32 %v342, %v361
        %v382 = vmul.f32 %v343, %v361
        %v383 = vmul.f32 %v344, %v361
        %v384 = vmul.f32 %v345, %v361
        %v385 = vmul.f32 %v346, %v361
        %v386 = vmul.f32 %v347, %v361
        %v387 = vmul.f32 %v348, %v361
        %v388 = vmul.f32 %v349, %v361
        %v389 = vmul.f32 %v350, %v361
        %v390 = vmul.f32 %v351, %v361
        %v391 = vmul.f32 %v352, %v361
        %v392 = vmul.f32 %v353, %v361
        %v393 = vmul.f32 %v354, %v361
        %v394 = vmul.f32 %v355, %v361
        %v395 = vld [vmem:[%s3] sm:$0x1]
        %v397 = vlaneseq
        %v398 = vshrl.u32 %v397, 7
        %v399 = vsub.s32 0, %v398
        %v400 = vrot.slane %v395, %v399
        %v402 = vadd.f32 %v363, %v400
        %v403 = vadd.f32 %v364, %v400
        %v404 = vadd.f32 %v365, %v400
        %v405 = vadd.f32 %v366, %v400
        %v406 = vadd.f32 %v367, %v400
        %v407 = vadd.f32 %v368, %v400
        %v408 = vadd.f32 %v369, %v400
        %v409 = vadd.f32 %v370, %v400
        %v410 = vadd.f32 %v371, %v400
        %v411 = vadd.f32 %v372, %v400
        %v412 = vadd.f32 %v373, %v400
        %v413 = vadd.f32 %v374, %v400
        %v414 = vadd.f32 %v375, %v400
        %v415 = vadd.f32 %v376, %v400
        %v416 = vadd.f32 %v377, %v400
        %v417 = vadd.f32 %v378, %v400
        %v418 = vadd.f32 %v379, %v400
        %v419 = vadd.f32 %v380, %v400
        %v420 = vadd.f32 %v381, %v400
        %v421 = vadd.f32 %v382, %v400
        %v422 = vadd.f32 %v383, %v400
        %v423 = vadd.f32 %v384, %v400
        %v424 = vadd.f32 %v385, %v400
        %v425 = vadd.f32 %v386, %v400
        %v426 = vadd.f32 %v387, %v400
        %v427 = vadd.f32 %v388, %v400
        %v428 = vadd.f32 %v389, %v400
        %v429 = vadd.f32 %v390, %v400
        %v430 = vadd.f32 %v391, %v400
        %v431 = vadd.f32 %v392, %v400
        %v432 = vadd.f32 %v393, %v400
        %v433 = vadd.f32 %v394, %v400
        %v434 = vadd.f32 %v402, %v403
        %v435 = vadd.f32 %v434, %v404
        %v436 = vadd.f32 %v435, %v405
        %v437 = vadd.f32 %v436, %v406
        %v438 = vadd.f32 %v437, %v407
        %v439 = vadd.f32 %v438, %v408
        %v440 = vadd.f32 %v439, %v409
        %v441 = vadd.f32 %v440, %v410
        %v442 = vadd.f32 %v441, %v411
        %v443 = vadd.f32 %v442, %v412
        %v444 = vadd.f32 %v443, %v413
        %v445 = vadd.f32 %v444, %v414
        %v446 = vadd.f32 %v445, %v415
        %v447 = vadd.f32 %v446, %v416
        %v448 = vadd.f32 %v447, %v417
        %v449 = vadd.f32 %v448, %v418
        %v450 = vadd.f32 %v449, %v419
        %v451 = vadd.f32 %v450, %v420
        %v452 = vadd.f32 %v451, %v421
        %v453 = vadd.f32 %v452, %v422
        %v454 = vadd.f32 %v453, %v423
        %v455 = vadd.f32 %v454, %v424
        %v456 = vadd.f32 %v455, %v425
        %v457 = vadd.f32 %v456, %v426
        %v458 = vadd.f32 %v457, %v427
        %v459 = vadd.f32 %v458, %v428
        %v460 = vadd.f32 %v459, %v429
        %v461 = vadd.f32 %v460, %v430
        %v462 = vadd.f32 %v461, %v431
        %v463 = vadd.f32 %v462, %v432
        %v464 = vadd.f32 %v463, %v433
        %v465 = vrot.slane %v464, 4
        %v466 = vadd.f32 %v464, %v465
        %v467 = vrot.slane %v466, 2
        %v468 = vadd.f32 %v466, %v467
        %v469 = vrot.slane %v468, 1
        %v470 = vadd.f32 %v468, %v469
        %v471 = vmul.f32 %v470, 0.00390625
        %v472 = vld [vmem:[%s4] sm:$0xff]
        %v473 = vld [vmem:[%s4 + $0x8] sm:$0xff]
        %v474 = vld [vmem:[%s4 + $0x10] sm:$0xff]
        %v475 = vld [vmem:[%s4 + $0x18] sm:$0xff]
        %v476 = vld [vmem:[%s4 + $0x20] sm:$0xff]
        %v477 = vld [vmem:[%s4 + $0x28] sm:$0xff]
        %v478 = vld [vmem:[%s4 + $0x30] sm:$0xff]
        %v479 = vld [vmem:[%s4 + $0x38] sm:$0xff]
        %v480 = vld [vmem:[%s4 + $0x40] sm:$0xff]
        %v481 = vld [vmem:[%s4 + $0x48] sm:$0xff]
        %v482 = vld [vmem:[%s4 + $0x50] sm:$0xff]
        %v483 = vld [vmem:[%s4 + $0x58] sm:$0xff]
        %v484 = vld [vmem:[%s4 + $0x60] sm:$0xff]
        %v485 = vld [vmem:[%s4 + $0x68] sm:$0xff]
        %v486 = vld [vmem:[%s4 + $0x70] sm:$0xff]
        %v487 = vld [vmem:[%s4 + $0x78] sm:$0xff]
        %v488 = vld [vmem:[%s5] sm:$0x1]
        %489 = vmatprep.subr.mxu0 0.0
        %490 = vmatpush1.msra.mxu0 %v472
        %491 = vmatprep.subr.mxu0 0.0
        %492 = vmatpush1.msra.mxu0 %v473
        %493 = vmatprep.subr.mxu0 0.0
        %494 = vmatpush1.msra.mxu0 %v474
        %495 = vmatprep.subr.mxu0 0.0
        %496 = vmatpush1.msra.mxu0 %v475
        %497 = vmatprep.subr.mxu0 0.0
        %498 = vmatpush1.msra.mxu0 %v476
        %499 = vmatprep.subr.mxu0 0.0
        %500 = vmatpush1.msra.mxu0 %v477
        %501 = vmatprep.subr.mxu0 0.0
        %502 = vmatpush1.msra.mxu0 %v478
        %503 = vmatprep.subr.mxu0 0.0
        %504 = vmatpush1.msra.mxu0 %v479
        %505 = vmatprep.subr.mxu0 0.0
        %506 = vmatpush1.msra.mxu0 %v480
        %507 = vmatprep.subr.mxu0 0.0
        %508 = vmatpush1.msra.mxu0 %v481
        %509 = vmatprep.subr.mxu0 0.0
        %510 = vmatpush1.msra.mxu0 %v482
        %511 = vmatprep.subr.mxu0 0.0
        %512 = vmatpush1.msra.mxu0 %v483
        %513 = vmatprep.subr.mxu0 0.0
        %514 = vmatpush1.msra.mxu0 %v484
        %515 = vmatprep.subr.mxu0 0.0
        %516 = vmatpush1.msra.mxu0 %v485
        %517 = vmatprep.subr.mxu0 0.0
        %518 = vmatpush1.msra.mxu0 %v486
        %519 = vmatprep.subr.mxu0 0.0
        %520 = vmatpush1.msra.mxu0 %v487
        %521 = vmatprep.subr.mxu0 0.0
        %522 = vmatpush1.msra.mxu0 0.0
        %523 = vmatprep.subr.mxu0 0.0
        %524 = vmatpush1.msra.mxu0 0.0
        %525 = vmatprep.subr.mxu0 0.0
        %526 = vmatpush1.msra.mxu0 0.0
        %527 = vmatprep.subr.mxu0 0.0
        %528 = vmatpush1.msra.mxu0 0.0
        %529 = vmatprep.subr.mxu0 0.0
        %530 = vmatpush1.msra.mxu0 0.0
        %531 = vmatprep.subr.mxu0 0.0
        %532 = vmatpush1.msra.mxu0 0.0
        %533 = vmatprep.subr.mxu0 0.0
        %534 = vmatpush1.msra.mxu0 0.0
        %535 = vmatprep.subr.mxu0 0.0
        %536 = vmatpush1.msra.mxu0 0.0
        %537 = vmatprep.subr.mxu0 0.0
        %538 = vmatpush1.msra.mxu0 0.0
        %539 = vmatprep.subr.mxu0 0.0
        %540 = vmatpush1.msra.mxu0 0.0
        %541 = vmatprep.subr.mxu0 0.0
        %542 = vmatpush1.msra.mxu0 0.0
        %543 = vmatprep.subr.mxu0 0.0
        %544 = vmatpush1.msra.mxu0 0.0
        %545 = vmatprep.subr.mxu0 0.0
        %546 = vmatpush1.msra.mxu0 0.0
        %547 = vmatprep.subr.mxu0 0.0
        %548 = vmatpush1.msra.mxu0 0.0
        %549 = vmatprep.subr.mxu0 0.0
        %550 = vmatpush1.msra.mxu0 0.0
        %551 = vmatprep.subr.mxu0 0.0
        %552 = vmatpush1.msra.mxu0 0.0
        %553 = vmatprep.mubr.f32.mxu0 0.0
        %554 = vmatmul.mubr.f32.gmra.mrb[0].mxu0 %v471
        %v555 = vpop.f32.mrb[0].mxu0
        %v556 = vadd.f32 %v488, %v555
        %v557 = vpop.f32.mrb[0].mxu0
        %558 = vdwg.mxu0
        %v559 = vsub.f32 0.0, %v556
        %v560 = vmul.f32 %v559, 1.442695
        %v561 = vpow.pop %v560
        %v562 = vadd.f32 %v561, 1.0
        %v563 = vrcp.pop %v562
        %v564 = vmul.f32 1.0, %v563
        %v565 = vmul.f32 %v556, %v564
        %v566 = vld [vmem:[%s6] sm:$0xff]
        %v567 = vld [vmem:[%s7] sm:$0x1]
        %vm568 = vcmask 64512
        %v570 = vsel %vm568, %v565, 0
        %572 = vmatprep.subr.mxu0 0.0
        %573 = vmatpush1.msra.mxu0 %v566
        %574 = vmatprep.subr.mxu0 0.0
        %575 = vmatpush1.msra.mxu0 0.0
        %576 = vmatprep.subr.mxu0 0.0
        %577 = vmatpush1.msra.mxu0 0.0
        %578 = vmatprep.subr.mxu0 0.0
        %579 = vmatpush1.msra.mxu0 0.0
        %580 = vmatprep.subr.mxu0 0.0
        %581 = vmatpush1.msra.mxu0 0.0
        %582 = vmatprep.subr.mxu0 0.0
        %583 = vmatpush1.msra.mxu0 0.0
        %584 = vmatprep.subr.mxu0 0.0
        %585 = vmatpush1.msra.mxu0 0.0
        %586 = vmatprep.subr.mxu0 0.0
        %587 = vmatpush1.msra.mxu0 0.0
        %588 = vmatprep.subr.mxu0 0.0
        %589 = vmatpush1.msra.mxu0 0.0
        %590 = vmatprep.subr.mxu0 0.0
        %591 = vmatpush1.msra.mxu0 0.0
        %592 = vmatprep.subr.mxu0 0.0
        %593 = vmatpush1.msra.mxu0 0.0
        %594 = vmatprep.subr.mxu0 0.0
        %595 = vmatpush1.msra.mxu0 0.0
        %596 = vmatprep.subr.mxu0 0.0
        %597 = vmatpush1.msra.mxu0 0.0
        %598 = vmatprep.subr.mxu0 0.0
        %599 = vmatpush1.msra.mxu0 0.0
        %600 = vmatprep.subr.mxu0 0.0
        %601 = vmatpush1.msra.mxu0 0.0
        %602 = vmatprep.subr.mxu0 0.0
        %603 = vmatpush1.msra.mxu0 0.0
        %604 = vmatprep.subr.mxu0 0.0
        %605 = vmatpush1.msra.mxu0 0.0
        %606 = vmatprep.subr.mxu0 0.0
        %607 = vmatpush1.msra.mxu0 0.0
        %608 = vmatprep.subr.mxu0 0.0
        %609 = vmatpush1.msra.mxu0 0.0
        %610 = vmatprep.subr.mxu0 0.0
        %611 = vmatpush1.msra.mxu0 0.0
        %612 = vmatprep.subr.mxu0 0.0
        %613 = vmatpush1.msra.mxu0 0.0
        %614 = vmatprep.subr.mxu0 0.0
        %615 = vmatpush1.msra.mxu0 0.0
        %616 = vmatprep.subr.mxu0 0.0
        %617 = vmatpush1.msra.mxu0 0.0
        %618 = vmatprep.subr.mxu0 0.0
        %619 = vmatpush1.msra.mxu0 0.0
        %620 = vmatprep.subr.mxu0 0.0
        %621 = vmatpush1.msra.mxu0 0.0
        %622 = vmatprep.subr.mxu0 0.0
        %623 = vmatpush1.msra.mxu0 0.0
        %624 = vmatprep.subr.mxu0 0.0
        %625 = vmatpush1.msra.mxu0 0.0
        %626 = vmatprep.subr.mxu0 0.0
        %627 = vmatpush1.msra.mxu0 0.0
        %628 = vmatprep.subr.mxu0 0.0
        %629 = vmatpush1.msra.mxu0 0.0
        %630 = vmatprep.subr.mxu0 0.0
        %631 = vmatpush1.msra.mxu0 0.0
        %632 = vmatprep.subr.mxu0 0.0
        %633 = vmatpush1.msra.mxu0 0.0
        %634 = vmatprep.subr.mxu0 0.0
        %635 = vmatpush1.msra.mxu0 0.0
        %636 = vmatprep.mubr.f32.mxu0 0.0
        %637 = vmatmul.mubr.f32.gmra.mrb[0].mxu0 %v570
        %v638 = vpop.f32.mrb[0].mxu0
        %v639 = vadd.f32 %v567, %v638
        %v640 = vpop.f32.mrb[0].mxu0
        %641 = vdwg.mxu0
        %v642 = vsub.f32 0.0, %v639
        %v643 = vmul.f32 %v642, 1.442695
        %v644 = vpow.pop %v643
        %v645 = vadd.f32 %v644, 1.0
        %v646 = vrcp.pop %v645
        %v647 = vmul.f32 1.0, %v646
        %v648 = vld [vmem:[%s323] sm:$0xff]
        %v649 = vld [vmem:[%s323 + $0x8] sm:$0xff]
        %v650 = vld [vmem:[%s323 + $0x10] sm:$0xff]
        %v651 = vld [vmem:[%s323 + $0x18] sm:$0xff]
        %v652 = vld [vmem:[%s323 + $0x20] sm:$0xff]
        %v653 = vld [vmem:[%s323 + $0x28] sm:$0xff]
        %v654 = vld [vmem:[%s323 + $0x30] sm:$0xff]
        %v655 = vld [vmem:[%s323 + $0x38] sm:$0xff]
        %v656 = vld [vmem:[%s323 + $0x40] sm:$0xff]
        %v657 = vld [vmem:[%s323 + $0x48] sm:$0xff]
        %v658 = vld [vmem:[%s323 + $0x50] sm:$0xff]
        %v659 = vld [vmem:[%s323 + $0x58] sm:$0xff]
        %v660 = vld [vmem:[%s323 + $0x60] sm:$0xff]
        %v661 = vld [vmem:[%s323 + $0x68] sm:$0xff]
        %v662 = vld [vmem:[%s323 + $0x70] sm:$0xff]
        %v663 = vld [vmem:[%s323 + $0x78] sm:$0xff]
        %v664 = vld [vmem:[%s323 + $0x80] sm:$0xff]
        %v665 = vld [vmem:[%s323 + $0x88] sm:$0xff]
        %v666 = vld [vmem:[%s323 + $0x90] sm:$0xff]
        %v667 = vld [vmem:[%s323 + $0x98] sm:$0xff]
        %v668 = vld [vmem:[%s323 + $0xa0] sm:$0xff]
        %v669 = vld [vmem:[%s323 + $0xa8] sm:$0xff]
        %v670 = vld [vmem:[%s323 + $0xb0] sm:$0xff]
        %v671 = vld [vmem:[%s323 + $0xb8] sm:$0xff]
        %v672 = vld [vmem:[%s323 + $0xc0] sm:$0xff]
        %v673 = vld [vmem:[%s323 + $0xc8] sm:$0xff]
        %v674 = vld [vmem:[%s323 + $0xd0] sm:$0xff]
        %v675 = vld [vmem:[%s323 + $0xd8] sm:$0xff]
        %v676 = vld [vmem:[%s323 + $0xe0] sm:$0xff]
        %v677 = vld [vmem:[%s323 + $0xe8] sm:$0xff]
        %v678 = vld [vmem:[%s323 + $0xf0] sm:$0xff]
        %v679 = vld [vmem:[%s323 + $0xf8] sm:$0xff]
        %v680 = vlaneseq
        %v681 = vshrl.u32 %v680, 7
        %v682 = vsub.s32 0, %v681
        %v683 = vrot.slane %v647, %v682
        %v684 = vmul.f32 %v402, %v683
        %v685 = vmul.f32 %v403, %v683
        %v686 = vmul.f32 %v404, %v683
        %v687 = vmul.f32 %v405, %v683
        %v688 = vmul.f32 %v406, %v683
        %v689 = vmul.f32 %v407, %v683
        %v690 = vmul.f32 %v408, %v683
        %v691 = vmul.f32 %v409, %v683
        %v692 = vmul.f32 %v410, %v683
        %v693 = vmul.f32 %v411, %v683
        %v694 = vmul.f32 %v412, %v683
        %v695 = vmul.f32 %v413, %v683
        %v696 = vmul.f32 %v414, %v683
        %v697 = vmul.f32 %v415, %v683
        %v698 = vmul.f32 %v416, %v683
        %v699 = vmul.f32 %v417, %v683
        %v700 = vmul.f32 %v418, %v683
        %v701 = vmul.f32 %v419, %v683
        %v702 = vmul.f32 %v420, %v683
        %v703 = vmul.f32 %v421, %v683
        %v704 = vmul.f32 %v422, %v683
        %v705 = vmul.f32 %v423, %v683
        %v706 = vmul.f32 %v424, %v683
        %v707 = vmul.f32 %v425, %v683
        %v708 = vmul.f32 %v426, %v683
        %v709 = vmul.f32 %v427, %v683
        %v710 = vmul.f32 %v428, %v683
        %v711 = vmul.f32 %v429, %v683
        %v712 = vmul.f32 %v430, %v683
        %v713 = vmul.f32 %v431, %v683
        %v714 = vmul.f32 %v432, %v683
        %v715 = vmul.f32 %v433, %v683
        %v716 = vadd.f32 %v684, %v648
        %v717 = vadd.f32 %v685, %v649
        %v718 = vadd.f32 %v686, %v650
        %v719 = vadd.f32 %v687, %v651
        %v720 = vadd.f32 %v688, %v652
        %v721 = vadd.f32 %v689, %v653
        %v722 = vadd.f32 %v690, %v654
        %v723 = vadd.f32 %v691, %v655
        %v724 = vadd.f32 %v692, %v656
        %v725 = vadd.f32 %v693, %v657
        %v726 = vadd.f32 %v694, %v658
        %v727 = vadd.f32 %v695, %v659
        %v728 = vadd.f32 %v696, %v660
        %v729 = vadd.f32 %v697, %v661
        %v730 = vadd.f32 %v698, %v662
        %v731 = vadd.f32 %v699, %v663
        %v732 = vadd.f32 %v700, %v664
        %v733 = vadd.f32 %v701, %v665
        %v734 = vadd.f32 %v702, %v666
        %v735 = vadd.f32 %v703, %v667
        %v736 = vadd.f32 %v704, %v668
        %v737 = vadd.f32 %v705, %v669
        %v738 = vadd.f32 %v706, %v670
        %v739 = vadd.f32 %v707, %v671
        %v740 = vadd.f32 %v708, %v672
        %v741 = vadd.f32 %v709, %v673
        %v742 = vadd.f32 %v710, %v674
        %v743 = vadd.f32 %v711, %v675
        %v744 = vadd.f32 %v712, %v676
        %v745 = vadd.f32 %v713, %v677
        %v746 = vadd.f32 %v714, %v678
        %v747 = vadd.f32 %v715, %v679
        %v748 = vsub.f32 0.0, %v716
        %v749 = vsub.f32 0.0, %v717
        %v750 = vsub.f32 0.0, %v718
        %v751 = vsub.f32 0.0, %v719
        %v752 = vsub.f32 0.0, %v720
        %v753 = vsub.f32 0.0, %v721
        %v754 = vsub.f32 0.0, %v722
        %v755 = vsub.f32 0.0, %v723
        %v756 = vsub.f32 0.0, %v724
        %v757 = vsub.f32 0.0, %v725
        %v758 = vsub.f32 0.0, %v726
        %v759 = vsub.f32 0.0, %v727
        %v760 = vsub.f32 0.0, %v728
        %v761 = vsub.f32 0.0, %v729
        %v762 = vsub.f32 0.0, %v730
        %v763 = vsub.f32 0.0, %v731
        %v764 = vsub.f32 0.0, %v732
        %v765 = vsub.f32 0.0, %v733
        %v766 = vsub.f32 0.0, %v734
        %v767 = vsub.f32 0.0, %v735
        %v768 = vsub.f32 0.0, %v736
        %v769 = vsub.f32 0.0, %v737
        %v770 = vsub.f32 0.0, %v738
        %v771 = vsub.f32 0.0, %v739
        %v772 = vsub.f32 0.0, %v740
        %v773 = vsub.f32 0.0, %v741
        %v774 = vsub.f32 0.0, %v742
        %v775 = vsub.f32 0.0, %v743
        %v776 = vsub.f32 0.0, %v744
        %v777 = vsub.f32 0.0, %v745
        %v778 = vsub.f32 0.0, %v746
        %v779 = vsub.f32 0.0, %v747
        %v780 = vmul.f32 %v748, 1.442695
        %v781 = vpow.pop %v780
        %v782 = vmul.f32 %v749, 1.442695
        %v783 = vpow.pop %v782
        %v784 = vmul.f32 %v750, 1.442695
        %v785 = vpow.pop %v784
        %v786 = vmul.f32 %v751, 1.442695
        %v787 = vpow.pop %v786
        %v788 = vmul.f32 %v752, 1.442695
        %v789 = vpow.pop %v788
        %v790 = vmul.f32 %v753, 1.442695
        %v791 = vpow.pop %v790
        %v792 = vmul.f32 %v754, 1.442695
        %v793 = vpow.pop %v792
        %v794 = vmul.f32 %v755, 1.442695
        %v795 = vpow.pop %v794
        %v796 = vmul.f32 %v756, 1.442695
        %v797 = vpow.pop %v796
        %v798 = vmul.f32 %v757, 1.442695
        %v799 = vpow.pop %v798
        %v800 = vmul.f32 %v758, 1.442695
        %v801 = vpow.pop %v800
        %v802 = vmul.f32 %v759, 1.442695
        %v803 = vpow.pop %v802
        %v804 = vmul.f32 %v760, 1.442695
        %v805 = vpow.pop %v804
        %v806 = vmul.f32 %v761, 1.442695
        %v807 = vpow.pop %v806
        %v808 = vmul.f32 %v762, 1.442695
        %v809 = vpow.pop %v808
        %v810 = vmul.f32 %v763, 1.442695
        %v811 = vpow.pop %v810
        %v812 = vmul.f32 %v764, 1.442695
        %v813 = vpow.pop %v812
        %v814 = vmul.f32 %v765, 1.442695
        %v815 = vpow.pop %v814
        %v816 = vmul.f32 %v766, 1.442695
        %v817 = vpow.pop %v816
        %v818 = vmul.f32 %v767, 1.442695
        %v819 = vpow.pop %v818
        %v820 = vmul.f32 %v768, 1.442695
        %v821 = vpow.pop %v820
        %v822 = vmul.f32 %v769, 1.442695
        %v823 = vpow.pop %v822
        %v824 = vmul.f32 %v770, 1.442695
        %v825 = vpow.pop %v824
        %v826 = vmul.f32 %v771, 1.442695
        %v827 = vpow.pop %v826
        %v828 = vmul.f32 %v772, 1.442695
        %v829 = vpow.pop %v828
        %v830 = vmul.f32 %v773, 1.442695
        %v831 = vpow.pop %v830
        %v832 = vmul.f32 %v774, 1.442695
        %v833 = vpow.pop %v832
        %v834 = vmul.f32 %v775, 1.442695
        %v835 = vpow.pop %v834
        %v836 = vmul.f32 %v776, 1.442695
        %v837 = vpow.pop %v836
        %v838 = vmul.f32 %v777, 1.442695
        %v839 = vpow.pop %v838
        %v840 = vmul.f32 %v778, 1.442695
        %v841 = vpow.pop %v840
        %v842 = vmul.f32 %v779, 1.442695
        %v843 = vpow.pop %v842
        %v844 = vadd.f32 %v781, 1.0
        %v845 = vadd.f32 %v783, 1.0
        %v846 = vadd.f32 %v785, 1.0
        %v847 = vadd.f32 %v787, 1.0
        %v848 = vadd.f32 %v789, 1.0
        %v849 = vadd.f32 %v791, 1.0
        %v850 = vadd.f32 %v793, 1.0
        %v851 = vadd.f32 %v795, 1.0
        %v852 = vadd.f32 %v797, 1.0
        %v853 = vadd.f32 %v799, 1.0
        %v854 = vadd.f32 %v801, 1.0
        %v855 = vadd.f32 %v803, 1.0
        %v856 = vadd.f32 %v805, 1.0
        %v857 = vadd.f32 %v807, 1.0
        %v858 = vadd.f32 %v809, 1.0
        %v859 = vadd.f32 %v811, 1.0
        %v860 = vadd.f32 %v813, 1.0
        %v861 = vadd.f32 %v815, 1.0
        %v862 = vadd.f32 %v817, 1.0
        %v863 = vadd.f32 %v819, 1.0
        %v864 = vadd.f32 %v821, 1.0
        %v865 = vadd.f32 %v823, 1.0
        %v866 = vadd.f32 %v825, 1.0
        %v867 = vadd.f32 %v827, 1.0
        %v868 = vadd.f32 %v829, 1.0
        %v869 = vadd.f32 %v831, 1.0
        %v870 = vadd.f32 %v833, 1.0
        %v871 = vadd.f32 %v835, 1.0
        %v872 = vadd.f32 %v837, 1.0
        %v873 = vadd.f32 %v839, 1.0
        %v874 = vadd.f32 %v841, 1.0
        %v875 = vadd.f32 %v843, 1.0
        %v876 = vrcp.pop %v844
        %v877 = vmul.f32 1.0, %v876
        %v878 = vrcp.pop %v845
        %v879 = vmul.f32 1.0, %v878
        %v880 = vrcp.pop %v846
        %v881 = vmul.f32 1.0, %v880
        %v882 = vrcp.pop %v847
        %v883 = vmul.f32 1.0, %v882
        %v884 = vrcp.pop %v848
        %v885 = vmul.f32 1.0, %v884
        %v886 = vrcp.pop %v849
        %v887 = vmul.f32 1.0, %v886
        %v888 = vrcp.pop %v850
        %v889 = vmul.f32 1.0, %v888
        %v890 = vrcp.pop %v851
        %v891 = vmul.f32 1.0, %v890
        %v892 = vrcp.pop %v852
        %v893 = vmul.f32 1.0, %v892
        %v894 = vrcp.pop %v853
        %v895 = vmul.f32 1.0, %v894
        %v896 = vrcp.pop %v854
        %v897 = vmul.f32 1.0, %v896
        %v898 = vrcp.pop %v855
        %v899 = vmul.f32 1.0, %v898
        %v900 = vrcp.pop %v856
        %v901 = vmul.f32 1.0, %v900
        %v902 = vrcp.pop %v857
        %v903 = vmul.f32 1.0, %v902
        %v904 = vrcp.pop %v858
        %v905 = vmul.f32 1.0, %v904
        %v906 = vrcp.pop %v859
        %v907 = vmul.f32 1.0, %v906
        %v908 = vrcp.pop %v860
        %v909 = vmul.f32 1.0, %v908
        %v910 = vrcp.pop %v861
        %v911 = vmul.f32 1.0, %v910
        %v912 = vrcp.pop %v862
        %v913 = vmul.f32 1.0, %v912
        %v914 = vrcp.pop %v863
        %v915 = vmul.f32 1.0, %v914
        %v916 = vrcp.pop %v864
        %v917 = vmul.f32 1.0, %v916
        %v918 = vrcp.pop %v865
        %v919 = vmul.f32 1.0, %v918
        %v920 = vrcp.pop %v866
        %v921 = vmul.f32 1.0, %v920
        %v922 = vrcp.pop %v867
        %v923 = vmul.f32 1.0, %v922
        %v924 = vrcp.pop %v868
        %v925 = vmul.f32 1.0, %v924
        %v926 = vrcp.pop %v869
        %v927 = vmul.f32 1.0, %v926
        %v928 = vrcp.pop %v870
        %v929 = vmul.f32 1.0, %v928
        %v930 = vrcp.pop %v871
        %v931 = vmul.f32 1.0, %v930
        %v932 = vrcp.pop %v872
        %v933 = vmul.f32 1.0, %v932
        %v934 = vrcp.pop %v873
        %v935 = vmul.f32 1.0, %v934
        %v936 = vrcp.pop %v874
        %v937 = vmul.f32 1.0, %v936
        %v938 = vrcp.pop %v875
        %v939 = vmul.f32 1.0, %v938
        %v940 = vmul.f32 %v716, %v877
        %v941 = vmul.f32 %v717, %v879
        %v942 = vmul.f32 %v718, %v881
        %v943 = vmul.f32 %v719, %v883
        %v944 = vmul.f32 %v720, %v885
        %v945 = vmul.f32 %v721, %v887
        %v946 = vmul.f32 %v722, %v889
        %v947 = vmul.f32 %v723, %v891
        %v948 = vmul.f32 %v724, %v893
        %v949 = vmul.f32 %v725, %v895
        %v950 = vmul.f32 %v726, %v897
        %v951 = vmul.f32 %v727, %v899
        %v952 = vmul.f32 %v728, %v901
        %v953 = vmul.f32 %v729, %v903
        %v954 = vmul.f32 %v730, %v905
        %v955 = vmul.f32 %v731, %v907
        %v956 = vmul.f32 %v732, %v909
        %v957 = vmul.f32 %v733, %v911
        %v958 = vmul.f32 %v734, %v913
        %v959 = vmul.f32 %v735, %v915
        %v960 = vmul.f32 %v736, %v917
        %v961 = vmul.f32 %v737, %v919
        %v962 = vmul.f32 %v738, %v921
        %v963 = vmul.f32 %v739, %v923
        %v964 = vmul.f32 %v740, %v925
        %v965 = vmul.f32 %v741, %v927
        %v966 = vmul.f32 %v742, %v929
        %v967 = vmul.f32 %v743, %v931
        %v968 = vmul.f32 %v744, %v933
        %v969 = vmul.f32 %v745, %v935
        %v970 = vmul.f32 %v746, %v937
        %v971 = vmul.f32 %v747, %v939
        %972 = vst [vmem:[%s313] sm:$0xff] %v940
        %973 = vst [vmem:[%s313 + $0x8] sm:$0xff] %v941
        %974 = vst [vmem:[%s313 + $0x10] sm:$0xff] %v942
        %975 = vst [vmem:[%s313 + $0x18] sm:$0xff] %v943
        %976 = vst [vmem:[%s313 + $0x20] sm:$0xff] %v944
        %977 = vst [vmem:[%s313 + $0x28] sm:$0xff] %v945
        %978 = vst [vmem:[%s313 + $0x30] sm:$0xff] %v946
        %979 = vst [vmem:[%s313 + $0x38] sm:$0xff] %v947
        %980 = vst [vmem:[%s313 + $0x40] sm:$0xff] %v948
        %981 = vst [vmem:[%s313 + $0x48] sm:$0xff] %v949
        %982 = vst [vmem:[%s313 + $0x50] sm:$0xff] %v950
        %983 = vst [vmem:[%s313 + $0x58] sm:$0xff] %v951
        %984 = vst [vmem:[%s313 + $0x60] sm:$0xff] %v952
        %985 = vst [vmem:[%s313 + $0x68] sm:$0xff] %v953
        %986 = vst [vmem:[%s313 + $0x70] sm:$0xff] %v954
        %987 = vst [vmem:[%s313 + $0x78] sm:$0xff] %v955
        %988 = vst [vmem:[%s313 + $0x80] sm:$0xff] %v956
        %989 = vst [vmem:[%s313 + $0x88] sm:$0xff] %v957
        %990 = vst [vmem:[%s313 + $0x90] sm:$0xff] %v958
        %991 = vst [vmem:[%s313 + $0x98] sm:$0xff] %v959
        %992 = vst [vmem:[%s313 + $0xa0] sm:$0xff] %v960
        %993 = vst [vmem:[%s313 + $0xa8] sm:$0xff] %v961
        %994 = vst [vmem:[%s313 + $0xb0] sm:$0xff] %v962
        %995 = vst [vmem:[%s313 + $0xb8] sm:$0xff] %v963
        %996 = vst [vmem:[%s313 + $0xc0] sm:$0xff] %v964
        %997 = vst [vmem:[%s313 + $0xc8] sm:$0xff] %v965
        %998 = vst [vmem:[%s313 + $0xd0] sm:$0xff] %v966
        %999 = vst [vmem:[%s313 + $0xd8] sm:$0xff] %v967
        %1000 = vst [vmem:[%s313 + $0xe0] sm:$0xff] %v968
        %1001 = vst [vmem:[%s313 + $0xe8] sm:$0xff] %v969
        %1002 = vst [vmem:[%s313 + $0xf0] sm:$0xff] %v970
        %1003 = vst [vmem:[%s313 + $0xf8] sm:$0xff] %v971
        %s1004 = sand.u32 %s208, 1
        %s1005 = scalar_lea.sflag [#allocation3], %s1004
        %s1006 = sand.u32 %s208, 1
        %s1007 = smul.addr %s1006, 256
        %s1008 = scalar_lea.vmem [#allocation2], %s1007
        // Predicated region
        $region53: #{irblock_forward.7} parent=51 // pred_check
          %p1009 = pneg %p218
        $region54: #{irblock_forward.7} parent=51 // pred_check_branch
          %1011 = sbr.rel (%p1009) target = $region56
        $region55: #{irblock_forward.7} parent=51 // pred_region
          %s1013 = ssub.s32 4096, 4096
          %1014 = vsyncadd %s1005, %s1013
          %s1015 = smul.addr %s22, 32
          %s1016 = smul.addr %s1015, 128
          %s1017 = scalar_lea.hbm %s8, %s1016
          %s1018 = sshll.u32 %s1008, 4
          %s1019 = int_to_ptr.vmem [resolvable:$true] %s1018
          %1024 = dma.vmem_to_hbm [thread:$0]  %s1019, 4096, %s1017, %s1005, 128, 128, 8
        $region56: #{irblock_forward.7} parent=51 // pred_fallthru
          _
      $region52: #{irblock_forward.7} parent=5 // pred_fallthru
        _
      %p1025 = scmp.le.s32.totalorder 2, %s17
      // Predicated region
      $region57: #{irblock_forward.7} parent=5 // pred_check
        %p1026 = pneg %p1025
      $region58: #{irblock_forward.7} parent=5 // pred_check_branch
        %1028 = sbr.rel (%p1026) target = $region60
      $region59: #{irblock_forward.7} parent=5 // pred_region
        %s1029 = ssub.s32 %s17, 2
        // Predicated region
        $region61: #{irblock_forward.7} parent=59 // pred_check
          %p1030 = pneg %p224
        $region62: #{irblock_forward.7} parent=59 // pred_check_branch
          %1032 = sbr.rel (%p1030) target = $region64
        $region63: #{irblock_forward.7} parent=59 // pred_region
          %s1033 = sand.u32 %s209, 1
          %s1034 = scalar_lea.sflag [#allocation3], %s1033
          %s1035 = sand.u32 %s209, 1
          %s1036 = smul.addr %s1035, 256
          %s1037 = scalar_lea.vmem [#allocation2], %s1036
          %1038 = dma.done %s1034, 4096
        $region64: #{irblock_forward.7} parent=59 // pred_fallthru
          _
      $region60: #{irblock_forward.7} parent=5 // pred_fallthru
        _
    $region6: #{irblock_forward.7} parent=1 // loop_footer
      %s21 = sadd.s32 1, %s17
    $region7: #{irblock_forward.7} parent=1 // loop_footer_branch
      %16 = sbr.rel target = $region3
    $region8: #{irblock_forward.7} parent=1 // loop_exit
      _
    %1039 = vsyncpa [#allocation3], 1
    %s1040 = scalar_lea.sflag [#allocation3], 1
    %1041 = vsyncpa %s1040, 1

// kernel: irblock_forward.5
$region0: #{irblock_forward.5}
  #allocation0 [shape = 'u32[]', space=smem, size = 0x4, offset = 0x4, fixed_abs, tag = 'smem constant byte address 0x4 - core index']
  #allocation1 [shape = 'u32[144,128]{1,0:T(1,128)}', space=vmem, size = 0x12000, scoped, tag = 'internal scratch']
  #allocation2 [shape = 'f32[18,18,128]{2,1,0:T(8,128)}', space=vmem, size = 0x36000, scoped, tag = 'scratch operand']
  %s0 = inlined_call_operand.vmem [shape: f32[2,16,16,128], index: 0, kind: input, shape index: {}]
  %s1 = inlined_call_operand.vmem [shape: f32[1,128], index: 1, kind: input, shape index: {}]
  %s2 = inlined_call_operand.vmem [shape: f32[1,128], index: 2, kind: input, shape index: {}]
  %s3 = inlined_call_operand.hbm [shape: f32[1152,128], index: 3, kind: input, shape index: {}]
  %s4 = inlined_call_operand.vmem [shape: f32[2,16,16,128], index: 4, kind: output, shape index: {0}]
  %s5 = inlined_call_operand.vmem [shape: f32[2,2,128], index: 5, kind: output, shape index: {1}]
  %6 = xla_tuple %s4, %s5
  %s7 = sld [smem:[#allocation0]]
  $region61: #{irblock_forward.5} parent=0
    _
  %s9 = ssub.s32 1, %s7
  %s10 = scalar_select 0, %s9, %s7
  $region1: #{irblock_forward.5} parent=0
    #allocation3 [shape = 'u8[589824]{0}', space=vmem, size = 0x90000, scoped, tag = 'input window, operand 3, single buffered']
    #allocation4 [shape = 's32[2]{0}', space=sflag, size = 0x8, scoped, tag = 'scoped memory for irblock_forward.5']
    %11 = vsyncpa [#allocation4], 0
    loop: start=0, step=1, limit=4
    $region2: #{irblock_forward.5} parent=1 // loop_pre_header
      _
    $region3: #{irblock_forward.5} parent=1 // loop_header
      %s13 = sphi 0, %s17
      %p14 = scmp.ge.s32.totalorder %s13, 4
      %s23 = sphi 0, %s25
      %s26 = sphi 0, %s23
      %s27 = sphi 0, %s26
      %s43 = sphi 0, %s27
      %s47 = sphi 0, %s47
      %s49 = sphi 0, %s47
      %s50 = sphi 0, %s49
      %s64 = sphi 0, %s50
      %s68 = sphi 0, %s68
      %s70 = sphi 0, %s68
      %s71 = sphi 0, %s70
      %s85 = sphi 0, %s71
      %s89 = sphi 0, %s89
      %s91 = sphi 0, %s89
      %s92 = sphi 0, %s91
      %s106 = sphi 0, %s92
      %s112 = sphi 0, %s114
      %s115 = sphi 0, %s112
      %s116 = sphi 0, %s115
      %s132 = sphi 0, %s116
      %s138 = sphi 0, %s140
      %s141 = sphi 0, %s138
      %s142 = sphi 0, %s141
      %s158 = sphi 0, %s142
    $region4: #{irblock_forward.5} parent=1 // loop_header_branch
      %16 = sbr.rel (%p14) target = $region8
    $region5: #{irblock_forward.5} parent=1 // loop_body
      %s18 = ssub.s32 %s13, 1
      %s19 = ssub.s32 %s13, 2
      %s20 = sadd.s32 %s13, 1
      %s21 = ssub.s32 %s13, %s20
      %p22 = scmp.eq.s32.totalorder %s21, 0
      %s24 = sadd.s32 %s23, 1
      %s25 = scalar_select %p22, %s23, %s24
      %p28 = pneg %p22
      %p29 = scmp.eq.s32.totalorder %s13, 1
      %p30 = por %p28, %p29
      %p31 = scmp.ne.s32.totalorder %s23, %s26
      %p32 = scmp.eq.s32.totalorder %s13, 0
      %p33 = por %p31, %p32
      %p34 = scmp.ne.s32.totalorder %s23, %s26
      %p35 = scmp.eq.s32.totalorder %s18, 1
      %p36 = por %p34, %p35
      %p37 = scmp.ne.s32.totalorder %s26, %s27
      %p38 = scmp.eq.s32.totalorder %s18, 0
      %p39 = por %p37, %p38
      %p40 = scmp.ne.s32.totalorder %s26, %s27
      %p41 = scmp.eq.s32.totalorder %s19, 1
      %p42 = por %p40, %p41
      %p44 = scmp.ne.s32.totalorder %s27, %s43
      %p45 = scmp.eq.s32.totalorder %s19, 0
      %p46 = por %p44, %p45
      %s48 = sadd.s32 %s47, 1
      %p51 = scmp.eq.s32.totalorder %s13, 1
      %p52 = scmp.ne.s32.totalorder %s47, %s49
      %p53 = scmp.eq.s32.totalorder %s13, 0
      %p54 = por %p52, %p53
      %p55 = scmp.ne.s32.totalorder %s47, %s49
      %p56 = scmp.eq.s32.totalorder %s18, 1
      %p57 = por %p55, %p56
      %p58 = scmp.ne.s32.totalorder %s49, %s50
      %p59 = scmp.eq.s32.totalorder %s18, 0
      %p60 = por %p58, %p59
      %p61 = scmp.ne.s32.totalorder %s49, %s50
      %p62 = scmp.eq.s32.totalorder %s19, 1
      %p63 = por %p61, %p62
      %p65 = scmp.ne.s32.totalorder %s50, %s64
      %p66 = scmp.eq.s32.totalorder %s19, 0
      %p67 = por %p65, %p66
      %s69 = sadd.s32 %s68, 1
      %p72 = scmp.eq.s32.totalorder %s13, 1
      %p73 = scmp.ne.s32.totalorder %s68, %s70
      %p74 = scmp.eq.s32.totalorder %s13, 0
      %p75 = por %p73, %p74
      %p76 = scmp.ne.s32.totalorder %s68, %s70
      %p77 = scmp.eq.s32.totalorder %s18, 1
      %p78 = por %p76, %p77
      %p79 = scmp.ne.s32.totalorder %s70, %s71
      %p80 = scmp.eq.s32.totalorder %s18, 0
      %p81 = por %p79, %p80
      %p82 = scmp.ne.s32.totalorder %s70, %s71
      %p83 = scmp.eq.s32.totalorder %s19, 1
      %p84 = por %p82, %p83
      %p86 = scmp.ne.s32.totalorder %s71, %s85
      %p87 = scmp.eq.s32.totalorder %s19, 0
      %p88 = por %p86, %p87
      %s90 = sadd.s32 %s89, 1
      %p93 = scmp.eq.s32.totalorder %s13, 1
      %p94 = scmp.ne.s32.totalorder %s89, %s91
      %p95 = scmp.eq.s32.totalorder %s13, 0
      %p96 = por %p94, %p95
      %p97 = scmp.ne.s32.totalorder %s89, %s91
      %p98 = scmp.eq.s32.totalorder %s18, 1
      %p99 = por %p97, %p98
      %p100 = scmp.ne.s32.totalorder %s91, %s92
      %p101 = scmp.eq.s32.totalorder %s18, 0
      %p102 = por %p100, %p101
      %p103 = scmp.ne.s32.totalorder %s91, %s92
      %p104 = scmp.eq.s32.totalorder %s19, 1
      %p105 = por %p103, %p104
      %p107 = scmp.ne.s32.totalorder %s92, %s106
      %p108 = scmp.eq.s32.totalorder %s19, 0
      %p109 = por %p107, %p108
      %s110 = ssub.s32 %s13, %s20
      %p111 = scmp.eq.s32.totalorder %s110, 0
      %s113 = sadd.s32 %s112, 1
      %s114 = scalar_select %p111, %s112, %s113
      %p117 = pneg %p111
      %p118 = scmp.eq.s32.totalorder %s13, 1
      %p119 = por %p117, %p118
      %p120 = scmp.ne.s32.totalorder %s112, %s115
      %p121 = scmp.eq.s32.totalorder %s13, 0
      %p122 = por %p120, %p121
      %p123 = scmp.ne.s32.totalorder %s112, %s115
      %p124 = scmp.eq.s32.totalorder %s18, 1
      %p125 = por %p123, %p124
      %p126 = scmp.ne.s32.totalorder %s115, %s116
      %p127 = scmp.eq.s32.totalorder %s18, 0
      %p128 = por %p126, %p127
      %p129 = scmp.ne.s32.totalorder %s115, %s116
      %p130 = scmp.eq.s32.totalorder %s19, 1
      %p131 = por %p129, %p130
      %p133 = scmp.ne.s32.totalorder %s116, %s132
      %p134 = scmp.eq.s32.totalorder %s19, 0
      %p135 = por %p133, %p134
      %s136 = ssub.s32 %s13, %s20
      %p137 = scmp.eq.s32.totalorder %s136, 0
      %s139 = sadd.s32 %s138, 1
      %s140 = scalar_select %p137, %s138, %s139
      %p143 = pneg %p137
      %p144 = scmp.eq.s32.totalorder %s13, 1
      %p145 = por %p143, %p144
      %p146 = scmp.ne.s32.totalorder %s138, %s141
      %p147 = scmp.eq.s32.totalorder %s13, 0
      %p148 = por %p146, %p147
      %p149 = scmp.ne.s32.totalorder %s138, %s141
      %p150 = scmp.eq.s32.totalorder %s18, 1
      %p151 = por %p149, %p150
      %p152 = scmp.ne.s32.totalorder %s141, %s142
      %p153 = scmp.eq.s32.totalorder %s18, 0
      %p154 = por %p152, %p153
      %p155 = scmp.ne.s32.totalorder %s141, %s142
      %p156 = scmp.eq.s32.totalorder %s19, 1
      %p157 = por %p155, %p156
      %p159 = scmp.ne.s32.totalorder %s142, %s158
      %p160 = scmp.eq.s32.totalorder %s19, 0
      %p161 = por %p159, %p160
      %p162 = scmp.le.s32.totalorder 1, %s13
      %p163 = scmp.lt.s32.totalorder %s13, 3
      %p164 = pnand %p162, %p163
      %p165 = pneg %p164
      // Predicated region
      $region9: #{irblock_forward.5} parent=5 // pred_check
        _
      $region10: #{irblock_forward.5} parent=5 // pred_check_branch
        %167 = sbr.rel (%p164) target = $region12
      $region11: #{irblock_forward.5} parent=5 // pred_region
        %s168 = ssub.s32 %s13, 1
        // Predicated region
        $region13: #{irblock_forward.5} parent=11 // pred_check
          %p169 = pneg %p60
        $region14: #{irblock_forward.5} parent=11 // pred_check_branch
          %171 = sbr.rel (%p169) target = $region16
        $region15: #{irblock_forward.5} parent=11 // pred_region
          _
        $region16: #{irblock_forward.5} parent=11 // pred_fallthru
          _
        // Predicated region
        $region17: #{irblock_forward.5} parent=11 // pred_check
          %p172 = pneg %p81
        $region18: #{irblock_forward.5} parent=11 // pred_check_branch
          %174 = sbr.rel (%p172) target = $region20
        $region19: #{irblock_forward.5} parent=11 // pred_region
          _
        $region20: #{irblock_forward.5} parent=11 // pred_fallthru
          _
        // Predicated region
        $region21: #{irblock_forward.5} parent=11 // pred_check
          %p175 = pneg %p102
        $region22: #{irblock_forward.5} parent=11 // pred_check_branch
          %177 = sbr.rel (%p175) target = $region24
        $region23: #{irblock_forward.5} parent=11 // pred_region
          %s179 = ssub.s32 18432, 18432
          %180 = vsyncadd [#allocation4], %s179
          %s181 = sshll.u32 [#allocation3], 4
          %s182 = int_to_ptr.vmem [resolvable:$true] %s181
          %187 = dma.hbm_to_vmem [thread:$0]  %s3, 18432, %s182, [#allocation4], 128, 128, 8
        $region24: #{irblock_forward.5} parent=11 // pred_fallthru
          _
      $region12: #{irblock_forward.5} parent=5 // pred_fallthru
        _
      %p188 = scmp.lt.s32.totalorder %s13, 2
      // Predicated region
      $region25: #{irblock_forward.5} parent=5 // pred_check
        %p189 = pneg %p188
      $region26: #{irblock_forward.5} parent=5 // pred_check_branch
        %191 = sbr.rel (%p189) target = $region28
      $region27: #{irblock_forward.5} parent=5 // pred_region
        // Predicated region
        $region29: #{irblock_forward.5} parent=27 // pred_check
          %p192 = pneg %p33
        $region30: #{irblock_forward.5} parent=27 // pred_check_branch
          %194 = sbr.rel (%p192) target = $region32
        $region31: #{irblock_forward.5} parent=27 // pred_region
          %p195 = scmp.lt.s32.totalorder %s13, 1
          %s196 = scalar_select %p195, %s13, 1
          %s197 = smul.addr %s196, 32
          %s198 = smul.addr %s197, 8
          %s199 = scalar_lea.vmem %s0, %s198
        $region32: #{irblock_forward.5} parent=27 // pred_fallthru
          _
      $region28: #{irblock_forward.5} parent=5 // pred_fallthru
        _
      %p200 = scmp.le.s32.totalorder 1, %s13
      %p201 = scmp.lt.s32.totalorder %s13, 3
      %p202 = pnand %p200, %p201
      %p203 = pneg %p202
      // Predicated region
      $region33: #{irblock_forward.5} parent=5 // pred_check
        _
      $region34: #{irblock_forward.5} parent=5 // pred_check_branch
        %205 = sbr.rel (%p202) target = $region36
      $region35: #{irblock_forward.5} parent=5 // pred_region
        %s206 = ssub.s32 %s13, 1
        // Predicated region
        $region37: #{irblock_forward.5} parent=35 // pred_check
          %p207 = pneg %p102
        $region38: #{irblock_forward.5} parent=35 // pred_check_branch
          %209 = sbr.rel (%p207) target = $region40
        $region39: #{irblock_forward.5} parent=35 // pred_region
          %210 = dma.done [#allocation4], 18432
        $region40: #{irblock_forward.5} parent=35 // pred_fallthru
          _
        %p211 = scmp.lt.s32.totalorder %s18, 1
        %s212 = scalar_select %p211, %s18, 1
        %s213 = smul.addr %s212, 32
        %s214 = smul.addr %s213, 8
        %s215 = scalar_lea.vmem %s0, %s214
        %p216 = pneg %p39
        %p217 = pneg %p36
        %p218 = pneg %p60
        %p219 = pneg %p57
        %p220 = pneg %p81
        %p221 = pneg %p78
        %p222 = pneg %p102
        %p223 = pneg %p99
        %p224 = pneg %p128
        %p225 = pneg %p125
        %p226 = scmp.lt.s32.totalorder %s18, 1
        %s227 = scalar_select %p226, %s18, 1
        %s228 = smul.addr %s227, 32
        %s229 = smul.addr %s228, 8
        %s230 = scalar_lea.vmem %s4, %s229
        %p231 = pneg %p154
        %p232 = pneg %p151
        %p233 = scmp.lt.s32.totalorder %s18, 1
        %s234 = scalar_select %p233, %s18, 1
        %s235 = smul.addr %s234, 2
        %s236 = scalar_lea.vmem %s5, %s235
        %p237 = scmp.lt.s32.totalorder %s18, 1
        %s238 = scalar_select %p237, %s18, 1
        %s239 = smul.addr %s238, 32
        %s240 = smul.addr %s239, 8
        %s241 = scalar_lea.vmem %s0, %s240
        %p242 = scmp.lt.s32.totalorder %s18, 1
        %s243 = scalar_select %p242, %s18, 1
        %s244 = smul.addr %s243, 32
        %s245 = smul.addr %s244, 8
        %s246 = scalar_lea.vmem %s4, %s245
        %p247 = scmp.lt.s32.totalorder %s18, 1
        %s248 = scalar_select %p247, %s18, 1
        %s249 = smul.addr %s248, 2
        %s250 = scalar_lea.vmem %s5, %s249
        %v251 = vld [vmem:[%s241] sm:$0xff]
        %v252 = vld [vmem:[%s241 + $0x8] sm:$0xff]
        %v253 = vld [vmem:[%s241 + $0x10] sm:$0xff]
        %v254 = vld [vmem:[%s241 + $0x18] sm:$0xff]
        %v255 = vld [vmem:[%s241 + $0x20] sm:$0xff]
        %v256 = vld [vmem:[%s241 + $0x28] sm:$0xff]
        %v257 = vld [vmem:[%s241 + $0x30] sm:$0xff]
        %v258 = vld [vmem:[%s241 + $0x38] sm:$0xff]
        %v259 = vld [vmem:[%s241 + $0x40] sm:$0xff]
        %v260 = vld [vmem:[%s241 + $0x48] sm:$0xff]
        %v261 = vld [vmem:[%s241 + $0x50] sm:$0xff]
        %v262 = vld [vmem:[%s241 + $0x58] sm:$0xff]
        %v263 = vld [vmem:[%s241 + $0x60] sm:$0xff]
        %v264 = vld [vmem:[%s241 + $0x68] sm:$0xff]
        %v265 = vld [vmem:[%s241 + $0x70] sm:$0xff]
        %v266 = vld [vmem:[%s241 + $0x78] sm:$0xff]
        %v267 = vld [vmem:[%s241 + $0x80] sm:$0xff]
        %v268 = vld [vmem:[%s241 + $0x88] sm:$0xff]
        %v269 = vld [vmem:[%s241 + $0x90] sm:$0xff]
        %v270 = vld [vmem:[%s241 + $0x98] sm:$0xff]
        %v271 = vld [vmem:[%s241 + $0xa0] sm:$0xff]
        %v272 = vld [vmem:[%s241 + $0xa8] sm:$0xff]
        %v273 = vld [vmem:[%s241 + $0xb0] sm:$0xff]
        %v274 = vld [vmem:[%s241 + $0xb8] sm:$0xff]
        %v275 = vld [vmem:[%s241 + $0xc0] sm:$0xff]
        %v276 = vld [vmem:[%s241 + $0xc8] sm:$0xff]
        %v277 = vld [vmem:[%s241 + $0xd0] sm:$0xff]
        %v278 = vld [vmem:[%s241 + $0xd8] sm:$0xff]
        %v279 = vld [vmem:[%s241 + $0xe0] sm:$0xff]
        %v280 = vld [vmem:[%s241 + $0xe8] sm:$0xff]
        %v281 = vld [vmem:[%s241 + $0xf0] sm:$0xff]
        %v282 = vld [vmem:[%s241 + $0xf8] sm:$0xff]
        %v283 = vld [vmem:[%s1] sm:$0x1]
        %v285 = vlaneseq
        %v286 = vshrl.u32 %v285, 7
        %v287 = vsub.s32 0, %v286
        %v288 = vrot.slane %v283, %v287
        %v290 = vmul.f32 %v251, %v288
        %v291 = vmul.f32 %v252, %v288
        %v292 = vmul.f32 %v253, %v288
        %v293 = vmul.f32 %v254, %v288
        %v294 = vmul.f32 %v255, %v288
        %v295 = vmul.f32 %v256, %v288
        %v296 = vmul.f32 %v257, %v288
        %v297 = vmul.f32 %v258, %v288
        %v298 = vmul.f32 %v259, %v288
        %v299 = vmul.f32 %v260, %v288
        %v300 = vmul.f32 %v261, %v288
        %v301 = vmul.f32 %v262, %v288
        %v302 = vmul.f32 %v263, %v288
        %v303 = vmul.f32 %v264, %v288
        %v304 = vmul.f32 %v265, %v288
        %v305 = vmul.f32 %v266, %v288
        %v306 = vmul.f32 %v267, %v288
        %v307 = vmul.f32 %v268, %v288
        %v308 = vmul.f32 %v269, %v288
        %v309 = vmul.f32 %v270, %v288
        %v310 = vmul.f32 %v271, %v288
        %v311 = vmul.f32 %v272, %v288
        %v312 = vmul.f32 %v273, %v288
        %v313 = vmul.f32 %v274, %v288
        %v314 = vmul.f32 %v275, %v288
        %v315 = vmul.f32 %v276, %v288
        %v316 = vmul.f32 %v277, %v288
        %v317 = vmul.f32 %v278, %v288
        %v318 = vmul.f32 %v279, %v288
        %v319 = vmul.f32 %v280, %v288
        %v320 = vmul.f32 %v281, %v288
        %v321 = vmul.f32 %v282, %v288
        %v322 = vld [vmem:[%s2] sm:$0x1]
        %v324 = vlaneseq
        %v325 = vshrl.u32 %v324, 7
        %v326 = vsub.s32 0, %v325
        %v327 = vrot.slane %v322, %v326
        %v329 = vadd.f32 %v290, %v327
        %v330 = vadd.f32 %v291, %v327
        %v331 = vadd.f32 %v292, %v327
        %v332 = vadd.f32 %v293, %v327
        %v333 = vadd.f32 %v294, %v327
        %v334 = vadd.f32 %v295, %v327
        %v335 = vadd.f32 %v296, %v327
        %v336 = vadd.f32 %v297, %v327
        %v337 = vadd.f32 %v298, %v327
        %v338 = vadd.f32 %v299, %v327
        %v339 = vadd.f32 %v300, %v327
        %v340 = vadd.f32 %v301, %v327
        %v341 = vadd.f32 %v302, %v327
        %v342 = vadd.f32 %v303, %v327
        %v343 = vadd.f32 %v304, %v327
        %v344 = vadd.f32 %v305, %v327
        %v345 = vadd.f32 %v306, %v327
        %v346 = vadd.f32 %v307, %v327
        %v347 = vadd.f32 %v308, %v327
        %v348 = vadd.f32 %v309, %v327
        %v349 = vadd.f32 %v310, %v327
        %v350 = vadd.f32 %v311, %v327
        %v351 = vadd.f32 %v312, %v327
        %v352 = vadd.f32 %v313, %v327
        %v353 = vadd.f32 %v314, %v327
        %v354 = vadd.f32 %v315, %v327
        %v355 = vadd.f32 %v316, %v327
        %v356 = vadd.f32 %v317, %v327
        %v357 = vadd.f32 %v318, %v327
        %v358 = vadd.f32 %v319, %v327
        %v359 = vadd.f32 %v320, %v327
        %v360 = vadd.f32 %v321, %v327
        %361 = vst [vmem:[#allocation2] sm:$0xff] 0.0
        %362 = vst [vmem:[#allocation2 + $0x8] sm:$0xff] 0.0
        %363 = vst [vmem:[#allocation2 + $0x10] sm:$0x3] 0.0
        %s364 = scalar_lea.vmem [#allocation2], 408
        %365 = vst [vmem:[%s364] sm:$0xff] 0.0
        %366 = vst [vmem:[%s364 + $0x8] sm:$0xff] 0.0
        %367 = vst [vmem:[%s364 + $0x10] sm:$0x3] 0.0
        %368 = vst [vmem:[#allocation2] sm:$0x1] 0.0
        %369 = vst [vmem:[#allocation2 + $0x18] sm:$0x1] 0.0
        %370 = vst [vmem:[#allocation2 + $0x30] sm:$0x1] 0.0
        %371 = vst [vmem:[#allocation2 + $0x48] sm:$0x1] 0.0
        %372 = vst [vmem:[#allocation2 + $0x60] sm:$0x1] 0.0
        %373 = vst [vmem:[#allocation2 + $0x78] sm:$0x1] 0.0
        %374 = vst [vmem:[#allocation2 + $0x90] sm:$0x1] 0.0
        %375 = vst [vmem:[#allocation2 + $0xa8] sm:$0x1] 0.0
        %376 = vst [vmem:[#allocation2 + $0xc0] sm:$0x1] 0.0
        %377 = vst [vmem:[#allocation2 + $0xd8] sm:$0x1] 0.0
        %378 = vst [vmem:[#allocation2 + $0xf0] sm:$0x1] 0.0
        %379 = vst [vmem:[#allocation2 + $0x108] sm:$0x1] 0.0
        %380 = vst [vmem:[#allocation2 + $0x120] sm:$0x1] 0.0
        %381 = vst [vmem:[#allocation2 + $0x138] sm:$0x1] 0.0
        %382 = vst [vmem:[#allocation2 + $0x150] sm:$0x1] 0.0
        %383 = vst [vmem:[#allocation2 + $0x168] sm:$0x1] 0.0
        %384 = vst [vmem:[#allocation2 + $0x180] sm:$0x1] 0.0
        %385 = vst [vmem:[#allocation2 + $0x198] sm:$0x1] 0.0
        %386 = vst [vmem:[#allocation2 + $0x11] sm:$0x1] 0.0
        %387 = vst [vmem:[#allocation2 + $0x29] sm:$0x1] 0.0
        %388 = vst [vmem:[#allocation2 + $0x41] sm:$0x1] 0.0
        %389 = vst [vmem:[#allocation2 + $0x59] sm:$0x1] 0.0
        %390 = vst [vmem:[#allocation2 + $0x71] sm:$0x1] 0.0
        %391 = vst [vmem:[#allocation2 + $0x89] sm:$0x1] 0.0
        %392 = vst [vmem:[#allocation2 + $0xa1] sm:$0x1] 0.0
        %393 = vst [vmem:[#allocation2 + $0xb9] sm:$0x1] 0.0
        %394 = vst [vmem:[#allocation2 + $0xd1] sm:$0x1] 0.0
        %395 = vst [vmem:[#allocation2 + $0xe9] sm:$0x1] 0.0
        %396 = vst [vmem:[#allocation2 + $0x101] sm:$0x1] 0.0
        %397 = vst [vmem:[#allocation2 + $0x119] sm:$0x1] 0.0
        %398 = vst [vmem:[#allocation2 + $0x131] sm:$0x1] 0.0
        %399 = vst [vmem:[#allocation2 + $0x149] sm:$0x1] 0.0
        %400 = vst [vmem:[#allocation2 + $0x161] sm:$0x1] 0.0
        %401 = vst [vmem:[#allocation2 + $0x179] sm:$0x1] 0.0
        %402 = vst [vmem:[#allocation2 + $0x191] sm:$0x1] 0.0
        %403 = vst [vmem:[#allocation2 + $0x1a9] sm:$0x1] 0.0
        %s404 = scalar_lea.vmem [#allocation2], 24
        %405 = vst [vmem:[%s404 + $0x1] sm:$0xff] %v329
        %406 = vst [vmem:[%s404 + $0x9] sm:$0xff] %v330
        %407 = vst [vmem:[%s404 + $0x19] sm:$0xff] %v331
        %408 = vst [vmem:[%s404 + $0x21] sm:$0xff] %v332
        %409 = vst [vmem:[%s404 + $0x31] sm:$0xff] %v333
        %410 = vst [vmem:[%s404 + $0x39] sm:$0xff] %v334
        %411 = vst [vmem:[%s404 + $0x49] sm:$0xff] %v335
        %412 = vst [vmem:[%s404 + $0x51] sm:$0xff] %v336
        %413 = vst [vmem:[%s404 + $0x61] sm:$0xff] %v337
        %414 = vst [vmem:[%s404 + $0x69] sm:$0xff] %v338
        %415 = vst [vmem:[%s404 + $0x79] sm:$0xff] %v339
        %416 = vst [vmem:[%s404 + $0x81] sm:$0xff] %v340
        %417 = vst [vmem:[%s404 + $0x91] sm:$0xff] %v341
        %418 = vst [vmem:[%s404 + $0x99] sm:$0xff] %v342
        %419 = vst [vmem:[%s404 + $0xa9] sm:$0xff] %v343
        %420 = vst [vmem:[%s404 + $0xb1] sm:$0xff] %v344
        %421 = vst [vmem:[%s404 + $0xc1] sm:$0xff] %v345
        %422 = vst [vmem:[%s404 + $0xc9] sm:$0xff] %v346
        %423 = vst [vmem:[%s404 + $0xd9] sm:$0xff] %v347
        %424 = vst [vmem:[%s404 + $0xe1] sm:$0xff] %v348
        %425 = vst [vmem:[%s404 + $0xf1] sm:$0xff] %v349
        %426 = vst [vmem:[%s404 + $0xf9] sm:$0xff] %v350
        %427 = vst [vmem:[%s404 + $0x109] sm:$0xff] %v351
        %428 = vst [vmem:[%s404 + $0x111] sm:$0xff] %v352
        %429 = vst [vmem:[%s404 + $0x121] sm:$0xff] %v353
        %430 = vst [vmem:[%s404 + $0x129] sm:$0xff] %v354
        %431 = vst [vmem:[%s404 + $0x139] sm:$0xff] %v355
        %432 = vst [vmem:[%s404 + $0x141] sm:$0xff] %v356
        %433 = vst [vmem:[%s404 + $0x151] sm:$0xff] %v357
        %434 = vst [vmem:[%s404 + $0x159] sm:$0xff] %v358
        %435 = vst [vmem:[%s404 + $0x169] sm:$0xff] %v359
        %436 = vst [vmem:[%s404 + $0x171] sm:$0xff] %v360
        %v437 = vld [vmem:[#allocation2] sm:$0xff]
        %v438 = vld [vmem:[#allocation2 + $0x8] sm:$0xff]
        %v439 = vld [vmem:[#allocation2 + $0x10] sm:$0x3]
        %v440 = vld [vmem:[#allocation2 + $0x18] sm:$0xff]
        %v441 = vld [vmem:[#allocation2 + $0x20] sm:$0xff]
        %v442 = vld [vmem:[#allocation2 + $0x28] sm:$0x3]
        %v443 = vld [vmem:[#allocation2 + $0x30] sm:$0xff]
        %v444 = vld [vmem:[#allocation2 + $0x38] sm:$0xff]
        %v445 = vld [vmem:[#allocation2 + $0x40] sm:$0x3]
        %v446 = vld [vmem:[#allocation2 + $0x48] sm:$0xff]
        %v447 = vld [vmem:[#allocation2 + $0x50] sm:$0xff]
        %v448 = vld [vmem:[#allocation2 + $0x58] sm:$0x3]
        %v449 = vld [vmem:[#allocation2 + $0x60] sm:$0xff]
        %v450 = vld [vmem:[#allocation2 + $0x68] sm:$0xff]
        %v451 = vld [vmem:[#allocation2 + $0x70] sm:$0x3]
        %v452 = vld [vmem:[#allocation2 + $0x78] sm:$0xff]
        %v453 = vld [vmem:[#allocation2 + $0x80] sm:$0xff]
        %v454 = vld [vmem:[#allocation2 + $0x88] sm:$0x3]
        %v455 = vld [vmem:[#allocation2 + $0x90] sm:$0xff]
        %v456 = vld [vmem:[#allocation2 + $0x98] sm:$0xff]
        %v457 = vld [vmem:[#allocation2 + $0xa0] sm:$0x3]
        %v458 = vld [vmem:[#allocation2 + $0xa8] sm:$0xff]
        %v459 = vld [vmem:[#allocation2 + $0xb0] sm:$0xff]
        %v460 = vld [vmem:[#allocation2 + $0xb8] sm:$0x3]
        %v461 = vld [vmem:[#allocation2 + $0xc0] sm:$0xff]
        %v462 = vld [vmem:[#allocation2 + $0xc8] sm:$0xff]
        %v463 = vld [vmem:[#allocation2 + $0xd0] sm:$0x3]
        %v464 = vld [vmem:[#allocation2 + $0xd8] sm:$0xff]
        %v465 = vld [vmem:[#allocation2 + $0xe0] sm:$0xff]
        %v466 = vld [vmem:[#allocation2 + $0xe8] sm:$0x3]
        %v467 = vld [vmem:[#allocation2 + $0xf0] sm:$0xff]
        %v468 = vld [vmem:[#allocation2 + $0xf8] sm:$0xff]
        %v469 = vld [vmem:[#allocation2 + $0x100] sm:$0x3]
        %v470 = vld [vmem:[#allocation2 + $0x108] sm:$0xff]
        %v471 = vld [vmem:[#allocation2 + $0x110] sm:$0xff]
        %v472 = vld [vmem:[#allocation2 + $0x118] sm:$0x3]
        %v473 = vld [vmem:[#allocation2 + $0x120] sm:$0xff]
        %v474 = vld [vmem:[#allocation2 + $0x128] sm:$0xff]
        %v475 = vld [vmem:[#allocation2 + $0x130] sm:$0x3]
        %v476 = vld [vmem:[#allocation2 + $0x138] sm:$0xff]
        %v477 = vld [vmem:[#allocation2 + $0x140] sm:$0xff]
        %v478 = vld [vmem:[#allocation2 + $0x148] sm:$0x3]
        %v479 = vld [vmem:[#allocation2 + $0x150] sm:$0xff]
        %v480 = vld [vmem:[#allocation2 + $0x158] sm:$0xff]
        %v481 = vld [vmem:[#allocation2 + $0x160] sm:$0x3]
        %v482 = vld [vmem:[#allocation2 + $0x168] sm:$0xff]
        %v483 = vld [vmem:[#allocation2 + $0x170] sm:$0xff]
        %v484 = vld [vmem:[#allocation2 + $0x178] sm:$0x3]
        %v485 = vld [vmem:[#allocation2 + $0x180] sm:$0xff]
        %v486 = vld [vmem:[#allocation2 + $0x188] sm:$0xff]
        %v487 = vld [vmem:[#allocation2 + $0x190] sm:$0x3]
        %v488 = vld [vmem:[#allocation2 + $0x198] sm:$0xff]
        %v489 = vld [vmem:[#allocation2 + $0x1a0] sm:$0xff]
        %v490 = vld [vmem:[#allocation2 + $0x1a8] sm:$0x3]
        %vm539 = vcmask 1046528
        %v540 = vrot.slane %v437, 1
        %v541 = vrot.slane %v438, 1
        %v542 = vsel %vm539, %v540, %v541
        %v543 = vrot.slane %v439, 1
        %v544 = vsel %vm539, %v541, %v543
        %v545 = vrot.slane %v440, 1
        %v546 = vrot.slane %v441, 1
        %v547 = vsel %vm539, %v545, %v546
        %v548 = vrot.slane %v442, 1
        %v549 = vsel %vm539, %v546, %v548
        %v550 = vrot.slane %v443, 1
        %v551 = vrot.slane %v444, 1
        %v552 = vsel %vm539, %v550, %v551
        %v553 = vrot.slane %v445, 1
        %v554 = vsel %vm539, %v551, %v553
        %v555 = vrot.slane %v446, 1
        %v556 = vrot.slane %v447, 1
        %v557 = vsel %vm539, %v555, %v556
        %v558 = vrot.slane %v448, 1
        %v559 = vsel %vm539, %v556, %v558
        %v560 = vrot.slane %v449, 1
        %v561 = vrot.slane %v450, 1
        %v562 = vsel %vm539, %v560, %v561
        %v563 = vrot.slane %v451, 1
        %v564 = vsel %vm539, %v561, %v563
        %v565 = vrot.slane %v452, 1
        %v566 = vrot.slane %v453, 1
        %v567 = vsel %vm539, %v565, %v566
        %v568 = vrot.slane %v454, 1
        %v569 = vsel %vm539, %v566, %v568
        %v570 = vrot.slane %v455, 1
        %v571 = vrot.slane %v456, 1
        %v572 = vsel %vm539, %v570, %v571
        %v573 = vrot.slane %v457, 1
        %v574 = vsel %vm539, %v571, %v573
        %v575 = vrot.slane %v458, 1
        %v576 = vrot.slane %v459, 1
        %v577 = vsel %vm539, %v575, %v576
        %v578 = vrot.slane %v460, 1
        %v579 = vsel %vm539, %v576, %v578
        %v580 = vrot.slane %v461, 1
        %v581 = vrot.slane %v462, 1
        %v582 = vsel %vm539, %v580, %v581
        %v583 = vrot.slane %v463, 1
        %v584 = vsel %vm539, %v581, %v583
        %v585 = vrot.slane %v464, 1
        %v586 = vrot.slane %v465, 1
        %v587 = vsel %vm539, %v585, %v586
        %v588 = vrot.slane %v466, 1
        %v589 = vsel %vm539, %v586, %v588
        %v590 = vrot.slane %v467, 1
        %v591 = vrot.slane %v468, 1
        %v592 = vsel %vm539, %v590, %v591
        %v593 = vrot.slane %v469, 1
        %v594 = vsel %vm539, %v591, %v593
        %v595 = vrot.slane %v470, 1
        %v596 = vrot.slane %v471, 1
        %v597 = vsel %vm539, %v595, %v596
        %v598 = vrot.slane %v472, 1
        %v599 = vsel %vm539, %v596, %v598
        %v600 = vrot.slane %v473, 1
        %v601 = vrot.slane %v474, 1
        %v602 = vsel %vm539, %v600, %v601
        %v603 = vrot.slane %v475, 1
        %v604 = vsel %vm539, %v601, %v603
        %v605 = vrot.slane %v476, 1
        %v606 = vrot.slane %v477, 1
        %v607 = vsel %vm539, %v605, %v606
        %v608 = vrot.slane %v478, 1
        %v609 = vsel %vm539, %v606, %v608
        %v610 = vrot.slane %v479, 1
        %v611 = vrot.slane %v480, 1
        %v612 = vsel %vm539, %v610, %v611
        %v613 = vrot.slane %v481, 1
        %v614 = vsel %vm539, %v611, %v613
        %v615 = vrot.slane %v482, 1
        %v616 = vrot.slane %v483, 1
        %v617 = vsel %vm539, %v615, %v616
        %v618 = vrot.slane %v484, 1
        %v619 = vsel %vm539, %v616, %v618
        %vm652 = vcmask 1045504
        %v653 = vrot.slane %v437, 2
        %v654 = vrot.slane %v438, 2
        %v655 = vsel %vm652, %v653, %v654
        %v656 = vrot.slane %v439, 2
        %v657 = vsel %vm652, %v654, %v656
        %v658 = vrot.slane %v440, 2
        %v659 = vrot.slane %v441, 2
        %v660 = vsel %vm652, %v658, %v659
        %v661 = vrot.slane %v442, 2
        %v662 = vsel %vm652, %v659, %v661
        %v663 = vrot.slane %v443, 2
        %v664 = vrot.slane %v444, 2
        %v665 = vsel %vm652, %v663, %v664
        %v666 = vrot.slane %v445, 2
        %v667 = vsel %vm652, %v664, %v666
        %v668 = vrot.slane %v446, 2
        %v669 = vrot.slane %v447, 2
        %v670 = vsel %vm652, %v668, %v669
        %v671 = vrot.slane %v448, 2
        %v672 = vsel %vm652, %v669, %v671
        %v673 = vrot.slane %v449, 2
        %v674 = vrot.slane %v450, 2
        %v675 = vsel %vm652, %v673, %v674
        %v676 = vrot.slane %v451, 2
        %v677 = vsel %vm652, %v674, %v676
        %v678 = vrot.slane %v452, 2
        %v679 = vrot.slane %v453, 2
        %v680 = vsel %vm652, %v678, %v679
        %v681 = vrot.slane %v454, 2
        %v682 = vsel %vm652, %v679, %v681
        %v683 = vrot.slane %v455, 2
        %v684 = vrot.slane %v456, 2
        %v685 = vsel %vm652, %v683, %v684
        %v686 = vrot.slane %v457, 2
        %v687 = vsel %vm652, %v684, %v686
        %v688 = vrot.slane %v458, 2
        %v689 = vrot.slane %v459, 2
        %v690 = vsel %vm652, %v688, %v689
        %v691 = vrot.slane %v460, 2
        %v692 = vsel %vm652, %v689, %v691
        %v693 = vrot.slane %v461, 2
        %v694 = vrot.slane %v462, 2
        %v695 = vsel %vm652, %v693, %v694
        %v696 = vrot.slane %v463, 2
        %v697 = vsel %vm652, %v694, %v696
        %v698 = vrot.slane %v464, 2
        %v699 = vrot.slane %v465, 2
        %v700 = vsel %vm652, %v698, %v699
        %v701 = vrot.slane %v466, 2
        %v702 = vsel %vm652, %v699, %v701
        %v703 = vrot.slane %v467, 2
        %v704 = vrot.slane %v468, 2
        %v705 = vsel %vm652, %v703, %v704
        %v706 = vrot.slane %v469, 2
        %v707 = vsel %vm652, %v704, %v706
        %v708 = vrot.slane %v470, 2
        %v709 = vrot.slane %v471, 2
        %v710 = vsel %vm652, %v708, %v709
        %v711 = vrot.slane %v472, 2
        %v712 = vsel %vm652, %v709, %v711
        %v713 = vrot.slane %v473, 2
        %v714 = vrot.slane %v474, 2
        %v715 = vsel %vm652, %v713, %v714
        %v716 = vrot.slane %v475, 2
        %v717 = vsel %vm652, %v714, %v716
        %v718 = vrot.slane %v476, 2
        %v719 = vrot.slane %v477, 2
        %v720 = vsel %vm652, %v718, %v719
        %v721 = vrot.slane %v478, 2
        %v722 = vsel %vm652, %v719, %v721
        %v723 = vrot.slane %v479, 2
        %v724 = vrot.slane %v480, 2
        %v725 = vsel %vm652, %v723, %v724
        %v726 = vrot.slane %v481, 2
        %v727 = vsel %vm652, %v724, %v726
        %v728 = vrot.slane %v482, 2
        %v729 = vrot.slane %v483, 2
        %v730 = vsel %vm652, %v728, %v729
        %v731 = vrot.slane %v484, 2
        %v732 = vsel %vm652, %v729, %v731
        %v768 = vrot.slane %v485, 1
        %v769 = vrot.slane %v486, 1
        %v770 = vsel %vm539, %v768, %v769
        %v771 = vrot.slane %v487, 1
        %v772 = vsel %vm539, %v769, %v771
        %v775 = vrot.slane %v485, 2
        %v776 = vrot.slane %v486, 2
        %v777 = vsel %vm652, %v775, %v776
        %v778 = vrot.slane %v487, 2
        %v779 = vsel %vm652, %v776, %v778
        %v785 = vrot.slane %v488, 1
        %v786 = vrot.slane %v489, 1
        %v787 = vsel %vm539, %v785, %v786
        %v788 = vrot.slane %v490, 1
        %v789 = vsel %vm539, %v786, %v788
        %v792 = vrot.slane %v488, 2
        %v793 = vrot.slane %v489, 2
        %v794 = vsel %vm652, %v792, %v793
        %v795 = vrot.slane %v490, 2
        %v796 = vsel %vm652, %v793, %v795
        %v799 = vld [vmem:[#allocation3] sm:$0xff]
        %v800 = vld [vmem:[#allocation3 + $0x8] sm:$0xff]
        %v801 = vld [vmem:[#allocation3 + $0x10] sm:$0xff]
        %v802 = vld [vmem:[#allocation3 + $0x18] sm:$0xff]
        %v803 = vld [vmem:[#allocation3 + $0x20] sm:$0xff]
        %v804 = vld [vmem:[#allocation3 + $0x28] sm:$0xff]
        %v805 = vld [vmem:[#allocation3 + $0x30] sm:$0xff]
        %v806 = vld [vmem:[#allocation3 + $0x38] sm:$0xff]
        %v807 = vld [vmem:[#allocation3 + $0x40] sm:$0xff]
        %v808 = vld [vmem:[#allocation3 + $0x48] sm:$0xff]
        %v809 = vld [vmem:[#allocation3 + $0x50] sm:$0xff]
        %v810 = vld [vmem:[#allocation3 + $0x58] sm:$0xff]
        %v811 = vld [vmem:[#allocation3 + $0x60] sm:$0xff]
        %v812 = vld [vmem:[#allocation3 + $0x68] sm:$0xff]
        %v813 = vld [vmem:[#allocation3 + $0x70] sm:$0xff]
        %v814 = vld [vmem:[#allocation3 + $0x78] sm:$0xff]
        %v815 = vld [vmem:[#allocation3 + $0x80] sm:$0xff]
        %v816 = vld [vmem:[#allocation3 + $0x88] sm:$0xff]
        %v817 = vld [vmem:[#allocation3 + $0x90] sm:$0xff]
        %v818 = vld [vmem:[#allocation3 + $0x98] sm:$0xff]
        %v819 = vld [vmem:[#allocation3 + $0xa0] sm:$0xff]
        %v820 = vld [vmem:[#allocation3 + $0xa8] sm:$0xff]
        %v821 = vld [vmem:[#allocation3 + $0xb0] sm:$0xff]
        %v822 = vld [vmem:[#allocation3 + $0xb8] sm:$0xff]
        %v823 = vld [vmem:[#allocation3 + $0xc0] sm:$0xff]
        %v824 = vld [vmem:[#allocation3 + $0xc8] sm:$0xff]
        %v825 = vld [vmem:[#allocation3 + $0xd0] sm:$0xff]
        %v826 = vld [vmem:[#allocation3 + $0xd8] sm:$0xff]
        %v827 = vld [vmem:[#allocation3 + $0xe0] sm:$0xff]
        %v828 = vld [vmem:[#allocation3 + $0xe8] sm:$0xff]
        %v829 = vld [vmem:[#allocation3 + $0xf0] sm:$0xff]
        %v830 = vld [vmem:[#allocation3 + $0xf8] sm:$0xff]
        %v831 = vld [vmem:[#allocation3 + $0x100] sm:$0xff]
        %v832 = vld [vmem:[#allocation3 + $0x108] sm:$0xff]
        %v833 = vld [vmem:[#allocation3 + $0x110] sm:$0xff]
        %v834 = vld [vmem:[#allocation3 + $0x118] sm:$0xff]
        %v835 = vld [vmem:[#allocation3 + $0x120] sm:$0xff]
        %v836 = vld [vmem:[#allocation3 + $0x128] sm:$0xff]
        %v837 = vld [vmem:[#allocation3 + $0x130] sm:$0xff]
        %v838 = vld [vmem:[#allocation3 + $0x138] sm:$0xff]
        %v839 = vld [vmem:[#allocation3 + $0x140] sm:$0xff]
        %v840 = vld [vmem:[#allocation3 + $0x148] sm:$0xff]
        %v841 = vld [vmem:[#allocation3 + $0x150] sm:$0xff]
        %v842 = vld [vmem:[#allocation3 + $0x158] sm:$0xff]
        %v843 = vld [vmem:[#allocation3 + $0x160] sm:$0xff]
        %v844 = vld [vmem:[#allocation3 + $0x168] sm:$0xff]
        %v845 = vld [vmem:[#allocation3 + $0x170] sm:$0xff]
        %v846 = vld [vmem:[#allocation3 + $0x178] sm:$0xff]
        %v847 = vld [vmem:[#allocation3 + $0x180] sm:$0xff]
        %v848 = vld [vmem:[#allocation3 + $0x188] sm:$0xff]
        %v849 = vld [vmem:[#allocation3 + $0x190] sm:$0xff]
        %v850 = vld [vmem:[#allocation3 + $0x198] sm:$0xff]
        %v851 = vld [vmem:[#allocation3 + $0x1a0] sm:$0xff]
        %v852 = vld [vmem:[#allocation3 + $0x1a8] sm:$0xff]
        %v853 = vld [vmem:[#allocation3 + $0x1b0] sm:$0xff]
        %v854 = vld [vmem:[#allocation3 + $0x1b8] sm:$0xff]
        %v855 = vld [vmem:[#allocation3 + $0x1c0] sm:$0xff]
        %v856 = vld [vmem:[#allocation3 + $0x1c8] sm:$0xff]
        %v857 = vld [vmem:[#allocation3 + $0x1d0] sm:$0xff]
        %v858 = vld [vmem:[#allocation3 + $0x1d8] sm:$0xff]
        %v859 = vld [vmem:[#allocation3 + $0x1e0] sm:$0xff]
        %v860 = vld [vmem:[#allocation3 + $0x1e8] sm:$0xff]
        %v861 = vld [vmem:[#allocation3 + $0x1f0] sm:$0xff]
        %v862 = vld [vmem:[#allocation3 + $0x1f8] sm:$0xff]
        %v863 = vld [vmem:[#allocation3 + $0x200] sm:$0xff]
        %v864 = vld [vmem:[#allocation3 + $0x208] sm:$0xff]
        %v865 = vld [vmem:[#allocation3 + $0x210] sm:$0xff]
        %v866 = vld [vmem:[#allocation3 + $0x218] sm:$0xff]
        %v867 = vld [vmem:[#allocation3 + $0x220] sm:$0xff]
        %v868 = vld [vmem:[#allocation3 + $0x228] sm:$0xff]
        %v869 = vld [vmem:[#allocation3 + $0x230] sm:$0xff]
        %v870 = vld [vmem:[#allocation3 + $0x238] sm:$0xff]
        %v871 = vld [vmem:[#allocation3 + $0x240] sm:$0xff]
        %v872 = vld [vmem:[#allocation3 + $0x248] sm:$0xff]
        %v873 = vld [vmem:[#allocation3 + $0x250] sm:$0xff]
        %v874 = vld [vmem:[#allocation3 + $0x258] sm:$0xff]
        %v875 = vld [vmem:[#allocation3 + $0x260] sm:$0xff]
        %v876 = vld [vmem:[#allocation3 + $0x268] sm:$0xff]
        %v877 = vld [vmem:[#allocation3 + $0x270] sm:$0xff]
        %v878 = vld [vmem:[#allocation3 + $0x278] sm:$0xff]
        %v879 = vld [vmem:[#allocation3 + $0x280] sm:$0xff]
        %v880 = vld [vmem:[#allocation3 + $0x288] sm:$0xff]
        %v881 = vld [vmem:[#allocation3 + $0x290] sm:$0xff]
        %v882 = vld [vmem:[#allocation3 + $0x298] sm:$0xff]
        %v883 = vld [vmem:[#allocation3 + $0x2a0] sm:$0xff]
        %v884 = vld [vmem:[#allocation3 + $0x2a8] sm:$0xff]
        %v885 = vld [vmem:[#allocation3 + $0x2b0] sm:$0xff]
        %v886 = vld [vmem:[#allocation3 + $0x2b8] sm:$0xff]
        %v887 = vld [vmem:[#allocation3 + $0x2c0] sm:$0xff]
        %v888 = vld [vmem:[#allocation3 + $0x2c8] sm:$0xff]
        %v889 = vld [vmem:[#allocation3 + $0x2d0] sm:$0xff]
        %v890 = vld [vmem:[#allocation3 + $0x2d8] sm:$0xff]
        %v891 = vld [vmem:[#allocation3 + $0x2e0] sm:$0xff]
        %v892 = vld [vmem:[#allocation3 + $0x2e8] sm:$0xff]
        %v893 = vld [vmem:[#allocation3 + $0x2f0] sm:$0xff]
        %v894 = vld [vmem:[#allocation3 + $0x2f8] sm:$0xff]
        %v895 = vld [vmem:[#allocation3 + $0x300] sm:$0xff]
        %v896 = vld [vmem:[#allocation3 + $0x308] sm:$0xff]
        %v897 = vld [vmem:[#allocation3 + $0x310] sm:$0xff]
        %v898 = vld [vmem:[#allocation3 + $0x318] sm:$0xff]
        %v899 = vld [vmem:[#allocation3 + $0x320] sm:$0xff]
        %v900 = vld [vmem:[#allocation3 + $0x328] sm:$0xff]
        %v901 = vld [vmem:[#allocation3 + $0x330] sm:$0xff]
        %v902 = vld [vmem:[#allocation3 + $0x338] sm:$0xff]
        %v903 = vld [vmem:[#allocation3 + $0x340] sm:$0xff]
        %v904 = vld [vmem:[#allocation3 + $0x348] sm:$0xff]
        %v905 = vld [vmem:[#allocation3 + $0x350] sm:$0xff]
        %v906 = vld [vmem:[#allocation3 + $0x358] sm:$0xff]
        %v907 = vld [vmem:[#allocation3 + $0x360] sm:$0xff]
        %v908 = vld [vmem:[#allocation3 + $0x368] sm:$0xff]
        %v909 = vld [vmem:[#allocation3 + $0x370] sm:$0xff]
        %v910 = vld [vmem:[#allocation3 + $0x378] sm:$0xff]
        %v911 = vld [vmem:[#allocation3 + $0x380] sm:$0xff]
        %v912 = vld [vmem:[#allocation3 + $0x388] sm:$0xff]
        %v913 = vld [vmem:[#allocation3 + $0x390] sm:$0xff]
        %v914 = vld [vmem:[#allocation3 + $0x398] sm:$0xff]
        %v915 = vld [vmem:[#allocation3 + $0x3a0] sm:$0xff]
        %v916 = vld [vmem:[#allocation3 + $0x3a8] sm:$0xff]
        %v917 = vld [vmem:[#allocation3 + $0x3b0] sm:$0xff]
        %v918 = vld [vmem:[#allocation3 + $0x3b8] sm:$0xff]
        %v919 = vld [vmem:[#allocation3 + $0x3c0] sm:$0xff]
        %v920 = vld [vmem:[#allocation3 + $0x3c8] sm:$0xff]
        %v921 = vld [vmem:[#allocation3 + $0x3d0] sm:$0xff]
        %v922 = vld [vmem:[#allocation3 + $0x3d8] sm:$0xff]
        %v923 = vld [vmem:[#allocation3 + $0x3e0] sm:$0xff]
        %v924 = vld [vmem:[#allocation3 + $0x3e8] sm:$0xff]
        %v925 = vld [vmem:[#allocation3 + $0x3f0] sm:$0xff]
        %v926 = vld [vmem:[#allocation3 + $0x3f8] sm:$0xff]
        %v927 = vld [vmem:[#allocation3 + $0x400] sm:$0xff]
        %v928 = vld [vmem:[#allocation3 + $0x408] sm:$0xff]
        %v929 = vld [vmem:[#allocation3 + $0x410] sm:$0xff]
        %v930 = vld [vmem:[#allocation3 + $0x418] sm:$0xff]
        %v931 = vld [vmem:[#allocation3 + $0x420] sm:$0xff]
        %v932 = vld [vmem:[#allocation3 + $0x428] sm:$0xff]
        %v933 = vld [vmem:[#allocation3 + $0x430] sm:$0xff]
        %v934 = vld [vmem:[#allocation3 + $0x438] sm:$0xff]
        %v935 = vld [vmem:[#allocation3 + $0x440] sm:$0xff]
        %v936 = vld [vmem:[#allocation3 + $0x448] sm:$0xff]
        %v937 = vld [vmem:[#allocation3 + $0x450] sm:$0xff]
        %v938 = vld [vmem:[#allocation3 + $0x458] sm:$0xff]
        %v939 = vld [vmem:[#allocation3 + $0x460] sm:$0xff]
        %v940 = vld [vmem:[#allocation3 + $0x468] sm:$0xff]
        %v941 = vld [vmem:[#allocation3 + $0x470] sm:$0xff]
        %v942 = vld [vmem:[#allocation3 + $0x478] sm:$0xff]
        %943 = vmatprep.subr.mxu0 0.0
        %944 = vmatpush1.msra.mxu0 %v799
        %945 = vmatprep.subr.mxu0 0.0
        %946 = vmatpush1.msra.mxu0 %v800
        %947 = vmatprep.subr.mxu0 0.0
        %948 = vmatpush1.msra.mxu0 %v801
        %949 = vmatprep.subr.mxu0 0.0
        %950 = vmatpush1.msra.mxu0 %v802
        %951 = vmatprep.subr.mxu0 0.0
        %952 = vmatpush1.msra.mxu0 %v803
        %953 = vmatprep.subr.mxu0 0.0
        %954 = vmatpush1.msra.mxu0 %v804
        %955 = vmatprep.subr.mxu0 0.0
        %956 = vmatpush1.msra.mxu0 %v805
        %957 = vmatprep.subr.mxu0 0.0
        %958 = vmatpush1.msra.mxu0 %v806
        %959 = vmatprep.subr.mxu0 0.0
        %960 = vmatpush1.msra.mxu0 %v807
        %961 = vmatprep.subr.mxu0 0.0
        %962 = vmatpush1.msra.mxu0 %v808
        %963 = vmatprep.subr.mxu0 0.0
        %964 = vmatpush1.msra.mxu0 %v809
        %965 = vmatprep.subr.mxu0 0.0
        %966 = vmatpush1.msra.mxu0 %v810
        %967 = vmatprep.subr.mxu0 0.0
        %968 = vmatpush1.msra.mxu0 %v811
        %969 = vmatprep.subr.mxu0 0.0
        %970 = vmatpush1.msra.mxu0 %v812
        %971 = vmatprep.subr.mxu0 0.0
        %972 = vmatpush1.msra.mxu0 %v813
        %973 = vmatprep.subr.mxu0 0.0
        %974 = vmatpush1.msra.mxu0 %v814
        %975 = vmatprep.subr.mxu0 0.0
        %976 = vmatpush1.msra.mxu0 %v815
        %977 = vmatprep.subr.mxu0 0.0
        %978 = vmatpush1.msra.mxu0 %v816
        %979 = vmatprep.subr.mxu0 0.0
        %980 = vmatpush1.msra.mxu0 %v817
        %981 = vmatprep.subr.mxu0 0.0
        %982 = vmatpush1.msra.mxu0 %v818
        %983 = vmatprep.subr.mxu0 0.0
        %984 = vmatpush1.msra.mxu0 %v819
        %985 = vmatprep.subr.mxu0 0.0
        %986 = vmatpush1.msra.mxu0 %v820
        %987 = vmatprep.subr.mxu0 0.0
        %988 = vmatpush1.msra.mxu0 %v821
        %989 = vmatprep.subr.mxu0 0.0
        %990 = vmatpush1.msra.mxu0 %v822
        %991 = vmatprep.subr.mxu0 0.0
        %992 = vmatpush1.msra.mxu0 %v823
        %993 = vmatprep.subr.mxu0 0.0
        %994 = vmatpush1.msra.mxu0 %v824
        %995 = vmatprep.subr.mxu0 0.0
        %996 = vmatpush1.msra.mxu0 %v825
        %997 = vmatprep.subr.mxu0 0.0
        %998 = vmatpush1.msra.mxu0 %v826
        %999 = vmatprep.subr.mxu0 0.0
        %1000 = vmatpush1.msra.mxu0 %v827
        %1001 = vmatprep.subr.mxu0 0.0
        %1002 = vmatpush1.msra.mxu0 %v828
        %1003 = vmatprep.subr.mxu0 0.0
        %1004 = vmatpush1.msra.mxu0 %v829
        %1005 = vmatprep.subr.mxu0 0.0
        %1006 = vmatpush1.msra.mxu0 %v830
        %1007 = vmatprep.mubr.f32.mxu0 %v542
        %1008 = vmatmul.mubr.f32.gmra.mrb[0].mxu0 %v437
        %v1009 = vpop.f32.mrb[0].mxu0
        %v1010 = vadd.f32 0.0, %v1009
        %v1011 = vpop.f32.mrb[0].mxu0
        %1012 = vmatprep.mubr.f32.mxu0 %v544
        %1013 = vmatmul.mubr.f32.gmra.mrb[0].mxu0 %v438
        %v1014 = vpop.f32.mrb[0].mxu0
        %v1015 = vadd.f32 0.0, %v1014
        %v1016 = vpop.f32.mrb[0].mxu0
        %1017 = vmatprep.mubr.f32.mxu0 %v547
        %1018 = vmatmul.mubr.f32.gmra.mrb[0].mxu0 %v440
        %v1019 = vpop.f32.mrb[0].mxu0
        %v1020 = vadd.f32 0.0, %v1019
        %v1021 = vpop.f32.mrb[0].mxu0
        %1022 = vmatprep.mubr.f32.mxu0 %v549
        %1023 = vmatmul.mubr.f32.gmra.mrb[0].mxu0 %v441
        %v1024 = vpop.f32.mrb[0].mxu0
        %v1025 = vadd.f32 0.0, %v1024
        %v1026 = vpop.f32.mrb[0].mxu0
        %1027 = vmatprep.mubr.f32.mxu0 %v552
        %1028 = vmatmul.mubr.f32.gmra.mrb[0].mxu0 %v443
        %v1029 = vpop.f32.mrb[0].mxu0
        %v1030 = vadd.f32 0.0, %v1029
        %v1031 = vpop.f32.mrb[0].mxu0
        %1032 = vmatprep.mubr.f32.mxu0 %v554
        %1033 = vmatmul.mubr.f32.gmra.mrb[0].mxu0 %v444
        %v1034 = vpop.f32.mrb[0].mxu0
        %v1035 = vadd.f32 0.0, %v1034
        %v1036 = vpop.f32.mrb[0].mxu0
        %1037 = vmatprep.mubr.f32.mxu0 %v557
        %1038 = vmatmul.mubr.f32.gmra.mrb[0].mxu0 %v446
        %v1039 = vpop.f32.mrb[0].mxu0
        %v1040 = vadd.f32 0.0, %v1039
        %v1041 = vpop.f32.mrb[0].mxu0
        %1042 = vmatprep.mubr.f32.mxu0 %v559
        %1043 = vmatmul.mubr.f32.gmra.mrb[0].mxu0 %v447
        %v1044 = vpop.f32.mrb[0].mxu0
        %v1045 = vadd.f32 0.0, %v1044
        %v1046 = vpop.f32.mrb[0].mxu0
        %1047 = vmatprep.mubr.f32.mxu0 %v562
        %1048 = vmatmul.mubr.f32.gmra.mrb[0].mxu0 %v449
        %v1049 = vpop.f32.mrb[0].mxu0
        %v1050 = vadd.f32 0.0, %v1049
        %v1051 = vpop.f32.mrb[0].mxu0
        %1052 = vmatprep.mubr.f32.mxu0 %v564
        %1053 = vmatmul.mubr.f32.gmra.mrb[0].mxu0 %v450
        %v1054 = vpop.f32.mrb[0].mxu0
        %v1055 = vadd.f32 0.0, %v1054
        %v1056 = vpop.f32.mrb[0].mxu0
        %1057 = vmatprep.mubr.f32.mxu0 %v567
        %1058 = vmatmul.mubr.f32.gmra.mrb[0].mxu0 %v452
        %v1059 = vpop.f32.mrb[0].mxu0
        %v1060 = vadd.f32 0.0, %v1059
        %v1061 = vpop.f32.mrb[0].mxu0
        %1062 = vmatprep.mubr.f32.mxu0 %v569
        %1063 = vmatmul.mubr.f32.gmra.mrb[0].mxu0 %v453
        %v1064 = vpop.f32.mrb[0].mxu0
        %v1065 = vadd.f32 0.0, %v1064
        %v1066 = vpop.f32.mrb[0].mxu0
        %1067 = vmatprep.mubr.f32.mxu0 %v572
        %1068 = vmatmul.mubr.f32.gmra.mrb[0].mxu0 %v455
        %v1069 = vpop.f32.mrb[0].mxu0
        %v1070 = vadd.f32 0.0, %v1069
        %v1071 = vpop.f32.mrb[0].mxu0
        %1072 = vmatprep.mubr.f32.mxu0 %v574
        %1073 = vmatmul.mubr.f32.gmra.mrb[0].mxu0 %v456
        %v1074 = vpop.f32.mrb[0].mxu0
        %v1075 = vadd.f32 0.0, %v1074
        %v1076 = vpop.f32.mrb[0].mxu0
        %1077 = vmatprep.mubr.f32.mxu0 %v577
        %1078 = vmatmul.mubr.f32.gmra.mrb[0].mxu0 %v458
        %v1079 = vpop.f32.mrb[0].mxu0
        %v1080 = vadd.f32 0.0, %v1079
        %v1081 = vpop.f32.mrb[0].mxu0
        %1082 = vmatprep.mubr.f32.mxu0 %v579
        %1083 = vmatmul.mubr.f32.gmra.mrb[0].mxu0 %v459
        %v1084 = vpop.f32.mrb[0].mxu0
        %v1085 = vadd.f32 0.0, %v1084
        %v1086 = vpop.f32.mrb[0].mxu0
        %1087 = vmatprep.mubr.f32.mxu0 %v582
        %1088 = vmatmul.mubr.f32.gmra.mrb[0].mxu0 %v461
        %v1089 = vpop.f32.mrb[0].mxu0
        %v1090 = vadd.f32 0.0, %v1089
        %v1091 = vpop.f32.mrb[0].mxu0
        %1092 = vmatprep.mubr.f32.mxu0 %v584
        %1093 = vmatmul.mubr.f32.gmra.mrb[0].mxu0 %v462
        %v1094 = vpop.f32.mrb[0].mxu0
        %v1095 = vadd.f32 0.0, %v1094
        %v1096 = vpop.f32.mrb[0].mxu0
        %1097 = vmatprep.mubr.f32.mxu0 %v587
        %1098 = vmatmul.mubr.f32.gmra.mrb[0].mxu0 %v464
        %v1099 = vpop.f32.mrb[0].mxu0
        %v1100 = vadd.f32 0.0, %v1099
        %v1101 = vpop.f32.mrb[0].mxu0
        %1102 = vmatprep.mubr.f32.mxu0 %v589
        %1103 = vmatmul.mubr.f32.gmra.mrb[0].mxu0 %v465
        %v1104 = vpop.f32.mrb[0].mxu0
        %v1105 = vadd.f32 0.0, %v1104
        %v1106 = vpop.f32.mrb[0].mxu0
        %1107 = vmatprep.mubr.f32.mxu0 %v592
        %1108 = vmatmul.mubr.f32.gmra.mrb[0].mxu0 %v467
        %v1109 = vpop.f32.mrb[0].mxu0
        %v1110 = vadd.f32 0.0, %v1109
        %v1111 = vpop.f32.mrb[0].mxu0
        %1112 = vmatprep.mubr.f32.mxu0 %v594
        %1113 = vmatmul.mubr.f32.gmra.mrb[0].mxu0 %v468
        %v1114 = vpop.f32.mrb[0].mxu0
        %v1115 = vadd.f32 0.0, %v1114
        %v1116 = vpop.f32.mrb[0].mxu0
        %1117 = vmatprep.mubr.f32.mxu0 %v597
        %1118 = vmatmul.mubr.f32.gmra.mrb[0].mxu0 %v470
        %v1119 = vpop.f32.mrb[0].mxu0
        %v1120 = vadd.f32 0.0, %v1119
        %v1121 = vpop.f32.mrb[0].mxu0
        %1122 = vmatprep.mubr.f32.mxu0 %v599
        %1123 = vmatmul.mubr.f32.gmra.mrb[0].mxu0 %v471
        %v1124 = vpop.f32.mrb[0].mxu0
        %v1125 = vadd.f32 0.0, %v1124
        %v1126 = vpop.f32.mrb[0].mxu0
        %1127 = vmatprep.mubr.f32.mxu0 %v602
        %1128 = vmatmul.mubr.f32.gmra.mrb[0].mxu0 %v473
        %v1129 = vpop.f32.mrb[0].mxu0
        %v1130 = vadd.f32 0.0, %v1129
        %v1131 = vpop.f32.mrb[0].mxu0
        %1132 = vmatprep.mubr.f32.mxu0 %v604
        %1133 = vmatmul.mubr.f32.gmra.mrb[0].mxu0 %v474
        %v1134 = vpop.f32.mrb[0].mxu0
        %v1135 = vadd.f32 0.0, %v1134
        %v1136 = vpop.f32.mrb[0].mxu0
        %1137 = vmatprep.mubr.f32.mxu0 %v607
        %1138 = vmatmul.mubr.f32.gmra.mrb[0].mxu0 %v476
        %v1139 = vpop.f32.mrb[0].mxu0
        %v1140 = vadd.f32 0.0, %v1139
        %v1141 = vpop.f32.mrb[0].mxu0
        %1142 = vmatprep.mubr.f32.mxu0 %v609
        %1143 = vmatmul.mubr.f32.gmra.mrb[0].mxu0 %v477
        %v1144 = vpop.f32.mrb[0].mxu0
        %v1145 = vadd.f32 0.0, %v1144
        %v1146 = vpop.f32.mrb[0].mxu0
        %1147 = vmatprep.mubr.f32.mxu0 %v612
        %1148 = vmatmul.mubr.f32.gmra.mrb[0].mxu0 %v479
        %v1149 = vpop.f32.mrb[0].mxu0
        %v1150 = vadd.f32 0.0, %v1149
        %v1151 = vpop.f32.mrb[0].mxu0
        %1152 = vmatprep.mubr.f32.mxu0 %v614
        %1153 = vmatmul.mubr.f32.gmra.mrb[0].mxu0 %v480
        %v1154 = vpop.f32.mrb[0].mxu0
        %v1155 = vadd.f32 0.0, %v1154
        %v1156 = vpop.f32.mrb[0].mxu0
        %1157 = vmatprep.mubr.f32.mxu0 %v617
        %1158 = vmatmul.mubr.f32.gmra.mrb[0].mxu0 %v482
        %v1159 = vpop.f32.mrb[0].mxu0
        %v1160 = vadd.f32 0.0, %v1159
        %v1161 = vpop.f32.mrb[0].mxu0
        %1162 = vmatprep.mubr.f32.mxu0 %v619
        %1163 = vmatmul.mubr.f32.gmra.mrb[0].mxu0 %v483
        %v1164 = vpop.f32.mrb[0].mxu0
        %v1165 = vadd.f32 0.0, %v1164
        %v1166 = vpop.f32.mrb[0].mxu0
        %1167 = vdwg.mxu0
        %1168 = vmatprep.subr.mxu0 0.0
        %1169 = vmatpush1.msra.mxu0 %v831
        %1170 = vmatprep.subr.mxu0 0.0
        %1171 = vmatpush1.msra.mxu0 %v832
        %1172 = vmatprep.subr.mxu0 0.0
        %1173 = vmatpush1.msra.mxu0 %v833
        %1174 = vmatprep.subr.mxu0 0.0
        %1175 = vmatpush1.msra.mxu0 %v834
        %1176 = vmatprep.subr.mxu0 0.0
        %1177 = vmatpush1.msra.mxu0 %v835
        %1178 = vmatprep.subr.mxu0 0.0
        %1179 = vmatpush1.msra.mxu0 %v836
        %1180 = vmatprep.subr.mxu0 0.0
        %1181 = vmatpush1.msra.mxu0 %v837
        %1182 = vmatprep.subr.mxu0 0.0
        %1183 = vmatpush1.msra.mxu0 %v838
        %1184 = vmatprep.subr.mxu0 0.0
        %1185 = vmatpush1.msra.mxu0 %v839
        %1186 = vmatprep.subr.mxu0 0.0
        %1187 = vmatpush1.msra.mxu0 %v840
        %1188 = vmatprep.subr.mxu0 0.0
        %1189 = vmatpush1.msra.mxu0 %v841
        %1190 = vmatprep.subr.mxu0 0.0
        %1191 = vmatpush1.msra.mxu0 %v842
        %1192 = vmatprep.subr.mxu0 0.0
        %1193 = vmatpush1.msra.mxu0 %v843
        %1194 = vmatprep.subr.mxu0 0.0
        %1195 = vmatpush1.msra.mxu0 %v844
        %1196 = vmatprep.subr.mxu0 0.0
        %1197 = vmatpush1.msra.mxu0 %v845
        %1198 = vmatprep.subr.mxu0 0.0
        %1199 = vmatpush1.msra.mxu0 %v846
        %1200 = vmatprep.subr.mxu0 0.0
        %1201 = vmatpush1.msra.mxu0 %v847
        %1202 = vmatprep.subr.mxu0 0.0
        %1203 = vmatpush1.msra.mxu0 %v848
        %1204 = vmatprep.subr.mxu0 0.0
        %1205 = vmatpush1.msra.mxu0 %v849
        %1206 = vmatprep.subr.mxu0 0.0
        %1207 = vmatpush1.msra.mxu0 %v850
        %1208 = vmatprep.subr.mxu0 0.0
        %1209 = vmatpush1.msra.mxu0 %v851
        %1210 = vmatprep.subr.mxu0 0.0
        %1211 = vmatpush1.msra.mxu0 %v852
        %1212 = vmatprep.subr.mxu0 0.0
        %1213 = vmatpush1.msra.mxu0 %v853
        %1214 = vmatprep.subr.mxu0 0.0
        %1215 = vmatpush1.msra.mxu0 %v854
        %1216 = vmatprep.subr.mxu0 0.0
        %1217 = vmatpush1.msra.mxu0 %v855
        %1218 = vmatprep.subr.mxu0 0.0
        %1219 = vmatpush1.msra.mxu0 %v856
        %1220 = vmatprep.subr.mxu0 0.0
        %1221 = vmatpush1.msra.mxu0 %v857
        %1222 = vmatprep.subr.mxu0 0.0
        %1223 = vmatpush1.msra.mxu0 %v858
        %1224 = vmatprep.subr.mxu0 0.0
        %1225 = vmatpush1.msra.mxu0 %v859
        %1226 = vmatprep.subr.mxu0 0.0
        %1227 = vmatpush1.msra.mxu0 %v860
        %1228 = vmatprep.subr.mxu0 0.0
        %1229 = vmatpush1.msra.mxu0 %v861
        %1230 = vmatprep.subr.mxu0 0.0
        %1231 = vmatpush1.msra.mxu0 %v862
        %1232 = vmatprep.mubr.f32.mxu0 %v440
        %1233 = vmatmul.mubr.f32.gmra.mrb[0].mxu0 %v655
        %v1234 = vpop.f32.mrb[0].mxu0
        %v1235 = vadd.f32 %v1010, %v1234
        %v1236 = vpop.f32.mrb[0].mxu0
        %1237 = vmatprep.mubr.f32.mxu0 %v441
        %1238 = vmatmul.mubr.f32.gmra.mrb[0].mxu0 %v657
        %v1239 = vpop.f32.mrb[0].mxu0
        %v1240 = vadd.f32 %v1015, %v1239
        %v1241 = vpop.f32.mrb[0].mxu0
        %1242 = vmatprep.mubr.f32.mxu0 %v443
        %1243 = vmatmul.mubr.f32.gmra.mrb[0].mxu0 %v660
        %v1244 = vpop.f32.mrb[0].mxu0
        %v1245 = vadd.f32 %v1020, %v1244
        %v1246 = vpop.f32.mrb[0].mxu0
        %1247 = vmatprep.mubr.f32.mxu0 %v444
        %1248 = vmatmul.mubr.f32.gmra.mrb[0].mxu0 %v662
        %v1249 = vpop.f32.mrb[0].mxu0
        %v1250 = vadd.f32 %v1025, %v1249
        %v1251 = vpop.f32.mrb[0].mxu0
        %1252 = vmatprep.mubr.f32.mxu0 %v446
        %1253 = vmatmul.mubr.f32.gmra.mrb[0].mxu0 %v665
        %v1254 = vpop.f32.mrb[0].mxu0
        %v1255 = vadd.f32 %v1030, %v1254
        %v1256 = vpop.f32.mrb[0].mxu0
        %1257 = vmatprep.mubr.f32.mxu0 %v447
        %1258 = vmatmul.mubr.f32.gmra.mrb[0].mxu0 %v667
        %v1259 = vpop.f32.mrb[0].mxu0
        %v1260 = vadd.f32 %v1035, %v1259
        %v1261 = vpop.f32.mrb[0].mxu0
        %1262 = vmatprep.mubr.f32.mxu0 %v449
        %1263 = vmatmul.mubr.f32.gmra.mrb[0].mxu0 %v670
        %v1264 = vpop.f32.mrb[0].mxu0
        %v1265 = vadd.f32 %v1040, %v1264
        %v1266 = vpop.f32.mrb[0].mxu0
        %1267 = vmatprep.mubr.f32.mxu0 %v450
        %1268 = vmatmul.mubr.f32.gmra.mrb[0].mxu0 %v672
        %v1269 = vpop.f32.mrb[0].mxu0
        %v1270 = vadd.f32 %v1045, %v1269
        %v1271 = vpop.f32.mrb[0].mxu0
        %1272 = vmatprep.mubr.f32.mxu0 %v452
        %1273 = vmatmul.mubr.f32.gmra.mrb[0].mxu0 %v675
        %v1274 = vpop.f32.mrb[0].mxu0
        %v1275 = vadd.f32 %v1050, %v1274
        %v1276 = vpop.f32.mrb[0].mxu0
        %1277 = vmatprep.mubr.f32.mxu0 %v453
        %1278 = vmatmul.mubr.f32.gmra.mrb[0].mxu0 %v677
        %v1279 = vpop.f32.mrb[0].mxu0
        %v1280 = vadd.f32 %v1055, %v1279
        %v1281 = vpop.f32.mrb[0].mxu0
        %1282 = vmatprep.mubr.f32.mxu0 %v455
        %1283 = vmatmul.mubr.f32.gmra.mrb[0].mxu0 %v680
        %v1284 = vpop.f32.mrb[0].mxu0
        %v1285 = vadd.f32 %v1060, %v1284
        %v1286 = vpop.f32.mrb[0].mxu0
        %1287 = vmatprep.mubr.f32.mxu0 %v456
        %1288 = vmatmul.mubr.f32.gmra.mrb[0].mxu0 %v682
        %v1289 = vpop.f32.mrb[0].mxu0
        %v1290 = vadd.f32 %v1065, %v1289
        %v1291 = vpop.f32.mrb[0].mxu0
        %1292 = vmatprep.mubr.f32.mxu0 %v458
        %1293 = vmatmul.mubr.f32.gmra.mrb[0].mxu0 %v685
        %v1294 = vpop.f32.mrb[0].mxu0
        %v1295 = vadd.f32 %v1070, %v1294
        %v1296 = vpop.f32.mrb[0].mxu0
        %1297 = vmatprep.mubr.f32.mxu0 %v459
        %1298 = vmatmul.mubr.f32.gmra.mrb[0].mxu0 %v687
        %v1299 = vpop.f32.mrb[0].mxu0
        %v1300 = vadd.f32 %v1075, %v1299
        %v1301 = vpop.f32.mrb[0].mxu0
        %1302 = vmatprep.mubr.f32.mxu0 %v461
        %1303 = vmatmul.mubr.f32.gmra.mrb[0].mxu0 %v690
        %v1304 = vpop.f32.mrb[0].mxu0
        %v1305 = vadd.f32 %v1080, %v1304
        %v1306 = vpop.f32.mrb[0].mxu0
        %1307 = vmatprep.mubr.f32.mxu0 %v462
        %1308 = vmatmul.mubr.f32.gmra.mrb[0].mxu0 %v692
        %v1309 = vpop.f32.mrb[0].mxu0
        %v1310 = vadd.f32 %v1085, %v1309
        %v1311 = vpop.f32.mrb[0].mxu0
        %1312 = vmatprep.mubr.f32.mxu0 %v464
        %1313 = vmatmul.mubr.f32.gmra.mrb[0].mxu0 %v695
        %v1314 = vpop.f32.mrb[0].mxu0
        %v1315 = vadd.f32 %v1090, %v1314
        %v1316 = vpop.f32.mrb[0].mxu0
        %1317 = vmatprep.mubr.f32.mxu0 %v465
        %1318 = vmatmul.mubr.f32.gmra.mrb[0].mxu0 %v697
        %v1319 = vpop.f32.mrb[0].mxu0
        %v1320 = vadd.f32 %v1095, %v1319
        %v1321 = vpop.f32.mrb[0].mxu0
        %1322 = vmatprep.mubr.f32.mxu0 %v467
        %1323 = vmatmul.mubr.f32.gmra.mrb[0].mxu0 %v700
        %v1324 = vpop.f32.mrb[0].mxu0
        %v1325 = vadd.f32 %v1100, %v1324
        %v1326 = vpop.f32.mrb[0].mxu0
        %1327 = vmatprep.mubr.f32.mxu0 %v468
        %1328 = vmatmul.mubr.f32.gmra.mrb[0].mxu0 %v702
        %v1329 = vpop.f32.mrb[0].mxu0
        %v1330 = vadd.f32 %v1105, %v1329
        %v1331 = vpop.f32.mrb[0].mxu0
        %1332 = vmatprep.mubr.f32.mxu0 %v470
        %1333 = vmatmul.mubr.f32.gmra.mrb[0].mxu0 %v705
        %v1334 = vpop.f32.mrb[0].mxu0
        %v1335 = vadd.f32 %v1110, %v1334
        %v1336 = vpop.f32.mrb[0].mxu0
        %1337 = vmatprep.mubr.f32.mxu0 %v471
        %1338 = vmatmul.mubr.f32.gmra.mrb[0].mxu0 %v707
        %v1339 = vpop.f32.mrb[0].mxu0
        %v1340 = vadd.f32 %v1115, %v1339
        %v1341 = vpop.f32.mrb[0].mxu0
        %1342 = vmatprep.mubr.f32.mxu0 %v473
        %1343 = vmatmul.mubr.f32.gmra.mrb[0].mxu0 %v710
        %v1344 = vpop.f32.mrb[0].mxu0
        %v1345 = vadd.f32 %v1120, %v1344
        %v1346 = vpop.f32.mrb[0].mxu0
        %1347 = vmatprep.mubr.f32.mxu0 %v474
        %1348 = vmatmul.mubr.f32.gmra.mrb[0].mxu0 %v712
        %v1349 = vpop.f32.mrb[0].mxu0
        %v1350 = vadd.f32 %v1125, %v1349
        %v1351 = vpop.f32.mrb[0].mxu0
        %1352 = vmatprep.mubr.f32.mxu0 %v476
        %1353 = vmatmul.mubr.f32.gmra.mrb[0].mxu0 %v715
        %v1354 = vpop.f32.mrb[0].mxu0
        %v1355 = vadd.f32 %v1130, %v1354
        %v1356 = vpop.f32.mrb[0].mxu0
        %1357 = vmatprep.mubr.f32.mxu0 %v477
        %1358 = vmatmul.mubr.f32.gmra.mrb[0].mxu0 %v717
        %v1359 = vpop.f32.mrb[0].mxu0
        %v1360 = vadd.f32 %v1135, %v1359
        %v1361 = vpop.f32.mrb[0].mxu0
        %1362 = vmatprep.mubr.f32.mxu0 %v479
        %1363 = vmatmul.mubr.f32.gmra.mrb[0].mxu0 %v720
        %v1364 = vpop.f32.mrb[0].mxu0
        %v1365 = vadd.f32 %v1140, %v1364
        %v1366 = vpop.f32.mrb[0].mxu0
        %1367 = vmatprep.mubr.f32.mxu0 %v480
        %1368 = vmatmul.mubr.f32.gmra.mrb[0].mxu0 %v722
        %v1369 = vpop.f32.mrb[0].mxu0
        %v1370 = vadd.f32 %v1145, %v1369
        %v1371 = vpop.f32.mrb[0].mxu0
        %1372 = vmatprep.mubr.f32.mxu0 %v482
        %1373 = vmatmul.mubr.f32.gmra.mrb[0].mxu0 %v725
        %v1374 = vpop.f32.mrb[0].mxu0
        %v1375 = vadd.f32 %v1150, %v1374
        %v1376 = vpop.f32.mrb[0].mxu0
        %1377 = vmatprep.mubr.f32.mxu0 %v483
        %1378 = vmatmul.mubr.f32.gmra.mrb[0].mxu0 %v727
        %v1379 = vpop.f32.mrb[0].mxu0
        %v1380 = vadd.f32 %v1155, %v1379
        %v1381 = vpop.f32.mrb[0].mxu0
        %1382 = vmatprep.mubr.f32.mxu0 %v485
        %1383 = vmatmul.mubr.f32.gmra.mrb[0].mxu0 %v730
        %v1384 = vpop.f32.mrb[0].mxu0
        %v1385 = vadd.f32 %v1160, %v1384
        %v1386 = vpop.f32.mrb[0].mxu0
        %1387 = vmatprep.mubr.f32.mxu0 %v486
        %1388 = vmatmul.mubr.f32.gmra.mrb[0].mxu0 %v732
        %v1389 = vpop.f32.mrb[0].mxu0
        %v1390 = vadd.f32 %v1165, %v1389
        %v1391 = vpop.f32.mrb[0].mxu0
        %1392 = vdwg.mxu0
        %1393 = vmatprep.subr.mxu0 0.0
        %1394 = vmatpush1.msra.mxu0 %v863
        %1395 = vmatprep.subr.mxu0 0.0
        %1396 = vmatpush1.msra.mxu0 %v864
        %1397 = vmatprep.subr.mxu0 0.0
        %1398 = vmatpush1.msra.mxu0 %v865
        %1399 = vmatprep.subr.mxu0 0.0
        %1400 = vmatpush1.msra.mxu0 %v866
        %1401 = vmatprep.subr.mxu0 0.0
        %1402 = vmatpush1.msra.mxu0 %v867
        %1403 = vmatprep.subr.mxu0 0.0
        %1404 = vmatpush1.msra.mxu0 %v868
        %1405 = vmatprep.subr.mxu0 0.0
        %1406 = vmatpush1.msra.mxu0 %v869
        %1407 = vmatprep.subr.mxu0 0.0
        %1408 = vmatpush1.msra.mxu0 %v870
        %1409 = vmatprep.subr.mxu0 0.0
        %1410 = vmatpush1.msra.mxu0 %v871
        %1411 = vmatprep.subr.mxu0 0.0
        %1412 = vmatpush1.msra.mxu0 %v872
        %1413 = vmatprep.subr.mxu0 0.0
        %1414 = vmatpush1.msra.mxu0 %v873
        %1415 = vmatprep.subr.mxu0 0.0
        %1416 = vmatpush1.msra.mxu0 %v874
        %1417 = vmatprep.subr.mxu0 0.0
        %1418 = vmatpush1.msra.mxu0 %v875
        %1419 = vmatprep.subr.mxu0 0.0
        %1420 = vmatpush1.msra.mxu0 %v876
        %1421 = vmatprep.subr.mxu0 0.0
        %1422 = vmatpush1.msra.mxu0 %v877
        %1423 = vmatprep.subr.mxu0 0.0
        %1424 = vmatpush1.msra.mxu0 %v878
        %1425 = vmatprep.subr.mxu0 0.0
        %1426 = vmatpush1.msra.mxu0 %v879
        %1427 = vmatprep.subr.mxu0 0.0
        %1428 = vmatpush1.msra.mxu0 %v880
        %1429 = vmatprep.subr.mxu0 0.0
        %1430 = vmatpush1.msra.mxu0 %v881
        %1431 = vmatprep.subr.mxu0 0.0
        %1432 = vmatpush1.msra.mxu0 %v882
        %1433 = vmatprep.subr.mxu0 0.0
        %1434 = vmatpush1.msra.mxu0 %v883
        %1435 = vmatprep.subr.mxu0 0.0
        %1436 = vmatpush1.msra.mxu0 %v884
        %1437 = vmatprep.subr.mxu0 0.0
        %1438 = vmatpush1.msra.mxu0 %v885
        %1439 = vmatprep.subr.mxu0 0.0
        %1440 = vmatpush1.msra.mxu0 %v886
        %1441 = vmatprep.subr.mxu0 0.0
        %1442 = vmatpush1.msra.mxu0 %v887
        %1443 = vmatprep.subr.mxu0 0.0
        %1444 = vmatpush1.msra.mxu0 %v888
        %1445 = vmatprep.subr.mxu0 0.0
        %1446 = vmatpush1.msra.mxu0 %v889
        %1447 = vmatprep.subr.mxu0 0.0
        %1448 = vmatpush1.msra.mxu0 %v890
        %1449 = vmatprep.subr.mxu0 0.0
        %1450 = vmatpush1.msra.mxu0 %v891
        %1451 = vmatprep.subr.mxu0 0.0
        %1452 = vmatpush1.msra.mxu0 %v892
        %1453 = vmatprep.subr.mxu0 0.0
        %1454 = vmatpush1.msra.mxu0 %v893
        %1455 = vmatprep.subr.mxu0 0.0
        %1456 = vmatpush1.msra.mxu0 %v894
        %1457 = vmatprep.mubr.f32.mxu0 %v660
        %1458 = vmatmul.mubr.f32.gmra.mrb[0].mxu0 %v547
        %v1459 = vpop.f32.mrb[0].mxu0
        %v1460 = vadd.f32 %v1235, %v1459
        %v1461 = vpop.f32.mrb[0].mxu0
        %1462 = vmatprep.mubr.f32.mxu0 %v662
        %1463 = vmatmul.mubr.f32.gmra.mrb[0].mxu0 %v549
        %v1464 = vpop.f32.mrb[0].mxu0
        %v1465 = vadd.f32 %v1240, %v1464
        %v1466 = vpop.f32.mrb[0].mxu0
        %1467 = vmatprep.mubr.f32.mxu0 %v665
        %1468 = vmatmul.mubr.f32.gmra.mrb[0].mxu0 %v552
        %v1469 = vpop.f32.mrb[0].mxu0
        %v1470 = vadd.f32 %v1245, %v1469
        %v1471 = vpop.f32.mrb[0].mxu0
        %1472 = vmatprep.mubr.f32.mxu0 %v667
        %1473 = vmatmul.mubr.f32.gmra.mrb[0].mxu0 %v554
        %v1474 = vpop.f32.mrb[0].mxu0
        %v1475 = vadd.f32 %v1250, %v1474
        %v1476 = vpop.f32.mrb[0].mxu0
        %1477 = vmatprep.mubr.f32.mxu0 %v670
        %1478 = vmatmul.mubr.f32.gmra.mrb[0].mxu0 %v557
        %v1479 = vpop.f32.mrb[0].mxu0
        %v1480 = vadd.f32 %v1255, %v1479
        %v1481 = vpop.f32.mrb[0].mxu0
        %1482 = vmatprep.mubr.f32.mxu0 %v672
        %1483 = vmatmul.mubr.f32.gmra.mrb[0].mxu0 %v559
        %v1484 = vpop.f32.mrb[0].mxu0
        %v1485 = vadd.f32 %v1260, %v1484
        %v1486 = vpop.f32.mrb[0].mxu0
        %1487 = vmatprep.mubr.f32.mxu0 %v675
        %1488 = vmatmul.mubr.f32.gmra.mrb[0].mxu0 %v562
        %v1489 = vpop.f32.mrb[0].mxu0
        %v1490 = vadd.f32 %v1265, %v1489
        %v1491 = vpop.f32.mrb[0].mxu0
        %1492 = vmatprep.mubr.f32.mxu0 %v677
        %1493 = vmatmul.mubr.f32.gmra.mrb[0].mxu0 %v564
        %v1494 = vpop.f32.mrb[0].mxu0
        %v1495 = vadd.f32 %v1270, %v1494
        %v1496 = vpop.f32.mrb[0].mxu0
        %1497 = vmatprep.mubr.f32.mxu0 %v680
        %1498 = vmatmul.mubr.f32.gmra.mrb[0].mxu0 %v567
        %v1499 = vpop.f32.mrb[0].mxu0
        %v1500 = vadd.f32 %v1275, %v1499
        %v1501 = vpop.f32.mrb[0].mxu0
        %1502 = vmatprep.mubr.f32.mxu0 %v682
        %1503 = vmatmul.mubr.f32.gmra.mrb[0].mxu0 %v569
        %v1504 = vpop.f32.mrb[0].mxu0
        %v1505 = vadd.f32 %v1280, %v1504
        %v1506 = vpop.f32.mrb[0].mxu0
        %1507 = vmatprep.mubr.f32.mxu0 %v685
        %1508 = vmatmul.mubr.f32.gmra.mrb[0].mxu0 %v572
        %v1509 = vpop.f32.mrb[0].mxu0
        %v1510 = vadd.f32 %v1285, %v1509
        %v1511 = vpop.f32.mrb[0].mxu0
        %1512 = vmatprep.mubr.f32.mxu0 %v687
        %1513 = vmatmul.mubr.f32.gmra.mrb[0].mxu0 %v574
        %v1514 = vpop.f32.mrb[0].mxu0
        %v1515 = vadd.f32 %v1290, %v1514
        %v1516 = vpop.f32.mrb[0].mxu0
        %1517 = vmatprep.mubr.f32.mxu0 %v690
        %1518 = vmatmul.mubr.f32.gmra.mrb[0].mxu0 %v577
        %v1519 = vpop.f32.mrb[0].mxu0
        %v1520 = vadd.f32 %v1295, %v1519
        %v1521 = vpop.f32.mrb[0].mxu0
        %1522 = vmatprep.mubr.f32.mxu0 %v692
        %1523 = vmatmul.mubr.f32.gmra.mrb[0].mxu0 %v579
        %v1524 = vpop.f32.mrb[0].mxu0
        %v1525 = vadd.f32 %v1300, %v1524
        %v1526 = vpop.f32.mrb[0].mxu0
        %1527 = vmatprep.mubr.f32.mxu0 %v695
        %1528 = vmatmul.mubr.f32.gmra.mrb[0].mxu0 %v582
        %v1529 = vpop.f32.mrb[0].mxu0
        %v1530 = vadd.f32 %v1305, %v1529
        %v1531 = vpop.f32.mrb[0].mxu0
        %1532 = vmatprep.mubr.f32.mxu0 %v697
        %1533 = vmatmul.mubr.f32.gmra.mrb[0].mxu0 %v584
        %v1534 = vpop.f32.mrb[0].mxu0
        %v1535 = vadd.f32 %v1310, %v1534
        %v1536 = vpop.f32.mrb[0].mxu0
        %1537 = vmatprep.mubr.f32.mxu0 %v700
        %1538 = vmatmul.mubr.f32.gmra.mrb[0].mxu0 %v587
        %v1539 = vpop.f32.mrb[0].mxu0
        %v1540 = vadd.f32 %v1315, %v1539
        %v1541 = vpop.f32.mrb[0].mxu0
        %1542 = vmatprep.mubr.f32.mxu0 %v702
        %1543 = vmatmul.mubr.f32.gmra.mrb[0].mxu0 %v589
        %v1544 = vpop.f32.mrb[0].mxu0
        %v1545 = vadd.f32 %v1320, %v1544
        %v1546 = vpop.f32.mrb[0].mxu0
        %1547 = vmatprep.mubr.f32.mxu0 %v705
        %1548 = vmatmul.mubr.f32.gmra.mrb[0].mxu0 %v592
        %v1549 = vpop.f32.mrb[0].mxu0
        %v1550 = vadd.f32 %v1325, %v1549
        %v1551 = vpop.f32.mrb[0].mxu0
        %1552 = vmatprep.mubr.f32.mxu0 %v707
        %1553 = vmatmul.mubr.f32.gmra.mrb[0].mxu0 %v594
        %v1554 = vpop.f32.mrb[0].mxu0
        %v1555 = vadd.f32 %v1330, %v1554
        %v1556 = vpop.f32.mrb[0].mxu0
        %1557 = vmatprep.mubr.f32.mxu0 %v710
        %1558 = vmatmul.mubr.f32.gmra.mrb[0].mxu0 %v597
        %v1559 = vpop.f32.mrb[0].mxu0
        %v1560 = vadd.f32 %v1335, %v1559
        %v1561 = vpop.f32.mrb[0].mxu0
        %1562 = vmatprep.mubr.f32.mxu0 %v712
        %1563 = vmatmul.mubr.f32.gmra.mrb[0].mxu0 %v599
        %v1564 = vpop.f32.mrb[0].mxu0
        %v1565 = vadd.f32 %v1340, %v1564
        %v1566 = vpop.f32.mrb[0].mxu0
        %1567 = vmatprep.mubr.f32.mxu0 %v715
        %1568 = vmatmul.mubr.f32.gmra.mrb[0].mxu0 %v602
        %v1569 = vpop.f32.mrb[0].mxu0
        %v1570 = vadd.f32 %v1345, %v1569
        %v1571 = vpop.f32.mrb[0].mxu0
        %1572 = vmatprep.mubr.f32.mxu0 %v717
        %1573 = vmatmul.mubr.f32.gmra.mrb[0].mxu0 %v604
        %v1574 = vpop.f32.mrb[0].mxu0
        %v1575 = vadd.f32 %v1350, %v1574
        %v1576 = vpop.f32.mrb[0].mxu0
        %1577 = vmatprep.mubr.f32.mxu0 %v720
        %1578 = vmatmul.mubr.f32.gmra.mrb[0].mxu0 %v607
        %v1579 = vpop.f32.mrb[0].mxu0
        %v1580 = vadd.f32 %v1355, %v1579
        %v1581 = vpop.f32.mrb[0].mxu0
        %1582 = vmatprep.mubr.f32.mxu0 %v722
        %1583 = vmatmul.mubr.f32.gmra.mrb[0].mxu0 %v609
        %v1584 = vpop.f32.mrb[0].mxu0
        %v1585 = vadd.f32 %v1360, %v1584
        %v1586 = vpop.f32.mrb[0].mxu0
        %1587 = vmatprep.mubr.f32.mxu0 %v725
        %1588 = vmatmul.mubr.f32.gmra.mrb[0].mxu0 %v612
        %v1589 = vpop.f32.mrb[0].mxu0
        %v1590 = vadd.f32 %v1365, %v1589
        %v1591 = vpop.f32.mrb[0].mxu0
        %1592 = vmatprep.mubr.f32.mxu0 %v727
        %1593 = vmatmul.mubr.f32.gmra.mrb[0].mxu0 %v614
        %v1594 = vpop.f32.mrb[0].mxu0
        %v1595 = vadd.f32 %v1370, %v1594
        %v1596 = vpop.f32.mrb[0].mxu0
        %1597 = vmatprep.mubr.f32.mxu0 %v730
        %1598 = vmatmul.mubr.f32.gmra.mrb[0].mxu0 %v617
        %v1599 = vpop.f32.mrb[0].mxu0
        %v1600 = vadd.f32 %v1375, %v1599
        %v1601 = vpop.f32.mrb[0].mxu0
        %1602 = vmatprep.mubr.f32.mxu0 %v732
        %1603 = vmatmul.mubr.f32.gmra.mrb[0].mxu0 %v619
        %v1604 = vpop.f32.mrb[0].mxu0
        %v1605 = vadd.f32 %v1380, %v1604
        %v1606 = vpop.f32.mrb[0].mxu0
        %1607 = vmatprep.mubr.f32.mxu0 %v777
        %1608 = vmatmul.mubr.f32.gmra.mrb[0].mxu0 %v770
        %v1609 = vpop.f32.mrb[0].mxu0
        %v1610 = vadd.f32 %v1385, %v1609
        %v1611 = vpop.f32.mrb[0].mxu0
        %1612 = vmatprep.mubr.f32.mxu0 %v779
        %1613 = vmatmul.mubr.f32.gmra.mrb[0].mxu0 %v772
        %v1614 = vpop.f32.mrb[0].mxu0
        %v1615 = vadd.f32 %v1390, %v1614
        %v1616 = vpop.f32.mrb[0].mxu0
        %1617 = vdwg.mxu0
        %1618 = vmatprep.subr.mxu0 0.0
        %1619 = vmatpush1.msra.mxu0 %v895
        %1620 = vmatprep.subr.mxu0 0.0
        %1621 = vmatpush1.msra.mxu0 %v896
        %1622 = vmatprep.subr.mxu0 0.0
        %1623 = vmatpush1.msra.mxu0 %v897
        %1624 = vmatprep.subr.mxu0 0.0
        %1625 = vmatpush1.msra.mxu0 %v898
        %1626 = vmatprep.subr.mxu0 0.0
        %1627 = vmatpush1.msra.mxu0 %v899
        %1628 = vmatprep.subr.mxu0 0.0
        %1629 = vmatpush1.msra.mxu0 %v900
        %1630 = vmatprep.subr.mxu0 0.0
        %1631 = vmatpush1.msra.mxu0 %v901
        %1632 = vmatprep.subr.mxu0 0.0
        %1633 = vmatpush1.msra.mxu0 %v902
        %1634 = vmatprep.subr.mxu0 0.0
        %1635 = vmatpush1.msra.mxu0 %v903
        %1636 = vmatprep.subr.mxu0 0.0
        %1637 = vmatpush1.msra.mxu0 %v904
        %1638 = vmatprep.subr.mxu0 0.0
        %1639 = vmatpush1.msra.mxu0 %v905
        %1640 = vmatprep.subr.mxu0 0.0
        %1641 = vmatpush1.msra.mxu0 %v906
        %1642 = vmatprep.subr.mxu0 0.0
        %1643 = vmatpush1.msra.mxu0 %v907
        %1644 = vmatprep.subr.mxu0 0.0
        %1645 = vmatpush1.msra.mxu0 %v908
        %1646 = vmatprep.subr.mxu0 0.0
        %1647 = vmatpush1.msra.mxu0 %v909
        %1648 = vmatprep.subr.mxu0 0.0
        %1649 = vmatpush1.msra.mxu0 %v910
        %1650 = vmatprep.subr.mxu0 0.0
        %1651 = vmatpush1.msra.mxu0 %v911
        %1652 = vmatprep.subr.mxu0 0.0
        %1653 = vmatpush1.msra.mxu0 %v912
        %1654 = vmatprep.subr.mxu0 0.0
        %1655 = vmatpush1.msra.mxu0 %v913
        %1656 = vmatprep.subr.mxu0 0.0
        %1657 = vmatpush1.msra.mxu0 %v914
        %1658 = vmatprep.subr.mxu0 0.0
        %1659 = vmatpush1.msra.mxu0 %v915
        %1660 = vmatprep.subr.mxu0 0.0
        %1661 = vmatpush1.msra.mxu0 %v916
        %1662 = vmatprep.subr.mxu0 0.0
        %1663 = vmatpush1.msra.mxu0 %v917
        %1664 = vmatprep.subr.mxu0 0.0
        %1665 = vmatpush1.msra.mxu0 %v918
        %1666 = vmatprep.subr.mxu0 0.0
        %1667 = vmatpush1.msra.mxu0 %v919
        %1668 = vmatprep.subr.mxu0 0.0
        %1669 = vmatpush1.msra.mxu0 %v920
        %1670 = vmatprep.subr.mxu0 0.0
        %1671 = vmatpush1.msra.mxu0 %v921
        %1672 = vmatprep.subr.mxu0 0.0
        %1673 = vmatpush1.msra.mxu0 %v922
        %1674 = vmatprep.subr.mxu0 0.0
        %1675 = vmatpush1.msra.mxu0 %v923
        %1676 = vmatprep.subr.mxu0 0.0
        %1677 = vmatpush1.msra.mxu0 %v924
        %1678 = vmatprep.subr.mxu0 0.0
        %1679 = vmatpush1.msra.mxu0 %v925
        %1680 = vmatprep.subr.mxu0 0.0
        %1681 = vmatpush1.msra.mxu0 %v926
        %1682 = vmatprep.mubr.f32.mxu0 %v552
        %1683 = vmatmul.mubr.f32.gmra.mrb[0].mxu0 %v443
        %v1684 = vpop.f32.mrb[0].mxu0
        %v1685 = vadd.f32 %v1460, %v1684
        %v1686 = vpop.f32.mrb[0].mxu0
        %1687 = vmatprep.mubr.f32.mxu0 %v554
        %1688 = vmatmul.mubr.f32.gmra.mrb[0].mxu0 %v444
        %v1689 = vpop.f32.mrb[0].mxu0
        %v1690 = vadd.f32 %v1465, %v1689
        %v1691 = vpop.f32.mrb[0].mxu0
        %1692 = vmatprep.mubr.f32.mxu0 %v557
        %1693 = vmatmul.mubr.f32.gmra.mrb[0].mxu0 %v446
        %v1694 = vpop.f32.mrb[0].mxu0
        %v1695 = vadd.f32 %v1470, %v1694
        %v1696 = vpop.f32.mrb[0].mxu0
        %1697 = vmatprep.mubr.f32.mxu0 %v559
        %1698 = vmatmul.mubr.f32.gmra.mrb[0].mxu0 %v447
        %v1699 = vpop.f32.mrb[0].mxu0
        %v1700 = vadd.f32 %v1475, %v1699
        %v1701 = vpop.f32.mrb[0].mxu0
        %1702 = vmatprep.mubr.f32.mxu0 %v562
        %1703 = vmatmul.mubr.f32.gmra.mrb[0].mxu0 %v449
        %v1704 = vpop.f32.mrb[0].mxu0
        %v1705 = vadd.f32 %v1480, %v1704
        %v1706 = vpop.f32.mrb[0].mxu0
        %1707 = vmatprep.mubr.f32.mxu0 %v564
        %1708 = vmatmul.mubr.f32.gmra.mrb[0].mxu0 %v450
        %v1709 = vpop.f32.mrb[0].mxu0
        %v1710 = vadd.f32 %v1485, %v1709
        %v1711 = vpop.f32.mrb[0].mxu0
        %1712 = vmatprep.mubr.f32.mxu0 %v567
        %1713 = vmatmul.mubr.f32.gmra.mrb[0].mxu0 %v452
        %v1714 = vpop.f32.mrb[0].mxu0
        %v1715 = vadd.f32 %v1490, %v1714
        %v1716 = vpop.f32.mrb[0].mxu0
        %1717 = vmatprep.mubr.f32.mxu0 %v569
        %1718 = vmatmul.mubr.f32.gmra.mrb[0].mxu0 %v453
        %v1719 = vpop.f32.mrb[0].mxu0
        %v1720 = vadd.f32 %v1495, %v1719
        %v1721 = vpop.f32.mrb[0].mxu0
        %1722 = vmatprep.mubr.f32.mxu0 %v572
        %1723 = vmatmul.mubr.f32.gmra.mrb[0].mxu0 %v455
        %v1724 = vpop.f32.mrb[0].mxu0
        %v1725 = vadd.f32 %v1500, %v1724
        %v1726 = vpop.f32.mrb[0].mxu0
        %1727 = vmatprep.mubr.f32.mxu0 %v574
        %1728 = vmatmul.mubr.f32.gmra.mrb[0].mxu0 %v456
        %v1729 = vpop.f32.mrb[0].mxu0
        %v1730 = vadd.f32 %v1505, %v1729
        %v1731 = vpop.f32.mrb[0].mxu0
        %1732 = vmatprep.mubr.f32.mxu0 %v577
        %1733 = vmatmul.mubr.f32.gmra.mrb[0].mxu0 %v458
        %v1734 = vpop.f32.mrb[0].mxu0
        %v1735 = vadd.f32 %v1510, %v1734
        %v1736 = vpop.f32.mrb[0].mxu0
        %1737 = vmatprep.mubr.f32.mxu0 %v579
        %1738 = vmatmul.mubr.f32.gmra.mrb[0].mxu0 %v459
        %v1739 = vpop.f32.mrb[0].mxu0
        %v1740 = vadd.f32 %v1515, %v1739
        %v1741 = vpop.f32.mrb[0].mxu0
        %1742 = vmatprep.mubr.f32.mxu0 %v582
        %1743 = vmatmul.mubr.f32.gmra.mrb[0].mxu0 %v461
        %v1744 = vpop.f32.mrb[0].mxu0
        %v1745 = vadd.f32 %v1520, %v1744
        %v1746 = vpop.f32.mrb[0].mxu0
        %1747 = vmatprep.mubr.f32.mxu0 %v584
        %1748 = vmatmul.mubr.f32.gmra.mrb[0].mxu0 %v462
        %v1749 = vpop.f32.mrb[0].mxu0
        %v1750 = vadd.f32 %v1525, %v1749
        %v1751 = vpop.f32.mrb[0].mxu0
        %1752 = vmatprep.mubr.f32.mxu0 %v587
        %1753 = vmatmul.mubr.f32.gmra.mrb[0].mxu0 %v464
        %v1754 = vpop.f32.mrb[0].mxu0
        %v1755 = vadd.f32 %v1530, %v1754
        %v1756 = vpop.f32.mrb[0].mxu0
        %1757 = vmatprep.mubr.f32.mxu0 %v589
        %1758 = vmatmul.mubr.f32.gmra.mrb[0].mxu0 %v465
        %v1759 = vpop.f32.mrb[0].mxu0
        %v1760 = vadd.f32 %v1535, %v1759
        %v1761 = vpop.f32.mrb[0].mxu0
        %1762 = vmatprep.mubr.f32.mxu0 %v592
        %1763 = vmatmul.mubr.f32.gmra.mrb[0].mxu0 %v467
        %v1764 = vpop.f32.mrb[0].mxu0
        %v1765 = vadd.f32 %v1540, %v1764
        %v1766 = vpop.f32.mrb[0].mxu0
        %1767 = vmatprep.mubr.f32.mxu0 %v594
        %1768 = vmatmul.mubr.f32.gmra.mrb[0].mxu0 %v468
        %v1769 = vpop.f32.mrb[0].mxu0
        %v1770 = vadd.f32 %v1545, %v1769
        %v1771 = vpop.f32.mrb[0].mxu0
        %1772 = vmatprep.mubr.f32.mxu0 %v597
        %1773 = vmatmul.mubr.f32.gmra.mrb[0].mxu0 %v470
        %v1774 = vpop.f32.mrb[0].mxu0
        %v1775 = vadd.f32 %v1550, %v1774
        %v1776 = vpop.f32.mrb[0].mxu0
        %1777 = vmatprep.mubr.f32.mxu0 %v599
        %1778 = vmatmul.mubr.f32.gmra.mrb[0].mxu0 %v471
        %v1779 = vpop.f32.mrb[0].mxu0
        %v1780 = vadd.f32 %v1555, %v1779
        %v1781 = vpop.f32.mrb[0].mxu0
        %1782 = vmatprep.mubr.f32.mxu0 %v602
        %1783 = vmatmul.mubr.f32.gmra.mrb[0].mxu0 %v473
        %v1784 = vpop.f32.mrb[0].mxu0
        %v1785 = vadd.f32 %v1560, %v1784
        %v1786 = vpop.f32.mrb[0].mxu0
        %1787 = vmatprep.mubr.f32.mxu0 %v604
        %1788 = vmatmul.mubr.f32.gmra.mrb[0].mxu0 %v474
        %v1789 = vpop.f32.mrb[0].mxu0
        %v1790 = vadd.f32 %v1565, %v1789
        %v1791 = vpop.f32.mrb[0].mxu0
        %1792 = vmatprep.mubr.f32.mxu0 %v607
        %1793 = vmatmul.mubr.f32.gmra.mrb[0].mxu0 %v476
        %v1794 = vpop.f32.mrb[0].mxu0
        %v1795 = vadd.f32 %v1570, %v1794
        %v1796 = vpop.f32.mrb[0].mxu0
        %1797 = vmatprep.mubr.f32.mxu0 %v609
        %1798 = vmatmul.mubr.f32.gmra.mrb[0].mxu0 %v477
        %v1799 = vpop.f32.mrb[0].mxu0
        %v1800 = vadd.f32 %v1575, %v1799
        %v1801 = vpop.f32.mrb[0].mxu0
        %1802 = vmatprep.mubr.f32.mxu0 %v612
        %1803 = vmatmul.mubr.f32.gmra.mrb[0].mxu0 %v479
        %v1804 = vpop.f32.mrb[0].mxu0
        %v1805 = vadd.f32 %v1580, %v1804
        %v1806 = vpop.f32.mrb[0].mxu0
        %1807 = vmatprep.mubr.f32.mxu0 %v614
        %1808 = vmatmul.mubr.f32.gmra.mrb[0].mxu0 %v480
        %v1809 = vpop.f32.mrb[0].mxu0
        %v1810 = vadd.f32 %v1585, %v1809
        %v1811 = vpop.f32.mrb[0].mxu0
        %1812 = vmatprep.mubr.f32.mxu0 %v617
        %1813 = vmatmul.mubr.f32.gmra.mrb[0].mxu0 %v482
        %v1814 = vpop.f32.mrb[0].mxu0
        %v1815 = vadd.f32 %v1590, %v1814
        %v1816 = vpop.f32.mrb[0].mxu0
        %1817 = vmatprep.mubr.f32.mxu0 %v619
        %1818 = vmatmul.mubr.f32.gmra.mrb[0].mxu0 %v483
        %v1819 = vpop.f32.mrb[0].mxu0
        %v1820 = vadd.f32 %v1595, %v1819
        %v1821 = vpop.f32.mrb[0].mxu0
        %1822 = vmatprep.mubr.f32.mxu0 %v770
        %1823 = vmatmul.mubr.f32.gmra.mrb[0].mxu0 %v485
        %v1824 = vpop.f32.mrb[0].mxu0
        %v1825 = vadd.f32 %v1600, %v1824
        %v1826 = vpop.f32.mrb[0].mxu0
        %1827 = vmatprep.mubr.f32.mxu0 %v772
        %1828 = vmatmul.mubr.f32.gmra.mrb[0].mxu0 %v486
        %v1829 = vpop.f32.mrb[0].mxu0
        %v1830 = vadd.f32 %v1605, %v1829
        %v1831 = vpop.f32.mrb[0].mxu0
        %1832 = vmatprep.mubr.f32.mxu0 %v787
        %1833 = vmatmul.mubr.f32.gmra.mrb[0].mxu0 %v488
        %v1834 = vpop.f32.mrb[0].mxu0
        %v1835 = vadd.f32 %v1610, %v1834
        %v1836 = vpop.f32.mrb[0].mxu0
        %1837 = vmatprep.mubr.f32.mxu0 %v789
        %1838 = vmatmul.mubr.f32.gmra.mrb[0].mxu0 %v489
        %v1839 = vpop.f32.mrb[0].mxu0
        %v1840 = vadd.f32 %v1615, %v1839
        %v1841 = vpop.f32.mrb[0].mxu0
        %1842 = vdwg.mxu0
        %1843 = vmatprep.subr.mxu0 0.0
        %1844 = vmatpush1.msra.mxu0 %v927
        %1845 = vmatprep.subr.mxu0 0.0
        %1846 = vmatpush1.msra.mxu0 %v928
        %1847 = vmatprep.subr.mxu0 0.0
        %1848 = vmatpush1.msra.mxu0 %v929
        %1849 = vmatprep.subr.mxu0 0.0
        %1850 = vmatpush1.msra.mxu0 %v930
        %1851 = vmatprep.subr.mxu0 0.0
        %1852 = vmatpush1.msra.mxu0 %v931
        %1853 = vmatprep.subr.mxu0 0.0
        %1854 = vmatpush1.msra.mxu0 %v932
        %1855 = vmatprep.subr.mxu0 0.0
        %1856 = vmatpush1.msra.mxu0 %v933
        %1857 = vmatprep.subr.mxu0 0.0
        %1858 = vmatpush1.msra.mxu0 %v934
        %1859 = vmatprep.subr.mxu0 0.0
        %1860 = vmatpush1.msra.mxu0 %v935
        %1861 = vmatprep.subr.mxu0 0.0
        %1862 = vmatpush1.msra.mxu0 %v936
        %1863 = vmatprep.subr.mxu0 0.0
        %1864 = vmatpush1.msra.mxu0 %v937
        %1865 = vmatprep.subr.mxu0 0.0
        %1866 = vmatpush1.msra.mxu0 %v938
        %1867 = vmatprep.subr.mxu0 0.0
        %1868 = vmatpush1.msra.mxu0 %v939
        %1869 = vmatprep.subr.mxu0 0.0
        %1870 = vmatpush1.msra.mxu0 %v940
        %1871 = vmatprep.subr.mxu0 0.0
        %1872 = vmatpush1.msra.mxu0 %v941
        %1873 = vmatprep.subr.mxu0 0.0
        %1874 = vmatpush1.msra.mxu0 %v942
        %1875 = vmatprep.subr.mxu0 0.0
        %1876 = vmatpush1.msra.mxu0 0.0
        %1877 = vmatprep.subr.mxu0 0.0
        %1878 = vmatpush1.msra.mxu0 0.0
        %1879 = vmatprep.subr.mxu0 0.0
        %1880 = vmatpush1.msra.mxu0 0.0
        %1881 = vmatprep.subr.mxu0 0.0
        %1882 = vmatpush1.msra.mxu0 0.0
        %1883 = vmatprep.subr.mxu0 0.0
        %1884 = vmatpush1.msra.mxu0 0.0
        %1885 = vmatprep.subr.mxu0 0.0
        %1886 = vmatpush1.msra.mxu0 0.0
        %1887 = vmatprep.subr.mxu0 0.0
        %1888 = vmatpush1.msra.mxu0 0.0
        %1889 = vmatprep.subr.mxu0 0.0
        %1890 = vmatpush1.msra.mxu0 0.0
        %1891 = vmatprep.subr.mxu0 0.0
        %1892 = vmatpush1.msra.mxu0 0.0
        %1893 = vmatprep.subr.mxu0 0.0
        %1894 = vmatpush1.msra.mxu0 0.0
        %1895 = vmatprep.subr.mxu0 0.0
        %1896 = vmatpush1.msra.mxu0 0.0
        %1897 = vmatprep.subr.mxu0 0.0
        %1898 = vmatpush1.msra.mxu0 0.0
        %1899 = vmatprep.subr.mxu0 0.0
        %1900 = vmatpush1.msra.mxu0 0.0
        %1901 = vmatprep.subr.mxu0 0.0
        %1902 = vmatpush1.msra.mxu0 0.0
        %1903 = vmatprep.subr.mxu0 0.0
        %1904 = vmatpush1.msra.mxu0 0.0
        %1905 = vmatprep.subr.mxu0 0.0
        %1906 = vmatpush1.msra.mxu0 0.0
        %1907 = vmatprep.mubr.f32.mxu0 0.0
        %1908 = vmatmul.mubr.f32.gmra.mrb[0].mxu0 %v665
        %v1909 = vpop.f32.mrb[0].mxu0
        %v1910 = vadd.f32 %v1685, %v1909
        %v1911 = vpop.f32.mrb[0].mxu0
        %1912 = vmatprep.mubr.f32.mxu0 0.0
        %1913 = vmatmul.mubr.f32.gmra.mrb[0].mxu0 %v667
        %v1914 = vpop.f32.mrb[0].mxu0
        %v1915 = vadd.f32 %v1690, %v1914
        %v1916 = vpop.f32.mrb[0].mxu0
        %1917 = vmatprep.mubr.f32.mxu0 0.0
        %1918 = vmatmul.mubr.f32.gmra.mrb[0].mxu0 %v670
        %v1919 = vpop.f32.mrb[0].mxu0
        %v1920 = vadd.f32 %v1695, %v1919
        %v1921 = vpop.f32.mrb[0].mxu0
        %1922 = vmatprep.mubr.f32.mxu0 0.0
        %1923 = vmatmul.mubr.f32.gmra.mrb[0].mxu0 %v672
        %v1924 = vpop.f32.mrb[0].mxu0
        %v1925 = vadd.f32 %v1700, %v1924
        %v1926 = vpop.f32.mrb[0].mxu0
        %1927 = vmatprep.mubr.f32.mxu0 0.0
        %1928 = vmatmul.mubr.f32.gmra.mrb[0].mxu0 %v675
        %v1929 = vpop.f32.mrb[0].mxu0
        %v1930 = vadd.f32 %v1705, %v1929
        %v1931 = vpop.f32.mrb[0].mxu0
        %1932 = vmatprep.mubr.f32.mxu0 0.0
        %1933 = vmatmul.mubr.f32.gmra.mrb[0].mxu0 %v677
        %v1934 = vpop.f32.mrb[0].mxu0
        %v1935 = vadd.f32 %v1710, %v1934
        %v1936 = vpop.f32.mrb[0].mxu0
        %1937 = vmatprep.mubr.f32.mxu0 0.0
        %1938 = vmatmul.mubr.f32.gmra.mrb[0].mxu0 %v680
        %v1939 = vpop.f32.mrb[0].mxu0
        %v1940 = vadd.f32 %v1715, %v1939
        %v1941 = vpop.f32.mrb[0].mxu0
        %1942 = vmatprep.mubr.f32.mxu0 0.0
        %1943 = vmatmul.mubr.f32.gmra.mrb[0].mxu0 %v682
        %v1944 = vpop.f32.mrb[0].mxu0
        %v1945 = vadd.f32 %v1720, %v1944
        %v1946 = vpop.f32.mrb[0].mxu0
        %1947 = vmatprep.mubr.f32.mxu0 0.0
        %1948 = vmatmul.mubr.f32.gmra.mrb[0].mxu0 %v685
        %v1949 = vpop.f32.mrb[0].mxu0
        %v1950 = vadd.f32 %v1725, %v1949
        %v1951 = vpop.f32.mrb[0].mxu0
        %1952 = vmatprep.mubr.f32.mxu0 0.0
        %1953 = vmatmul.mubr.f32.gmra.mrb[0].mxu0 %v687
        %v1954 = vpop.f32.mrb[0].mxu0
        %v1955 = vadd.f32 %v1730, %v1954
        %v1956 = vpop.f32.mrb[0].mxu0
        %1957 = vmatprep.mubr.f32.mxu0 0.0
        %1958 = vmatmul.mubr.f32.gmra.mrb[0].mxu0 %v690
        %v1959 = vpop.f32.mrb[0].mxu0
        %v1960 = vadd.f32 %v1735, %v1959
        %v1961 = vpop.f32.mrb[0].mxu0
        %1962 = vmatprep.mubr.f32.mxu0 0.0
        %1963 = vmatmul.mubr.f32.gmra.mrb[0].mxu0 %v692
        %v1964 = vpop.f32.mrb[0].mxu0
        %v1965 = vadd.f32 %v1740, %v1964
        %v1966 = vpop.f32.mrb[0].mxu0
        %1967 = vmatprep.mubr.f32.mxu0 0.0
        %1968 = vmatmul.mubr.f32.gmra.mrb[0].mxu0 %v695
        %v1969 = vpop.f32.mrb[0].mxu0
        %v1970 = vadd.f32 %v1745, %v1969
        %v1971 = vpop.f32.mrb[0].mxu0
        %1972 = vmatprep.mubr.f32.mxu0 0.0
        %1973 = vmatmul.mubr.f32.gmra.mrb[0].mxu0 %v697
        %v1974 = vpop.f32.mrb[0].mxu0
        %v1975 = vadd.f32 %v1750, %v1974
        %v1976 = vpop.f32.mrb[0].mxu0
        %1977 = vmatprep.mubr.f32.mxu0 0.0
        %1978 = vmatmul.mubr.f32.gmra.mrb[0].mxu0 %v700
        %v1979 = vpop.f32.mrb[0].mxu0
        %v1980 = vadd.f32 %v1755, %v1979
        %v1981 = vpop.f32.mrb[0].mxu0
        %1982 = vmatprep.mubr.f32.mxu0 0.0
        %1983 = vmatmul.mubr.f32.gmra.mrb[0].mxu0 %v702
        %v1984 = vpop.f32.mrb[0].mxu0
        %v1985 = vadd.f32 %v1760, %v1984
        %v1986 = vpop.f32.mrb[0].mxu0
        %1987 = vmatprep.mubr.f32.mxu0 0.0
        %1988 = vmatmul.mubr.f32.gmra.mrb[0].mxu0 %v705
        %v1989 = vpop.f32.mrb[0].mxu0
        %v1990 = vadd.f32 %v1765, %v1989
        %v1991 = vpop.f32.mrb[0].mxu0
        %1992 = vmatprep.mubr.f32.mxu0 0.0
        %1993 = vmatmul.mubr.f32.gmra.mrb[0].mxu0 %v707
        %v1994 = vpop.f32.mrb[0].mxu0
        %v1995 = vadd.f32 %v1770, %v1994
        %v1996 = vpop.f32.mrb[0].mxu0
        %1997 = vmatprep.mubr.f32.mxu0 0.0
        %1998 = vmatmul.mubr.f32.gmra.mrb[0].mxu0 %v710
        %v1999 = vpop.f32.mrb[0].mxu0
        %v2000 = vadd.f32 %v1775, %v1999
        %v2001 = vpop.f32.mrb[0].mxu0
        %2002 = vmatprep.mubr.f32.mxu0 0.0
        %2003 = vmatmul.mubr.f32.gmra.mrb[0].mxu0 %v712
        %v2004 = vpop.f32.mrb[0].mxu0
        %v2005 = vadd.f32 %v1780, %v2004
        %v2006 = vpop.f32.mrb[0].mxu0
        %2007 = vmatprep.mubr.f32.mxu0 0.0
        %2008 = vmatmul.mubr.f32.gmra.mrb[0].mxu0 %v715
        %v2009 = vpop.f32.mrb[0].mxu0
        %v2010 = vadd.f32 %v1785, %v2009
        %v2011 = vpop.f32.mrb[0].mxu0
        %2012 = vmatprep.mubr.f32.mxu0 0.0
        %2013 = vmatmul.mubr.f32.gmra.mrb[0].mxu0 %v717
        %v2014 = vpop.f32.mrb[0].mxu0
        %v2015 = vadd.f32 %v1790, %v2014
        %v2016 = vpop.f32.mrb[0].mxu0
        %2017 = vmatprep.mubr.f32.mxu0 0.0
        %2018 = vmatmul.mubr.f32.gmra.mrb[0].mxu0 %v720
        %v2019 = vpop.f32.mrb[0].mxu0
        %v2020 = vadd.f32 %v1795, %v2019
        %v2021 = vpop.f32.mrb[0].mxu0
        %2022 = vmatprep.mubr.f32.mxu0 0.0
        %2023 = vmatmul.mubr.f32.gmra.mrb[0].mxu0 %v722
        %v2024 = vpop.f32.mrb[0].mxu0
        %v2025 = vadd.f32 %v1800, %v2024
        %v2026 = vpop.f32.mrb[0].mxu0
        %2027 = vmatprep.mubr.f32.mxu0 0.0
        %2028 = vmatmul.mubr.f32.gmra.mrb[0].mxu0 %v725
        %v2029 = vpop.f32.mrb[0].mxu0
        %v2030 = vadd.f32 %v1805, %v2029
        %v2031 = vpop.f32.mrb[0].mxu0
        %2032 = vmatprep.mubr.f32.mxu0 0.0
        %2033 = vmatmul.mubr.f32.gmra.mrb[0].mxu0 %v727
        %v2034 = vpop.f32.mrb[0].mxu0
        %v2035 = vadd.f32 %v1810, %v2034
        %v2036 = vpop.f32.mrb[0].mxu0
        %2037 = vmatprep.mubr.f32.mxu0 0.0
        %2038 = vmatmul.mubr.f32.gmra.mrb[0].mxu0 %v730
        %v2039 = vpop.f32.mrb[0].mxu0
        %v2040 = vadd.f32 %v1815, %v2039
        %v2041 = vpop.f32.mrb[0].mxu0
        %2042 = vmatprep.mubr.f32.mxu0 0.0
        %2043 = vmatmul.mubr.f32.gmra.mrb[0].mxu0 %v732
        %v2044 = vpop.f32.mrb[0].mxu0
        %v2045 = vadd.f32 %v1820, %v2044
        %v2046 = vpop.f32.mrb[0].mxu0
        %2047 = vmatprep.mubr.f32.mxu0 0.0
        %2048 = vmatmul.mubr.f32.gmra.mrb[0].mxu0 %v777
        %v2049 = vpop.f32.mrb[0].mxu0
        %v2050 = vadd.f32 %v1825, %v2049
        %v2051 = vpop.f32.mrb[0].mxu0
        %2052 = vmatprep.mubr.f32.mxu0 0.0
        %2053 = vmatmul.mubr.f32.gmra.mrb[0].mxu0 %v779
        %v2054 = vpop.f32.mrb[0].mxu0
        %v2055 = vadd.f32 %v1830, %v2054
        %v2056 = vpop.f32.mrb[0].mxu0
        %2057 = vmatprep.mubr.f32.mxu0 0.0
        %2058 = vmatmul.mubr.f32.gmra.mrb[0].mxu0 %v794
        %v2059 = vpop.f32.mrb[0].mxu0
        %v2060 = vadd.f32 %v1835, %v2059
        %v2061 = vpop.f32.mrb[0].mxu0
        %2062 = vmatprep.mubr.f32.mxu0 0.0
        %2063 = vmatmul.mubr.f32.gmra.mrb[0].mxu0 %v796
        %v2064 = vpop.f32.mrb[0].mxu0
        %v2065 = vadd.f32 %v1840, %v2064
        %v2066 = vpop.f32.mrb[0].mxu0
        %2067 = vdwg.mxu0
        %2068 = vst [vmem:[%s246] sm:$0xff] %v1910
        %2069 = vst [vmem:[%s246 + $0x8] sm:$0xff] %v1915
        %2070 = vst [vmem:[%s246 + $0x10] sm:$0xff] %v1920
        %2071 = vst [vmem:[%s246 + $0x18] sm:$0xff] %v1925
        %2072 = vst [vmem:[%s246 + $0x20] sm:$0xff] %v1930
        %2073 = vst [vmem:[%s246 + $0x28] sm:$0xff] %v1935
        %2074 = vst [vmem:[%s246 + $0x30] sm:$0xff] %v1940
        %2075 = vst [vmem:[%s246 + $0x38] sm:$0xff] %v1945
        %2076 = vst [vmem:[%s246 + $0x40] sm:$0xff] %v1950
        %2077 = vst [vmem:[%s246 + $0x48] sm:$0xff] %v1955
        %2078 = vst [vmem:[%s246 + $0x50] sm:$0xff] %v1960
        %2079 = vst [vmem:[%s246 + $0x58] sm:$0xff] %v1965
        %2080 = vst [vmem:[%s246 + $0x60] sm:$0xff] %v1970
        %2081 = vst [vmem:[%s246 + $0x68] sm:$0xff] %v1975
        %2082 = vst [vmem:[%s246 + $0x70] sm:$0xff] %v1980
        %2083 = vst [vmem:[%s246 + $0x78] sm:$0xff] %v1985
        %2084 = vst [vmem:[%s246 + $0x80] sm:$0xff] %v1990
        %2085 = vst [vmem:[%s246 + $0x88] sm:$0xff] %v1995
        %2086 = vst [vmem:[%s246 + $0x90] sm:$0xff] %v2000
        %2087 = vst [vmem:[%s246 + $0x98] sm:$0xff] %v2005
        %2088 = vst [vmem:[%s246 + $0xa0] sm:$0xff] %v2010
        %2089 = vst [vmem:[%s246 + $0xa8] sm:$0xff] %v2015
        %2090 = vst [vmem:[%s246 + $0xb0] sm:$0xff] %v2020
        %2091 = vst [vmem:[%s246 + $0xb8] sm:$0xff] %v2025
        %2092 = vst [vmem:[%s246 + $0xc0] sm:$0xff] %v2030
        %2093 = vst [vmem:[%s246 + $0xc8] sm:$0xff] %v2035
        %2094 = vst [vmem:[%s246 + $0xd0] sm:$0xff] %v2040
        %2095 = vst [vmem:[%s246 + $0xd8] sm:$0xff] %v2045
        %2096 = vst [vmem:[%s246 + $0xe0] sm:$0xff] %v2050
        %2097 = vst [vmem:[%s246 + $0xe8] sm:$0xff] %v2055
        %2098 = vst [vmem:[%s246 + $0xf0] sm:$0xff] %v2060
        %2099 = vst [vmem:[%s246 + $0xf8] sm:$0xff] %v2065
        %v2100 = vadd.f32 %v1910, %v1915
        %v2101 = vadd.f32 %v2100, %v1920
        %v2102 = vadd.f32 %v2101, %v1925
        %v2103 = vadd.f32 %v2102, %v1930
        %v2104 = vadd.f32 %v2103, %v1935
        %v2105 = vadd.f32 %v2104, %v1940
        %v2106 = vadd.f32 %v2105, %v1945
        %v2107 = vadd.f32 %v2106, %v1950
        %v2108 = vadd.f32 %v2107, %v1955
        %v2109 = vadd.f32 %v2108, %v1960
        %v2110 = vadd.f32 %v2109, %v1965
        %v2111 = vadd.f32 %v2110, %v1970
        %v2112 = vadd.f32 %v2111, %v1975
        %v2113 = vadd.f32 %v2112, %v1980
        %v2114 = vadd.f32 %v2113, %v1985
        %v2115 = vadd.f32 %v2114, %v1990
        %v2116 = vadd.f32 %v2115, %v1995
        %v2117 = vadd.f32 %v2116, %v2000
        %v2118 = vadd.f32 %v2117, %v2005
        %v2119 = vadd.f32 %v2118, %v2010
        %v2120 = vadd.f32 %v2119, %v2015
        %v2121 = vadd.f32 %v2120, %v2020
        %v2122 = vadd.f32 %v2121, %v2025
        %v2123 = vadd.f32 %v2122, %v2030
        %v2124 = vadd.f32 %v2123, %v2035
        %v2125 = vadd.f32 %v2124, %v2040
        %v2126 = vadd.f32 %v2125, %v2045
        %v2127 = vadd.f32 %v2126, %v2050
        %v2128 = vadd.f32 %v2127, %v2055
        %v2129 = vadd.f32 %v2128, %v2060
        %v2130 = vadd.f32 %v2129, %v2065
        %v2131 = vrot.slane %v2130, 4
        %v2132 = vadd.f32 %v2130, %v2131
        %v2133 = vrot.slane %v2132, 2
        %v2134 = vadd.f32 %v2132, %v2133
        %v2135 = vrot.slane %v2134, 1
        %v2136 = vadd.f32 %v2134, %v2135
        %v2137 = vmul.f32 %v1910, %v1910
        %v2138 = vmul.f32 %v1915, %v1915
        %v2139 = vmul.f32 %v1920, %v1920
        %v2140 = vmul.f32 %v1925, %v1925
        %v2141 = vmul.f32 %v1930, %v1930
        %v2142 = vmul.f32 %v1935, %v1935
        %v2143 = vmul.f32 %v1940, %v1940
        %v2144 = vmul.f32 %v1945, %v1945
        %v2145 = vmul.f32 %v1950, %v1950
        %v2146 = vmul.f32 %v1955, %v1955
        %v2147 = vmul.f32 %v1960, %v1960
        %v2148 = vmul.f32 %v1965, %v1965
        %v2149 = vmul.f32 %v1970, %v1970
        %v2150 = vmul.f32 %v1975, %v1975
        %v2151 = vmul.f32 %v1980, %v1980
        %v2152 = vmul.f32 %v1985, %v1985
        %v2153 = vmul.f32 %v1990, %v1990
        %v2154 = vmul.f32 %v1995, %v1995
        %v2155 = vmul.f32 %v2000, %v2000
        %v2156 = vmul.f32 %v2005, %v2005
        %v2157 = vmul.f32 %v2010, %v2010
        %v2158 = vmul.f32 %v2015, %v2015
        %v2159 = vmul.f32 %v2020, %v2020
        %v2160 = vmul.f32 %v2025, %v2025
        %v2161 = vmul.f32 %v2030, %v2030
        %v2162 = vmul.f32 %v2035, %v2035
        %v2163 = vmul.f32 %v2040, %v2040
        %v2164 = vmul.f32 %v2045, %v2045
        %v2165 = vmul.f32 %v2050, %v2050
        %v2166 = vmul.f32 %v2055, %v2055
        %v2167 = vmul.f32 %v2060, %v2060
        %v2168 = vmul.f32 %v2065, %v2065
        %v2169 = vadd.f32 %v2137, %v2138
        %v2170 = vadd.f32 %v2169, %v2139
        %v2171 = vadd.f32 %v2170, %v2140
        %v2172 = vadd.f32 %v2171, %v2141
        %v2173 = vadd.f32 %v2172, %v2142
        %v2174 = vadd.f32 %v2173, %v2143
        %v2175 = vadd.f32 %v2174, %v2144
        %v2176 = vadd.f32 %v2175, %v2145
        %v2177 = vadd.f32 %v2176, %v2146
        %v2178 = vadd.f32 %v2177, %v2147
        %v2179 = vadd.f32 %v2178, %v2148
        %v2180 = vadd.f32 %v2179, %v2149
        %v2181 = vadd.f32 %v2180, %v2150
        %v2182 = vadd.f32 %v2181, %v2151
        %v2183 = vadd.f32 %v2182, %v2152
        %v2184 = vadd.f32 %v2183, %v2153
        %v2185 = vadd.f32 %v2184, %v2154
        %v2186 = vadd.f32 %v2185, %v2155
        %v2187 = vadd.f32 %v2186, %v2156
        %v2188 = vadd.f32 %v2187, %v2157
        %v2189 = vadd.f32 %v2188, %v2158
        %v2190 = vadd.f32 %v2189, %v2159
        %v2191 = vadd.f32 %v2190, %v2160
        %v2192 = vadd.f32 %v2191, %v2161
        %v2193 = vadd.f32 %v2192, %v2162
        %v2194 = vadd.f32 %v2193, %v2163
        %v2195 = vadd.f32 %v2194, %v2164
        %v2196 = vadd.f32 %v2195, %v2165
        %v2197 = vadd.f32 %v2196, %v2166
        %v2198 = vadd.f32 %v2197, %v2167
        %v2199 = vadd.f32 %v2198, %v2168
        %v2200 = vrot.slane %v2199, 4
        %v2201 = vadd.f32 %v2199, %v2200
        %v2202 = vrot.slane %v2201, 2
        %v2203 = vadd.f32 %v2201, %v2202
        %v2204 = vrot.slane %v2203, 1
        %v2205 = vadd.f32 %v2203, %v2204
        %vm2206 = vcmask 1040384
        %v2207 = vsel %vm2206, %v2136, %v2205
        %2208 = vst [vmem:[%s250] sm:$0x3] %v2207
        %p2209 = scmp.lt.s32.totalorder %s18, 1
        %s2210 = scalar_select %p2209, %s18, 1
        %s2211 = smul.addr %s2210, 32
        %s2212 = smul.addr %s2211, 8
        %s2213 = scalar_lea.vmem %s4, %s2212
        %p2214 = scmp.lt.s32.totalorder %s18, 1
        %s2215 = scalar_select %p2214, %s18, 1
        %s2216 = smul.addr %s2215, 2
        %s2217 = scalar_lea.vmem %s5, %s2216
        // Predicated region
        $region41: #{irblock_forward.5} parent=35 // pred_check
          %p2218 = pneg %p125
        $region42: #{irblock_forward.5} parent=35 // pred_check_branch
          %2220 = sbr.rel (%p2218) target = $region44
        $region43: #{irblock_forward.5} parent=35 // pred_region
          _
        $region44: #{irblock_forward.5} parent=35 // pred_fallthru
          _
        // Predicated region
        $region45: #{irblock_forward.5} parent=35 // pred_check
          %p2221 = pneg %p151
        $region46: #{irblock_forward.5} parent=35 // pred_check_branch
          %2223 = sbr.rel (%p2221) target = $region48
        $region47: #{irblock_forward.5} parent=35 // pred_region
          _
        $region48: #{irblock_forward.5} parent=35 // pred_fallthru
          _
      $region36: #{irblock_forward.5} parent=5 // pred_fallthru
        _
      %p2224 = scmp.le.s32.totalorder 2, %s13
      // Predicated region
      $region49: #{irblock_forward.5} parent=5 // pred_check
        %p2225 = pneg %p2224
      $region50: #{irblock_forward.5} parent=5 // pred_check_branch
        %2227 = sbr.rel (%p2225) target = $region52
      $region51: #{irblock_forward.5} parent=5 // pred_region
        %s2228 = ssub.s32 %s13, 2
        // Predicated region
        $region53: #{irblock_forward.5} parent=51 // pred_check
          %p2229 = pneg %p131
        $region54: #{irblock_forward.5} parent=51 // pred_check_branch
          %2231 = sbr.rel (%p2229) target = $region56
        $region55: #{irblock_forward.5} parent=51 // pred_region
          %p2232 = scmp.lt.s32.totalorder %s19, 1
          %s2233 = scalar_select %p2232, %s19, 1
          %s2234 = smul.addr %s2233, 32
          %s2235 = smul.addr %s2234, 8
          %s2236 = scalar_lea.vmem %s4, %s2235
        $region56: #{irblock_forward.5} parent=51 // pred_fallthru
          _
        // Predicated region
        $region57: #{irblock_forward.5} parent=51 // pred_check
          %p2237 = pneg %p157
        $region58: #{irblock_forward.5} parent=51 // pred_check_branch
          %2239 = sbr.rel (%p2237) target = $region60
        $region59: #{irblock_forward.5} parent=51 // pred_region
          %p2240 = scmp.lt.s32.totalorder %s19, 1
          %s2241 = scalar_select %p2240, %s19, 1
          %s2242 = smul.addr %s2241, 2
          %s2243 = scalar_lea.vmem %s5, %s2242
        $region60: #{irblock_forward.5} parent=51 // pred_fallthru
          _
      $region52: #{irblock_forward.5} parent=5 // pred_fallthru
        _
    $region6: #{irblock_forward.5} parent=1 // loop_footer
      %s17 = sadd.s32 1, %s13
    $region7: #{irblock_forward.5} parent=1 // loop_footer_branch
      %12 = sbr.rel target = $region3
    $region8: #{irblock_forward.5} parent=1 // loop_exit
      _
    %2244 = vsyncpa [#allocation4], 1
    %s2245 = scalar_lea.sflag [#allocation4], 1
    %2246 = vsyncpa %s2245, 1

// kernel: irblock_forward.6
$region0: #{irblock_forward.6}
  #allocation0 [shape = 'u32[]', space=smem, size = 0x4, offset = 0x4, fixed_abs, tag = 'smem constant byte address 0x4 - core index']
  #allocation1 [shape = 'u32[144,128]{1,0:T(1,128)}', space=vmem, size = 0x12000, scoped, tag = 'internal scratch']
  #allocation2 [shape = 'f32[18,18,128]{2,1,0:T(8,128)}', space=vmem, size = 0x36000, scoped, tag = 'scratch operand']
  %s0 = inlined_call_operand.vmem [shape: f32[2,16,16,128], index: 0, kind: input, shape index: {}]
  %s1 = inlined_call_operand.vmem [shape: f32[1,128], index: 1, kind: input, shape index: {}]
  %s2 = inlined_call_operand.vmem [shape: f32[1,128], index: 2, kind: input, shape index: {}]
  %s3 = inlined_call_operand.vmem [shape: f32[1152,128], index: 3, kind: input, shape index: {}]
  %s4 = inlined_call_operand.vmem [shape: f32[2,16,16,128], index: 4, kind: output, shape index: {0}]
  %s5 = inlined_call_operand.vmem [shape: f32[2,2,128], index: 5, kind: output, shape index: {1}]
  %6 = xla_tuple %s4, %s5
  %s7 = sld [smem:[#allocation0]]
  $region57: #{irblock_forward.6} parent=0
    _
  %s9 = ssub.s32 1, %s7
  %s10 = scalar_select 0, %s9, %s7
  loop: start=0, step=1, limit=4
  $region2: #{irblock_forward.6} parent=0 // loop_pre_header
    _
  $region3: #{irblock_forward.6} parent=0 // loop_header
    %s12 = sphi 0, %s16
    %p13 = scmp.ge.s32.totalorder %s12, 4
    %s22 = sphi 0, %s24
    %s25 = sphi 0, %s22
    %s26 = sphi 0, %s25
    %s42 = sphi 0, %s26
    %s46 = sphi 0, %s46
    %s48 = sphi 0, %s46
    %s49 = sphi 0, %s48
    %s63 = sphi 0, %s49
    %s67 = sphi 0, %s67
    %s69 = sphi 0, %s67
    %s70 = sphi 0, %s69
    %s84 = sphi 0, %s70
    %s88 = sphi 0, %s88
    %s90 = sphi 0, %s88
    %s91 = sphi 0, %s90
    %s105 = sphi 0, %s91
    %s111 = sphi 0, %s113
    %s114 = sphi 0, %s111
    %s115 = sphi 0, %s114
    %s131 = sphi 0, %s115
    %s137 = sphi 0, %s139
    %s140 = sphi 0, %s137
    %s141 = sphi 0, %s140
    %s157 = sphi 0, %s141
  $region4: #{irblock_forward.6} parent=0 // loop_header_branch
    %15 = sbr.rel (%p13) target = $region8
  $region5: #{irblock_forward.6} parent=0 // loop_body
    %s17 = ssub.s32 %s12, 1
    %s18 = ssub.s32 %s12, 2
    %s19 = sadd.s32 %s12, 1
    %s20 = ssub.s32 %s12, %s19
    %p21 = scmp.eq.s32.totalorder %s20, 0
    %s23 = sadd.s32 %s22, 1
    %s24 = scalar_select %p21, %s22, %s23
    %p27 = pneg %p21
    %p28 = scmp.eq.s32.totalorder %s12, 1
    %p29 = por %p27, %p28
    %p30 = scmp.ne.s32.totalorder %s22, %s25
    %p31 = scmp.eq.s32.totalorder %s12, 0
    %p32 = por %p30, %p31
    %p33 = scmp.ne.s32.totalorder %s22, %s25
    %p34 = scmp.eq.s32.totalorder %s17, 1
    %p35 = por %p33, %p34
    %p36 = scmp.ne.s32.totalorder %s25, %s26
    %p37 = scmp.eq.s32.totalorder %s17, 0
    %p38 = por %p36, %p37
    %p39 = scmp.ne.s32.totalorder %s25, %s26
    %p40 = scmp.eq.s32.totalorder %s18, 1
    %p41 = por %p39, %p40
    %p43 = scmp.ne.s32.totalorder %s26, %s42
    %p44 = scmp.eq.s32.totalorder %s18, 0
    %p45 = por %p43, %p44
    %s47 = sadd.s32 %s46, 1
    %p50 = scmp.eq.s32.totalorder %s12, 1
    %p51 = scmp.ne.s32.totalorder %s46, %s48
    %p52 = scmp.eq.s32.totalorder %s12, 0
    %p53 = por %p51, %p52
    %p54 = scmp.ne.s32.totalorder %s46, %s48
    %p55 = scmp.eq.s32.totalorder %s17, 1
    %p56 = por %p54, %p55
    %p57 = scmp.ne.s32.totalorder %s48, %s49
    %p58 = scmp.eq.s32.totalorder %s17, 0
    %p59 = por %p57, %p58
    %p60 = scmp.ne.s32.totalorder %s48, %s49
    %p61 = scmp.eq.s32.totalorder %s18, 1
    %p62 = por %p60, %p61
    %p64 = scmp.ne.s32.totalorder %s49, %s63
    %p65 = scmp.eq.s32.totalorder %s18, 0
    %p66 = por %p64, %p65
    %s68 = sadd.s32 %s67, 1
    %p71 = scmp.eq.s32.totalorder %s12, 1
    %p72 = scmp.ne.s32.totalorder %s67, %s69
    %p73 = scmp.eq.s32.totalorder %s12, 0
    %p74 = por %p72, %p73
    %p75 = scmp.ne.s32.totalorder %s67, %s69
    %p76 = scmp.eq.s32.totalorder %s17, 1
    %p77 = por %p75, %p76
    %p78 = scmp.ne.s32.totalorder %s69, %s70
    %p79 = scmp.eq.s32.totalorder %s17, 0
    %p80 = por %p78, %p79
    %p81 = scmp.ne.s32.totalorder %s69, %s70
    %p82 = scmp.eq.s32.totalorder %s18, 1
    %p83 = por %p81, %p82
    %p85 = scmp.ne.s32.totalorder %s70, %s84
    %p86 = scmp.eq.s32.totalorder %s18, 0
    %p87 = por %p85, %p86
    %s89 = sadd.s32 %s88, 1
    %p92 = scmp.eq.s32.totalorder %s12, 1
    %p93 = scmp.ne.s32.totalorder %s88, %s90
    %p94 = scmp.eq.s32.totalorder %s12, 0
    %p95 = por %p93, %p94
    %p96 = scmp.ne.s32.totalorder %s88, %s90
    %p97 = scmp.eq.s32.totalorder %s17, 1
    %p98 = por %p96, %p97
    %p99 = scmp.ne.s32.totalorder %s90, %s91
    %p100 = scmp.eq.s32.totalorder %s17, 0
    %p101 = por %p99, %p100
    %p102 = scmp.ne.s32.totalorder %s90, %s91
    %p103 = scmp.eq.s32.totalorder %s18, 1
    %p104 = por %p102, %p103
    %p106 = scmp.ne.s32.totalorder %s91, %s105
    %p107 = scmp.eq.s32.totalorder %s18, 0
    %p108 = por %p106, %p107
    %s109 = ssub.s32 %s12, %s19
    %p110 = scmp.eq.s32.totalorder %s109, 0
    %s112 = sadd.s32 %s111, 1
    %s113 = scalar_select %p110, %s111, %s112
    %p116 = pneg %p110
    %p117 = scmp.eq.s32.totalorder %s12, 1
    %p118 = por %p116, %p117
    %p119 = scmp.ne.s32.totalorder %s111, %s114
    %p120 = scmp.eq.s32.totalorder %s12, 0
    %p121 = por %p119, %p120
    %p122 = scmp.ne.s32.totalorder %s111, %s114
    %p123 = scmp.eq.s32.totalorder %s17, 1
    %p124 = por %p122, %p123
    %p125 = scmp.ne.s32.totalorder %s114, %s115
    %p126 = scmp.eq.s32.totalorder %s17, 0
    %p127 = por %p125, %p126
    %p128 = scmp.ne.s32.totalorder %s114, %s115
    %p129 = scmp.eq.s32.totalorder %s18, 1
    %p130 = por %p128, %p129
    %p132 = scmp.ne.s32.totalorder %s115, %s131
    %p133 = scmp.eq.s32.totalorder %s18, 0
    %p134 = por %p132, %p133
    %s135 = ssub.s32 %s12, %s19
    %p136 = scmp.eq.s32.totalorder %s135, 0
    %s138 = sadd.s32 %s137, 1
    %s139 = scalar_select %p136, %s137, %s138
    %p142 = pneg %p136
    %p143 = scmp.eq.s32.totalorder %s12, 1
    %p144 = por %p142, %p143
    %p145 = scmp.ne.s32.totalorder %s137, %s140
    %p146 = scmp.eq.s32.totalorder %s12, 0
    %p147 = por %p145, %p146
    %p148 = scmp.ne.s32.totalorder %s137, %s140
    %p149 = scmp.eq.s32.totalorder %s17, 1
    %p150 = por %p148, %p149
    %p151 = scmp.ne.s32.totalorder %s140, %s141
    %p152 = scmp.eq.s32.totalorder %s17, 0
    %p153 = por %p151, %p152
    %p154 = scmp.ne.s32.totalorder %s140, %s141
    %p155 = scmp.eq.s32.totalorder %s18, 1
    %p156 = por %p154, %p155
    %p158 = scmp.ne.s32.totalorder %s141, %s157
    %p159 = scmp.eq.s32.totalorder %s18, 0
    %p160 = por %p158, %p159
    %p161 = scmp.le.s32.totalorder 1, %s12
    %p162 = scmp.lt.s32.totalorder %s12, 3
    %p163 = pnand %p161, %p162
    %p164 = pneg %p163
    // Predicated region
    $region9: #{irblock_forward.6} parent=5 // pred_check
      _
    $region10: #{irblock_forward.6} parent=5 // pred_check_branch
      %166 = sbr.rel (%p163) target = $region12
    $region11: #{irblock_forward.6} parent=5 // pred_region
      %s167 = ssub.s32 %s12, 1
      // Predicated region
      $region13: #{irblock_forward.6} parent=11 // pred_check
        %p168 = pneg %p59
      $region14: #{irblock_forward.6} parent=11 // pred_check_branch
        %170 = sbr.rel (%p168) target = $region16
      $region15: #{irblock_forward.6} parent=11 // pred_region
        _
      $region16: #{irblock_forward.6} parent=11 // pred_fallthru
        _
      // Predicated region
      $region17: #{irblock_forward.6} parent=11 // pred_check
        %p171 = pneg %p80
      $region18: #{irblock_forward.6} parent=11 // pred_check_branch
        %173 = sbr.rel (%p171) target = $region20
      $region19: #{irblock_forward.6} parent=11 // pred_region
        _
      $region20: #{irblock_forward.6} parent=11 // pred_fallthru
        _
      // Predicated region
      $region21: #{irblock_forward.6} parent=11 // pred_check
        %p174 = pneg %p101
      $region22: #{irblock_forward.6} parent=11 // pred_check_branch
        %176 = sbr.rel (%p174) target = $region24
      $region23: #{irblock_forward.6} parent=11 // pred_region
        _
      $region24: #{irblock_forward.6} parent=11 // pred_fallthru
        _
    $region12: #{irblock_forward.6} parent=5 // pred_fallthru
      _
    %p177 = scmp.lt.s32.totalorder %s12, 2
    // Predicated region
    $region25: #{irblock_forward.6} parent=5 // pred_check
      %p178 = pneg %p177
    $region26: #{irblock_forward.6} parent=5 // pred_check_branch
      %180 = sbr.rel (%p178) target = $region28
    $region27: #{irblock_forward.6} parent=5 // pred_region
      // Predicated region
      $region29: #{irblock_forward.6} parent=27 // pred_check
        %p181 = pneg %p32
      $region30: #{irblock_forward.6} parent=27 // pred_check_branch
        %183 = sbr.rel (%p181) target = $region32
      $region31: #{irblock_forward.6} parent=27 // pred_region
        %p184 = scmp.lt.s32.totalorder %s12, 1
        %s185 = scalar_select %p184, %s12, 1
        %s186 = smul.addr %s185, 32
        %s187 = smul.addr %s186, 8
        %s188 = scalar_lea.vmem %s0, %s187
      $region32: #{irblock_forward.6} parent=27 // pred_fallthru
        _
    $region28: #{irblock_forward.6} parent=5 // pred_fallthru
      _
    %p189 = scmp.le.s32.totalorder 1, %s12
    %p190 = scmp.lt.s32.totalorder %s12, 3
    %p191 = pnand %p189, %p190
    %p192 = pneg %p191
    // Predicated region
    $region33: #{irblock_forward.6} parent=5 // pred_check
      _
    $region34: #{irblock_forward.6} parent=5 // pred_check_branch
      %194 = sbr.rel (%p191) target = $region36
    $region35: #{irblock_forward.6} parent=5 // pred_region
      %s195 = ssub.s32 %s12, 1
      %p196 = scmp.lt.s32.totalorder %s17, 1
      %s197 = scalar_select %p196, %s17, 1
      %s198 = smul.addr %s197, 32
      %s199 = smul.addr %s198, 8
      %s200 = scalar_lea.vmem %s0, %s199
      %p201 = pneg %p38
      %p202 = pneg %p35
      %p203 = pneg %p59
      %p204 = pneg %p56
      %p205 = pneg %p80
      %p206 = pneg %p77
      %p207 = pneg %p101
      %p208 = pneg %p98
      %p209 = pneg %p127
      %p210 = pneg %p124
      %p211 = scmp.lt.s32.totalorder %s17, 1
      %s212 = scalar_select %p211, %s17, 1
      %s213 = smul.addr %s212, 32
      %s214 = smul.addr %s213, 8
      %s215 = scalar_lea.vmem %s4, %s214
      %p216 = pneg %p153
      %p217 = pneg %p150
      %p218 = scmp.lt.s32.totalorder %s17, 1
      %s219 = scalar_select %p218, %s17, 1
      %s220 = smul.addr %s219, 2
      %s221 = scalar_lea.vmem %s5, %s220
      %p222 = scmp.lt.s32.totalorder %s17, 1
      %s223 = scalar_select %p222, %s17, 1
      %s224 = smul.addr %s223, 32
      %s225 = smul.addr %s224, 8
      %s226 = scalar_lea.vmem %s0, %s225
      %p227 = scmp.lt.s32.totalorder %s17, 1
      %s228 = scalar_select %p227, %s17, 1
      %s229 = smul.addr %s228, 32
      %s230 = smul.addr %s229, 8
      %s231 = scalar_lea.vmem %s4, %s230
      %p232 = scmp.lt.s32.totalorder %s17, 1
      %s233 = scalar_select %p232, %s17, 1
      %s234 = smul.addr %s233, 2
      %s235 = scalar_lea.vmem %s5, %s234
      %v236 = vld [vmem:[%s226] sm:$0xff]
      %v237 = vld [vmem:[%s226 + $0x8] sm:$0xff]
      %v238 = vld [vmem:[%s226 + $0x10] sm:$0xff]
      %v239 = vld [vmem:[%s226 + $0x18] sm:$0xff]
      %v240 = vld [vmem:[%s226 + $0x20] sm:$0xff]
      %v241 = vld [vmem:[%s226 + $0x28] sm:$0xff]
      %v242 = vld [vmem:[%s226 + $0x30] sm:$0xff]
      %v243 = vld [vmem:[%s226 + $0x38] sm:$0xff]
      %v244 = vld [vmem:[%s226 + $0x40] sm:$0xff]
      %v245 = vld [vmem:[%s226 + $0x48] sm:$0xff]
      %v246 = vld [vmem:[%s226 + $0x50] sm:$0xff]
      %v247 = vld [vmem:[%s226 + $0x58] sm:$0xff]
      %v248 = vld [vmem:[%s226 + $0x60] sm:$0xff]
      %v249 = vld [vmem:[%s226 + $0x68] sm:$0xff]
      %v250 = vld [vmem:[%s226 + $0x70] sm:$0xff]
      %v251 = vld [vmem:[%s226 + $0x78] sm:$0xff]
      %v252 = vld [vmem:[%s226 + $0x80] sm:$0xff]
      %v253 = vld [vmem:[%s226 + $0x88] sm:$0xff]
      %v254 = vld [vmem:[%s226 + $0x90] sm:$0xff]
      %v255 = vld [vmem:[%s226 + $0x98] sm:$0xff]
      %v256 = vld [vmem:[%s226 + $0xa0] sm:$0xff]
      %v257 = vld [vmem:[%s226 + $0xa8] sm:$0xff]
      %v258 = vld [vmem:[%s226 + $0xb0] sm:$0xff]
      %v259 = vld [vmem:[%s226 + $0xb8] sm:$0xff]
      %v260 = vld [vmem:[%s226 + $0xc0] sm:$0xff]
      %v261 = vld [vmem:[%s226 + $0xc8] sm:$0xff]
      %v262 = vld [vmem:[%s226 + $0xd0] sm:$0xff]
      %v263 = vld [vmem:[%s226 + $0xd8] sm:$0xff]
      %v264 = vld [vmem:[%s226 + $0xe0] sm:$0xff]
      %v265 = vld [vmem:[%s226 + $0xe8] sm:$0xff]
      %v266 = vld [vmem:[%s226 + $0xf0] sm:$0xff]
      %v267 = vld [vmem:[%s226 + $0xf8] sm:$0xff]
      %v268 = vld [vmem:[%s1] sm:$0x1]
      %v270 = vlaneseq
      %v271 = vshrl.u32 %v270, 7
      %v272 = vsub.s32 0, %v271
      %v273 = vrot.slane %v268, %v272
      %v275 = vmul.f32 %v236, %v273
      %v276 = vmul.f32 %v237, %v273
      %v277 = vmul.f32 %v238, %v273
      %v278 = vmul.f32 %v239, %v273
      %v279 = vmul.f32 %v240, %v273
      %v280 = vmul.f32 %v241, %v273
      %v281 = vmul.f32 %v242, %v273
      %v282 = vmul.f32 %v243, %v273
      %v283 = vmul.f32 %v244, %v273
      %v284 = vmul.f32 %v245, %v273
      %v285 = vmul.f32 %v246, %v273
      %v286 = vmul.f32 %v247, %v273
      %v287 = vmul.f32 %v248, %v273
      %v288 = vmul.f32 %v249, %v273
      %v289 = vmul.f32 %v250, %v273
      %v290 = vmul.f32 %v251, %v273
      %v291 = vmul.f32 %v252, %v273
      %v292 = vmul.f32 %v253, %v273
      %v293 = vmul.f32 %v254, %v273
      %v294 = vmul.f32 %v255, %v273
      %v295 = vmul.f32 %v256, %v273
      %v296 = vmul.f32 %v257, %v273
      %v297 = vmul.f32 %v258, %v273
      %v298 = vmul.f32 %v259, %v273
      %v299 = vmul.f32 %v260, %v273
      %v300 = vmul.f32 %v261, %v273
      %v301 = vmul.f32 %v262, %v273
      %v302 = vmul.f32 %v263, %v273
      %v303 = vmul.f32 %v264, %v273
      %v304 = vmul.f32 %v265, %v273
      %v305 = vmul.f32 %v266, %v273
      %v306 = vmul.f32 %v267, %v273
      %v307 = vld [vmem:[%s2] sm:$0x1]
      %v309 = vlaneseq
      %v310 = vshrl.u32 %v309, 7
      %v311 = vsub.s32 0, %v310
      %v312 = vrot.slane %v307, %v311
      %v314 = vadd.f32 %v275, %v312
      %v315 = vadd.f32 %v276, %v312
      %v316 = vadd.f32 %v277, %v312
      %v317 = vadd.f32 %v278, %v312
      %v318 = vadd.f32 %v279, %v312
      %v319 = vadd.f32 %v280, %v312
      %v320 = vadd.f32 %v281, %v312
      %v321 = vadd.f32 %v282, %v312
      %v322 = vadd.f32 %v283, %v312
      %v323 = vadd.f32 %v284, %v312
      %v324 = vadd.f32 %v285, %v312
      %v325 = vadd.f32 %v286, %v312
      %v326 = vadd.f32 %v287, %v312
      %v327 = vadd.f32 %v288, %v312
      %v328 = vadd.f32 %v289, %v312
      %v329 = vadd.f32 %v290, %v312
      %v330 = vadd.f32 %v291, %v312
      %v331 = vadd.f32 %v292, %v312
      %v332 = vadd.f32 %v293, %v312
      %v333 = vadd.f32 %v294, %v312
      %v334 = vadd.f32 %v295, %v312
      %v335 = vadd.f32 %v296, %v312
      %v336 = vadd.f32 %v297, %v312
      %v337 = vadd.f32 %v298, %v312
      %v338 = vadd.f32 %v299, %v312
      %v339 = vadd.f32 %v300, %v312
      %v340 = vadd.f32 %v301, %v312
      %v341 = vadd.f32 %v302, %v312
      %v342 = vadd.f32 %v303, %v312
      %v343 = vadd.f32 %v304, %v312
      %v344 = vadd.f32 %v305, %v312
      %v345 = vadd.f32 %v306, %v312
      %v346 = vsub.f32 0.0, %v314
      %v347 = vsub.f32 0.0, %v315
      %v348 = vsub.f32 0.0, %v316
      %v349 = vsub.f32 0.0, %v317
      %v350 = vsub.f32 0.0, %v318
      %v351 = vsub.f32 0.0, %v319
      %v352 = vsub.f32 0.0, %v320
      %v353 = vsub.f32 0.0, %v321
      %v354 = vsub.f32 0.0, %v322
      %v355 = vsub.f32 0.0, %v323
      %v356 = vsub.f32 0.0, %v324
      %v357 = vsub.f32 0.0, %v325
      %v358 = vsub.f32 0.0, %v326
      %v359 = vsub.f32 0.0, %v327
      %v360 = vsub.f32 0.0, %v328
      %v361 = vsub.f32 0.0, %v329
      %v362 = vsub.f32 0.0, %v330
      %v363 = vsub.f32 0.0, %v331
      %v364 = vsub.f32 0.0, %v332
      %v365 = vsub.f32 0.0, %v333
      %v366 = vsub.f32 0.0, %v334
      %v367 = vsub.f32 0.0, %v335
      %v368 = vsub.f32 0.0, %v336
      %v369 = vsub.f32 0.0, %v337
      %v370 = vsub.f32 0.0, %v338
      %v371 = vsub.f32 0.0, %v339
      %v372 = vsub.f32 0.0, %v340
      %v373 = vsub.f32 0.0, %v341
      %v374 = vsub.f32 0.0, %v342
      %v375 = vsub.f32 0.0, %v343
      %v376 = vsub.f32 0.0, %v344
      %v377 = vsub.f32 0.0, %v345
      %v378 = vmul.f32 %v346, 1.442695
      %v379 = vpow.pop %v378
      %v380 = vmul.f32 %v347, 1.442695
      %v381 = vpow.pop %v380
      %v382 = vmul.f32 %v348, 1.442695
      %v383 = vpow.pop %v382
      %v384 = vmul.f32 %v349, 1.442695
      %v385 = vpow.pop %v384
      %v386 = vmul.f32 %v350, 1.442695
      %v387 = vpow.pop %v386
      %v388 = vmul.f32 %v351, 1.442695
      %v389 = vpow.pop %v388
      %v390 = vmul.f32 %v352, 1.442695
      %v391 = vpow.pop %v390
      %v392 = vmul.f32 %v353, 1.442695
      %v393 = vpow.pop %v392
      %v394 = vmul.f32 %v354, 1.442695
      %v395 = vpow.pop %v394
      %v396 = vmul.f32 %v355, 1.442695
      %v397 = vpow.pop %v396
      %v398 = vmul.f32 %v356, 1.442695
      %v399 = vpow.pop %v398
      %v400 = vmul.f32 %v357, 1.442695
      %v401 = vpow.pop %v400
      %v402 = vmul.f32 %v358, 1.442695
      %v403 = vpow.pop %v402
      %v404 = vmul.f32 %v359, 1.442695
      %v405 = vpow.pop %v404
      %v406 = vmul.f32 %v360, 1.442695
      %v407 = vpow.pop %v406
      %v408 = vmul.f32 %v361, 1.442695
      %v409 = vpow.pop %v408
      %v410 = vmul.f32 %v362, 1.442695
      %v411 = vpow.pop %v410
      %v412 = vmul.f32 %v363, 1.442695
      %v413 = vpow.pop %v412
      %v414 = vmul.f32 %v364, 1.442695
      %v415 = vpow.pop %v414
      %v416 = vmul.f32 %v365, 1.442695
      %v417 = vpow.pop %v416
      %v418 = vmul.f32 %v366, 1.442695
      %v419 = vpow.pop %v418
      %v420 = vmul.f32 %v367, 1.442695
      %v421 = vpow.pop %v420
      %v422 = vmul.f32 %v368, 1.442695
      %v423 = vpow.pop %v422
      %v424 = vmul.f32 %v369, 1.442695
      %v425 = vpow.pop %v424
      %v426 = vmul.f32 %v370, 1.442695
      %v427 = vpow.pop %v426
      %v428 = vmul.f32 %v371, 1.442695
      %v429 = vpow.pop %v428
      %v430 = vmul.f32 %v372, 1.442695
      %v431 = vpow.pop %v430
      %v432 = vmul.f32 %v373, 1.442695
      %v433 = vpow.pop %v432
      %v434 = vmul.f32 %v374, 1.442695
      %v435 = vpow.pop %v434
      %v436 = vmul.f32 %v375, 1.442695
      %v437 = vpow.pop %v436
      %v438 = vmul.f32 %v376, 1.442695
      %v439 = vpow.pop %v438
      %v440 = vmul.f32 %v377, 1.442695
      %v441 = vpow.pop %v440
      %v442 = vadd.f32 %v379, 1.0
      %v443 = vadd.f32 %v381, 1.0
      %v444 = vadd.f32 %v383, 1.0
      %v445 = vadd.f32 %v385, 1.0
      %v446 = vadd.f32 %v387, 1.0
      %v447 = vadd.f32 %v389, 1.0
      %v448 = vadd.f32 %v391, 1.0
      %v449 = vadd.f32 %v393, 1.0
      %v450 = vadd.f32 %v395, 1.0
      %v451 = vadd.f32 %v397, 1.0
      %v452 = vadd.f32 %v399, 1.0
      %v453 = vadd.f32 %v401, 1.0
      %v454 = vadd.f32 %v403, 1.0
      %v455 = vadd.f32 %v405, 1.0
      %v456 = vadd.f32 %v407, 1.0
      %v457 = vadd.f32 %v409, 1.0
      %v458 = vadd.f32 %v411, 1.0
      %v459 = vadd.f32 %v413, 1.0
      %v460 = vadd.f32 %v415, 1.0
      %v461 = vadd.f32 %v417, 1.0
      %v462 = vadd.f32 %v419, 1.0
      %v463 = vadd.f32 %v421, 1.0
      %v464 = vadd.f32 %v423, 1.0
      %v465 = vadd.f32 %v425, 1.0
      %v466 = vadd.f32 %v427, 1.0
      %v467 = vadd.f32 %v429, 1.0
      %v468 = vadd.f32 %v431, 1.0
      %v469 = vadd.f32 %v433, 1.0
      %v470 = vadd.f32 %v435, 1.0
      %v471 = vadd.f32 %v437, 1.0
      %v472 = vadd.f32 %v439, 1.0
      %v473 = vadd.f32 %v441, 1.0
      %v474 = vrcp.pop %v442
      %v475 = vmul.f32 1.0, %v474
      %v476 = vrcp.pop %v443
      %v477 = vmul.f32 1.0, %v476
      %v478 = vrcp.pop %v444
      %v479 = vmul.f32 1.0, %v478
      %v480 = vrcp.pop %v445
      %v481 = vmul.f32 1.0, %v480
      %v482 = vrcp.pop %v446
      %v483 = vmul.f32 1.0, %v482
      %v484 = vrcp.pop %v447
      %v485 = vmul.f32 1.0, %v484
      %v486 = vrcp.pop %v448
      %v487 = vmul.f32 1.0, %v486
      %v488 = vrcp.pop %v449
      %v489 = vmul.f32 1.0, %v488
      %v490 = vrcp.pop %v450
      %v491 = vmul.f32 1.0, %v490
      %v492 = vrcp.pop %v451
      %v493 = vmul.f32 1.0, %v492
      %v494 = vrcp.pop %v452
      %v495 = vmul.f32 1.0, %v494
      %v496 = vrcp.pop %v453
      %v497 = vmul.f32 1.0, %v496
      %v498 = vrcp.pop %v454
      %v499 = vmul.f32 1.0, %v498
      %v500 = vrcp.pop %v455
      %v501 = vmul.f32 1.0, %v500
      %v502 = vrcp.pop %v456
      %v503 = vmul.f32 1.0, %v502
      %v504 = vrcp.pop %v457
      %v505 = vmul.f32 1.0, %v504
      %v506 = vrcp.pop %v458
      %v507 = vmul.f32 1.0, %v506
      %v508 = vrcp.pop %v459
      %v509 = vmul.f32 1.0, %v508
      %v510 = vrcp.pop %v460
      %v511 = vmul.f32 1.0, %v510
      %v512 = vrcp.pop %v461
      %v513 = vmul.f32 1.0, %v512
      %v514 = vrcp.pop %v462
      %v515 = vmul.f32 1.0, %v514
      %v516 = vrcp.pop %v463
      %v517 = vmul.f32 1.0, %v516
      %v518 = vrcp.pop %v464
      %v519 = vmul.f32 1.0, %v518
      %v520 = vrcp.pop %v465
      %v521 = vmul.f32 1.0, %v520
      %v522 = vrcp.pop %v466
      %v523 = vmul.f32 1.0, %v522
      %v524 = vrcp.pop %v467
      %v525 = vmul.f32 1.0, %v524
      %v526 = vrcp.pop %v468
      %v527 = vmul.f32 1.0, %v526
      %v528 = vrcp.pop %v469
      %v529 = vmul.f32 1.0, %v528
      %v530 = vrcp.pop %v470
      %v531 = vmul.f32 1.0, %v530
      %v532 = vrcp.pop %v471
      %v533 = vmul.f32 1.0, %v532
      %v534 = vrcp.pop %v472
      %v535 = vmul.f32 1.0, %v534
      %v536 = vrcp.pop %v473
      %v537 = vmul.f32 1.0, %v536
      %v538 = vmul.f32 %v314, %v475
      %v539 = vmul.f32 %v315, %v477
      %v540 = vmul.f32 %v316, %v479
      %v541 = vmul.f32 %v317, %v481
      %v542 = vmul.f32 %v318, %v483
      %v543 = vmul.f32 %v319, %v485
      %v544 = vmul.f32 %v320, %v487
      %v545 = vmul.f32 %v321, %v489
      %v546 = vmul.f32 %v322, %v491
      %v547 = vmul.f32 %v323, %v493
      %v548 = vmul.f32 %v324, %v495
      %v549 = vmul.f32 %v325, %v497
      %v550 = vmul.f32 %v326, %v499
      %v551 = vmul.f32 %v327, %v501
      %v552 = vmul.f32 %v328, %v503
      %v553 = vmul.f32 %v329, %v505
      %v554 = vmul.f32 %v330, %v507
      %v555 = vmul.f32 %v331, %v509
      %v556 = vmul.f32 %v332, %v511
      %v557 = vmul.f32 %v333, %v513
      %v558 = vmul.f32 %v334, %v515
      %v559 = vmul.f32 %v335, %v517
      %v560 = vmul.f32 %v336, %v519
      %v561 = vmul.f32 %v337, %v521
      %v562 = vmul.f32 %v338, %v523
      %v563 = vmul.f32 %v339, %v525
      %v564 = vmul.f32 %v340, %v527
      %v565 = vmul.f32 %v341, %v529
      %v566 = vmul.f32 %v342, %v531
      %v567 = vmul.f32 %v343, %v533
      %v568 = vmul.f32 %v344, %v535
      %v569 = vmul.f32 %v345, %v537
      %570 = vst [vmem:[#allocation2] sm:$0xff] 0.0
      %571 = vst [vmem:[#allocation2 + $0x8] sm:$0xff] 0.0
      %572 = vst [vmem:[#allocation2 + $0x10] sm:$0x3] 0.0
      %s573 = scalar_lea.vmem [#allocation2], 408
      %574 = vst [vmem:[%s573] sm:$0xff] 0.0
      %575 = vst [vmem:[%s573 + $0x8] sm:$0xff] 0.0
      %576 = vst [vmem:[%s573 + $0x10] sm:$0x3] 0.0
      %577 = vst [vmem:[#allocation2] sm:$0x1] 0.0
      %578 = vst [vmem:[#allocation2 + $0x18] sm:$0x1] 0.0
      %579 = vst [vmem:[#allocation2 + $0x30] sm:$0x1] 0.0
      %580 = vst [vmem:[#allocation2 + $0x48] sm:$0x1] 0.0
      %581 = vst [vmem:[#allocation2 + $0x60] sm:$0x1] 0.0
      %582 = vst [vmem:[#allocation2 + $0x78] sm:$0x1] 0.0
      %583 = vst [vmem:[#allocation2 + $0x90] sm:$0x1] 0.0
      %584 = vst [vmem:[#allocation2 + $0xa8] sm:$0x1] 0.0
      %585 = vst [vmem:[#allocation2 + $0xc0] sm:$0x1] 0.0
      %586 = vst [vmem:[#allocation2 + $0xd8] sm:$0x1] 0.0
      %587 = vst [vmem:[#allocation2 + $0xf0] sm:$0x1] 0.0
      %588 = vst [vmem:[#allocation2 + $0x108] sm:$0x1] 0.0
      %589 = vst [vmem:[#allocation2 + $0x120] sm:$0x1] 0.0
      %590 = vst [vmem:[#allocation2 + $0x138] sm:$0x1] 0.0
      %591 = vst [vmem:[#allocation2 + $0x150] sm:$0x1] 0.0
      %592 = vst [vmem:[#allocation2 + $0x168] sm:$0x1] 0.0
      %593 = vst [vmem:[#allocation2 + $0x180] sm:$0x1] 0.0
      %594 = vst [vmem:[#allocation2 + $0x198] sm:$0x1] 0.0
      %595 = vst [vmem:[#allocation2 + $0x11] sm:$0x1] 0.0
      %596 = vst [vmem:[#allocation2 + $0x29] sm:$0x1] 0.0
      %597 = vst [vmem:[#allocation2 + $0x41] sm:$0x1] 0.0
      %598 = vst [vmem:[#allocation2 + $0x59] sm:$0x1] 0.0
      %599 = vst [vmem:[#allocation2 + $0x71] sm:$0x1] 0.0
      %600 = vst [vmem:[#allocation2 + $0x89] sm:$0x1] 0.0
      %601 = vst [vmem:[#allocation2 + $0xa1] sm:$0x1] 0.0
      %602 = vst [vmem:[#allocation2 + $0xb9] sm:$0x1] 0.0
      %603 = vst [vmem:[#allocation2 + $0xd1] sm:$0x1] 0.0
      %604 = vst [vmem:[#allocation2 + $0xe9] sm:$0x1] 0.0
      %605 = vst [vmem:[#allocation2 + $0x101] sm:$0x1] 0.0
      %606 = vst [vmem:[#allocation2 + $0x119] sm:$0x1] 0.0
      %607 = vst [vmem:[#allocation2 + $0x131] sm:$0x1] 0.0
      %608 = vst [vmem:[#allocation2 + $0x149] sm:$0x1] 0.0
      %609 = vst [vmem:[#allocation2 + $0x161] sm:$0x1] 0.0
      %610 = vst [vmem:[#allocation2 + $0x179] sm:$0x1] 0.0
      %611 = vst [vmem:[#allocation2 + $0x191] sm:$0x1] 0.0
      %612 = vst [vmem:[#allocation2 + $0x1a9] sm:$0x1] 0.0
      %s613 = scalar_lea.vmem [#allocation2], 24
      %614 = vst [vmem:[%s613 + $0x1] sm:$0xff] %v538
      %615 = vst [vmem:[%s613 + $0x9] sm:$0xff] %v539
      %616 = vst [vmem:[%s613 + $0x19] sm:$0xff] %v540
      %617 = vst [vmem:[%s613 + $0x21] sm:$0xff] %v541
      %618 = vst [vmem:[%s613 + $0x31] sm:$0xff] %v542
      %619 = vst [vmem:[%s613 + $0x39] sm:$0xff] %v543
      %620 = vst [vmem:[%s613 + $0x49] sm:$0xff] %v544
      %621 = vst [vmem:[%s613 + $0x51] sm:$0xff] %v545
      %622 = vst [vmem:[%s613 + $0x61] sm:$0xff] %v546
      %623 = vst [vmem:[%s613 + $0x69] sm:$0xff] %v547
      %624 = vst [vmem:[%s613 + $0x79] sm:$0xff] %v548
      %625 = vst [vmem:[%s613 + $0x81] sm:$0xff] %v549
      %626 = vst [vmem:[%s613 + $0x91] sm:$0xff] %v550
      %627 = vst [vmem:[%s613 + $0x99] sm:$0xff] %v551
      %628 = vst [vmem:[%s613 + $0xa9] sm:$0xff] %v552
      %629 = vst [vmem:[%s613 + $0xb1] sm:$0xff] %v553
      %630 = vst [vmem:[%s613 + $0xc1] sm:$0xff] %v554
      %631 = vst [vmem:[%s613 + $0xc9] sm:$0xff] %v555
      %632 = vst [vmem:[%s613 + $0xd9] sm:$0xff] %v556
      %633 = vst [vmem:[%s613 + $0xe1] sm:$0xff] %v557
      %634 = vst [vmem:[%s613 + $0xf1] sm:$0xff] %v558
      %635 = vst [vmem:[%s613 + $0xf9] sm:$0xff] %v559
      %636 = vst [vmem:[%s613 + $0x109] sm:$0xff] %v560
      %637 = vst [vmem:[%s613 + $0x111] sm:$0xff] %v561
      %638 = vst [vmem:[%s613 + $0x121] sm:$0xff] %v562
      %639 = vst [vmem:[%s613 + $0x129] sm:$0xff] %v563
      %640 = vst [vmem:[%s613 + $0x139] sm:$0xff] %v564
      %641 = vst [vmem:[%s613 + $0x141] sm:$0xff] %v565
      %642 = vst [vmem:[%s613 + $0x151] sm:$0xff] %v566
      %643 = vst [vmem:[%s613 + $0x159] sm:$0xff] %v567
      %644 = vst [vmem:[%s613 + $0x169] sm:$0xff] %v568
      %645 = vst [vmem:[%s613 + $0x171] sm:$0xff] %v569
      %v646 = vld [vmem:[#allocation2] sm:$0xff]
      %v647 = vld [vmem:[#allocation2 + $0x8] sm:$0xff]
      %v648 = vld [vmem:[#allocation2 + $0x10] sm:$0x3]
      %v649 = vld [vmem:[#allocation2 + $0x18] sm:$0xff]
      %v650 = vld [vmem:[#allocation2 + $0x20] sm:$0xff]
      %v651 = vld [vmem:[#allocation2 + $0x28] sm:$0x3]
      %v652 = vld [vmem:[#allocation2 + $0x30] sm:$0xff]
      %v653 = vld [vmem:[#allocation2 + $0x38] sm:$0xff]
      %v654 = vld [vmem:[#allocation2 + $0x40] sm:$0x3]
      %v655 = vld [vmem:[#allocation2 + $0x48] sm:$0xff]
      %v656 = vld [vmem:[#allocation2 + $0x50] sm:$0xff]
      %v657 = vld [vmem:[#allocation2 + $0x58] sm:$0x3]
      %v658 = vld [vmem:[#allocation2 + $0x60] sm:$0xff]
      %v659 = vld [vmem:[#allocation2 + $0x68] sm:$0xff]
      %v660 = vld [vmem:[#allocation2 + $0x70] sm:$0x3]
      %v661 = vld [vmem:[#allocation2 + $0x78] sm:$0xff]
      %v662 = vld [vmem:[#allocation2 + $0x80] sm:$0xff]
      %v663 = vld [vmem:[#allocation2 + $0x88] sm:$0x3]
      %v664 = vld [vmem:[#allocation2 + $0x90] sm:$0xff]
      %v665 = vld [vmem:[#allocation2 + $0x98] sm:$0xff]
      %v666 = vld [vmem:[#allocation2 + $0xa0] sm:$0x3]
      %v667 = vld [vmem:[#allocation2 + $0xa8] sm:$0xff]
      %v668 = vld [vmem:[#allocation2 + $0xb0] sm:$0xff]
      %v669 = vld [vmem:[#allocation2 + $0xb8] sm:$0x3]
      %v670 = vld [vmem:[#allocation2 + $0xc0] sm:$0xff]
      %v671 = vld [vmem:[#allocation2 + $0xc8] sm:$0xff]
      %v672 = vld [vmem:[#allocation2 + $0xd0] sm:$0x3]
      %v673 = vld [vmem:[#allocation2 + $0xd8] sm:$0xff]
      %v674 = vld [vmem:[#allocation2 + $0xe0] sm:$0xff]
      %v675 = vld [vmem:[#allocation2 + $0xe8] sm:$0x3]
      %v676 = vld [vmem:[#allocation2 + $0xf0] sm:$0xff]
      %v677 = vld [vmem:[#allocation2 + $0xf8] sm:$0xff]
      %v678 = vld [vmem:[#allocation2 + $0x100] sm:$0x3]
      %v679 = vld [vmem:[#allocation2 + $0x108] sm:$0xff]
      %v680 = vld [vmem:[#allocation2 + $0x110] sm:$0xff]
      %v681 = vld [vmem:[#allocation2 + $0x118] sm:$0x3]
      %v682 = vld [vmem:[#allocation2 + $0x120] sm:$0xff]
      %v683 = vld [vmem:[#allocation2 + $0x128] sm:$0xff]
      %v684 = vld [vmem:[#allocation2 + $0x130] sm:$0x3]
      %v685 = vld [vmem:[#allocation2 + $0x138] sm:$0xff]
      %v686 = vld [vmem:[#allocation2 + $0x140] sm:$0xff]
      %v687 = vld [vmem:[#allocation2 + $0x148] sm:$0x3]
      %v688 = vld [vmem:[#allocation2 + $0x150] sm:$0xff]
      %v689 = vld [vmem:[#allocation2 + $0x158] sm:$0xff]
      %v690 = vld [vmem:[#allocation2 + $0x160] sm:$0x3]
      %v691 = vld [vmem:[#allocation2 + $0x168] sm:$0xff]
      %v692 = vld [vmem:[#allocation2 + $0x170] sm:$0xff]
      %v693 = vld [vmem:[#allocation2 + $0x178] sm:$0x3]
      %v694 = vld [vmem:[#allocation2 + $0x180] sm:$0xff]
      %v695 = vld [vmem:[#allocation2 + $0x188] sm:$0xff]
      %v696 = vld [vmem:[#allocation2 + $0x190] sm:$0x3]
      %v697 = vld [vmem:[#allocation2 + $0x198] sm:$0xff]
      %v698 = vld [vmem:[#allocation2 + $0x1a0] sm:$0xff]
      %v699 = vld [vmem:[#allocation2 + $0x1a8] sm:$0x3]
      %vm748 = vcmask 1046528
      %v749 = vrot.slane %v646, 1
      %v750 = vrot.slane %v647, 1
      %v751 = vsel %vm748, %v749, %v750
      %v752 = vrot.slane %v648, 1
      %v753 = vsel %vm748, %v750, %v752
      %v754 = vrot.slane %v649, 1
      %v755 = vrot.slane %v650, 1
      %v756 = vsel %vm748, %v754, %v755
      %v757 = vrot.slane %v651, 1
      %v758 = vsel %vm748, %v755, %v757
      %v759 = vrot.slane %v652, 1
      %v760 = vrot.slane %v653, 1
      %v761 = vsel %vm748, %v759, %v760
      %v762 = vrot.slane %v654, 1
      %v763 = vsel %vm748, %v760, %v762
      %v764 = vrot.slane %v655, 1
      %v765 = vrot.slane %v656, 1
      %v766 = vsel %vm748, %v764, %v765
      %v767 = vrot.slane %v657, 1
      %v768 = vsel %vm748, %v765, %v767
      %v769 = vrot.slane %v658, 1
      %v770 = vrot.slane %v659, 1
      %v771 = vsel %vm748, %v769, %v770
      %v772 = vrot.slane %v660, 1
      %v773 = vsel %vm748, %v770, %v772
      %v774 = vrot.slane %v661, 1
      %v775 = vrot.slane %v662, 1
      %v776 = vsel %vm748, %v774, %v775
      %v777 = vrot.slane %v663, 1
      %v778 = vsel %vm748, %v775, %v777
      %v779 = vrot.slane %v664, 1
      %v780 = vrot.slane %v665, 1
      %v781 = vsel %vm748, %v779, %v780
      %v782 = vrot.slane %v666, 1
      %v783 = vsel %vm748, %v780, %v782
      %v784 = vrot.slane %v667, 1
      %v785 = vrot.slane %v668, 1
      %v786 = vsel %vm748, %v784, %v785
      %v787 = vrot.slane %v669, 1
      %v788 = vsel %vm748, %v785, %v787
      %v789 = vrot.slane %v670, 1
      %v790 = vrot.slane %v671, 1
      %v791 = vsel %vm748, %v789, %v790
      %v792 = vrot.slane %v672, 1
      %v793 = vsel %vm748, %v790, %v792
      %v794 = vrot.slane %v673, 1
      %v795 = vrot.slane %v674, 1
      %v796 = vsel %vm748, %v794, %v795
      %v797 = vrot.slane %v675, 1
      %v798 = vsel %vm748, %v795, %v797
      %v799 = vrot.slane %v676, 1
      %v800 = vrot.slane %v677, 1
      %v801 = vsel %vm748, %v799, %v800
      %v802 = vrot.slane %v678, 1
      %v803 = vsel %vm748, %v800, %v802
      %v804 = vrot.slane %v679, 1
      %v805 = vrot.slane %v680, 1
      %v806 = vsel %vm748, %v804, %v805
      %v807 = vrot.slane %v681, 1
      %v808 = vsel %vm748, %v805, %v807
      %v809 = vrot.slane %v682, 1
      %v810 = vrot.slane %v683, 1
      %v811 = vsel %vm748, %v809, %v810
      %v812 = vrot.slane %v684, 1
      %v813 = vsel %vm748, %v810, %v812
      %v814 = vrot.slane %v685, 1
      %v815 = vrot.slane %v686, 1
      %v816 = vsel %vm748, %v814, %v815
      %v817 = vrot.slane %v687, 1
      %v818 = vsel %vm748, %v815, %v817
      %v819 = vrot.slane %v688, 1
      %v820 = vrot.slane %v689, 1
      %v821 = vsel %vm748, %v819, %v820
      %v822 = vrot.slane %v690, 1
      %v823 = vsel %vm748, %v820, %v822
      %v824 = vrot.slane %v691, 1
      %v825 = vrot.slane %v692, 1
      %v826 = vsel %vm748, %v824, %v825
      %v827 = vrot.slane %v693, 1
      %v828 = vsel %vm748, %v825, %v827
      %vm861 = vcmask 1045504
      %v862 = vrot.slane %v646, 2
      %v863 = vrot.slane %v647, 2
      %v864 = vsel %vm861, %v862, %v863
      %v865 = vrot.slane %v648, 2
      %v866 = vsel %vm861, %v863, %v865
      %v867 = vrot.slane %v649, 2
      %v868 = vrot.slane %v650, 2
      %v869 = vsel %vm861, %v867, %v868
      %v870 = vrot.slane %v651, 2
      %v871 = vsel %vm861, %v868, %v870
      %v872 = vrot.slane %v652, 2
      %v873 = vrot.slane %v653, 2
      %v874 = vsel %vm861, %v872, %v873
      %v875 = vrot.slane %v654, 2
      %v876 = vsel %vm861, %v873, %v875
      %v877 = vrot.slane %v655, 2
      %v878 = vrot.slane %v656, 2
      %v879 = vsel %vm861, %v877, %v878
      %v880 = vrot.slane %v657, 2
      %v881 = vsel %vm861, %v878, %v880
      %v882 = vrot.slane %v658, 2
      %v883 = vrot.slane %v659, 2
      %v884 = vsel %vm861, %v882, %v883
      %v885 = vrot.slane %v660, 2
      %v886 = vsel %vm861, %v883, %v885
      %v887 = vrot.slane %v661, 2
      %v888 = vrot.slane %v662, 2
      %v889 = vsel %vm861, %v887, %v888
      %v890 = vrot.slane %v663, 2
      %v891 = vsel %vm861, %v888, %v890
      %v892 = vrot.slane %v664, 2
      %v893 = vrot.slane %v665, 2
      %v894 = vsel %vm861, %v892, %v893
      %v895 = vrot.slane %v666, 2
      %v896 = vsel %vm861, %v893, %v895
      %v897 = vrot.slane %v667, 2
      %v898 = vrot.slane %v668, 2
      %v899 = vsel %vm861, %v897, %v898
      %v900 = vrot.slane %v669, 2
      %v901 = vsel %vm861, %v898, %v900
      %v902 = vrot.slane %v670, 2
      %v903 = vrot.slane %v671, 2
      %v904 = vsel %vm861, %v902, %v903
      %v905 = vrot.slane %v672, 2
      %v906 = vsel %vm861, %v903, %v905
      %v907 = vrot.slane %v673, 2
      %v908 = vrot.slane %v674, 2
      %v909 = vsel %vm861, %v907, %v908
      %v910 = vrot.slane %v675, 2
      %v911 = vsel %vm861, %v908, %v910
      %v912 = vrot.slane %v676, 2
      %v913 = vrot.slane %v677, 2
      %v914 = vsel %vm861, %v912, %v913
      %v915 = vrot.slane %v678, 2
      %v916 = vsel %vm861, %v913, %v915
      %v917 = vrot.slane %v679, 2
      %v918 = vrot.slane %v680, 2
      %v919 = vsel %vm861, %v917, %v918
      %v920 = vrot.slane %v681, 2
      %v921 = vsel %vm861, %v918, %v920
      %v922 = vrot.slane %v682, 2
      %v923 = vrot.slane %v683, 2
      %v924 = vsel %vm861, %v922, %v923
      %v925 = vrot.slane %v684, 2
      %v926 = vsel %vm861, %v923, %v925
      %v927 = vrot.slane %v685, 2
      %v928 = vrot.slane %v686, 2
      %v929 = vsel %vm861, %v927, %v928
      %v930 = vrot.slane %v687, 2
      %v931 = vsel %vm861, %v928, %v930
      %v932 = vrot.slane %v688, 2
      %v933 = vrot.slane %v689, 2
      %v934 = vsel %vm861, %v932, %v933
      %v935 = vrot.slane %v690, 2
      %v936 = vsel %vm861, %v933, %v935
      %v937 = vrot.slane %v691, 2
      %v938 = vrot.slane %v692, 2
      %v939 = vsel %vm861, %v937, %v938
      %v940 = vrot.slane %v693, 2
      %v941 = vsel %vm861, %v938, %v940
      %v977 = vrot.slane %v694, 1
      %v978 = vrot.slane %v695, 1
      %v979 = vsel %vm748, %v977, %v978
      %v980 = vrot.slane %v696, 1
      %v981 = vsel %vm748, %v978, %v980
      %v984 = vrot.slane %v694, 2
      %v985 = vrot.slane %v695, 2
      %v986 = vsel %vm861, %v984, %v985
      %v987 = vrot.slane %v696, 2
      %v988 = vsel %vm861, %v985, %v987
      %v994 = vrot.slane %v697, 1
      %v995 = vrot.slane %v698, 1
      %v996 = vsel %vm748, %v994, %v995
      %v997 = vrot.slane %v699, 1
      %v998 = vsel %vm748, %v995, %v997
      %v1001 = vrot.slane %v697, 2
      %v1002 = vrot.slane %v698, 2
      %v1003 = vsel %vm861, %v1001, %v1002
      %v1004 = vrot.slane %v699, 2
      %v1005 = vsel %vm861, %v1002, %v1004
      %v1008 = vld [vmem:[%s3] sm:$0xff]
      %v1009 = vld [vmem:[%s3 + $0x8] sm:$0xff]
      %v1010 = vld [vmem:[%s3 + $0x10] sm:$0xff]
      %v1011 = vld [vmem:[%s3 + $0x18] sm:$0xff]
      %v1012 = vld [vmem:[%s3 + $0x20] sm:$0xff]
      %v1013 = vld [vmem:[%s3 + $0x28] sm:$0xff]
      %v1014 = vld [vmem:[%s3 + $0x30] sm:$0xff]
      %v1015 = vld [vmem:[%s3 + $0x38] sm:$0xff]
      %v1016 = vld [vmem:[%s3 + $0x40] sm:$0xff]
      %v1017 = vld [vmem:[%s3 + $0x48] sm:$0xff]
      %v1018 = vld [vmem:[%s3 + $0x50] sm:$0xff]
      %v1019 = vld [vmem:[%s3 + $0x58] sm:$0xff]
      %v1020 = vld [vmem:[%s3 + $0x60] sm:$0xff]
      %v1021 = vld [vmem:[%s3 + $0x68] sm:$0xff]
      %v1022 = vld [vmem:[%s3 + $0x70] sm:$0xff]
      %v1023 = vld [vmem:[%s3 + $0x78] sm:$0xff]
      %v1024 = vld [vmem:[%s3 + $0x80] sm:$0xff]
      %v1025 = vld [vmem:[%s3 + $0x88] sm:$0xff]
      %v1026 = vld [vmem:[%s3 + $0x90] sm:$0xff]
      %v1027 = vld [vmem:[%s3 + $0x98] sm:$0xff]
      %v1028 = vld [vmem:[%s3 + $0xa0] sm:$0xff]
      %v1029 = vld [vmem:[%s3 + $0xa8] sm:$0xff]
      %v1030 = vld [vmem:[%s3 + $0xb0] sm:$0xff]
      %v1031 = vld [vmem:[%s3 + $0xb8] sm:$0xff]
      %v1032 = vld [vmem:[%s3 + $0xc0] sm:$0xff]
      %v1033 = vld [vmem:[%s3 + $0xc8] sm:$0xff]
      %v1034 = vld [vmem:[%s3 + $0xd0] sm:$0xff]
      %v1035 = vld [vmem:[%s3 + $0xd8] sm:$0xff]
      %v1036 = vld [vmem:[%s3 + $0xe0] sm:$0xff]
      %v1037 = vld [vmem:[%s3 + $0xe8] sm:$0xff]
      %v1038 = vld [vmem:[%s3 + $0xf0] sm:$0xff]
      %v1039 = vld [vmem:[%s3 + $0xf8] sm:$0xff]
      %v1040 = vld [vmem:[%s3 + $0x100] sm:$0xff]
      %v1041 = vld [vmem:[%s3 + $0x108] sm:$0xff]
      %v1042 = vld [vmem:[%s3 + $0x110] sm:$0xff]
      %v1043 = vld [vmem:[%s3 + $0x118] sm:$0xff]
      %v1044 = vld [vmem:[%s3 + $0x120] sm:$0xff]
      %v1045 = vld [vmem:[%s3 + $0x128] sm:$0xff]
      %v1046 = vld [vmem:[%s3 + $0x130] sm:$0xff]
      %v1047 = vld [vmem:[%s3 + $0x138] sm:$0xff]
      %v1048 = vld [vmem:[%s3 + $0x140] sm:$0xff]
      %v1049 = vld [vmem:[%s3 + $0x148] sm:$0xff]
      %v1050 = vld [vmem:[%s3 + $0x150] sm:$0xff]
      %v1051 = vld [vmem:[%s3 + $0x158] sm:$0xff]
      %v1052 = vld [vmem:[%s3 + $0x160] sm:$0xff]
      %v1053 = vld [vmem:[%s3 + $0x168] sm:$0xff]
      %v1054 = vld [vmem:[%s3 + $0x170] sm:$0xff]
      %v1055 = vld [vmem:[%s3 + $0x178] sm:$0xff]
      %v1056 = vld [vmem:[%s3 + $0x180] sm:$0xff]
      %v1057 = vld [vmem:[%s3 + $0x188] sm:$0xff]
      %v1058 = vld [vmem:[%s3 + $0x190] sm:$0xff]
      %v1059 = vld [vmem:[%s3 + $0x198] sm:$0xff]
      %v1060 = vld [vmem:[%s3 + $0x1a0] sm:$0xff]
      %v1061 = vld [vmem:[%s3 + $0x1a8] sm:$0xff]
      %v1062 = vld [vmem:[%s3 + $0x1b0] sm:$0xff]
      %v1063 = vld [vmem:[%s3 + $0x1b8] sm:$0xff]
      %v1064 = vld [vmem:[%s3 + $0x1c0] sm:$0xff]
      %v1065 = vld [vmem:[%s3 + $0x1c8] sm:$0xff]
      %v1066 = vld [vmem:[%s3 + $0x1d0] sm:$0xff]
      %v1067 = vld [vmem:[%s3 + $0x1d8] sm:$0xff]
      %v1068 = vld [vmem:[%s3 + $0x1e0] sm:$0xff]
      %v1069 = vld [vmem:[%s3 + $0x1e8] sm:$0xff]
      %v1070 = vld [vmem:[%s3 + $0x1f0] sm:$0xff]
      %v1071 = vld [vmem:[%s3 + $0x1f8] sm:$0xff]
      %v1072 = vld [vmem:[%s3 + $0x200] sm:$0xff]
      %v1073 = vld [vmem:[%s3 + $0x208] sm:$0xff]
      %v1074 = vld [vmem:[%s3 + $0x210] sm:$0xff]
      %v1075 = vld [vmem:[%s3 + $0x218] sm:$0xff]
      %v1076 = vld [vmem:[%s3 + $0x220] sm:$0xff]
      %v1077 = vld [vmem:[%s3 + $0x228] sm:$0xff]
      %v1078 = vld [vmem:[%s3 + $0x230] sm:$0xff]
      %v1079 = vld [vmem:[%s3 + $0x238] sm:$0xff]
      %v1080 = vld [vmem:[%s3 + $0x240] sm:$0xff]
      %v1081 = vld [vmem:[%s3 + $0x248] sm:$0xff]
      %v1082 = vld [vmem:[%s3 + $0x250] sm:$0xff]
      %v1083 = vld [vmem:[%s3 + $0x258] sm:$0xff]
      %v1084 = vld [vmem:[%s3 + $0x260] sm:$0xff]
      %v1085 = vld [vmem:[%s3 + $0x268] sm:$0xff]
      %v1086 = vld [vmem:[%s3 + $0x270] sm:$0xff]
      %v1087 = vld [vmem:[%s3 + $0x278] sm:$0xff]
      %v1088 = vld [vmem:[%s3 + $0x280] sm:$0xff]
      %v1089 = vld [vmem:[%s3 + $0x288] sm:$0xff]
      %v1090 = vld [vmem:[%s3 + $0x290] sm:$0xff]
      %v1091 = vld [vmem:[%s3 + $0x298] sm:$0xff]
      %v1092 = vld [vmem:[%s3 + $0x2a0] sm:$0xff]
      %v1093 = vld [vmem:[%s3 + $0x2a8] sm:$0xff]
      %v1094 = vld [vmem:[%s3 + $0x2b0] sm:$0xff]
      %v1095 = vld [vmem:[%s3 + $0x2b8] sm:$0xff]
      %v1096 = vld [vmem:[%s3 + $0x2c0] sm:$0xff]
      %v1097 = vld [vmem:[%s3 + $0x2c8] sm:$0xff]
      %v1098 = vld [vmem:[%s3 + $0x2d0] sm:$0xff]
      %v1099 = vld [vmem:[%s3 + $0x2d8] sm:$0xff]
      %v1100 = vld [vmem:[%s3 + $0x2e0] sm:$0xff]
      %v1101 = vld [vmem:[%s3 + $0x2e8] sm:$0xff]
      %v1102 = vld [vmem:[%s3 + $0x2f0] sm:$0xff]
      %v1103 = vld [vmem:[%s3 + $0x2f8] sm:$0xff]
      %v1104 = vld [vmem:[%s3 + $0x300] sm:$0xff]
      %v1105 = vld [vmem:[%s3 + $0x308] sm:$0xff]
      %v1106 = vld [vmem:[%s3 + $0x310] sm:$0xff]
      %v1107 = vld [vmem:[%s3 + $0x318] sm:$0xff]
      %v1108 = vld [vmem:[%s3 + $0x320] sm:$0xff]
      %v1109 = vld [vmem:[%s3 + $0x328] sm:$0xff]
      %v1110 = vld [vmem:[%s3 + $0x330] sm:$0xff]
      %v1111 = vld [vmem:[%s3 + $0x338] sm:$0xff]
      %v1112 = vld [vmem:[%s3 + $0x340] sm:$0xff]
      %v1113 = vld [vmem:[%s3 + $0x348] sm:$0xff]
      %v1114 = vld [vmem:[%s3 + $0x350] sm:$0xff]
      %v1115 = vld [vmem:[%s3 + $0x358] sm:$0xff]
      %v1116 = vld [vmem:[%s3 + $0x360] sm:$0xff]
      %v1117 = vld [vmem:[%s3 + $0x368] sm:$0xff]
      %v1118 = vld [vmem:[%s3 + $0x370] sm:$0xff]
      %v1119 = vld [vmem:[%s3 + $0x378] sm:$0xff]
      %v1120 = vld [vmem:[%s3 + $0x380] sm:$0xff]
      %v1121 = vld [vmem:[%s3 + $0x388] sm:$0xff]
      %v1122 = vld [vmem:[%s3 + $0x390] sm:$0xff]
      %v1123 = vld [vmem:[%s3 + $0x398] sm:$0xff]
      %v1124 = vld [vmem:[%s3 + $0x3a0] sm:$0xff]
      %v1125 = vld [vmem:[%s3 + $0x3a8] sm:$0xff]
      %v1126 = vld [vmem:[%s3 + $0x3b0] sm:$0xff]
      %v1127 = vld [vmem:[%s3 + $0x3b8] sm:$0xff]
      %v1128 = vld [vmem:[%s3 + $0x3c0] sm:$0xff]
      %v1129 = vld [vmem:[%s3 + $0x3c8] sm:$0xff]
      %v1130 = vld [vmem:[%s3 + $0x3d0] sm:$0xff]
      %v1131 = vld [vmem:[%s3 + $0x3d8] sm:$0xff]
      %v1132 = vld [vmem:[%s3 + $0x3e0] sm:$0xff]
      %v1133 = vld [vmem:[%s3 + $0x3e8] sm:$0xff]
      %v1134 = vld [vmem:[%s3 + $0x3f0] sm:$0xff]
      %v1135 = vld [vmem:[%s3 + $0x3f8] sm:$0xff]
      %v1136 = vld [vmem:[%s3 + $0x400] sm:$0xff]
      %v1137 = vld [vmem:[%s3 + $0x408] sm:$0xff]
      %v1138 = vld [vmem:[%s3 + $0x410] sm:$0xff]
      %v1139 = vld [vmem:[%s3 + $0x418] sm:$0xff]
      %v1140 = vld [vmem:[%s3 + $0x420] sm:$0xff]
      %v1141 = vld [vmem:[%s3 + $0x428] sm:$0xff]
      %v1142 = vld [vmem:[%s3 + $0x430] sm:$0xff]
      %v1143 = vld [vmem:[%s3 + $0x438] sm:$0xff]
      %v1144 = vld [vmem:[%s3 + $0x440] sm:$0xff]
      %v1145 = vld [vmem:[%s3 + $0x448] sm:$0xff]
      %v1146 = vld [vmem:[%s3 + $0x450] sm:$0xff]
      %v1147 = vld [vmem:[%s3 + $0x458] sm:$0xff]
      %v1148 = vld [vmem:[%s3 + $0x460] sm:$0xff]
      %v1149 = vld [vmem:[%s3 + $0x468] sm:$0xff]
      %v1150 = vld [vmem:[%s3 + $0x470] sm:$0xff]
      %v1151 = vld [vmem:[%s3 + $0x478] sm:$0xff]
      %1152 = vmatprep.subr.mxu0 0.0
      %1153 = vmatpush1.msra.mxu0 %v1008
      %1154 = vmatprep.subr.mxu0 0.0
      %1155 = vmatpush1.msra.mxu0 %v1009
      %1156 = vmatprep.subr.mxu0 0.0
      %1157 = vmatpush1.msra.mxu0 %v1010
      %1158 = vmatprep.subr.mxu0 0.0
      %1159 = vmatpush1.msra.mxu0 %v1011
      %1160 = vmatprep.subr.mxu0 0.0
      %1161 = vmatpush1.msra.mxu0 %v1012
      %1162 = vmatprep.subr.mxu0 0.0
      %1163 = vmatpush1.msra.mxu0 %v1013
      %1164 = vmatprep.subr.mxu0 0.0
      %1165 = vmatpush1.msra.mxu0 %v1014
      %1166 = vmatprep.subr.mxu0 0.0
      %1167 = vmatpush1.msra.mxu0 %v1015
      %1168 = vmatprep.subr.mxu0 0.0
      %1169 = vmatpush1.msra.mxu0 %v1016
      %1170 = vmatprep.subr.mxu0 0.0
      %1171 = vmatpush1.msra.mxu0 %v1017
      %1172 = vmatprep.subr.mxu0 0.0
      %1173 = vmatpush1.msra.mxu0 %v1018
      %1174 = vmatprep.subr.mxu0 0.0
      %1175 = vmatpush1.msra.mxu0 %v1019
      %1176 = vmatprep.subr.mxu0 0.0
      %1177 = vmatpush1.msra.mxu0 %v1020
      %1178 = vmatprep.subr.mxu0 0.0
      %1179 = vmatpush1.msra.mxu0 %v1021
      %1180 = vmatprep.subr.mxu0 0.0
      %1181 = vmatpush1.msra.mxu0 %v1022
      %1182 = vmatprep.subr.mxu0 0.0
      %1183 = vmatpush1.msra.mxu0 %v1023
      %1184 = vmatprep.subr.mxu0 0.0
      %1185 = vmatpush1.msra.mxu0 %v1024
      %1186 = vmatprep.subr.mxu0 0.0
      %1187 = vmatpush1.msra.mxu0 %v1025
      %1188 = vmatprep.subr.mxu0 0.0
      %1189 = vmatpush1.msra.mxu0 %v1026
      %1190 = vmatprep.subr.mxu0 0.0
      %1191 = vmatpush1.msra.mxu0 %v1027
      %1192 = vmatprep.subr.mxu0 0.0
      %1193 = vmatpush1.msra.mxu0 %v1028
      %1194 = vmatprep.subr.mxu0 0.0
      %1195 = vmatpush1.msra.mxu0 %v1029
      %1196 = vmatprep.subr.mxu0 0.0
      %1197 = vmatpush1.msra.mxu0 %v1030
      %1198 = vmatprep.subr.mxu0 0.0
      %1199 = vmatpush1.msra.mxu0 %v1031
      %1200 = vmatprep.subr.mxu0 0.0
      %1201 = vmatpush1.msra.mxu0 %v1032
      %1202 = vmatprep.subr.mxu0 0.0
      %1203 = vmatpush1.msra.mxu0 %v1033
      %1204 = vmatprep.subr.mxu0 0.0
      %1205 = vmatpush1.msra.mxu0 %v1034
      %1206 = vmatprep.subr.mxu0 0.0
      %1207 = vmatpush1.msra.mxu0 %v1035
      %1208 = vmatprep.subr.mxu0 0.0
      %1209 = vmatpush1.msra.mxu0 %v1036
      %1210 = vmatprep.subr.mxu0 0.0
      %1211 = vmatpush1.msra.mxu0 %v1037
      %1212 = vmatprep.subr.mxu0 0.0
      %1213 = vmatpush1.msra.mxu0 %v1038
      %1214 = vmatprep.subr.mxu0 0.0
      %1215 = vmatpush1.msra.mxu0 %v1039
      %1216 = vmatprep.mubr.f32.mxu0 %v751
      %1217 = vmatmul.mubr.f32.gmra.mrb[0].mxu0 %v646
      %v1218 = vpop.f32.mrb[0].mxu0
      %v1219 = vadd.f32 0.0, %v1218
      %v1220 = vpop.f32.mrb[0].mxu0
      %1221 = vmatprep.mubr.f32.mxu0 %v753
      %1222 = vmatmul.mubr.f32.gmra.mrb[0].mxu0 %v647
      %v1223 = vpop.f32.mrb[0].mxu0
      %v1224 = vadd.f32 0.0, %v1223
      %v1225 = vpop.f32.mrb[0].mxu0
      %1226 = vmatprep.mubr.f32.mxu0 %v756
      %1227 = vmatmul.mubr.f32.gmra.mrb[0].mxu0 %v649
      %v1228 = vpop.f32.mrb[0].mxu0
      %v1229 = vadd.f32 0.0, %v1228
      %v1230 = vpop.f32.mrb[0].mxu0
      %1231 = vmatprep.mubr.f32.mxu0 %v758
      %1232 = vmatmul.mubr.f32.gmra.mrb[0].mxu0 %v650
      %v1233 = vpop.f32.mrb[0].mxu0
      %v1234 = vadd.f32 0.0, %v1233
      %v1235 = vpop.f32.mrb[0].mxu0
      %1236 = vmatprep.mubr.f32.mxu0 %v761
      %1237 = vmatmul.mubr.f32.gmra.mrb[0].mxu0 %v652
      %v1238 = vpop.f32.mrb[0].mxu0
      %v1239 = vadd.f32 0.0, %v1238
      %v1240 = vpop.f32.mrb[0].mxu0
      %1241 = vmatprep.mubr.f32.mxu0 %v763
      %1242 = vmatmul.mubr.f32.gmra.mrb[0].mxu0 %v653
      %v1243 = vpop.f32.mrb[0].mxu0
      %v1244 = vadd.f32 0.0, %v1243
      %v1245 = vpop.f32.mrb[0].mxu0
      %1246 = vmatprep.mubr.f32.mxu0 %v766
      %1247 = vmatmul.mubr.f32.gmra.mrb[0].mxu0 %v655
      %v1248 = vpop.f32.mrb[0].mxu0
      %v1249 = vadd.f32 0.0, %v1248
      %v1250 = vpop.f32.mrb[0].mxu0
      %1251 = vmatprep.mubr.f32.mxu0 %v768
      %1252 = vmatmul.mubr.f32.gmra.mrb[0].mxu0 %v656
      %v1253 = vpop.f32.mrb[0].mxu0
      %v1254 = vadd.f32 0.0, %v1253
      %v1255 = vpop.f32.mrb[0].mxu0
      %1256 = vmatprep.mubr.f32.mxu0 %v771
      %1257 = vmatmul.mubr.f32.gmra.mrb[0].mxu0 %v658
      %v1258 = vpop.f32.mrb[0].mxu0
      %v1259 = vadd.f32 0.0, %v1258
      %v1260 = vpop.f32.mrb[0].mxu0
      %1261 = vmatprep.mubr.f32.mxu0 %v773
      %1262 = vmatmul.mubr.f32.gmra.mrb[0].mxu0 %v659
      %v1263 = vpop.f32.mrb[0].mxu0
      %v1264 = vadd.f32 0.0, %v1263
      %v1265 = vpop.f32.mrb[0].mxu0
      %1266 = vmatprep.mubr.f32.mxu0 %v776
      %1267 = vmatmul.mubr.f32.gmra.mrb[0].mxu0 %v661
      %v1268 = vpop.f32.mrb[0].mxu0
      %v1269 = vadd.f32 0.0, %v1268
      %v1270 = vpop.f32.mrb[0].mxu0
      %1271 = vmatprep.mubr.f32.mxu0 %v778
      %1272 = vmatmul.mubr.f32.gmra.mrb[0].mxu0 %v662
      %v1273 = vpop.f32.mrb[0].mxu0
      %v1274 = vadd.f32 0.0, %v1273
      %v1275 = vpop.f32.mrb[0].mxu0
      %1276 = vmatprep.mubr.f32.mxu0 %v781
      %1277 = vmatmul.mubr.f32.gmra.mrb[0].mxu0 %v664
      %v1278 = vpop.f32.mrb[0].mxu0
      %v1279 = vadd.f32 0.0, %v1278
      %v1280 = vpop.f32.mrb[0].mxu0
      %1281 = vmatprep.mubr.f32.mxu0 %v783
      %1282 = vmatmul.mubr.f32.gmra.mrb[0].mxu0 %v665
      %v1283 = vpop.f32.mrb[0].mxu0
      %v1284 = vadd.f32 0.0, %v1283
      %v1285 = vpop.f32.mrb[0].mxu0
      %1286 = vmatprep.mubr.f32.mxu0 %v786
      %1287 = vmatmul.mubr.f32.gmra.mrb[0].mxu0 %v667
      %v1288 = vpop.f32.mrb[0].mxu0
      %v1289 = vadd.f32 0.0, %v1288
      %v1290 = vpop.f32.mrb[0].mxu0
      %1291 = vmatprep.mubr.f32.mxu0 %v788
      %1292 = vmatmul.mubr.f32.gmra.mrb[0].mxu0 %v668
      %v1293 = vpop.f32.mrb[0].mxu0
      %v1294 = vadd.f32 0.0, %v1293
      %v1295 = vpop.f32.mrb[0].mxu0
      %1296 = vmatprep.mubr.f32.mxu0 %v791
      %1297 = vmatmul.mubr.f32.gmra.mrb[0].mxu0 %v670
      %v1298 = vpop.f32.mrb[0].mxu0
      %v1299 = vadd.f32 0.0, %v1298
      %v1300 = vpop.f32.mrb[0].mxu0
      %1301 = vmatprep.mubr.f32.mxu0 %v793
      %1302 = vmatmul.mubr.f32.gmra.mrb[0].mxu0 %v671
      %v1303 = vpop.f32.mrb[0].mxu0
      %v1304 = vadd.f32 0.0, %v1303
      %v1305 = vpop.f32.mrb[0].mxu0
      %1306 = vmatprep.mubr.f32.mxu0 %v796
      %1307 = vmatmul.mubr.f32.gmra.mrb[0].mxu0 %v673
      %v1308 = vpop.f32.mrb[0].mxu0
      %v1309 = vadd.f32 0.0, %v1308
      %v1310 = vpop.f32.mrb[0].mxu0
      %1311 = vmatprep.mubr.f32.mxu0 %v798
      %1312 = vmatmul.mubr.f32.gmra.mrb[0].mxu0 %v674
      %v1313 = vpop.f32.mrb[0].mxu0
      %v1314 = vadd.f32 0.0, %v1313
      %v1315 = vpop.f32.mrb[0].mxu0
      %1316 = vmatprep.mubr.f32.mxu0 %v801
      %1317 = vmatmul.mubr.f32.gmra.mrb[0].mxu0 %v676
      %v1318 = vpop.f32.mrb[0].mxu0
      %v1319 = vadd.f32 0.0, %v1318
      %v1320 = vpop.f32.mrb[0].mxu0
      %1321 = vmatprep.mubr.f32.mxu0 %v803
      %1322 = vmatmul.mubr.f32.gmra.mrb[0].mxu0 %v677
      %v1323 = vpop.f32.mrb[0].mxu0
      %v1324 = vadd.f32 0.0, %v1323
      %v1325 = vpop.f32.mrb[0].mxu0
      %1326 = vmatprep.mubr.f32.mxu0 %v806
      %1327 = vmatmul.mubr.f32.gmra.mrb[0].mxu0 %v679
      %v1328 = vpop.f32.mrb[0].mxu0
      %v1329 = vadd.f32 0.0, %v1328
      %v1330 = vpop.f32.mrb[0].mxu0
      %1331 = vmatprep.mubr.f32.mxu0 %v808
      %1332 = vmatmul.mubr.f32.gmra.mrb[0].mxu0 %v680
      %v1333 = vpop.f32.mrb[0].mxu0
      %v1334 = vadd.f32 0.0, %v1333
      %v1335 = vpop.f32.mrb[0].mxu0
      %1336 = vmatprep.mubr.f32.mxu0 %v811
      %1337 = vmatmul.mubr.f32.gmra.mrb[0].mxu0 %v682
      %v1338 = vpop.f32.mrb[0].mxu0
      %v1339 = vadd.f32 0.0, %v1338
      %v1340 = vpop.f32.mrb[0].mxu0
      %1341 = vmatprep.mubr.f32.mxu0 %v813
      %1342 = vmatmul.mubr.f32.gmra.mrb[0].mxu0 %v683
      %v1343 = vpop.f32.mrb[0].mxu0
      %v1344 = vadd.f32 0.0, %v1343
      %v1345 = vpop.f32.mrb[0].mxu0
      %1346 = vmatprep.mubr.f32.mxu0 %v816
      %1347 = vmatmul.mubr.f32.gmra.mrb[0].mxu0 %v685
      %v1348 = vpop.f32.mrb[0].mxu0
      %v1349 = vadd.f32 0.0, %v1348
      %v1350 = vpop.f32.mrb[0].mxu0
      %1351 = vmatprep.mubr.f32.mxu0 %v818
      %1352 = vmatmul.mubr.f32.gmra.mrb[0].mxu0 %v686
      %v1353 = vpop.f32.mrb[0].mxu0
      %v1354 = vadd.f32 0.0, %v1353
      %v1355 = vpop.f32.mrb[0].mxu0
      %1356 = vmatprep.mubr.f32.mxu0 %v821
      %1357 = vmatmul.mubr.f32.gmra.mrb[0].mxu0 %v688
      %v1358 = vpop.f32.mrb[0].mxu0
      %v1359 = vadd.f32 0.0, %v1358
      %v1360 = vpop.f32.mrb[0].mxu0
      %1361 = vmatprep.mubr.f32.mxu0 %v823
      %1362 = vmatmul.mubr.f32.gmra.mrb[0].mxu0 %v689
      %v1363 = vpop.f32.mrb[0].mxu0
      %v1364 = vadd.f32 0.0, %v1363
      %v1365 = vpop.f32.mrb[0].mxu0
      %1366 = vmatprep.mubr.f32.mxu0 %v826
      %1367 = vmatmul.mubr.f32.gmra.mrb[0].mxu0 %v691
      %v1368 = vpop.f32.mrb[0].mxu0
      %v1369 = vadd.f32 0.0, %v1368
      %v1370 = vpop.f32.mrb[0].mxu0
      %1371 = vmatprep.mubr.f32.mxu0 %v828
      %1372 = vmatmul.mubr.f32.gmra.mrb[0].mxu0 %v692
      %v1373 = vpop.f32.mrb[0].mxu0
      %v1374 = vadd.f32 0.0, %v1373
      %v1375 = vpop.f32.mrb[0].mxu0
      %1376 = vdwg.mxu0
      %1377 = vmatprep.subr.mxu0 0.0
      %1378 = vmatpush1.msra.mxu0 %v1040
      %1379 = vmatprep.subr.mxu0 0.0
      %1380 = vmatpush1.msra.mxu0 %v1041
      %1381 = vmatprep.subr.mxu0 0.0
      %1382 = vmatpush1.msra.mxu0 %v1042
      %1383 = vmatprep.subr.mxu0 0.0
      %1384 = vmatpush1.msra.mxu0 %v1043
      %1385 = vmatprep.subr.mxu0 0.0
      %1386 = vmatpush1.msra.mxu0 %v1044
      %1387 = vmatprep.subr.mxu0 0.0
      %1388 = vmatpush1.msra.mxu0 %v1045
      %1389 = vmatprep.subr.mxu0 0.0
      %1390 = vmatpush1.msra.mxu0 %v1046
      %1391 = vmatprep.subr.mxu0 0.0
      %1392 = vmatpush1.msra.mxu0 %v1047
      %1393 = vmatprep.subr.mxu0 0.0
      %1394 = vmatpush1.msra.mxu0 %v1048
      %1395 = vmatprep.subr.mxu0 0.0
      %1396 = vmatpush1.msra.mxu0 %v1049
      %1397 = vmatprep.subr.mxu0 0.0
      %1398 = vmatpush1.msra.mxu0 %v1050
      %1399 = vmatprep.subr.mxu0 0.0
      %1400 = vmatpush1.msra.mxu0 %v1051
      %1401 = vmatprep.subr.mxu0 0.0
      %1402 = vmatpush1.msra.mxu0 %v1052
      %1403 = vmatprep.subr.mxu0 0.0
      %1404 = vmatpush1.msra.mxu0 %v1053
      %1405 = vmatprep.subr.mxu0 0.0
      %1406 = vmatpush1.msra.mxu0 %v1054
      %1407 = vmatprep.subr.mxu0 0.0
      %1408 = vmatpush1.msra.mxu0 %v1055
      %1409 = vmatprep.subr.mxu0 0.0
      %1410 = vmatpush1.msra.mxu0 %v1056
      %1411 = vmatprep.subr.mxu0 0.0
      %1412 = vmatpush1.msra.mxu0 %v1057
      %1413 = vmatprep.subr.mxu0 0.0
      %1414 = vmatpush1.msra.mxu0 %v1058
      %1415 = vmatprep.subr.mxu0 0.0
      %1416 = vmatpush1.msra.mxu0 %v1059
      %1417 = vmatprep.subr.mxu0 0.0
      %1418 = vmatpush1.msra.mxu0 %v1060
      %1419 = vmatprep.subr.mxu0 0.0
      %1420 = vmatpush1.msra.mxu0 %v1061
      %1421 = vmatprep.subr.mxu0 0.0
      %1422 = vmatpush1.msra.mxu0 %v1062
      %1423 = vmatprep.subr.mxu0 0.0
      %1424 = vmatpush1.msra.mxu0 %v1063
      %1425 = vmatprep.subr.mxu0 0.0
      %1426 = vmatpush1.msra.mxu0 %v1064
      %1427 = vmatprep.subr.mxu0 0.0
      %1428 = vmatpush1.msra.mxu0 %v1065
      %1429 = vmatprep.subr.mxu0 0.0
      %1430 = vmatpush1.msra.mxu0 %v1066
      %1431 = vmatprep.subr.mxu0 0.0
      %1432 = vmatpush1.msra.mxu0 %v1067
      %1433 = vmatprep.subr.mxu0 0.0
      %1434 = vmatpush1.msra.mxu0 %v1068
      %1435 = vmatprep.subr.mxu0 0.0
      %1436 = vmatpush1.msra.mxu0 %v1069
      %1437 = vmatprep.subr.mxu0 0.0
      %1438 = vmatpush1.msra.mxu0 %v1070
      %1439 = vmatprep.subr.mxu0 0.0
      %1440 = vmatpush1.msra.mxu0 %v1071
      %1441 = vmatprep.mubr.f32.mxu0 %v649
      %1442 = vmatmul.mubr.f32.gmra.mrb[0].mxu0 %v864
      %v1443 = vpop.f32.mrb[0].mxu0
      %v1444 = vadd.f32 %v1219, %v1443
      %v1445 = vpop.f32.mrb[0].mxu0
      %1446 = vmatprep.mubr.f32.mxu0 %v650
      %1447 = vmatmul.mubr.f32.gmra.mrb[0].mxu0 %v866
      %v1448 = vpop.f32.mrb[0].mxu0
      %v1449 = vadd.f32 %v1224, %v1448
      %v1450 = vpop.f32.mrb[0].mxu0
      %1451 = vmatprep.mubr.f32.mxu0 %v652
      %1452 = vmatmul.mubr.f32.gmra.mrb[0].mxu0 %v869
      %v1453 = vpop.f32.mrb[0].mxu0
      %v1454 = vadd.f32 %v1229, %v1453
      %v1455 = vpop.f32.mrb[0].mxu0
      %1456 = vmatprep.mubr.f32.mxu0 %v653
      %1457 = vmatmul.mubr.f32.gmra.mrb[0].mxu0 %v871
      %v1458 = vpop.f32.mrb[0].mxu0
      %v1459 = vadd.f32 %v1234, %v1458
      %v1460 = vpop.f32.mrb[0].mxu0
      %1461 = vmatprep.mubr.f32.mxu0 %v655
      %1462 = vmatmul.mubr.f32.gmra.mrb[0].mxu0 %v874
      %v1463 = vpop.f32.mrb[0].mxu0
      %v1464 = vadd.f32 %v1239, %v1463
      %v1465 = vpop.f32.mrb[0].mxu0
      %1466 = vmatprep.mubr.f32.mxu0 %v656
      %1467 = vmatmul.mubr.f32.gmra.mrb[0].mxu0 %v876
      %v1468 = vpop.f32.mrb[0].mxu0
      %v1469 = vadd.f32 %v1244, %v1468
      %v1470 = vpop.f32.mrb[0].mxu0
      %1471 = vmatprep.mubr.f32.mxu0 %v658
      %1472 = vmatmul.mubr.f32.gmra.mrb[0].mxu0 %v879
      %v1473 = vpop.f32.mrb[0].mxu0
      %v1474 = vadd.f32 %v1249, %v1473
      %v1475 = vpop.f32.mrb[0].mxu0
      %1476 = vmatprep.mubr.f32.mxu0 %v659
      %1477 = vmatmul.mubr.f32.gmra.mrb[0].mxu0 %v881
      %v1478 = vpop.f32.mrb[0].mxu0
      %v1479 = vadd.f32 %v1254, %v1478
      %v1480 = vpop.f32.mrb[0].mxu0
      %1481 = vmatprep.mubr.f32.mxu0 %v661
      %1482 = vmatmul.mubr.f32.gmra.mrb[0].mxu0 %v884
      %v1483 = vpop.f32.mrb[0].mxu0
      %v1484 = vadd.f32 %v1259, %v1483
      %v1485 = vpop.f32.mrb[0].mxu0
      %1486 = vmatprep.mubr.f32.mxu0 %v662
      %1487 = vmatmul.mubr.f32.gmra.mrb[0].mxu0 %v886
      %v1488 = vpop.f32.mrb[0].mxu0
      %v1489 = vadd.f32 %v1264, %v1488
      %v1490 = vpop.f32.mrb[0].mxu0
      %1491 = vmatprep.mubr.f32.mxu0 %v664
      %1492 = vmatmul.mubr.f32.gmra.mrb[0].mxu0 %v889
      %v1493 = vpop.f32.mrb[0].mxu0
      %v1494 = vadd.f32 %v1269, %v1493
      %v1495 = vpop.f32.mrb[0].mxu0
      %1496 = vmatprep.mubr.f32.mxu0 %v665
      %1497 = vmatmul.mubr.f32.gmra.mrb[0].mxu0 %v891
      %v1498 = vpop.f32.mrb[0].mxu0
      %v1499 = vadd.f32 %v1274, %v1498
      %v1500 = vpop.f32.mrb[0].mxu0
      %1501 = vmatprep.mubr.f32.mxu0 %v667
      %1502 = vmatmul.mubr.f32.gmra.mrb[0].mxu0 %v894
      %v1503 = vpop.f32.mrb[0].mxu0
      %v1504 = vadd.f32 %v1279, %v1503
      %v1505 = vpop.f32.mrb[0].mxu0
      %1506 = vmatprep.mubr.f32.mxu0 %v668
      %1507 = vmatmul.mubr.f32.gmra.mrb[0].mxu0 %v896
      %v1508 = vpop.f32.mrb[0].mxu0
      %v1509 = vadd.f32 %v1284, %v1508
      %v1510 = vpop.f32.mrb[0].mxu0
      %1511 = vmatprep.mubr.f32.mxu0 %v670
      %1512 = vmatmul.mubr.f32.gmra.mrb[0].mxu0 %v899
      %v1513 = vpop.f32.mrb[0].mxu0
      %v1514 = vadd.f32 %v1289, %v1513
      %v1515 = vpop.f32.mrb[0].mxu0
      %1516 = vmatprep.mubr.f32.mxu0 %v671
      %1517 = vmatmul.mubr.f32.gmra.mrb[0].mxu0 %v901
      %v1518 = vpop.f32.mrb[0].mxu0
      %v1519 = vadd.f32 %v1294, %v1518
      %v1520 = vpop.f32.mrb[0].mxu0
      %1521 = vmatprep.mubr.f32.mxu0 %v673
      %1522 = vmatmul.mubr.f32.gmra.mrb[0].mxu0 %v904
      %v1523 = vpop.f32.mrb[0].mxu0
      %v1524 = vadd.f32 %v1299, %v1523
      %v1525 = vpop.f32.mrb[0].mxu0
      %1526 = vmatprep.mubr.f32.mxu0 %v674
      %1527 = vmatmul.mubr.f32.gmra.mrb[0].mxu0 %v906
      %v1528 = vpop.f32.mrb[0].mxu0
      %v1529 = vadd.f32 %v1304, %v1528
      %v1530 = vpop.f32.mrb[0].mxu0
      %1531 = vmatprep.mubr.f32.mxu0 %v676
      %1532 = vmatmul.mubr.f32.gmra.mrb[0].mxu0 %v909
      %v1533 = vpop.f32.mrb[0].mxu0
      %v1534 = vadd.f32 %v1309, %v1533
      %v1535 = vpop.f32.mrb[0].mxu0
      %1536 = vmatprep.mubr.f32.mxu0 %v677
      %1537 = vmatmul.mubr.f32.gmra.mrb[0].mxu0 %v911
      %v1538 = vpop.f32.mrb[0].mxu0
      %v1539 = vadd.f32 %v1314, %v1538
      %v1540 = vpop.f32.mrb[0].mxu0
      %1541 = vmatprep.mubr.f32.mxu0 %v679
      %1542 = vmatmul.mubr.f32.gmra.mrb[0].mxu0 %v914
      %v1543 = vpop.f32.mrb[0].mxu0
      %v1544 = vadd.f32 %v1319, %v1543
      %v1545 = vpop.f32.mrb[0].mxu0
      %1546 = vmatprep.mubr.f32.mxu0 %v680
      %1547 = vmatmul.mubr.f32.gmra.mrb[0].mxu0 %v916
      %v1548 = vpop.f32.mrb[0].mxu0
      %v1549 = vadd.f32 %v1324, %v1548
      %v1550 = vpop.f32.mrb[0].mxu0
      %1551 = vmatprep.mubr.f32.mxu0 %v682
      %1552 = vmatmul.mubr.f32.gmra.mrb[0].mxu0 %v919
      %v1553 = vpop.f32.mrb[0].mxu0
      %v1554 = vadd.f32 %v1329, %v1553
      %v1555 = vpop.f32.mrb[0].mxu0
      %1556 = vmatprep.mubr.f32.mxu0 %v683
      %1557 = vmatmul.mubr.f32.gmra.mrb[0].mxu0 %v921
      %v1558 = vpop.f32.mrb[0].mxu0
      %v1559 = vadd.f32 %v1334, %v1558
      %v1560 = vpop.f32.mrb[0].mxu0
      %1561 = vmatprep.mubr.f32.mxu0 %v685
      %1562 = vmatmul.mubr.f32.gmra.mrb[0].mxu0 %v924
      %v1563 = vpop.f32.mrb[0].mxu0
      %v1564 = vadd.f32 %v1339, %v1563
      %v1565 = vpop.f32.mrb[0].mxu0
      %1566 = vmatprep.mubr.f32.mxu0 %v686
      %1567 = vmatmul.mubr.f32.gmra.mrb[0].mxu0 %v926
      %v1568 = vpop.f32.mrb[0].mxu0
      %v1569 = vadd.f32 %v1344, %v1568
      %v1570 = vpop.f32.mrb[0].mxu0
      %1571 = vmatprep.mubr.f32.mxu0 %v688
      %1572 = vmatmul.mubr.f32.gmra.mrb[0].mxu0 %v929
      %v1573 = vpop.f32.mrb[0].mxu0
      %v1574 = vadd.f32 %v1349, %v1573
      %v1575 = vpop.f32.mrb[0].mxu0
      %1576 = vmatprep.mubr.f32.mxu0 %v689
      %1577 = vmatmul.mubr.f32.gmra.mrb[0].mxu0 %v931
      %v1578 = vpop.f32.mrb[0].mxu0
      %v1579 = vadd.f32 %v1354, %v1578
      %v1580 = vpop.f32.mrb[0].mxu0
      %1581 = vmatprep.mubr.f32.mxu0 %v691
      %1582 = vmatmul.mubr.f32.gmra.mrb[0].mxu0 %v934
      %v1583 = vpop.f32.mrb[0].mxu0
      %v1584 = vadd.f32 %v1359, %v1583
      %v1585 = vpop.f32.mrb[0].mxu0
      %1586 = vmatprep.mubr.f32.mxu0 %v692
      %1587 = vmatmul.mubr.f32.gmra.mrb[0].mxu0 %v936
      %v1588 = vpop.f32.mrb[0].mxu0
      %v1589 = vadd.f32 %v1364, %v1588
      %v1590 = vpop.f32.mrb[0].mxu0
      %1591 = vmatprep.mubr.f32.mxu0 %v694
      %1592 = vmatmul.mubr.f32.gmra.mrb[0].mxu0 %v939
      %v1593 = vpop.f32.mrb[0].mxu0
      %v1594 = vadd.f32 %v1369, %v1593
      %v1595 = vpop.f32.mrb[0].mxu0
      %1596 = vmatprep.mubr.f32.mxu0 %v695
      %1597 = vmatmul.mubr.f32.gmra.mrb[0].mxu0 %v941
      %v1598 = vpop.f32.mrb[0].mxu0
      %v1599 = vadd.f32 %v1374, %v1598
      %v1600 = vpop.f32.mrb[0].mxu0
      %1601 = vdwg.mxu0
      %1602 = vmatprep.subr.mxu0 0.0
      %1603 = vmatpush1.msra.mxu0 %v1072
      %1604 = vmatprep.subr.mxu0 0.0
      %1605 = vmatpush1.msra.mxu0 %v1073
      %1606 = vmatprep.subr.mxu0 0.0
      %1607 = vmatpush1.msra.mxu0 %v1074
      %1608 = vmatprep.subr.mxu0 0.0
      %1609 = vmatpush1.msra.mxu0 %v1075
      %1610 = vmatprep.subr.mxu0 0.0
      %1611 = vmatpush1.msra.mxu0 %v1076
      %1612 = vmatprep.subr.mxu0 0.0
      %1613 = vmatpush1.msra.mxu0 %v1077
      %1614 = vmatprep.subr.mxu0 0.0
      %1615 = vmatpush1.msra.mxu0 %v1078
      %1616 = vmatprep.subr.mxu0 0.0
      %1617 = vmatpush1.msra.mxu0 %v1079
      %1618 = vmatprep.subr.mxu0 0.0
      %1619 = vmatpush1.msra.mxu0 %v1080
      %1620 = vmatprep.subr.mxu0 0.0
      %1621 = vmatpush1.msra.mxu0 %v1081
      %1622 = vmatprep.subr.mxu0 0.0
      %1623 = vmatpush1.msra.mxu0 %v1082
      %1624 = vmatprep.subr.mxu0 0.0
      %1625 = vmatpush1.msra.mxu0 %v1083
      %1626 = vmatprep.subr.mxu0 0.0
      %1627 = vmatpush1.msra.mxu0 %v1084
      %1628 = vmatprep.subr.mxu0 0.0
      %1629 = vmatpush1.msra.mxu0 %v1085
      %1630 = vmatprep.subr.mxu0 0.0
      %1631 = vmatpush1.msra.mxu0 %v1086
      %1632 = vmatprep.subr.mxu0 0.0
      %1633 = vmatpush1.msra.mxu0 %v1087
      %1634 = vmatprep.subr.mxu0 0.0
      %1635 = vmatpush1.msra.mxu0 %v1088
      %1636 = vmatprep.subr.mxu0 0.0
      %1637 = vmatpush1.msra.mxu0 %v1089
      %1638 = vmatprep.subr.mxu0 0.0
      %1639 = vmatpush1.msra.mxu0 %v1090
      %1640 = vmatprep.subr.mxu0 0.0
      %1641 = vmatpush1.msra.mxu0 %v1091
      %1642 = vmatprep.subr.mxu0 0.0
      %1643 = vmatpush1.msra.mxu0 %v1092
      %1644 = vmatprep.subr.mxu0 0.0
      %1645 = vmatpush1.msra.mxu0 %v1093
      %1646 = vmatprep.subr.mxu0 0.0
      %1647 = vmatpush1.msra.mxu0 %v1094
      %1648 = vmatprep.subr.mxu0 0.0
      %1649 = vmatpush1.msra.mxu0 %v1095
      %1650 = vmatprep.subr.mxu0 0.0
      %1651 = vmatpush1.msra.mxu0 %v1096
      %1652 = vmatprep.subr.mxu0 0.0
      %1653 = vmatpush1.msra.mxu0 %v1097
      %1654 = vmatprep.subr.mxu0 0.0
      %1655 = vmatpush1.msra.mxu0 %v1098
      %1656 = vmatprep.subr.mxu0 0.0
      %1657 = vmatpush1.msra.mxu0 %v1099
      %1658 = vmatprep.subr.mxu0 0.0
      %1659 = vmatpush1.msra.mxu0 %v1100
      %1660 = vmatprep.subr.mxu0 0.0
      %1661 = vmatpush1.msra.mxu0 %v1101
      %1662 = vmatprep.subr.mxu0 0.0
      %1663 = vmatpush1.msra.mxu0 %v1102
      %1664 = vmatprep.subr.mxu0 0.0
      %1665 = vmatpush1.msra.mxu0 %v1103
      %1666 = vmatprep.mubr.f32.mxu0 %v869
      %1667 = vmatmul.mubr.f32.gmra.mrb[0].mxu0 %v756
      %v1668 = vpop.f32.mrb[0].mxu0
      %v1669 = vadd.f32 %v1444, %v1668
      %v1670 = vpop.f32.mrb[0].mxu0
      %1671 = vmatprep.mubr.f32.mxu0 %v871
      %1672 = vmatmul.mubr.f32.gmra.mrb[0].mxu0 %v758
      %v1673 = vpop.f32.mrb[0].mxu0
      %v1674 = vadd.f32 %v1449, %v1673
      %v1675 = vpop.f32.mrb[0].mxu0
      %1676 = vmatprep.mubr.f32.mxu0 %v874
      %1677 = vmatmul.mubr.f32.gmra.mrb[0].mxu0 %v761
      %v1678 = vpop.f32.mrb[0].mxu0
      %v1679 = vadd.f32 %v1454, %v1678
      %v1680 = vpop.f32.mrb[0].mxu0
      %1681 = vmatprep.mubr.f32.mxu0 %v876
      %1682 = vmatmul.mubr.f32.gmra.mrb[0].mxu0 %v763
      %v1683 = vpop.f32.mrb[0].mxu0
      %v1684 = vadd.f32 %v1459, %v1683
      %v1685 = vpop.f32.mrb[0].mxu0
      %1686 = vmatprep.mubr.f32.mxu0 %v879
      %1687 = vmatmul.mubr.f32.gmra.mrb[0].mxu0 %v766
      %v1688 = vpop.f32.mrb[0].mxu0
      %v1689 = vadd.f32 %v1464, %v1688
      %v1690 = vpop.f32.mrb[0].mxu0
      %1691 = vmatprep.mubr.f32.mxu0 %v881
      %1692 = vmatmul.mubr.f32.gmra.mrb[0].mxu0 %v768
      %v1693 = vpop.f32.mrb[0].mxu0
      %v1694 = vadd.f32 %v1469, %v1693
      %v1695 = vpop.f32.mrb[0].mxu0
      %1696 = vmatprep.mubr.f32.mxu0 %v884
      %1697 = vmatmul.mubr.f32.gmra.mrb[0].mxu0 %v771
      %v1698 = vpop.f32.mrb[0].mxu0
      %v1699 = vadd.f32 %v1474, %v1698
      %v1700 = vpop.f32.mrb[0].mxu0
      %1701 = vmatprep.mubr.f32.mxu0 %v886
      %1702 = vmatmul.mubr.f32.gmra.mrb[0].mxu0 %v773
      %v1703 = vpop.f32.mrb[0].mxu0
      %v1704 = vadd.f32 %v1479, %v1703
      %v1705 = vpop.f32.mrb[0].mxu0
      %1706 = vmatprep.mubr.f32.mxu0 %v889
      %1707 = vmatmul.mubr.f32.gmra.mrb[0].mxu0 %v776
      %v1708 = vpop.f32.mrb[0].mxu0
      %v1709 = vadd.f32 %v1484, %v1708
      %v1710 = vpop.f32.mrb[0].mxu0
      %1711 = vmatprep.mubr.f32.mxu0 %v891
      %1712 = vmatmul.mubr.f32.gmra.mrb[0].mxu0 %v778
      %v1713 = vpop.f32.mrb[0].mxu0
      %v1714 = vadd.f32 %v1489, %v1713
      %v1715 = vpop.f32.mrb[0].mxu0
      %1716 = vmatprep.mubr.f32.mxu0 %v894
      %1717 = vmatmul.mubr.f32.gmra.mrb[0].mxu0 %v781
      %v1718 = vpop.f32.mrb[0].mxu0
      %v1719 = vadd.f32 %v1494, %v1718
      %v1720 = vpop.f32.mrb[0].mxu0
      %1721 = vmatprep.mubr.f32.mxu0 %v896
      %1722 = vmatmul.mubr.f32.gmra.mrb[0].mxu0 %v783
      %v1723 = vpop.f32.mrb[0].mxu0
      %v1724 = vadd.f32 %v1499, %v1723
      %v1725 = vpop.f32.mrb[0].mxu0
      %1726 = vmatprep.mubr.f32.mxu0 %v899
      %1727 = vmatmul.mubr.f32.gmra.mrb[0].mxu0 %v786
      %v1728 = vpop.f32.mrb[0].mxu0
      %v1729 = vadd.f32 %v1504, %v1728
      %v1730 = vpop.f32.mrb[0].mxu0
      %1731 = vmatprep.mubr.f32.mxu0 %v901
      %1732 = vmatmul.mubr.f32.gmra.mrb[0].mxu0 %v788
      %v1733 = vpop.f32.mrb[0].mxu0
      %v1734 = vadd.f32 %v1509, %v1733
      %v1735 = vpop.f32.mrb[0].mxu0
      %1736 = vmatprep.mubr.f32.mxu0 %v904
      %1737 = vmatmul.mubr.f32.gmra.mrb[0].mxu0 %v791
      %v1738 = vpop.f32.mrb[0].mxu0
      %v1739 = vadd.f32 %v1514, %v1738
      %v1740 = vpop.f32.mrb[0].mxu0
      %1741 = vmatprep.mubr.f32.mxu0 %v906
      %1742 = vmatmul.mubr.f32.gmra.mrb[0].mxu0 %v793
      %v1743 = vpop.f32.mrb[0].mxu0
      %v1744 = vadd.f32 %v1519, %v1743
      %v1745 = vpop.f32.mrb[0].mxu0
      %1746 = vmatprep.mubr.f32.mxu0 %v909
      %1747 = vmatmul.mubr.f32.gmra.mrb[0].mxu0 %v796
      %v1748 = vpop.f32.mrb[0].mxu0
      %v1749 = vadd.f32 %v1524, %v1748
      %v1750 = vpop.f32.mrb[0].mxu0
      %1751 = vmatprep.mubr.f32.mxu0 %v911
      %1752 = vmatmul.mubr.f32.gmra.mrb[0].mxu0 %v798
      %v1753 = vpop.f32.mrb[0].mxu0
      %v1754 = vadd.f32 %v1529, %v1753
      %v1755 = vpop.f32.mrb[0].mxu0
      %1756 = vmatprep.mubr.f32.mxu0 %v914
      %1757 = vmatmul.mubr.f32.gmra.mrb[0].mxu0 %v801
      %v1758 = vpop.f32.mrb[0].mxu0
      %v1759 = vadd.f32 %v1534, %v1758
      %v1760 = vpop.f32.mrb[0].mxu0
      %1761 = vmatprep.mubr.f32.mxu0 %v916
      %1762 = vmatmul.mubr.f32.gmra.mrb[0].mxu0 %v803
      %v1763 = vpop.f32.mrb[0].mxu0
      %v1764 = vadd.f32 %v1539, %v1763
      %v1765 = vpop.f32.mrb[0].mxu0
      %1766 = vmatprep.mubr.f32.mxu0 %v919
      %1767 = vmatmul.mubr.f32.gmra.mrb[0].mxu0 %v806
      %v1768 = vpop.f32.mrb[0].mxu0
      %v1769 = vadd.f32 %v1544, %v1768
      %v1770 = vpop.f32.mrb[0].mxu0
      %1771 = vmatprep.mubr.f32.mxu0 %v921
      %1772 = vmatmul.mubr.f32.gmra.mrb[0].mxu0 %v808
      %v1773 = vpop.f32.mrb[0].mxu0
      %v1774 = vadd.f32 %v1549, %v1773
      %v1775 = vpop.f32.mrb[0].mxu0
      %1776 = vmatprep.mubr.f32.mxu0 %v924
      %1777 = vmatmul.mubr.f32.gmra.mrb[0].mxu0 %v811
      %v1778 = vpop.f32.mrb[0].mxu0
      %v1779 = vadd.f32 %v1554, %v1778
      %v1780 = vpop.f32.mrb[0].mxu0
      %1781 = vmatprep.mubr.f32.mxu0 %v926
      %1782 = vmatmul.mubr.f32.gmra.mrb[0].mxu0 %v813
      %v1783 = vpop.f32.mrb[0].mxu0
      %v1784 = vadd.f32 %v1559, %v1783
      %v1785 = vpop.f32.mrb[0].mxu0
      %1786 = vmatprep.mubr.f32.mxu0 %v929
      %1787 = vmatmul.mubr.f32.gmra.mrb[0].mxu0 %v816
      %v1788 = vpop.f32.mrb[0].mxu0
      %v1789 = vadd.f32 %v1564, %v1788
      %v1790 = vpop.f32.mrb[0].mxu0
      %1791 = vmatprep.mubr.f32.mxu0 %v931
      %1792 = vmatmul.mubr.f32.gmra.mrb[0].mxu0 %v818
      %v1793 = vpop.f32.mrb[0].mxu0
      %v1794 = vadd.f32 %v1569, %v1793
      %v1795 = vpop.f32.mrb[0].mxu0
      %1796 = vmatprep.mubr.f32.mxu0 %v934
      %1797 = vmatmul.mubr.f32.gmra.mrb[0].mxu0 %v821
      %v1798 = vpop.f32.mrb[0].mxu0
      %v1799 = vadd.f32 %v1574, %v1798
      %v1800 = vpop.f32.mrb[0].mxu0
      %1801 = vmatprep.mubr.f32.mxu0 %v936
      %1802 = vmatmul.mubr.f32.gmra.mrb[0].mxu0 %v823
      %v1803 = vpop.f32.mrb[0].mxu0
      %v1804 = vadd.f32 %v1579, %v1803
      %v1805 = vpop.f32.mrb[0].mxu0
      %1806 = vmatprep.mubr.f32.mxu0 %v939
      %1807 = vmatmul.mubr.f32.gmra.mrb[0].mxu0 %v826
      %v1808 = vpop.f32.mrb[0].mxu0
      %v1809 = vadd.f32 %v1584, %v1808
      %v1810 = vpop.f32.mrb[0].mxu0
      %1811 = vmatprep.mubr.f32.mxu0 %v941
      %1812 = vmatmul.mubr.f32.gmra.mrb[0].mxu0 %v828
      %v1813 = vpop.f32.mrb[0].mxu0
      %v1814 = vadd.f32 %v1589, %v1813
      %v1815 = vpop.f32.mrb[0].mxu0
      %1816 = vmatprep.mubr.f32.mxu0 %v986
      %1817 = vmatmul.mubr.f32.gmra.mrb[0].mxu0 %v979
      %v1818 = vpop.f32.mrb[0].mxu0
      %v1819 = vadd.f32 %v1594, %v1818
      %v1820 = vpop.f32.mrb[0].mxu0
      %1821 = vmatprep.mubr.f32.mxu0 %v988
      %1822 = vmatmul.mubr.f32.gmra.mrb[0].mxu0 %v981
      %v1823 = vpop.f32.mrb[0].mxu0
      %v1824 = vadd.f32 %v1599, %v1823
      %v1825 = vpop.f32.mrb[0].mxu0
      %1826 = vdwg.mxu0
      %1827 = vmatprep.subr.mxu0 0.0
      %1828 = vmatpush1.msra.mxu0 %v1104
      %1829 = vmatprep.subr.mxu0 0.0
      %1830 = vmatpush1.msra.mxu0 %v1105
      %1831 = vmatprep.subr.mxu0 0.0
      %1832 = vmatpush1.msra.mxu0 %v1106
      %1833 = vmatprep.subr.mxu0 0.0
      %1834 = vmatpush1.msra.mxu0 %v1107
      %1835 = vmatprep.subr.mxu0 0.0
      %1836 = vmatpush1.msra.mxu0 %v1108
      %1837 = vmatprep.subr.mxu0 0.0
      %1838 = vmatpush1.msra.mxu0 %v1109
      %1839 = vmatprep.subr.mxu0 0.0
      %1840 = vmatpush1.msra.mxu0 %v1110
      %1841 = vmatprep.subr.mxu0 0.0
      %1842 = vmatpush1.msra.mxu0 %v1111
      %1843 = vmatprep.subr.mxu0 0.0
      %1844 = vmatpush1.msra.mxu0 %v1112
      %1845 = vmatprep.subr.mxu0 0.0
      %1846 = vmatpush1.msra.mxu0 %v1113
      %1847 = vmatprep.subr.mxu0 0.0
      %1848 = vmatpush1.msra.mxu0 %v1114
      %1849 = vmatprep.subr.mxu0 0.0
      %1850 = vmatpush1.msra.mxu0 %v1115
      %1851 = vmatprep.subr.mxu0 0.0
      %1852 = vmatpush1.msra.mxu0 %v1116
      %1853 = vmatprep.subr.mxu0 0.0
      %1854 = vmatpush1.msra.mxu0 %v1117
      %1855 = vmatprep.subr.mxu0 0.0
      %1856 = vmatpush1.msra.mxu0 %v1118
      %1857 = vmatprep.subr.mxu0 0.0
      %1858 = vmatpush1.msra.mxu0 %v1119
      %1859 = vmatprep.subr.mxu0 0.0
      %1860 = vmatpush1.msra.mxu0 %v1120
      %1861 = vmatprep.subr.mxu0 0.0
      %1862 = vmatpush1.msra.mxu0 %v1121
      %1863 = vmatprep.subr.mxu0 0.0
      %1864 = vmatpush1.msra.mxu0 %v1122
      %1865 = vmatprep.subr.mxu0 0.0
      %1866 = vmatpush1.msra.mxu0 %v1123
      %1867 = vmatprep.subr.mxu0 0.0
      %1868 = vmatpush1.msra.mxu0 %v1124
      %1869 = vmatprep.subr.mxu0 0.0
      %1870 = vmatpush1.msra.mxu0 %v1125
      %1871 = vmatprep.subr.mxu0 0.0
      %1872 = vmatpush1.msra.mxu0 %v1126
      %1873 = vmatprep.subr.mxu0 0.0
      %1874 = vmatpush1.msra.mxu0 %v1127
      %1875 = vmatprep.subr.mxu0 0.0
      %1876 = vmatpush1.msra.mxu0 %v1128
      %1877 = vmatprep.subr.mxu0 0.0
      %1878 = vmatpush1.msra.mxu0 %v1129
      %1879 = vmatprep.subr.mxu0 0.0
      %1880 = vmatpush1.msra.mxu0 %v1130
      %1881 = vmatprep.subr.mxu0 0.0
      %1882 = vmatpush1.msra.mxu0 %v1131
      %1883 = vmatprep.subr.mxu0 0.0
      %1884 = vmatpush1.msra.mxu0 %v1132
      %1885 = vmatprep.subr.mxu0 0.0
      %1886 = vmatpush1.msra.mxu0 %v1133
      %1887 = vmatprep.subr.mxu0 0.0
      %1888 = vmatpush1.msra.mxu0 %v1134
      %1889 = vmatprep.subr.mxu0 0.0
      %1890 = vmatpush1.msra.mxu0 %v1135
      %1891 = vmatprep.mubr.f32.mxu0 %v761
      %1892 = vmatmul.mubr.f32.gmra.mrb[0].mxu0 %v652
      %v1893 = vpop.f32.mrb[0].mxu0
      %v1894 = vadd.f32 %v1669, %v1893
      %v1895 = vpop.f32.mrb[0].mxu0
      %1896 = vmatprep.mubr.f32.mxu0 %v763
      %1897 = vmatmul.mubr.f32.gmra.mrb[0].mxu0 %v653
      %v1898 = vpop.f32.mrb[0].mxu0
      %v1899 = vadd.f32 %v1674, %v1898
      %v1900 = vpop.f32.mrb[0].mxu0
      %1901 = vmatprep.mubr.f32.mxu0 %v766
      %1902 = vmatmul.mubr.f32.gmra.mrb[0].mxu0 %v655
      %v1903 = vpop.f32.mrb[0].mxu0
      %v1904 = vadd.f32 %v1679, %v1903
      %v1905 = vpop.f32.mrb[0].mxu0
      %1906 = vmatprep.mubr.f32.mxu0 %v768
      %1907 = vmatmul.mubr.f32.gmra.mrb[0].mxu0 %v656
      %v1908 = vpop.f32.mrb[0].mxu0
      %v1909 = vadd.f32 %v1684, %v1908
      %v1910 = vpop.f32.mrb[0].mxu0
      %1911 = vmatprep.mubr.f32.mxu0 %v771
      %1912 = vmatmul.mubr.f32.gmra.mrb[0].mxu0 %v658
      %v1913 = vpop.f32.mrb[0].mxu0
      %v1914 = vadd.f32 %v1689, %v1913
      %v1915 = vpop.f32.mrb[0].mxu0
      %1916 = vmatprep.mubr.f32.mxu0 %v773
      %1917 = vmatmul.mubr.f32.gmra.mrb[0].mxu0 %v659
      %v1918 = vpop.f32.mrb[0].mxu0
      %v1919 = vadd.f32 %v1694, %v1918
      %v1920 = vpop.f32.mrb[0].mxu0
      %1921 = vmatprep.mubr.f32.mxu0 %v776
      %1922 = vmatmul.mubr.f32.gmra.mrb[0].mxu0 %v661
      %v1923 = vpop.f32.mrb[0].mxu0
      %v1924 = vadd.f32 %v1699, %v1923
      %v1925 = vpop.f32.mrb[0].mxu0
      %1926 = vmatprep.mubr.f32.mxu0 %v778
      %1927 = vmatmul.mubr.f32.gmra.mrb[0].mxu0 %v662
      %v1928 = vpop.f32.mrb[0].mxu0
      %v1929 = vadd.f32 %v1704, %v1928
      %v1930 = vpop.f32.mrb[0].mxu0
      %1931 = vmatprep.mubr.f32.mxu0 %v781
      %1932 = vmatmul.mubr.f32.gmra.mrb[0].mxu0 %v664
      %v1933 = vpop.f32.mrb[0].mxu0
      %v1934 = vadd.f32 %v1709, %v1933
      %v1935 = vpop.f32.mrb[0].mxu0
      %1936 = vmatprep.mubr.f32.mxu0 %v783
      %1937 = vmatmul.mubr.f32.gmra.mrb[0].mxu0 %v665
      %v1938 = vpop.f32.mrb[0].mxu0
      %v1939 = vadd.f32 %v1714, %v1938
      %v1940 = vpop.f32.mrb[0].mxu0
      %1941 = vmatprep.mubr.f32.mxu0 %v786
      %1942 = vmatmul.mubr.f32.gmra.mrb[0].mxu0 %v667
      %v1943 = vpop.f32.mrb[0].mxu0
      %v1944 = vadd.f32 %v1719, %v1943
      %v1945 = vpop.f32.mrb[0].mxu0
      %1946 = vmatprep.mubr.f32.mxu0 %v788
      %1947 = vmatmul.mubr.f32.gmra.mrb[0].mxu0 %v668
      %v1948 = vpop.f32.mrb[0].mxu0
      %v1949 = vadd.f32 %v1724, %v1948
      %v1950 = vpop.f32.mrb[0].mxu0
      %1951 = vmatprep.mubr.f32.mxu0 %v791
      %1952 = vmatmul.mubr.f32.gmra.mrb[0].mxu0 %v670
      %v1953 = vpop.f32.mrb[0].mxu0
      %v1954 = vadd.f32 %v1729, %v1953
      %v1955 = vpop.f32.mrb[0].mxu0
      %1956 = vmatprep.mubr.f32.mxu0 %v793
      %1957 = vmatmul.mubr.f32.gmra.mrb[0].mxu0 %v671
      %v1958 = vpop.f32.mrb[0].mxu0
      %v1959 = vadd.f32 %v1734, %v1958
      %v1960 = vpop.f32.mrb[0].mxu0
      %1961 = vmatprep.mubr.f32.mxu0 %v796
      %1962 = vmatmul.mubr.f32.gmra.mrb[0].mxu0 %v673
      %v1963 = vpop.f32.mrb[0].mxu0
      %v1964 = vadd.f32 %v1739, %v1963
      %v1965 = vpop.f32.mrb[0].mxu0
      %1966 = vmatprep.mubr.f32.mxu0 %v798
      %1967 = vmatmul.mubr.f32.gmra.mrb[0].mxu0 %v674
      %v1968 = vpop.f32.mrb[0].mxu0
      %v1969 = vadd.f32 %v1744, %v1968
      %v1970 = vpop.f32.mrb[0].mxu0
      %1971 = vmatprep.mubr.f32.mxu0 %v801
      %1972 = vmatmul.mubr.f32.gmra.mrb[0].mxu0 %v676
      %v1973 = vpop.f32.mrb[0].mxu0
      %v1974 = vadd.f32 %v1749, %v1973
      %v1975 = vpop.f32.mrb[0].mxu0
      %1976 = vmatprep.mubr.f32.mxu0 %v803
      %1977 = vmatmul.mubr.f32.gmra.mrb[0].mxu0 %v677
      %v1978 = vpop.f32.mrb[0].mxu0
      %v1979 = vadd.f32 %v1754, %v1978
      %v1980 = vpop.f32.mrb[0].mxu0
      %1981 = vmatprep.mubr.f32.mxu0 %v806
      %1982 = vmatmul.mubr.f32.gmra.mrb[0].mxu0 %v679
      %v1983 = vpop.f32.mrb[0].mxu0
      %v1984 = vadd.f32 %v1759, %v1983
      %v1985 = vpop.f32.mrb[0].mxu0
      %1986 = vmatprep.mubr.f32.mxu0 %v808
      %1987 = vmatmul.mubr.f32.gmra.mrb[0].mxu0 %v680
      %v1988 = vpop.f32.mrb[0].mxu0
      %v1989 = vadd.f32 %v1764, %v1988
      %v1990 = vpop.f32.mrb[0].mxu0
      %1991 = vmatprep.mubr.f32.mxu0 %v811
      %1992 = vmatmul.mubr.f32.gmra.mrb[0].mxu0 %v682
      %v1993 = vpop.f32.mrb[0].mxu0
      %v1994 = vadd.f32 %v1769, %v1993
      %v1995 = vpop.f32.mrb[0].mxu0
      %1996 = vmatprep.mubr.f32.mxu0 %v813
      %1997 = vmatmul.mubr.f32.gmra.mrb[0].mxu0 %v683
      %v1998 = vpop.f32.mrb[0].mxu0
      %v1999 = vadd.f32 %v1774, %v1998
      %v2000 = vpop.f32.mrb[0].mxu0
      %2001 = vmatprep.mubr.f32.mxu0 %v816
      %2002 = vmatmul.mubr.f32.gmra.mrb[0].mxu0 %v685
      %v2003 = vpop.f32.mrb[0].mxu0
      %v2004 = vadd.f32 %v1779, %v2003
      %v2005 = vpop.f32.mrb[0].mxu0
      %2006 = vmatprep.mubr.f32.mxu0 %v818
      %2007 = vmatmul.mubr.f32.gmra.mrb[0].mxu0 %v686
      %v2008 = vpop.f32.mrb[0].mxu0
      %v2009 = vadd.f32 %v1784, %v2008
      %v2010 = vpop.f32.mrb[0].mxu0
      %2011 = vmatprep.mubr.f32.mxu0 %v821
      %2012 = vmatmul.mubr.f32.gmra.mrb[0].mxu0 %v688
      %v2013 = vpop.f32.mrb[0].mxu0
      %v2014 = vadd.f32 %v1789, %v2013
      %v2015 = vpop.f32.mrb[0].mxu0
      %2016 = vmatprep.mubr.f32.mxu0 %v823
      %2017 = vmatmul.mubr.f32.gmra.mrb[0].mxu0 %v689
      %v2018 = vpop.f32.mrb[0].mxu0
      %v2019 = vadd.f32 %v1794, %v2018
      %v2020 = vpop.f32.mrb[0].mxu0
      %2021 = vmatprep.mubr.f32.mxu0 %v826
      %2022 = vmatmul.mubr.f32.gmra.mrb[0].mxu0 %v691
      %v2023 = vpop.f32.mrb[0].mxu0
      %v2024 = vadd.f32 %v1799, %v2023
      %v2025 = vpop.f32.mrb[0].mxu0
      %2026 = vmatprep.mubr.f32.mxu0 %v828
      %2027 = vmatmul.mubr.f32.gmra.mrb[0].mxu0 %v692
      %v2028 = vpop.f32.mrb[0].mxu0
      %v2029 = vadd.f32 %v1804, %v2028
      %v2030 = vpop.f32.mrb[0].mxu0
      %2031 = vmatprep.mubr.f32.mxu0 %v979
      %2032 = vmatmul.mubr.f32.gmra.mrb[0].mxu0 %v694
      %v2033 = vpop.f32.mrb[0].mxu0
      %v2034 = vadd.f32 %v1809, %v2033
      %v2035 = vpop.f32.mrb[0].mxu0
      %2036 = vmatprep.mubr.f32.mxu0 %v981
      %2037 = vmatmul.mubr.f32.gmra.mrb[0].mxu0 %v695
      %v2038 = vpop.f32.mrb[0].mxu0
      %v2039 = vadd.f32 %v1814, %v2038
      %v2040 = vpop.f32.mrb[0].mxu0
      %2041 = vmatprep.mubr.f32.mxu0 %v996
      %2042 = vmatmul.mubr.f32.gmra.mrb[0].mxu0 %v697
      %v2043 = vpop.f32.mrb[0].mxu0
      %v2044 = vadd.f32 %v1819, %v2043
      %v2045 = vpop.f32.mrb[0].mxu0
      %2046 = vmatprep.mubr.f32.mxu0 %v998
      %2047 = vmatmul.mubr.f32.gmra.mrb[0].mxu0 %v698
      %v2048 = vpop.f32.mrb[0].mxu0
      %v2049 = vadd.f32 %v1824, %v2048
      %v2050 = vpop.f32.mrb[0].mxu0
      %2051 = vdwg.mxu0
      %2052 = vmatprep.subr.mxu0 0.0
      %2053 = vmatpush1.msra.mxu0 %v1136
      %2054 = vmatprep.subr.mxu0 0.0
      %2055 = vmatpush1.msra.mxu0 %v1137
      %2056 = vmatprep.subr.mxu0 0.0
      %2057 = vmatpush1.msra.mxu0 %v1138
      %2058 = vmatprep.subr.mxu0 0.0
      %2059 = vmatpush1.msra.mxu0 %v1139
      %2060 = vmatprep.subr.mxu0 0.0
      %2061 = vmatpush1.msra.mxu0 %v1140
      %2062 = vmatprep.subr.mxu0 0.0
      %2063 = vmatpush1.msra.mxu0 %v1141
      %2064 = vmatprep.subr.mxu0 0.0
      %2065 = vmatpush1.msra.mxu0 %v1142
      %2066 = vmatprep.subr.mxu0 0.0
      %2067 = vmatpush1.msra.mxu0 %v1143
      %2068 = vmatprep.subr.mxu0 0.0
      %2069 = vmatpush1.msra.mxu0 %v1144
      %2070 = vmatprep.subr.mxu0 0.0
      %2071 = vmatpush1.msra.mxu0 %v1145
      %2072 = vmatprep.subr.mxu0 0.0
      %2073 = vmatpush1.msra.mxu0 %v1146
      %2074 = vmatprep.subr.mxu0 0.0
      %2075 = vmatpush1.msra.mxu0 %v1147
      %2076 = vmatprep.subr.mxu0 0.0
      %2077 = vmatpush1.msra.mxu0 %v1148
      %2078 = vmatprep.subr.mxu0 0.0
      %2079 = vmatpush1.msra.mxu0 %v1149
      %2080 = vmatprep.subr.mxu0 0.0
      %2081 = vmatpush1.msra.mxu0 %v1150
      %2082 = vmatprep.subr.mxu0 0.0
      %2083 = vmatpush1.msra.mxu0 %v1151
      %2084 = vmatprep.subr.mxu0 0.0
      %2085 = vmatpush1.msra.mxu0 0.0
      %2086 = vmatprep.subr.mxu0 0.0
      %2087 = vmatpush1.msra.mxu0 0.0
      %2088 = vmatprep.subr.mxu0 0.0
      %2089 = vmatpush1.msra.mxu0 0.0
      %2090 = vmatprep.subr.mxu0 0.0
      %2091 = vmatpush1.msra.mxu0 0.0
      %2092 = vmatprep.subr.mxu0 0.0
      %2093 = vmatpush1.msra.mxu0 0.0
      %2094 = vmatprep.subr.mxu0 0.0
      %2095 = vmatpush1.msra.mxu0 0.0
      %2096 = vmatprep.subr.mxu0 0.0
      %2097 = vmatpush1.msra.mxu0 0.0
      %2098 = vmatprep.subr.mxu0 0.0
      %2099 = vmatpush1.msra.mxu0 0.0
      %2100 = vmatprep.subr.mxu0 0.0
      %2101 = vmatpush1.msra.mxu0 0.0
      %2102 = vmatprep.subr.mxu0 0.0
      %2103 = vmatpush1.msra.mxu0 0.0
      %2104 = vmatprep.subr.mxu0 0.0
      %2105 = vmatpush1.msra.mxu0 0.0
      %2106 = vmatprep.subr.mxu0 0.0
      %2107 = vmatpush1.msra.mxu0 0.0
      %2108 = vmatprep.subr.mxu0 0.0
      %2109 = vmatpush1.msra.mxu0 0.0
      %2110 = vmatprep.subr.mxu0 0.0
      %2111 = vmatpush1.msra.mxu0 0.0
      %2112 = vmatprep.subr.mxu0 0.0
      %2113 = vmatpush1.msra.mxu0 0.0
      %2114 = vmatprep.subr.mxu0 0.0
      %2115 = vmatpush1.msra.mxu0 0.0
      %2116 = vmatprep.mubr.f32.mxu0 0.0
      %2117 = vmatmul.mubr.f32.gmra.mrb[0].mxu0 %v874
      %v2118 = vpop.f32.mrb[0].mxu0
      %v2119 = vadd.f32 %v1894, %v2118
      %v2120 = vpop.f32.mrb[0].mxu0
      %2121 = vmatprep.mubr.f32.mxu0 0.0
      %2122 = vmatmul.mubr.f32.gmra.mrb[0].mxu0 %v876
      %v2123 = vpop.f32.mrb[0].mxu0
      %v2124 = vadd.f32 %v1899, %v2123
      %v2125 = vpop.f32.mrb[0].mxu0
      %2126 = vmatprep.mubr.f32.mxu0 0.0
      %2127 = vmatmul.mubr.f32.gmra.mrb[0].mxu0 %v879
      %v2128 = vpop.f32.mrb[0].mxu0
      %v2129 = vadd.f32 %v1904, %v2128
      %v2130 = vpop.f32.mrb[0].mxu0
      %2131 = vmatprep.mubr.f32.mxu0 0.0
      %2132 = vmatmul.mubr.f32.gmra.mrb[0].mxu0 %v881
      %v2133 = vpop.f32.mrb[0].mxu0
      %v2134 = vadd.f32 %v1909, %v2133
      %v2135 = vpop.f32.mrb[0].mxu0
      %2136 = vmatprep.mubr.f32.mxu0 0.0
      %2137 = vmatmul.mubr.f32.gmra.mrb[0].mxu0 %v884
      %v2138 = vpop.f32.mrb[0].mxu0
      %v2139 = vadd.f32 %v1914, %v2138
      %v2140 = vpop.f32.mrb[0].mxu0
      %2141 = vmatprep.mubr.f32.mxu0 0.0
      %2142 = vmatmul.mubr.f32.gmra.mrb[0].mxu0 %v886
      %v2143 = vpop.f32.mrb[0].mxu0
      %v2144 = vadd.f32 %v1919, %v2143
      %v2145 = vpop.f32.mrb[0].mxu0
      %2146 = vmatprep.mubr.f32.mxu0 0.0
      %2147 = vmatmul.mubr.f32.gmra.mrb[0].mxu0 %v889
      %v2148 = vpop.f32.mrb[0].mxu0
      %v2149 = vadd.f32 %v1924, %v2148
      %v2150 = vpop.f32.mrb[0].mxu0
      %2151 = vmatprep.mubr.f32.mxu0 0.0
      %2152 = vmatmul.mubr.f32.gmra.mrb[0].mxu0 %v891
      %v2153 = vpop.f32.mrb[0].mxu0
      %v2154 = vadd.f32 %v1929, %v2153
      %v2155 = vpop.f32.mrb[0].mxu0
      %2156 = vmatprep.mubr.f32.mxu0 0.0
      %2157 = vmatmul.mubr.f32.gmra.mrb[0].mxu0 %v894
      %v2158 = vpop.f32.mrb[0].mxu0
      %v2159 = vadd.f32 %v1934, %v2158
      %v2160 = vpop.f32.mrb[0].mxu0
      %2161 = vmatprep.mubr.f32.mxu0 0.0
      %2162 = vmatmul.mubr.f32.gmra.mrb[0].mxu0 %v896
      %v2163 = vpop.f32.mrb[0].mxu0
      %v2164 = vadd.f32 %v1939, %v2163
      %v2165 = vpop.f32.mrb[0].mxu0
      %2166 = vmatprep.mubr.f32.mxu0 0.0
      %2167 = vmatmul.mubr.f32.gmra.mrb[0].mxu0 %v899
      %v2168 = vpop.f32.mrb[0].mxu0
      %v2169 = vadd.f32 %v1944, %v2168
      %v2170 = vpop.f32.mrb[0].mxu0
      %2171 = vmatprep.mubr.f32.mxu0 0.0
      %2172 = vmatmul.mubr.f32.gmra.mrb[0].mxu0 %v901
      %v2173 = vpop.f32.mrb[0].mxu0
      %v2174 = vadd.f32 %v1949, %v2173
      %v2175 = vpop.f32.mrb[0].mxu0
      %2176 = vmatprep.mubr.f32.mxu0 0.0
      %2177 = vmatmul.mubr.f32.gmra.mrb[0].mxu0 %v904
      %v2178 = vpop.f32.mrb[0].mxu0
      %v2179 = vadd.f32 %v1954, %v2178
      %v2180 = vpop.f32.mrb[0].mxu0
      %2181 = vmatprep.mubr.f32.mxu0 0.0
      %2182 = vmatmul.mubr.f32.gmra.mrb[0].mxu0 %v906
      %v2183 = vpop.f32.mrb[0].mxu0
      %v2184 = vadd.f32 %v1959, %v2183
      %v2185 = vpop.f32.mrb[0].mxu0
      %2186 = vmatprep.mubr.f32.mxu0 0.0
      %2187 = vmatmul.mubr.f32.gmra.mrb[0].mxu0 %v909
      %v2188 = vpop.f32.mrb[0].mxu0
      %v2189 = vadd.f32 %v1964, %v2188
      %v2190 = vpop.f32.mrb[0].mxu0
      %2191 = vmatprep.mubr.f32.mxu0 0.0
      %2192 = vmatmul.mubr.f32.gmra.mrb[0].mxu0 %v911
      %v2193 = vpop.f32.mrb[0].mxu0
      %v2194 = vadd.f32 %v1969, %v2193
      %v2195 = vpop.f32.mrb[0].mxu0
      %2196 = vmatprep.mubr.f32.mxu0 0.0
      %2197 = vmatmul.mubr.f32.gmra.mrb[0].mxu0 %v914
      %v2198 = vpop.f32.mrb[0].mxu0
      %v2199 = vadd.f32 %v1974, %v2198
      %v2200 = vpop.f32.mrb[0].mxu0
      %2201 = vmatprep.mubr.f32.mxu0 0.0
      %2202 = vmatmul.mubr.f32.gmra.mrb[0].mxu0 %v916
      %v2203 = vpop.f32.mrb[0].mxu0
      %v2204 = vadd.f32 %v1979, %v2203
      %v2205 = vpop.f32.mrb[0].mxu0
      %2206 = vmatprep.mubr.f32.mxu0 0.0
      %2207 = vmatmul.mubr.f32.gmra.mrb[0].mxu0 %v919
      %v2208 = vpop.f32.mrb[0].mxu0
      %v2209 = vadd.f32 %v1984, %v2208
      %v2210 = vpop.f32.mrb[0].mxu0
      %2211 = vmatprep.mubr.f32.mxu0 0.0
      %2212 = vmatmul.mubr.f32.gmra.mrb[0].mxu0 %v921
      %v2213 = vpop.f32.mrb[0].mxu0
      %v2214 = vadd.f32 %v1989, %v2213
      %v2215 = vpop.f32.mrb[0].mxu0
      %2216 = vmatprep.mubr.f32.mxu0 0.0
      %2217 = vmatmul.mubr.f32.gmra.mrb[0].mxu0 %v924
      %v2218 = vpop.f32.mrb[0].mxu0
      %v2219 = vadd.f32 %v1994, %v2218
      %v2220 = vpop.f32.mrb[0].mxu0
      %2221 = vmatprep.mubr.f32.mxu0 0.0
      %2222 = vmatmul.mubr.f32.gmra.mrb[0].mxu0 %v926
      %v2223 = vpop.f32.mrb[0].mxu0
      %v2224 = vadd.f32 %v1999, %v2223
      %v2225 = vpop.f32.mrb[0].mxu0
      %2226 = vmatprep.mubr.f32.mxu0 0.0
      %2227 = vmatmul.mubr.f32.gmra.mrb[0].mxu0 %v929
      %v2228 = vpop.f32.mrb[0].mxu0
      %v2229 = vadd.f32 %v2004, %v2228
      %v2230 = vpop.f32.mrb[0].mxu0
      %2231 = vmatprep.mubr.f32.mxu0 0.0
      %2232 = vmatmul.mubr.f32.gmra.mrb[0].mxu0 %v931
      %v2233 = vpop.f32.mrb[0].mxu0
      %v2234 = vadd.f32 %v2009, %v2233
      %v2235 = vpop.f32.mrb[0].mxu0
      %2236 = vmatprep.mubr.f32.mxu0 0.0
      %2237 = vmatmul.mubr.f32.gmra.mrb[0].mxu0 %v934
      %v2238 = vpop.f32.mrb[0].mxu0
      %v2239 = vadd.f32 %v2014, %v2238
      %v2240 = vpop.f32.mrb[0].mxu0
      %2241 = vmatprep.mubr.f32.mxu0 0.0
      %2242 = vmatmul.mubr.f32.gmra.mrb[0].mxu0 %v936
      %v2243 = vpop.f32.mrb[0].mxu0
      %v2244 = vadd.f32 %v2019, %v2243
      %v2245 = vpop.f32.mrb[0].mxu0
      %2246 = vmatprep.mubr.f32.mxu0 0.0
      %2247 = vmatmul.mubr.f32.gmra.mrb[0].mxu0 %v939
      %v2248 = vpop.f32.mrb[0].mxu0
      %v2249 = vadd.f32 %v2024, %v2248
      %v2250 = vpop.f32.mrb[0].mxu0
      %2251 = vmatprep.mubr.f32.mxu0 0.0
      %2252 = vmatmul.mubr.f32.gmra.mrb[0].mxu0 %v941
      %v2253 = vpop.f32.mrb[0].mxu0
      %v2254 = vadd.f32 %v2029, %v2253
      %v2255 = vpop.f32.mrb[0].mxu0
      %2256 = vmatprep.mubr.f32.mxu0 0.0
      %2257 = vmatmul.mubr.f32.gmra.mrb[0].mxu0 %v986
      %v2258 = vpop.f32.mrb[0].mxu0
      %v2259 = vadd.f32 %v2034, %v2258
      %v2260 = vpop.f32.mrb[0].mxu0
      %2261 = vmatprep.mubr.f32.mxu0 0.0
      %2262 = vmatmul.mubr.f32.gmra.mrb[0].mxu0 %v988
      %v2263 = vpop.f32.mrb[0].mxu0
      %v2264 = vadd.f32 %v2039, %v2263
      %v2265 = vpop.f32.mrb[0].mxu0
      %2266 = vmatprep.mubr.f32.mxu0 0.0
      %2267 = vmatmul.mubr.f32.gmra.mrb[0].mxu0 %v1003
      %v2268 = vpop.f32.mrb[0].mxu0
      %v2269 = vadd.f32 %v2044, %v2268
      %v2270 = vpop.f32.mrb[0].mxu0
      %2271 = vmatprep.mubr.f32.mxu0 0.0
      %2272 = vmatmul.mubr.f32.gmra.mrb[0].mxu0 %v1005
      %v2273 = vpop.f32.mrb[0].mxu0
      %v2274 = vadd.f32 %v2049, %v2273
      %v2275 = vpop.f32.mrb[0].mxu0
      %2276 = vdwg.mxu0
      %2277 = vst [vmem:[%s231] sm:$0xff] %v2119
      %2278 = vst [vmem:[%s231 + $0x8] sm:$0xff] %v2124
      %2279 = vst [vmem:[%s231 + $0x10] sm:$0xff] %v2129
      %2280 = vst [vmem:[%s231 + $0x18] sm:$0xff] %v2134
      %2281 = vst [vmem:[%s231 + $0x20] sm:$0xff] %v2139
      %2282 = vst [vmem:[%s231 + $0x28] sm:$0xff] %v2144
      %2283 = vst [vmem:[%s231 + $0x30] sm:$0xff] %v2149
      %2284 = vst [vmem:[%s231 + $0x38] sm:$0xff] %v2154
      %2285 = vst [vmem:[%s231 + $0x40] sm:$0xff] %v2159
      %2286 = vst [vmem:[%s231 + $0x48] sm:$0xff] %v2164
      %2287 = vst [vmem:[%s231 + $0x50] sm:$0xff] %v2169
      %2288 = vst [vmem:[%s231 + $0x58] sm:$0xff] %v2174
      %2289 = vst [vmem:[%s231 + $0x60] sm:$0xff] %v2179
      %2290 = vst [vmem:[%s231 + $0x68] sm:$0xff] %v2184
      %2291 = vst [vmem:[%s231 + $0x70] sm:$0xff] %v2189
      %2292 = vst [vmem:[%s231 + $0x78] sm:$0xff] %v2194
      %2293 = vst [vmem:[%s231 + $0x80] sm:$0xff] %v2199
      %2294 = vst [vmem:[%s231 + $0x88] sm:$0xff] %v2204
      %2295 = vst [vmem:[%s231 + $0x90] sm:$0xff] %v2209
      %2296 = vst [vmem:[%s231 + $0x98] sm:$0xff] %v2214
      %2297 = vst [vmem:[%s231 + $0xa0] sm:$0xff] %v2219
      %2298 = vst [vmem:[%s231 + $0xa8] sm:$0xff] %v2224
      %2299 = vst [vmem:[%s231 + $0xb0] sm:$0xff] %v2229
      %2300 = vst [vmem:[%s231 + $0xb8] sm:$0xff] %v2234
      %2301 = vst [vmem:[%s231 + $0xc0] sm:$0xff] %v2239
      %2302 = vst [vmem:[%s231 + $0xc8] sm:$0xff] %v2244
      %2303 = vst [vmem:[%s231 + $0xd0] sm:$0xff] %v2249
      %2304 = vst [vmem:[%s231 + $0xd8] sm:$0xff] %v2254
      %2305 = vst [vmem:[%s231 + $0xe0] sm:$0xff] %v2259
      %2306 = vst [vmem:[%s231 + $0xe8] sm:$0xff] %v2264
      %2307 = vst [vmem:[%s231 + $0xf0] sm:$0xff] %v2269
      %2308 = vst [vmem:[%s231 + $0xf8] sm:$0xff] %v2274
      %v2309 = vadd.f32 %v2119, %v2124
      %v2310 = vadd.f32 %v2309, %v2129
      %v2311 = vadd.f32 %v2310, %v2134
      %v2312 = vadd.f32 %v2311, %v2139
      %v2313 = vadd.f32 %v2312, %v2144
      %v2314 = vadd.f32 %v2313, %v2149
      %v2315 = vadd.f32 %v2314, %v2154
      %v2316 = vadd.f32 %v2315, %v2159
      %v2317 = vadd.f32 %v2316, %v2164
      %v2318 = vadd.f32 %v2317, %v2169
      %v2319 = vadd.f32 %v2318, %v2174
      %v2320 = vadd.f32 %v2319, %v2179
      %v2321 = vadd.f32 %v2320, %v2184
      %v2322 = vadd.f32 %v2321, %v2189
      %v2323 = vadd.f32 %v2322, %v2194
      %v2324 = vadd.f32 %v2323, %v2199
      %v2325 = vadd.f32 %v2324, %v2204
      %v2326 = vadd.f32 %v2325, %v2209
      %v2327 = vadd.f32 %v2326, %v2214
      %v2328 = vadd.f32 %v2327, %v2219
      %v2329 = vadd.f32 %v2328, %v2224
      %v2330 = vadd.f32 %v2329, %v2229
      %v2331 = vadd.f32 %v2330, %v2234
      %v2332 = vadd.f32 %v2331, %v2239
      %v2333 = vadd.f32 %v2332, %v2244
      %v2334 = vadd.f32 %v2333, %v2249
      %v2335 = vadd.f32 %v2334, %v2254
      %v2336 = vadd.f32 %v2335, %v2259
      %v2337 = vadd.f32 %v2336, %v2264
      %v2338 = vadd.f32 %v2337, %v2269
      %v2339 = vadd.f32 %v2338, %v2274
      %v2340 = vrot.slane %v2339, 4
      %v2341 = vadd.f32 %v2339, %v2340
      %v2342 = vrot.slane %v2341, 2
      %v2343 = vadd.f32 %v2341, %v2342
      %v2344 = vrot.slane %v2343, 1
      %v2345 = vadd.f32 %v2343, %v2344
      %v2346 = vmul.f32 %v2119, %v2119
      %v2347 = vmul.f32 %v2124, %v2124
      %v2348 = vmul.f32 %v2129, %v2129
      %v2349 = vmul.f32 %v2134, %v2134
      %v2350 = vmul.f32 %v2139, %v2139
      %v2351 = vmul.f32 %v2144, %v2144
      %v2352 = vmul.f32 %v2149, %v2149
      %v2353 = vmul.f32 %v2154, %v2154
      %v2354 = vmul.f32 %v2159, %v2159
      %v2355 = vmul.f32 %v2164, %v2164
      %v2356 = vmul.f32 %v2169, %v2169
      %v2357 = vmul.f32 %v2174, %v2174
      %v2358 = vmul.f32 %v2179, %v2179
      %v2359 = vmul.f32 %v2184, %v2184
      %v2360 = vmul.f32 %v2189, %v2189
      %v2361 = vmul.f32 %v2194, %v2194
      %v2362 = vmul.f32 %v2199, %v2199
      %v2363 = vmul.f32 %v2204, %v2204
      %v2364 = vmul.f32 %v2209, %v2209
      %v2365 = vmul.f32 %v2214, %v2214
      %v2366 = vmul.f32 %v2219, %v2219
      %v2367 = vmul.f32 %v2224, %v2224
      %v2368 = vmul.f32 %v2229, %v2229
      %v2369 = vmul.f32 %v2234, %v2234
      %v2370 = vmul.f32 %v2239, %v2239
      %v2371 = vmul.f32 %v2244, %v2244
      %v2372 = vmul.f32 %v2249, %v2249
      %v2373 = vmul.f32 %v2254, %v2254
      %v2374 = vmul.f32 %v2259, %v2259
      %v2375 = vmul.f32 %v2264, %v2264
      %v2376 = vmul.f32 %v2269, %v2269
      %v2377 = vmul.f32 %v2274, %v2274
      %v2378 = vadd.f32 %v2346, %v2347
      %v2379 = vadd.f32 %v2378, %v2348
      %v2380 = vadd.f32 %v2379, %v2349
      %v2381 = vadd.f32 %v2380, %v2350
      %v2382 = vadd.f32 %v2381, %v2351
      %v2383 = vadd.f32 %v2382, %v2352
      %v2384 = vadd.f32 %v2383, %v2353
      %v2385 = vadd.f32 %v2384, %v2354
      %v2386 = vadd.f32 %v2385, %v2355
      %v2387 = vadd.f32 %v2386, %v2356
      %v2388 = vadd.f32 %v2387, %v2357
      %v2389 = vadd.f32 %v2388, %v2358
      %v2390 = vadd.f32 %v2389, %v2359
      %v2391 = vadd.f32 %v2390, %v2360
      %v2392 = vadd.f32 %v2391, %v2361
      %v2393 = vadd.f32 %v2392, %v2362
      %v2394 = vadd.f32 %v2393, %v2363
      %v2395 = vadd.f32 %v2394, %v2364
      %v2396 = vadd.f32 %v2395, %v2365
      %v2397 = vadd.f32 %v2396, %v2366
      %v2398 = vadd.f32 %v2397, %v2367
      %v2399 = vadd.f32 %v2398, %v2368
      %v2400 = vadd.f32 %v2399, %v2369
      %v2401 = vadd.f32 %v2400, %v2370
      %v2402 = vadd.f32 %v2401, %v2371
      %v2403 = vadd.f32 %v2402, %v2372
      %v2404 = vadd.f32 %v2403, %v2373
      %v2405 = vadd.f32 %v2404, %v2374
      %v2406 = vadd.f32 %v2405, %v2375
      %v2407 = vadd.f32 %v2406, %v2376
      %v2408 = vadd.f32 %v2407, %v2377
      %v2409 = vrot.slane %v2408, 4
      %v2410 = vadd.f32 %v2408, %v2409
      %v2411 = vrot.slane %v2410, 2
      %v2412 = vadd.f32 %v2410, %v2411
      %v2413 = vrot.slane %v2412, 1
      %v2414 = vadd.f32 %v2412, %v2413
      %vm2415 = vcmask 1040384
      %v2416 = vsel %vm2415, %v2345, %v2414
      %2417 = vst [vmem:[%s235] sm:$0x3] %v2416
      %p2418 = scmp.lt.s32.totalorder %s17, 1
      %s2419 = scalar_select %p2418, %s17, 1
      %s2420 = smul.addr %s2419, 32
      %s2421 = smul.addr %s2420, 8
      %s2422 = scalar_lea.vmem %s4, %s2421
      %p2423 = scmp.lt.s32.totalorder %s17, 1
      %s2424 = scalar_select %p2423, %s17, 1
      %s2425 = smul.addr %s2424, 2
      %s2426 = scalar_lea.vmem %s5, %s2425
      // Predicated region
      $region37: #{irblock_forward.6} parent=35 // pred_check
        %p2427 = pneg %p124
      $region38: #{irblock_forward.6} parent=35 // pred_check_branch
        %2429 = sbr.rel (%p2427) target = $region40
      $region39: #{irblock_forward.6} parent=35 // pred_region
        _
      $region40: #{irblock_forward.6} parent=35 // pred_fallthru
        _
      // Predicated region
      $region41: #{irblock_forward.6} parent=35 // pred_check
        %p2430 = pneg %p150
      $region42: #{irblock_forward.6} parent=35 // pred_check_branch
        %2432 = sbr.rel (%p2430) target = $region44
      $region43: #{irblock_forward.6} parent=35 // pred_region
        _
      $region44: #{irblock_forward.6} parent=35 // pred_fallthru
        _
    $region36: #{irblock_forward.6} parent=5 // pred_fallthru
      _
    %p2433 = scmp.le.s32.totalorder 2, %s12
    // Predicated region
    $region45: #{irblock_forward.6} parent=5 // pred_check
      %p2434 = pneg %p2433
    $region46: #{irblock_forward.6} parent=5 // pred_check_branch
      %2436 = sbr.rel (%p2434) target = $region48
    $region47: #{irblock_forward.6} parent=5 // pred_region
      %s2437 = ssub.s32 %s12, 2
      // Predicated region
      $region49: #{irblock_forward.6} parent=47 // pred_check
        %p2438 = pneg %p130
      $region50: #{irblock_forward.6} parent=47 // pred_check_branch
        %2440 = sbr.rel (%p2438) target = $region52
      $region51: #{irblock_forward.6} parent=47 // pred_region
        %p2441 = scmp.lt.s32.totalorder %s18, 1
        %s2442 = scalar_select %p2441, %s18, 1
        %s2443 = smul.addr %s2442, 32
        %s2444 = smul.addr %s2443, 8
        %s2445 = scalar_lea.vmem %s4, %s2444
      $region52: #{irblock_forward.6} parent=47 // pred_fallthru
        _
      // Predicated region
      $region53: #{irblock_forward.6} parent=47 // pred_check
        %p2446 = pneg %p156
      $region54: #{irblock_forward.6} parent=47 // pred_check_branch
        %2448 = sbr.rel (%p2446) target = $region56
      $region55: #{irblock_forward.6} parent=47 // pred_region
        %p2449 = scmp.lt.s32.totalorder %s18, 1
        %s2450 = scalar_select %p2449, %s18, 1
        %s2451 = smul.addr %s2450, 2
        %s2452 = scalar_lea.vmem %s5, %s2451
      $region56: #{irblock_forward.6} parent=47 // pred_fallthru
        _
    $region48: #{irblock_forward.6} parent=5 // pred_fallthru
      _
  $region6: #{irblock_forward.6} parent=0 // loop_footer
    %s16 = sadd.s32 1, %s12
  $region7: #{irblock_forward.6} parent=0 // loop_footer_branch
    %11 = sbr.rel target = $region3
  $region8: #{irblock_forward.6} parent=0 // loop_exit
    _

</llo_original>
